<compile_context>
chip_gen: v7x
topology: tpu7x:2x2x1
jax: 0.10.0
libtpu: 0.0.40
codegen_flags: <defaults>
</compile_context>

<pallas_src>
import numpy as np
import jax
import jax.numpy as jnp
from jax.experimental import pallas as pl
from jax.experimental.pallas import tpu as pltpu

EPS = 1e-5     # PyTorch BatchNorm2d default eps (inference BN w/ running stats)
CPAD = 128     # channel padding -> lane-dense activations / MXU columns


def _round_up(x, m):
    return ((x + m - 1) // m) * m


def _pick_tm(m):
    # Largest convenient M-tile that divides M (small network -> small M).
    for t in (256, 512, 128, 64, 32, 16, 8):
        if t <= m and m % t == 0:
            return t
    return m


# ----------------------------- Pallas kernels ------------------------------
# All matmuls take bf16 tiles, accumulate in f32 on the MXU, do BN (+residual,
# +ReLU) in f32 on the VPU, and store bf16 lane-dense (Cout padded to 128).

def _mm_bn_relu_kernel(p_ref, w_ref, s_ref, b_ref, o_ref):
    acc = jnp.dot(p_ref[...], w_ref[...], preferred_element_type=jnp.float32)
    y = acc * s_ref[...] + b_ref[...]
    o_ref[...] = jnp.maximum(y, 0.0).astype(o_ref.dtype)


def _mm_bn_kernel(p_ref, w_ref, s_ref, b_ref, o_ref):
    acc = jnp.dot(p_ref[...], w_ref[...], preferred_element_type=jnp.float32)
    o_ref[...] = (acc * s_ref[...] + b_ref[...]).astype(o_ref.dtype)


def _mm_bn_add_relu_kernel(p_ref, w_ref, s_ref, b_ref, r_ref, o_ref):
    acc = jnp.dot(p_ref[...], w_ref[...], preferred_element_type=jnp.float32)
    y = acc * s_ref[...] + b_ref[...] + r_ref[...].astype(jnp.float32)
    o_ref[...] = jnp.maximum(y, 0.0).astype(o_ref.dtype)


def _fc_kernel(x_ref, wt_ref, o_ref):
    # fc weight is pre-normalized (divided by per-class norm) in the wrapper.
    o_ref[...] = jnp.dot(x_ref[...].astype(jnp.float32), wt_ref[...],
                         preferred_element_type=jnp.float32)


def _conv_call(P, Wm, scale, bias, residual, *, relu):
    M, K = P.shape
    CO = Wm.shape[1]
    TM = _pick_tm(M)
    grid = (M // TM,)
    in_specs = [
        pl.BlockSpec((TM, K), lambda i: (i, 0)),
        pl.BlockSpec((K, CO), lambda i: (0, 0)),
        pl.BlockSpec((1, CO), lambda i: (0, 0)),
        pl.BlockSpec((1, CO), lambda i: (0, 0)),
    ]
    args = [P, Wm, scale, bias]
    if residual is not None:
        kernel = _mm_bn_add_relu_kernel
        in_specs.append(pl.BlockSpec((TM, CO), lambda i: (i, 0)))
        args.append(residual)
    elif relu:
        kernel = _mm_bn_relu_kernel
    else:
        kernel = _mm_bn_kernel
    return pl.pallas_call(
        kernel,
        out_shape=jax.ShapeDtypeStruct((M, CO), jnp.bfloat16),
        grid=grid,
        in_specs=in_specs,
        out_specs=pl.BlockSpec((TM, CO), lambda i: (i, 0)),
        compiler_params=pltpu.CompilerParams(
            dimension_semantics=("parallel",)),
    )(*args)


# ------------------------------- glue (JAX) --------------------------------

def conv_bn(x, w, bn, *, stride, pad, residual=None, relu=True):
    """x: NHWC bf16 (channel-padded), w: [KH,KW,Cin,Cout_pad] bf16.
    Conv -> folded BN -> (+residual) -> (ReLU), matmul fused in Pallas."""
    N, H, W, C = x.shape
    KH, KW, Cin, Cout = w.shape
    Ho = (H + 2 * pad - KH) // stride + 1
    Wo = (W + 2 * pad - KW) // stride + 1
    xp = jnp.pad(x, ((0, 0), (pad, pad), (pad, pad), (0, 0))) if pad > 0 else x
    taps = []
    for kh in range(KH):
        for kw in range(KW):
            taps.append(jax.lax.slice(
                xp,
                (0, kh, kw, 0),
                (N, kh + stride * (Ho - 1) + 1, kw + stride * (Wo - 1) + 1, C),
                (1, stride, stride, 1)))      # each: [N, Ho, Wo, C]
    k_raw = KH * KW * C
    k_pad = _round_up(k_raw, 128)
    if k_pad > k_raw:                          # only the stem (49*3=147 -> 256)
        taps.append(jnp.zeros((N, Ho, Wo, k_pad - k_raw), dtype=x.dtype))
    # Single concat on the channel axis (matches the weight reshape ordering),
    # then a free leading-dim merge -- no stack+reshape relayout copy.
    P = jnp.concatenate(taps, axis=-1).reshape(N * Ho * Wo, k_pad)
    P = P.astype(jnp.bfloat16)
    Wm = w.reshape(k_raw, Cout)
    if k_pad > k_raw:
        Wm = jnp.pad(Wm, ((0, k_pad - k_raw), (0, 0)))
    Wm = Wm.astype(jnp.bfloat16)
    scale, bias = bn
    r = residual.reshape(N * Ho * Wo, Cout) if residual is not None else None
    y = _conv_call(P, Wm, scale, bias, r, relu=relu)
    return y.reshape(N, Ho, Wo, Cout)


def maxpool_3x3_s2_p1(x):
    # Trivial VPU work; plain-JAX maximum tree over the 9 strided taps (no
    # [9,M,C] HBM materialization, no kernel launch).
    N, H, W, C = x.shape
    Ho = (H + 2 - 3) // 2 + 1
    Wo = (W + 2 - 3) // 2 + 1
    xp = jnp.pad(x, ((0, 0), (1, 1), (1, 1), (0, 0)),
                 constant_values=-jnp.inf)
    out = None
    for kh in range(3):
        for kw in range(3):
            tap = jax.lax.slice(
                xp, (0, kh, kw, 0),
                (N, kh + 2 * (Ho - 1) + 1, kw + 2 * (Wo - 1) + 1, C),
                (1, 2, 2, 1))
            out = tap if out is None else jnp.maximum(out, tap)
    return out


def resnet_unit_fwd(x, p):
    s = p['stride']
    y = conv_bn(x, p['w1'], p['bn1'], stride=s, pad=1, relu=True)
    if 'wsc' in p:
        sc = conv_bn(x, p['wsc'], p['bnsc'], stride=s, pad=0, relu=False)
    else:
        sc = x
    return conv_bn(y, p['w2'], p['bn2'], stride=1, pad=1, residual=sc)


def resnet_forward(x_nchw, params):
    x = jnp.transpose(x_nchw, (0, 2, 3, 1)).astype(jnp.bfloat16)  # NCHW -> NHWC
    x = conv_bn(x, params['stem_w'], params['stem_bn'], stride=2, pad=3, relu=True)
    x = maxpool_3x3_s2_p1(x)
    for stage in params['stages']:
        for unit in stage:
            x = resnet_unit_fwd(x, unit)
    N = x.shape[0]
    feat = x.reshape(N, -1)   # spatial is 1x1 -> [N, C_pad]; matches torch flatten
    wt = params['fc_wt']      # pre-normalized, zero-padded to [C_pad, 128]
    logits_pad = pl.pallas_call(
        _fc_kernel,
        out_shape=jax.ShapeDtypeStruct((N, wt.shape[1]), jnp.float32),
        in_specs=[pl.BlockSpec(memory_space=pltpu.MemorySpace.VMEM)] * 2,
        out_specs=pl.BlockSpec(memory_space=pltpu.MemorySpace.VMEM),
    )(feat, wt)
    label_output = logits_pad[:, :params['num_class']]
    # linear_closs / relu_closs are defined but unused in the reference forward.
    return ([], label_output)


# ----------------------------- parameter init ------------------------------

def _make_conv(key, cin_real, cout_real, k, cin_pad, cout_pad):
    fan = cin_real * k * k
    w = jax.random.normal(key, (k, k, cin_real, cout_real)) / np.sqrt(fan)
    w = jnp.pad(w, ((0, 0), (0, 0),
                    (0, cin_pad - cin_real), (0, cout_pad - cout_real)))
    return w.astype(jnp.bfloat16)


def _make_bn(key, c_real, c_pad):
    k1, k2, k3, k4 = jax.random.split(key, 4)
    gamma = 1.0 + 0.1 * jax.random.normal(k1, (c_real,))
    beta = 0.1 * jax.random.normal(k2, (c_real,))
    mean = 0.1 * jax.random.normal(k3, (c_real,))
    var = 1.0 + 0.1 * jnp.abs(jax.random.normal(k4, (c_real,)))
    scale = gamma / jnp.sqrt(var + EPS)
    bias = beta - mean * scale
    scale = jnp.pad(scale, (0, c_pad - c_real))   # padded lanes stay exactly 0
    bias = jnp.pad(bias, (0, c_pad - c_real))
    return (scale.reshape(1, c_pad).astype(jnp.float32),
            bias.reshape(1, c_pad).astype(jnp.float32))


def _make_unit(key, cin_real, cout_real, stride, c_pad):
    ks = jax.random.split(key, 6)
    p = {'stride': stride,
         'w1': _make_conv(ks[0], cin_real, cout_real, 3, c_pad, c_pad),
         'bn1': _make_bn(ks[1], cout_real, c_pad),
         'w2': _make_conv(ks[2], cout_real, cout_real, 3, c_pad, c_pad),
         'bn2': _make_bn(ks[3], cout_real, c_pad)}
    if stride != 1 or cin_real != cout_real:
        p['wsc'] = _make_conv(ks[4], cin_real, cout_real, 1, c_pad, c_pad)
        p['bnsc'] = _make_bn(ks[5], cout_real, c_pad)
    return p


def init_params(key, in_channels, out_channels, repeats, num_class, c_pad=CPAD):
    n_units = sum(repeats[2:6])
    keys = jax.random.split(key, 3 + n_units)
    params = {
        'num_class': num_class,
        # Raw image input keeps its 3 channels; K is padded at patch time.
        'stem_w': _make_conv(keys[0], in_channels, out_channels[1], 7,
                             in_channels, c_pad),
        'stem_bn': _make_bn(keys[1], out_channels[1], c_pad),
    }
    stages = []
    cin = out_channels[1]
    kidx = 2
    for stage_idx, stride0 in zip([2, 3, 4, 5], [1, 2, 2, 2]):
        cout = out_channels[stage_idx]
        units = []
        for r in range(repeats[stage_idx]):
            s = stride0 if r == 0 else 1
            ci = cin if r == 0 else cout
            units.append(_make_unit(keys[kidx], ci, cout, s, c_pad))
            kidx += 1
        cin = cout
        stages.append(units)
    params['stages'] = stages
    # fc.weight is [num_class, F] in torch; the reference divides logits by
    # torch.norm(fc.weight, dim=1) -- hoist: pre-divide rows by their norm,
    # store transposed [F, num_class] and zero-pad to [c_pad, 128] lane-dense.
    F = out_channels[5]
    fw = jax.random.normal(keys[kidx], (num_class, F)) / np.sqrt(F)
    norms = jnp.sqrt(jnp.sum(fw * fw, axis=1, keepdims=True))
    fwn = (fw / norms).T                                   # [F, num_class]
    nc_pad = _round_up(num_class, 128)
    fwn = jnp.pad(fwn, ((0, c_pad - F), (0, nc_pad - num_class)))
    params['fc_wt'] = fwn.astype(jnp.float32)
    return params


# ---------------------------------- main -----------------------------------

if __name__ == "__main__":
    in_channels = 3
    out_channels = [0, 8, 16, 32, 64, 128]   # indices 1..5 used, small widths
    repeats = [0, 0, 2, 2, 2, 2]             # indices 2..5 used
    num_class = 10

    key = jax.random.PRNGKey(0)
    pkey, xkey = jax.random.split(key)
    params = init_params(pkey, in_channels, out_channels, repeats, num_class)

    # 32x32 input -> total stride 32 -> 1x1 spatial before flatten, as the
    # reference's reshape + Linear(out_channels[5], num_class) requires.
    x = jax.random.normal(xkey, (2, in_channels, 32, 32), dtype=jnp.float32)

    fwd = jax.jit(lambda inp: resnet_forward(inp, params))
    empty_list, label_output = fwd(x)
    jax.block_until_ready(label_output)
    assert label_output.shape == (2, num_class)
    assert label_output.dtype == jnp.float32
    print("KERNEL_OK")
</pallas_src>

<mosaic_0001>
module attributes {stable_mosaic.version = 11 : i64} {
  func.func @_mm_bn_relu_kernel(%arg0: i32, %arg1: memref<256x256xbf16, #tpu.memory_space<vmem>>, %arg2: memref<256x128xbf16, #tpu.memory_space<vmem>>, %arg3: memref<1x128xf32, #tpu.memory_space<vmem>>, %arg4: memref<1x128xf32, #tpu.memory_space<vmem>>, %arg5: memref<256x128xbf16, #tpu.memory_space<vmem>>) attributes {dimension_semantics = [#tpu.dimension_semantics<parallel>], iteration_bounds = array<i64: 2>, scalar_prefetch = 0 : i64, scratch_operands = 0 : i64, tpu.core_type = #tpu.core_type<tc>, window_params = [{transform_indices = @transform_0, window_bounds = array<i64: 256, 256>}, {pipeline_mode = #tpu.pipeline_mode<synchronous>, transform_indices = @transform_1, window_bounds = array<i64: 256, 128>}, {pipeline_mode = #tpu.pipeline_mode<synchronous>, transform_indices = @transform_2, window_bounds = array<i64: 1, 128>}, {pipeline_mode = #tpu.pipeline_mode<synchronous>, transform_indices = @transform_3, window_bounds = array<i64: 1, 128>}, {transform_indices = @transform_4, window_bounds = array<i64: 256, 128>}]} {
    %c0 = arith.constant 0 : index
    %c0_0 = arith.constant 0 : index
    %0 = vector.load %arg1[%c0, %c0_0] : memref<256x256xbf16, #tpu.memory_space<vmem>>, vector<256x256xbf16>
    %c0_1 = arith.constant 0 : index
    %c0_2 = arith.constant 0 : index
    %1 = vector.load %arg2[%c0_1, %c0_2] : memref<256x128xbf16, #tpu.memory_space<vmem>>, vector<256x128xbf16>
    %cst = arith.constant dense<0.000000e+00> : vector<256x128xf32>
    %2 = tpu.matmul %0, %1, %cst {dimension_numbers = #tpu.dot_dimension_numbers<[1], [0], [0], [1], [0, 0, 1, 1], [], []>} : vector<256x256xbf16>, vector<256x128xbf16>, vector<256x128xf32> -> vector<256x128xf32>
    %c0_3 = arith.constant 0 : index
    %c0_4 = arith.constant 0 : index
    %3 = vector.load %arg3[%c0_3, %c0_4] : memref<1x128xf32, #tpu.memory_space<vmem>>, vector<1x128xf32>
    %4 = vector.broadcast %3 : vector<1x128xf32> to vector<256x128xf32>
    %5 = arith.mulf %2, %4 : vector<256x128xf32>
    %c0_5 = arith.constant 0 : index
    %c0_6 = arith.constant 0 : index
    %6 = vector.load %arg4[%c0_5, %c0_6] : memref<1x128xf32, #tpu.memory_space<vmem>>, vector<1x128xf32>
    %7 = vector.broadcast %6 : vector<1x128xf32> to vector<256x128xf32>
    %8 = arith.addf %5, %7 : vector<256x128xf32>
    %cst_7 = arith.constant 0.000000e+00 : f32
    %9 = vector.broadcast %cst_7 : f32 to vector<256x128xf32>
    %10 = arith.maximumf %8, %9 : vector<256x128xf32>
    %11 = arith.truncf %10 : vector<256x128xf32> to vector<256x128xbf16>
    %c0_8 = arith.constant 0 : index
    %c0_9 = arith.constant 0 : index
    %12 = vector.load %arg5[%c0_8, %c0_9] : memref<256x128xbf16, #tpu.memory_space<vmem>>, vector<256x128xbf16>
    tpu.vector_store %arg5[%c0_8, %c0_9], %11 {strides = array<i32>} : memref<256x128xbf16, #tpu.memory_space<vmem>>, vector<256x128xbf16>,
    return
  }
  func.func @transform_0(%arg0: i32) -> (i32, i32) {
    %c0_i32 = arith.constant 0 : i32
    %c0_i32_0 = arith.constant 0 : i32
    return %arg0, %c0_i32 : i32, i32
  }
  func.func @transform_1(%arg0: i32) -> (i32, i32) {
    %c0_i32 = arith.constant 0 : i32
    %c0_i32_0 = arith.constant 0 : i32
    %c0_i32_1 = arith.constant 0 : i32
    return %c0_i32, %c0_i32_0 : i32, i32
  }
  func.func @transform_2(%arg0: i32) -> (i32, i32) {
    %c0_i32 = arith.constant 0 : i32
    %c0_i32_0 = arith.constant 0 : i32
    %c0_i32_1 = arith.constant 0 : i32
    return %c0_i32, %c0_i32_0 : i32, i32
  }
  func.func @transform_3(%arg0: i32) -> (i32, i32) {
    %c0_i32 = arith.constant 0 : i32
    %c0_i32_0 = arith.constant 0 : i32
    %c0_i32_1 = arith.constant 0 : i32
    return %c0_i32, %c0_i32_0 : i32, i32
  }
  func.func @transform_4(%arg0: i32) -> (i32, i32) {
    %c0_i32 = arith.constant 0 : i32
    %c0_i32_0 = arith.constant 0 : i32
    return %arg0, %c0_i32 : i32, i32
  }
}

module attributes {stable_mosaic.version = 11 : i64} {
  func.func @_mm_bn_relu_kernel(%arg0: i32, %arg1: memref<128x1152xbf16, #tpu.memory_space<vmem>>, %arg2: memref<1152x128xbf16, #tpu.memory_space<vmem>>, %arg3: memref<1x128xf32, #tpu.memory_space<vmem>>, %arg4: memref<1x128xf32, #tpu.memory_space<vmem>>, %arg5: memref<128x128xbf16, #tpu.memory_space<vmem>>) attributes {dimension_semantics = [#tpu.dimension_semantics<parallel>], iteration_bounds = array<i64: 1>, scalar_prefetch = 0 : i64, scratch_operands = 0 : i64, tpu.core_type = #tpu.core_type<tc>, window_params = [{transform_indices = @transform_0, window_bounds = array<i64: 128, 1152>}, {pipeline_mode = #tpu.pipeline_mode<synchronous>, transform_indices = @transform_1, window_bounds = array<i64: 1152, 128>}, {pipeline_mode = #tpu.pipeline_mode<synchronous>, transform_indices = @transform_2, window_bounds = array<i64: 1, 128>}, {pipeline_mode = #tpu.pipeline_mode<synchronous>, transform_indices = @transform_3, window_bounds = array<i64: 1, 128>}, {transform_indices = @transform_4, window_bounds = array<i64: 128, 128>}]} {
    %c0 = arith.constant 0 : index
    %c0_0 = arith.constant 0 : index
    %0 = vector.load %arg1[%c0, %c0_0] : memref<128x1152xbf16, #tpu.memory_space<vmem>>, vector<128x1152xbf16>
    %c0_1 = arith.constant 0 : index
    %c0_2 = arith.constant 0 : index
    %1 = vector.load %arg2[%c0_1, %c0_2] : memref<1152x128xbf16, #tpu.memory_space<vmem>>, vector<1152x128xbf16>
    %cst = arith.constant dense<0.000000e+00> : vector<128x128xf32>
    %2 = tpu.matmul %0, %1, %cst {dimension_numbers = #tpu.dot_dimension_numbers<[1], [0], [0], [1], [0, 0, 1, 1], [], []>} : vector<128x1152xbf16>, vector<1152x128xbf16>, vector<128x128xf32> -> vector<128x128xf32>
    %c0_3 = arith.constant 0 : index
    %c0_4 = arith.constant 0 : index
    %3 = vector.load %arg3[%c0_3, %c0_4] : memref<1x128xf32, #tpu.memory_space<vmem>>, vector<1x128xf32>
    %4 = vector.broadcast %3 : vector<1x128xf32> to vector<128x128xf32>
    %5 = arith.mulf %2, %4 : vector<128x128xf32>
    %c0_5 = arith.constant 0 : index
    %c0_6 = arith.constant 0 : index
    %6 = vector.load %arg4[%c0_5, %c0_6] : memref<1x128xf32, #tpu.memory_space<vmem>>, vector<1x128xf32>
    %7 = vector.broadcast %6 : vector<1x128xf32> to vector<128x128xf32>
    %8 = arith.addf %5, %7 : vector<128x128xf32>
    %cst_7 = arith.constant 0.000000e+00 : f32
    %9 = vector.broadcast %cst_7 : f32 to vector<128x128xf32>
    %10 = arith.maximumf %8, %9 : vector<128x128xf32>
    %11 = arith.truncf %10 : vector<128x128xf32> to vector<128x128xbf16>
    %c0_8 = arith.constant 0 : index
    %c0_9 = arith.constant 0 : index
    %12 = vector.load %arg5[%c0_8, %c0_9] : memref<128x128xbf16, #tpu.memory_space<vmem>>, vector<128x128xbf16>
    tpu.vector_store %arg5[%c0_8, %c0_9], %11 {strides = array<i32>} : memref<128x128xbf16, #tpu.memory_space<vmem>>, vector<128x128xbf16>,
    return
  }
  func.func @transform_0(%arg0: i32) -> (i32, i32) {
    %c0_i32 = arith.constant 0 : i32
    %c0_i32_0 = arith.constant 0 : i32
    return %arg0, %c0_i32 : i32, i32
  }
  func.func @transform_1(%arg0: i32) -> (i32, i32) {
    %c0_i32 = arith.constant 0 : i32
    %c0_i32_0 = arith.constant 0 : i32
    %c0_i32_1 = arith.constant 0 : i32
    return %c0_i32, %c0_i32_0 : i32, i32
  }
  func.func @transform_2(%arg0: i32) -> (i32, i32) {
    %c0_i32 = arith.constant 0 : i32
    %c0_i32_0 = arith.constant 0 : i32
    %c0_i32_1 = arith.constant 0 : i32
    return %c0_i32, %c0_i32_0 : i32, i32
  }
  func.func @transform_3(%arg0: i32) -> (i32, i32) {
    %c0_i32 = arith.constant 0 : i32
    %c0_i32_0 = arith.constant 0 : i32
    %c0_i32_1 = arith.constant 0 : i32
    return %c0_i32, %c0_i32_0 : i32, i32
  }
  func.func @transform_4(%arg0: i32) -> (i32, i32) {
    %c0_i32 = arith.constant 0 : i32
    %c0_i32_0 = arith.constant 0 : i32
    return %arg0, %c0_i32 : i32, i32
  }
}

module attributes {stable_mosaic.version = 11 : i64} {
  func.func @_mm_bn_kernel(%arg0: i32, %arg1: memref<128x128xbf16, #tpu.memory_space<vmem>>, %arg2: memref<128x128xbf16, #tpu.memory_space<vmem>>, %arg3: memref<1x128xf32, #tpu.memory_space<vmem>>, %arg4: memref<1x128xf32, #tpu.memory_space<vmem>>, %arg5: memref<128x128xbf16, #tpu.memory_space<vmem>>) attributes {dimension_semantics = [#tpu.dimension_semantics<parallel>], iteration_bounds = array<i64: 1>, scalar_prefetch = 0 : i64, scratch_operands = 0 : i64, tpu.core_type = #tpu.core_type<tc>, window_params = [{transform_indices = @transform_0, window_bounds = array<i64: 128, 128>}, {pipeline_mode = #tpu.pipeline_mode<synchronous>, transform_indices = @transform_1, window_bounds = array<i64: 128, 128>}, {pipeline_mode = #tpu.pipeline_mode<synchronous>, transform_indices = @transform_2, window_bounds = array<i64: 1, 128>}, {pipeline_mode = #tpu.pipeline_mode<synchronous>, transform_indices = @transform_3, window_bounds = array<i64: 1, 128>}, {transform_indices = @transform_4, window_bounds = array<i64: 128, 128>}]} {
    %c0 = arith.constant 0 : index
    %c0_0 = arith.constant 0 : index
    %0 = vector.load %arg1[%c0, %c0_0] : memref<128x128xbf16, #tpu.memory_space<vmem>>, vector<128x128xbf16>
    %c0_1 = arith.constant 0 : index
    %c0_2 = arith.constant 0 : index
    %1 = vector.load %arg2[%c0_1, %c0_2] : memref<128x128xbf16, #tpu.memory_space<vmem>>, vector<128x128xbf16>
    %cst = arith.constant dense<0.000000e+00> : vector<128x128xf32>
    %2 = tpu.matmul %0, %1, %cst {dimension_numbers = #tpu.dot_dimension_numbers<[1], [0], [0], [1], [0, 0, 1, 1], [], []>} : vector<128x128xbf16>, vector<128x128xbf16>, vector<128x128xf32> -> vector<128x128xf32>
    %c0_3 = arith.constant 0 : index
    %c0_4 = arith.constant 0 : index
    %3 = vector.load %arg3[%c0_3, %c0_4] : memref<1x128xf32, #tpu.memory_space<vmem>>, vector<1x128xf32>
    %4 = vector.broadcast %3 : vector<1x128xf32> to vector<128x128xf32>
    %5 = arith.mulf %2, %4 : vector<128x128xf32>
    %c0_5 = arith.constant 0 : index
    %c0_6 = arith.constant 0 : index
    %6 = vector.load %arg4[%c0_5, %c0_6] : memref<1x128xf32, #tpu.memory_space<vmem>>, vector<1x128xf32>
    %7 = vector.broadcast %6 : vector<1x128xf32> to vector<128x128xf32>
    %8 = arith.addf %5, %7 : vector<128x128xf32>
    %9 = arith.truncf %8 : vector<128x128xf32> to vector<128x128xbf16>
    %c0_7 = arith.constant 0 : index
    %c0_8 = arith.constant 0 : index
    %10 = vector.load %arg5[%c0_7, %c0_8] : memref<128x128xbf16, #tpu.memory_space<vmem>>, vector<128x128xbf16>
    tpu.vector_store %arg5[%c0_7, %c0_8], %9 {strides = array<i32>} : memref<128x128xbf16, #tpu.memory_space<vmem>>, vector<128x128xbf16>,
    return
  }
  func.func @transform_0(%arg0: i32) -> (i32, i32) {
    %c0_i32 = arith.constant 0 : i32
    %c0_i32_0 = arith.constant 0 : i32
    return %arg0, %c0_i32 : i32, i32
  }
  func.func @transform_1(%arg0: i32) -> (i32, i32) {
    %c0_i32 = arith.constant 0 : i32
    %c0_i32_0 = arith.constant 0 : i32
    %c0_i32_1 = arith.constant 0 : i32
    return %c0_i32, %c0_i32_0 : i32, i32
  }
  func.func @transform_2(%arg0: i32) -> (i32, i32) {
    %c0_i32 = arith.constant 0 : i32
    %c0_i32_0 = arith.constant 0 : i32
    %c0_i32_1 = arith.constant 0 : i32
    return %c0_i32, %c0_i32_0 : i32, i32
  }
  func.func @transform_3(%arg0: i32) -> (i32, i32) {
    %c0_i32 = arith.constant 0 : i32
    %c0_i32_0 = arith.constant 0 : i32
    %c0_i32_1 = arith.constant 0 : i32
    return %c0_i32, %c0_i32_0 : i32, i32
  }
  func.func @transform_4(%arg0: i32) -> (i32, i32) {
    %c0_i32 = arith.constant 0 : i32
    %c0_i32_0 = arith.constant 0 : i32
    return %arg0, %c0_i32 : i32, i32
  }
}

module attributes {stable_mosaic.version = 11 : i64} {
  func.func @_mm_bn_add_relu_kernel(%arg0: i32, %arg1: memref<128x1152xbf16, #tpu.memory_space<vmem>>, %arg2: memref<1152x128xbf16, #tpu.memory_space<vmem>>, %arg3: memref<1x128xf32, #tpu.memory_space<vmem>>, %arg4: memref<1x128xf32, #tpu.memory_space<vmem>>, %arg5: memref<128x128xbf16, #tpu.memory_space<vmem>>, %arg6: memref<128x128xbf16, #tpu.memory_space<vmem>>) attributes {dimension_semantics = [#tpu.dimension_semantics<parallel>], iteration_bounds = array<i64: 1>, scalar_prefetch = 0 : i64, scratch_operands = 0 : i64, tpu.core_type = #tpu.core_type<tc>, window_params = [{transform_indices = @transform_0, window_bounds = array<i64: 128, 1152>}, {pipeline_mode = #tpu.pipeline_mode<synchronous>, transform_indices = @transform_1, window_bounds = array<i64: 1152, 128>}, {pipeline_mode = #tpu.pipeline_mode<synchronous>, transform_indices = @transform_2, window_bounds = array<i64: 1, 128>}, {pipeline_mode = #tpu.pipeline_mode<synchronous>, transform_indices = @transform_3, window_bounds = array<i64: 1, 128>}, {transform_indices = @transform_4, window_bounds = array<i64: 128, 128>}, {transform_indices = @transform_5, window_bounds = array<i64: 128, 128>}]} {
    %c0 = arith.constant 0 : index
    %c0_0 = arith.constant 0 : index
    %0 = vector.load %arg1[%c0, %c0_0] : memref<128x1152xbf16, #tpu.memory_space<vmem>>, vector<128x1152xbf16>
    %c0_1 = arith.constant 0 : index
    %c0_2 = arith.constant 0 : index
    %1 = vector.load %arg2[%c0_1, %c0_2] : memref<1152x128xbf16, #tpu.memory_space<vmem>>, vector<1152x128xbf16>
    %cst = arith.constant dense<0.000000e+00> : vector<128x128xf32>
    %2 = tpu.matmul %0, %1, %cst {dimension_numbers = #tpu.dot_dimension_numbers<[1], [0], [0], [1], [0, 0, 1, 1], [], []>} : vector<128x1152xbf16>, vector<1152x128xbf16>, vector<128x128xf32> -> vector<128x128xf32>
    %c0_3 = arith.constant 0 : index
    %c0_4 = arith.constant 0 : index
    %3 = vector.load %arg3[%c0_3, %c0_4] : memref<1x128xf32, #tpu.memory_space<vmem>>, vector<1x128xf32>
    %4 = vector.broadcast %3 : vector<1x128xf32> to vector<128x128xf32>
    %5 = arith.mulf %2, %4 : vector<128x128xf32>
    %c0_5 = arith.constant 0 : index
    %c0_6 = arith.constant 0 : index
    %6 = vector.load %arg4[%c0_5, %c0_6] : memref<1x128xf32, #tpu.memory_space<vmem>>, vector<1x128xf32>
    %7 = vector.broadcast %6 : vector<1x128xf32> to vector<128x128xf32>
    %8 = arith.addf %5, %7 : vector<128x128xf32>
    %c0_7 = arith.constant 0 : index
    %c0_8 = arith.constant 0 : index
    %9 = vector.load %arg5[%c0_7, %c0_8] : memref<128x128xbf16, #tpu.memory_space<vmem>>, vector<128x128xbf16>
    %10 = arith.extf %9 : vector<128x128xbf16> to vector<128x128xf32>
    %11 = arith.addf %8, %10 : vector<128x128xf32>
    %cst_9 = arith.constant 0.000000e+00 : f32
    %12 = vector.broadcast %cst_9 : f32 to vector<128x128xf32>
    %13 = arith.maximumf %11, %12 : vector<128x128xf32>
    %14 = arith.truncf %13 : vector<128x128xf32> to vector<128x128xbf16>
    %c0_10 = arith.constant 0 : index
    %c0_11 = arith.constant 0 : index
    %15 = vector.load %arg6[%c0_10, %c0_11] : memref<128x128xbf16, #tpu.memory_space<vmem>>, vector<128x128xbf16>
    tpu.vector_store %arg6[%c0_10, %c0_11], %14 {strides = array<i32>} : memref<128x128xbf16, #tpu.memory_space<vmem>>, vector<128x128xbf16>,
    return
  }
  func.func @transform_0(%arg0: i32) -> (i32, i32) {
    %c0_i32 = arith.constant 0 : i32
    %c0_i32_0 = arith.constant 0 : i32
    return %arg0, %c0_i32 : i32, i32
  }
  func.func @transform_1(%arg0: i32) -> (i32, i32) {
    %c0_i32 = arith.constant 0 : i32
    %c0_i32_0 = arith.constant 0 : i32
    %c0_i32_1 = arith.constant 0 : i32
    return %c0_i32, %c0_i32_0 : i32, i32
  }
  func.func @transform_2(%arg0: i32) -> (i32, i32) {
    %c0_i32 = arith.constant 0 : i32
    %c0_i32_0 = arith.constant 0 : i32
    %c0_i32_1 = arith.constant 0 : i32
    return %c0_i32, %c0_i32_0 : i32, i32
  }
  func.func @transform_3(%arg0: i32) -> (i32, i32) {
    %c0_i32 = arith.constant 0 : i32
    %c0_i32_0 = arith.constant 0 : i32
    %c0_i32_1 = arith.constant 0 : i32
    return %c0_i32, %c0_i32_0 : i32, i32
  }
  func.func @transform_4(%arg0: i32) -> (i32, i32) {
    %c0_i32 = arith.constant 0 : i32
    %c0_i32_0 = arith.constant 0 : i32
    return %arg0, %c0_i32 : i32, i32
  }
  func.func @transform_5(%arg0: i32) -> (i32, i32) {
    %c0_i32 = arith.constant 0 : i32
    %c0_i32_0 = arith.constant 0 : i32
    return %arg0, %c0_i32 : i32, i32
  }
}

module attributes {stable_mosaic.version = 11 : i64} {
  func.func @_mm_bn_relu_kernel(%arg0: i32, %arg1: memref<32x1152xbf16, #tpu.memory_space<vmem>>, %arg2: memref<1152x128xbf16, #tpu.memory_space<vmem>>, %arg3: memref<1x128xf32, #tpu.memory_space<vmem>>, %arg4: memref<1x128xf32, #tpu.memory_space<vmem>>, %arg5: memref<32x128xbf16, #tpu.memory_space<vmem>>) attributes {dimension_semantics = [#tpu.dimension_semantics<parallel>], iteration_bounds = array<i64: 1>, scalar_prefetch = 0 : i64, scratch_operands = 0 : i64, tpu.core_type = #tpu.core_type<tc>, window_params = [{transform_indices = @transform_0, window_bounds = array<i64: 32, 1152>}, {pipeline_mode = #tpu.pipeline_mode<synchronous>, transform_indices = @transform_1, window_bounds = array<i64: 1152, 128>}, {pipeline_mode = #tpu.pipeline_mode<synchronous>, transform_indices = @transform_2, window_bounds = array<i64: 1, 128>}, {pipeline_mode = #tpu.pipeline_mode<synchronous>, transform_indices = @transform_3, window_bounds = array<i64: 1, 128>}, {transform_indices = @transform_4, window_bounds = array<i64: 32, 128>}]} {
    %c0 = arith.constant 0 : index
    %c0_0 = arith.constant 0 : index
    %0 = vector.load %arg1[%c0, %c0_0] : memref<32x1152xbf16, #tpu.memory_space<vmem>>, vector<32x1152xbf16>
    %c0_1 = arith.constant 0 : index
    %c0_2 = arith.constant 0 : index
    %1 = vector.load %arg2[%c0_1, %c0_2] : memref<1152x128xbf16, #tpu.memory_space<vmem>>, vector<1152x128xbf16>
    %cst = arith.constant dense<0.000000e+00> : vector<32x128xf32>
    %2 = tpu.matmul %0, %1, %cst {dimension_numbers = #tpu.dot_dimension_numbers<[1], [0], [0], [1], [0, 0, 1, 1], [], []>} : vector<32x1152xbf16>, vector<1152x128xbf16>, vector<32x128xf32> -> vector<32x128xf32>
    %c0_3 = arith.constant 0 : index
    %c0_4 = arith.constant 0 : index
    %3 = vector.load %arg3[%c0_3, %c0_4] : memref<1x128xf32, #tpu.memory_space<vmem>>, vector<1x128xf32>
    %4 = vector.broadcast %3 : vector<1x128xf32> to vector<32x128xf32>
    %5 = arith.mulf %2, %4 : vector<32x128xf32>
    %c0_5 = arith.constant 0 : index
    %c0_6 = arith.constant 0 : index
    %6 = vector.load %arg4[%c0_5, %c0_6] : memref<1x128xf32, #tpu.memory_space<vmem>>, vector<1x128xf32>
    %7 = vector.broadcast %6 : vector<1x128xf32> to vector<32x128xf32>
    %8 = arith.addf %5, %7 : vector<32x128xf32>
    %cst_7 = arith.constant 0.000000e+00 : f32
    %9 = vector.broadcast %cst_7 : f32 to vector<32x128xf32>
    %10 = arith.maximumf %8, %9 : vector<32x128xf32>
    %11 = arith.truncf %10 : vector<32x128xf32> to vector<32x128xbf16>
    %c0_8 = arith.constant 0 : index
    %c0_9 = arith.constant 0 : index
    %12 = vector.load %arg5[%c0_8, %c0_9] : memref<32x128xbf16, #tpu.memory_space<vmem>>, vector<32x128xbf16>
    tpu.vector_store %arg5[%c0_8, %c0_9], %11 {strides = array<i32>} : memref<32x128xbf16, #tpu.memory_space<vmem>>, vector<32x128xbf16>,
    return
  }
  func.func @transform_0(%arg0: i32) -> (i32, i32) {
    %c0_i32 = arith.constant 0 : i32
    %c0_i32_0 = arith.constant 0 : i32
    return %arg0, %c0_i32 : i32, i32
  }
  func.func @transform_1(%arg0: i32) -> (i32, i32) {
    %c0_i32 = arith.constant 0 : i32
    %c0_i32_0 = arith.constant 0 : i32
    %c0_i32_1 = arith.constant 0 : i32
    return %c0_i32, %c0_i32_0 : i32, i32
  }
  func.func @transform_2(%arg0: i32) -> (i32, i32) {
    %c0_i32 = arith.constant 0 : i32
    %c0_i32_0 = arith.constant 0 : i32
    %c0_i32_1 = arith.constant 0 : i32
    return %c0_i32, %c0_i32_0 : i32, i32
  }
  func.func @transform_3(%arg0: i32) -> (i32, i32) {
    %c0_i32 = arith.constant 0 : i32
    %c0_i32_0 = arith.constant 0 : i32
    %c0_i32_1 = arith.constant 0 : i32
    return %c0_i32, %c0_i32_0 : i32, i32
  }
  func.func @transform_4(%arg0: i32) -> (i32, i32) {
    %c0_i32 = arith.constant 0 : i32
    %c0_i32_0 = arith.constant 0 : i32
    return %arg0, %c0_i32 : i32, i32
  }
}

module attributes {stable_mosaic.version = 11 : i64} {
  func.func @_mm_bn_add_relu_kernel(%arg0: i32, %arg1: memref<32x1152xbf16, #tpu.memory_space<vmem>>, %arg2: memref<1152x128xbf16, #tpu.memory_space<vmem>>, %arg3: memref<1x128xf32, #tpu.memory_space<vmem>>, %arg4: memref<1x128xf32, #tpu.memory_space<vmem>>, %arg5: memref<32x128xbf16, #tpu.memory_space<vmem>>, %arg6: memref<32x128xbf16, #tpu.memory_space<vmem>>) attributes {dimension_semantics = [#tpu.dimension_semantics<parallel>], iteration_bounds = array<i64: 1>, scalar_prefetch = 0 : i64, scratch_operands = 0 : i64, tpu.core_type = #tpu.core_type<tc>, window_params = [{transform_indices = @transform_0, window_bounds = array<i64: 32, 1152>}, {pipeline_mode = #tpu.pipeline_mode<synchronous>, transform_indices = @transform_1, window_bounds = array<i64: 1152, 128>}, {pipeline_mode = #tpu.pipeline_mode<synchronous>, transform_indices = @transform_2, window_bounds = array<i64: 1, 128>}, {pipeline_mode = #tpu.pipeline_mode<synchronous>, transform_indices = @transform_3, window_bounds = array<i64: 1, 128>}, {transform_indices = @transform_4, window_bounds = array<i64: 32, 128>}, {transform_indices = @transform_5, window_bounds = array<i64: 32, 128>}]} {
    %c0 = arith.constant 0 : index
    %c0_0 = arith.constant 0 : index
    %0 = vector.load %arg1[%c0, %c0_0] : memref<32x1152xbf16, #tpu.memory_space<vmem>>, vector<32x1152xbf16>
    %c0_1 = arith.constant 0 : index
    %c0_2 = arith.constant 0 : index
    %1 = vector.load %arg2[%c0_1, %c0_2] : memref<1152x128xbf16, #tpu.memory_space<vmem>>, vector<1152x128xbf16>
    %cst = arith.constant dense<0.000000e+00> : vector<32x128xf32>
    %2 = tpu.matmul %0, %1, %cst {dimension_numbers = #tpu.dot_dimension_numbers<[1], [0], [0], [1], [0, 0, 1, 1], [], []>} : vector<32x1152xbf16>, vector<1152x128xbf16>, vector<32x128xf32> -> vector<32x128xf32>
    %c0_3 = arith.constant 0 : index
    %c0_4 = arith.constant 0 : index
    %3 = vector.load %arg3[%c0_3, %c0_4] : memref<1x128xf32, #tpu.memory_space<vmem>>, vector<1x128xf32>
    %4 = vector.broadcast %3 : vector<1x128xf32> to vector<32x128xf32>
    %5 = arith.mulf %2, %4 : vector<32x128xf32>
    %c0_5 = arith.constant 0 : index
    %c0_6 = arith.constant 0 : index
    %6 = vector.load %arg4[%c0_5, %c0_6] : memref<1x128xf32, #tpu.memory_space<vmem>>, vector<1x128xf32>
    %7 = vector.broadcast %6 : vector<1x128xf32> to vector<32x128xf32>
    %8 = arith.addf %5, %7 : vector<32x128xf32>
    %c0_7 = arith.constant 0 : index
    %c0_8 = arith.constant 0 : index
    %9 = vector.load %arg5[%c0_7, %c0_8] : memref<32x128xbf16, #tpu.memory_space<vmem>>, vector<32x128xbf16>
    %10 = arith.extf %9 : vector<32x128xbf16> to vector<32x128xf32>
    %11 = arith.addf %8, %10 : vector<32x128xf32>
    %cst_9 = arith.constant 0.000000e+00 : f32
    %12 = vector.broadcast %cst_9 : f32 to vector<32x128xf32>
    %13 = arith.maximumf %11, %12 : vector<32x128xf32>
    %14 = arith.truncf %13 : vector<32x128xf32> to vector<32x128xbf16>
    %c0_10 = arith.constant 0 : index
    %c0_11 = arith.constant 0 : index
    %15 = vector.load %arg6[%c0_10, %c0_11] : memref<32x128xbf16, #tpu.memory_space<vmem>>, vector<32x128xbf16>
    tpu.vector_store %arg6[%c0_10, %c0_11], %14 {strides = array<i32>} : memref<32x128xbf16, #tpu.memory_space<vmem>>, vector<32x128xbf16>,
    return
  }
  func.func @transform_0(%arg0: i32) -> (i32, i32) {
    %c0_i32 = arith.constant 0 : i32
    %c0_i32_0 = arith.constant 0 : i32
    return %arg0, %c0_i32 : i32, i32
  }
  func.func @transform_1(%arg0: i32) -> (i32, i32) {
    %c0_i32 = arith.constant 0 : i32
    %c0_i32_0 = arith.constant 0 : i32
    %c0_i32_1 = arith.constant 0 : i32
    return %c0_i32, %c0_i32_0 : i32, i32
  }
  func.func @transform_2(%arg0: i32) -> (i32, i32) {
    %c0_i32 = arith.constant 0 : i32
    %c0_i32_0 = arith.constant 0 : i32
    %c0_i32_1 = arith.constant 0 : i32
    return %c0_i32, %c0_i32_0 : i32, i32
  }
  func.func @transform_3(%arg0: i32) -> (i32, i32) {
    %c0_i32 = arith.constant 0 : i32
    %c0_i32_0 = arith.constant 0 : i32
    %c0_i32_1 = arith.constant 0 : i32
    return %c0_i32, %c0_i32_0 : i32, i32
  }
  func.func @transform_4(%arg0: i32) -> (i32, i32) {
    %c0_i32 = arith.constant 0 : i32
    %c0_i32_0 = arith.constant 0 : i32
    return %arg0, %c0_i32 : i32, i32
  }
  func.func @transform_5(%arg0: i32) -> (i32, i32) {
    %c0_i32 = arith.constant 0 : i32
    %c0_i32_0 = arith.constant 0 : i32
    return %arg0, %c0_i32 : i32, i32
  }
}

module attributes {stable_mosaic.version = 11 : i64} {
  func.func @_mm_bn_kernel(%arg0: i32, %arg1: memref<32x128xbf16, #tpu.memory_space<vmem>>, %arg2: memref<128x128xbf16, #tpu.memory_space<vmem>>, %arg3: memref<1x128xf32, #tpu.memory_space<vmem>>, %arg4: memref<1x128xf32, #tpu.memory_space<vmem>>, %arg5: memref<32x128xbf16, #tpu.memory_space<vmem>>) attributes {dimension_semantics = [#tpu.dimension_semantics<parallel>], iteration_bounds = array<i64: 1>, scalar_prefetch = 0 : i64, scratch_operands = 0 : i64, tpu.core_type = #tpu.core_type<tc>, window_params = [{transform_indices = @transform_0, window_bounds = array<i64: 32, 128>}, {pipeline_mode = #tpu.pipeline_mode<synchronous>, transform_indices = @transform_1, window_bounds = array<i64: 128, 128>}, {pipeline_mode = #tpu.pipeline_mode<synchronous>, transform_indices = @transform_2, window_bounds = array<i64: 1, 128>}, {pipeline_mode = #tpu.pipeline_mode<synchronous>, transform_indices = @transform_3, window_bounds = array<i64: 1, 128>}, {transform_indices = @transform_4, window_bounds = array<i64: 32, 128>}]} {
    %c0 = arith.constant 0 : index
    %c0_0 = arith.constant 0 : index
    %0 = vector.load %arg1[%c0, %c0_0] : memref<32x128xbf16, #tpu.memory_space<vmem>>, vector<32x128xbf16>
    %c0_1 = arith.constant 0 : index
    %c0_2 = arith.constant 0 : index
    %1 = vector.load %arg2[%c0_1, %c0_2] : memref<128x128xbf16, #tpu.memory_space<vmem>>, vector<128x128xbf16>
    %cst = arith.constant dense<0.000000e+00> : vector<32x128xf32>
    %2 = tpu.matmul %0, %1, %cst {dimension_numbers = #tpu.dot_dimension_numbers<[1], [0], [0], [1], [0, 0, 1, 1], [], []>} : vector<32x128xbf16>, vector<128x128xbf16>, vector<32x128xf32> -> vector<32x128xf32>
    %c0_3 = arith.constant 0 : index
    %c0_4 = arith.constant 0 : index
    %3 = vector.load %arg3[%c0_3, %c0_4] : memref<1x128xf32, #tpu.memory_space<vmem>>, vector<1x128xf32>
    %4 = vector.broadcast %3 : vector<1x128xf32> to vector<32x128xf32>
    %5 = arith.mulf %2, %4 : vector<32x128xf32>
    %c0_5 = arith.constant 0 : index
    %c0_6 = arith.constant 0 : index
    %6 = vector.load %arg4[%c0_5, %c0_6] : memref<1x128xf32, #tpu.memory_space<vmem>>, vector<1x128xf32>
    %7 = vector.broadcast %6 : vector<1x128xf32> to vector<32x128xf32>
    %8 = arith.addf %5, %7 : vector<32x128xf32>
    %9 = arith.truncf %8 : vector<32x128xf32> to vector<32x128xbf16>
    %c0_7 = arith.constant 0 : index
    %c0_8 = arith.constant 0 : index
    %10 = vector.load %arg5[%c0_7, %c0_8] : memref<32x128xbf16, #tpu.memory_space<vmem>>, vector<32x128xbf16>
    tpu.vector_store %arg5[%c0_7, %c0_8], %9 {strides = array<i32>} : memref<32x128xbf16, #tpu.memory_space<vmem>>, vector<32x128xbf16>,
    return
  }
  func.func @transform_0(%arg0: i32) -> (i32, i32) {
    %c0_i32 = arith.constant 0 : i32
    %c0_i32_0 = arith.constant 0 : i32
    return %arg0, %c0_i32 : i32, i32
  }
  func.func @transform_1(%arg0: i32) -> (i32, i32) {
    %c0_i32 = arith.constant 0 : i32
    %c0_i32_0 = arith.constant 0 : i32
    %c0_i32_1 = arith.constant 0 : i32
    return %c0_i32, %c0_i32_0 : i32, i32
  }
  func.func @transform_2(%arg0: i32) -> (i32, i32) {
    %c0_i32 = arith.constant 0 : i32
    %c0_i32_0 = arith.constant 0 : i32
    %c0_i32_1 = arith.constant 0 : i32
    return %c0_i32, %c0_i32_0 : i32, i32
  }
  func.func @transform_3(%arg0: i32) -> (i32, i32) {
    %c0_i32 = arith.constant 0 : i32
    %c0_i32_0 = arith.constant 0 : i32
    %c0_i32_1 = arith.constant 0 : i32
    return %c0_i32, %c0_i32_0 : i32, i32
  }
  func.func @transform_4(%arg0: i32) -> (i32, i32) {
    %c0_i32 = arith.constant 0 : i32
    %c0_i32_0 = arith.constant 0 : i32
    return %arg0, %c0_i32 : i32, i32
  }
}

module attributes {stable_mosaic.version = 11 : i64} {
  func.func @_mm_bn_relu_kernel(%arg0: i32, %arg1: memref<8x1152xbf16, #tpu.memory_space<vmem>>, %arg2: memref<1152x128xbf16, #tpu.memory_space<vmem>>, %arg3: memref<1x128xf32, #tpu.memory_space<vmem>>, %arg4: memref<1x128xf32, #tpu.memory_space<vmem>>, %arg5: memref<8x128xbf16, #tpu.memory_space<vmem>>) attributes {dimension_semantics = [#tpu.dimension_semantics<parallel>], iteration_bounds = array<i64: 1>, scalar_prefetch = 0 : i64, scratch_operands = 0 : i64, tpu.core_type = #tpu.core_type<tc>, window_params = [{transform_indices = @transform_0, window_bounds = array<i64: 8, 1152>}, {pipeline_mode = #tpu.pipeline_mode<synchronous>, transform_indices = @transform_1, window_bounds = array<i64: 1152, 128>}, {pipeline_mode = #tpu.pipeline_mode<synchronous>, transform_indices = @transform_2, window_bounds = array<i64: 1, 128>}, {pipeline_mode = #tpu.pipeline_mode<synchronous>, transform_indices = @transform_3, window_bounds = array<i64: 1, 128>}, {transform_indices = @transform_4, window_bounds = array<i64: 8, 128>}]} {
    %c0 = arith.constant 0 : index
    %c0_0 = arith.constant 0 : index
    %0 = vector.load %arg1[%c0, %c0_0] : memref<8x1152xbf16, #tpu.memory_space<vmem>>, vector<8x1152xbf16>
    %c0_1 = arith.constant 0 : index
    %c0_2 = arith.constant 0 : index
    %1 = vector.load %arg2[%c0_1, %c0_2] : memref<1152x128xbf16, #tpu.memory_space<vmem>>, vector<1152x128xbf16>
    %cst = arith.constant dense<0.000000e+00> : vector<8x128xf32>
    %2 = tpu.matmul %0, %1, %cst {dimension_numbers = #tpu.dot_dimension_numbers<[1], [0], [0], [1], [0, 0, 1, 1], [], []>} : vector<8x1152xbf16>, vector<1152x128xbf16>, vector<8x128xf32> -> vector<8x128xf32>
    %c0_3 = arith.constant 0 : index
    %c0_4 = arith.constant 0 : index
    %3 = vector.load %arg3[%c0_3, %c0_4] : memref<1x128xf32, #tpu.memory_space<vmem>>, vector<1x128xf32>
    %4 = vector.broadcast %3 : vector<1x128xf32> to vector<8x128xf32>
    %5 = arith.mulf %2, %4 : vector<8x128xf32>
    %c0_5 = arith.constant 0 : index
    %c0_6 = arith.constant 0 : index
    %6 = vector.load %arg4[%c0_5, %c0_6] : memref<1x128xf32, #tpu.memory_space<vmem>>, vector<1x128xf32>
    %7 = vector.broadcast %6 : vector<1x128xf32> to vector<8x128xf32>
    %8 = arith.addf %5, %7 : vector<8x128xf32>
    %cst_7 = arith.constant 0.000000e+00 : f32
    %9 = vector.broadcast %cst_7 : f32 to vector<8x128xf32>
    %10 = arith.maximumf %8, %9 : vector<8x128xf32>
    %11 = arith.truncf %10 : vector<8x128xf32> to vector<8x128xbf16>
    %c0_8 = arith.constant 0 : index
    %c0_9 = arith.constant 0 : index
    %12 = vector.load %arg5[%c0_8, %c0_9] : memref<8x128xbf16, #tpu.memory_space<vmem>>, vector<8x128xbf16>
    tpu.vector_store %arg5[%c0_8, %c0_9], %11 {strides = array<i32>} : memref<8x128xbf16, #tpu.memory_space<vmem>>, vector<8x128xbf16>,
    return
  }
  func.func @transform_0(%arg0: i32) -> (i32, i32) {
    %c0_i32 = arith.constant 0 : i32
    %c0_i32_0 = arith.constant 0 : i32
    return %arg0, %c0_i32 : i32, i32
  }
  func.func @transform_1(%arg0: i32) -> (i32, i32) {
    %c0_i32 = arith.constant 0 : i32
    %c0_i32_0 = arith.constant 0 : i32
    %c0_i32_1 = arith.constant 0 : i32
    return %c0_i32, %c0_i32_0 : i32, i32
  }
  func.func @transform_2(%arg0: i32) -> (i32, i32) {
    %c0_i32 = arith.constant 0 : i32
    %c0_i32_0 = arith.constant 0 : i32
    %c0_i32_1 = arith.constant 0 : i32
    return %c0_i32, %c0_i32_0 : i32, i32
  }
  func.func @transform_3(%arg0: i32) -> (i32, i32) {
    %c0_i32 = arith.constant 0 : i32
    %c0_i32_0 = arith.constant 0 : i32
    %c0_i32_1 = arith.constant 0 : i32
    return %c0_i32, %c0_i32_0 : i32, i32
  }
  func.func @transform_4(%arg0: i32) -> (i32, i32) {
    %c0_i32 = arith.constant 0 : i32
    %c0_i32_0 = arith.constant 0 : i32
    return %arg0, %c0_i32 : i32, i32
  }
}

module attributes {stable_mosaic.version = 11 : i64} {
  func.func @_mm_bn_add_relu_kernel(%arg0: i32, %arg1: memref<8x1152xbf16, #tpu.memory_space<vmem>>, %arg2: memref<1152x128xbf16, #tpu.memory_space<vmem>>, %arg3: memref<1x128xf32, #tpu.memory_space<vmem>>, %arg4: memref<1x128xf32, #tpu.memory_space<vmem>>, %arg5: memref<8x128xbf16, #tpu.memory_space<vmem>>, %arg6: memref<8x128xbf16, #tpu.memory_space<vmem>>) attributes {dimension_semantics = [#tpu.dimension_semantics<parallel>], iteration_bounds = array<i64: 1>, scalar_prefetch = 0 : i64, scratch_operands = 0 : i64, tpu.core_type = #tpu.core_type<tc>, window_params = [{transform_indices = @transform_0, window_bounds = array<i64: 8, 1152>}, {pipeline_mode = #tpu.pipeline_mode<synchronous>, transform_indices = @transform_1, window_bounds = array<i64: 1152, 128>}, {pipeline_mode = #tpu.pipeline_mode<synchronous>, transform_indices = @transform_2, window_bounds = array<i64: 1, 128>}, {pipeline_mode = #tpu.pipeline_mode<synchronous>, transform_indices = @transform_3, window_bounds = array<i64: 1, 128>}, {transform_indices = @transform_4, window_bounds = array<i64: 8, 128>}, {transform_indices = @transform_5, window_bounds = array<i64: 8, 128>}]} {
    %c0 = arith.constant 0 : index
    %c0_0 = arith.constant 0 : index
    %0 = vector.load %arg1[%c0, %c0_0] : memref<8x1152xbf16, #tpu.memory_space<vmem>>, vector<8x1152xbf16>
    %c0_1 = arith.constant 0 : index
    %c0_2 = arith.constant 0 : index
    %1 = vector.load %arg2[%c0_1, %c0_2] : memref<1152x128xbf16, #tpu.memory_space<vmem>>, vector<1152x128xbf16>
    %cst = arith.constant dense<0.000000e+00> : vector<8x128xf32>
    %2 = tpu.matmul %0, %1, %cst {dimension_numbers = #tpu.dot_dimension_numbers<[1], [0], [0], [1], [0, 0, 1, 1], [], []>} : vector<8x1152xbf16>, vector<1152x128xbf16>, vector<8x128xf32> -> vector<8x128xf32>
    %c0_3 = arith.constant 0 : index
    %c0_4 = arith.constant 0 : index
    %3 = vector.load %arg3[%c0_3, %c0_4] : memref<1x128xf32, #tpu.memory_space<vmem>>, vector<1x128xf32>
    %4 = vector.broadcast %3 : vector<1x128xf32> to vector<8x128xf32>
    %5 = arith.mulf %2, %4 : vector<8x128xf32>
    %c0_5 = arith.constant 0 : index
    %c0_6 = arith.constant 0 : index
    %6 = vector.load %arg4[%c0_5, %c0_6] : memref<1x128xf32, #tpu.memory_space<vmem>>, vector<1x128xf32>
    %7 = vector.broadcast %6 : vector<1x128xf32> to vector<8x128xf32>
    %8 = arith.addf %5, %7 : vector<8x128xf32>
    %c0_7 = arith.constant 0 : index
    %c0_8 = arith.constant 0 : index
    %9 = vector.load %arg5[%c0_7, %c0_8] : memref<8x128xbf16, #tpu.memory_space<vmem>>, vector<8x128xbf16>
    %10 = arith.extf %9 : vector<8x128xbf16> to vector<8x128xf32>
    %11 = arith.addf %8, %10 : vector<8x128xf32>
    %cst_9 = arith.constant 0.000000e+00 : f32
    %12 = vector.broadcast %cst_9 : f32 to vector<8x128xf32>
    %13 = arith.maximumf %11, %12 : vector<8x128xf32>
    %14 = arith.truncf %13 : vector<8x128xf32> to vector<8x128xbf16>
    %c0_10 = arith.constant 0 : index
    %c0_11 = arith.constant 0 : index
    %15 = vector.load %arg6[%c0_10, %c0_11] : memref<8x128xbf16, #tpu.memory_space<vmem>>, vector<8x128xbf16>
    tpu.vector_store %arg6[%c0_10, %c0_11], %14 {strides = array<i32>} : memref<8x128xbf16, #tpu.memory_space<vmem>>, vector<8x128xbf16>,
    return
  }
  func.func @transform_0(%arg0: i32) -> (i32, i32) {
    %c0_i32 = arith.constant 0 : i32
    %c0_i32_0 = arith.constant 0 : i32
    return %arg0, %c0_i32 : i32, i32
  }
  func.func @transform_1(%arg0: i32) -> (i32, i32) {
    %c0_i32 = arith.constant 0 : i32
    %c0_i32_0 = arith.constant 0 : i32
    %c0_i32_1 = arith.constant 0 : i32
    return %c0_i32, %c0_i32_0 : i32, i32
  }
  func.func @transform_2(%arg0: i32) -> (i32, i32) {
    %c0_i32 = arith.constant 0 : i32
    %c0_i32_0 = arith.constant 0 : i32
    %c0_i32_1 = arith.constant 0 : i32
    return %c0_i32, %c0_i32_0 : i32, i32
  }
  func.func @transform_3(%arg0: i32) -> (i32, i32) {
    %c0_i32 = arith.constant 0 : i32
    %c0_i32_0 = arith.constant 0 : i32
    %c0_i32_1 = arith.constant 0 : i32
    return %c0_i32, %c0_i32_0 : i32, i32
  }
  func.func @transform_4(%arg0: i32) -> (i32, i32) {
    %c0_i32 = arith.constant 0 : i32
    %c0_i32_0 = arith.constant 0 : i32
    return %arg0, %c0_i32 : i32, i32
  }
  func.func @transform_5(%arg0: i32) -> (i32, i32) {
    %c0_i32 = arith.constant 0 : i32
    %c0_i32_0 = arith.constant 0 : i32
    return %arg0, %c0_i32 : i32, i32
  }
}

module attributes {stable_mosaic.version = 11 : i64} {
  func.func @_mm_bn_kernel(%arg0: i32, %arg1: memref<8x128xbf16, #tpu.memory_space<vmem>>, %arg2: memref<128x128xbf16, #tpu.memory_space<vmem>>, %arg3: memref<1x128xf32, #tpu.memory_space<vmem>>, %arg4: memref<1x128xf32, #tpu.memory_space<vmem>>, %arg5: memref<8x128xbf16, #tpu.memory_space<vmem>>) attributes {dimension_semantics = [#tpu.dimension_semantics<parallel>], iteration_bounds = array<i64: 1>, scalar_prefetch = 0 : i64, scratch_operands = 0 : i64, tpu.core_type = #tpu.core_type<tc>, window_params = [{transform_indices = @transform_0, window_bounds = array<i64: 8, 128>}, {pipeline_mode = #tpu.pipeline_mode<synchronous>, transform_indices = @transform_1, window_bounds = array<i64: 128, 128>}, {pipeline_mode = #tpu.pipeline_mode<synchronous>, transform_indices = @transform_2, window_bounds = array<i64: 1, 128>}, {pipeline_mode = #tpu.pipeline_mode<synchronous>, transform_indices = @transform_3, window_bounds = array<i64: 1, 128>}, {transform_indices = @transform_4, window_bounds = array<i64: 8, 128>}]} {
    %c0 = arith.constant 0 : index
    %c0_0 = arith.constant 0 : index
    %0 = vector.load %arg1[%c0, %c0_0] : memref<8x128xbf16, #tpu.memory_space<vmem>>, vector<8x128xbf16>
    %c0_1 = arith.constant 0 : index
    %c0_2 = arith.constant 0 : index
    %1 = vector.load %arg2[%c0_1, %c0_2] : memref<128x128xbf16, #tpu.memory_space<vmem>>, vector<128x128xbf16>
    %cst = arith.constant dense<0.000000e+00> : vector<8x128xf32>
    %2 = tpu.matmul %0, %1, %cst {dimension_numbers = #tpu.dot_dimension_numbers<[1], [0], [0], [1], [0, 0, 1, 1], [], []>} : vector<8x128xbf16>, vector<128x128xbf16>, vector<8x128xf32> -> vector<8x128xf32>
    %c0_3 = arith.constant 0 : index
    %c0_4 = arith.constant 0 : index
    %3 = vector.load %arg3[%c0_3, %c0_4] : memref<1x128xf32, #tpu.memory_space<vmem>>, vector<1x128xf32>
    %4 = vector.broadcast %3 : vector<1x128xf32> to vector<8x128xf32>
    %5 = arith.mulf %2, %4 : vector<8x128xf32>
    %c0_5 = arith.constant 0 : index
    %c0_6 = arith.constant 0 : index
    %6 = vector.load %arg4[%c0_5, %c0_6] : memref<1x128xf32, #tpu.memory_space<vmem>>, vector<1x128xf32>
    %7 = vector.broadcast %6 : vector<1x128xf32> to vector<8x128xf32>
    %8 = arith.addf %5, %7 : vector<8x128xf32>
    %9 = arith.truncf %8 : vector<8x128xf32> to vector<8x128xbf16>
    %c0_7 = arith.constant 0 : index
    %c0_8 = arith.constant 0 : index
    %10 = vector.load %arg5[%c0_7, %c0_8] : memref<8x128xbf16, #tpu.memory_space<vmem>>, vector<8x128xbf16>
    tpu.vector_store %arg5[%c0_7, %c0_8], %9 {strides = array<i32>} : memref<8x128xbf16, #tpu.memory_space<vmem>>, vector<8x128xbf16>,
    return
  }
  func.func @transform_0(%arg0: i32) -> (i32, i32) {
    %c0_i32 = arith.constant 0 : i32
    %c0_i32_0 = arith.constant 0 : i32
    return %arg0, %c0_i32 : i32, i32
  }
  func.func @transform_1(%arg0: i32) -> (i32, i32) {
    %c0_i32 = arith.constant 0 : i32
    %c0_i32_0 = arith.constant 0 : i32
    %c0_i32_1 = arith.constant 0 : i32
    return %c0_i32, %c0_i32_0 : i32, i32
  }
  func.func @transform_2(%arg0: i32) -> (i32, i32) {
    %c0_i32 = arith.constant 0 : i32
    %c0_i32_0 = arith.constant 0 : i32
    %c0_i32_1 = arith.constant 0 : i32
    return %c0_i32, %c0_i32_0 : i32, i32
  }
  func.func @transform_3(%arg0: i32) -> (i32, i32) {
    %c0_i32 = arith.constant 0 : i32
    %c0_i32_0 = arith.constant 0 : i32
    %c0_i32_1 = arith.constant 0 : i32
    return %c0_i32, %c0_i32_0 : i32, i32
  }
  func.func @transform_4(%arg0: i32) -> (i32, i32) {
    %c0_i32 = arith.constant 0 : i32
    %c0_i32_0 = arith.constant 0 : i32
    return %arg0, %c0_i32 : i32, i32
  }
}

module attributes {stable_mosaic.version = 11 : i64} {
  func.func @_mm_bn_relu_kernel(%arg0: i32, %arg1: memref<2x1152xbf16, #tpu.memory_space<vmem>>, %arg2: memref<1152x128xbf16, #tpu.memory_space<vmem>>, %arg3: memref<1x128xf32, #tpu.memory_space<vmem>>, %arg4: memref<1x128xf32, #tpu.memory_space<vmem>>, %arg5: memref<2x128xbf16, #tpu.memory_space<vmem>>) attributes {dimension_semantics = [#tpu.dimension_semantics<parallel>], iteration_bounds = array<i64: 1>, scalar_prefetch = 0 : i64, scratch_operands = 0 : i64, tpu.core_type = #tpu.core_type<tc>, window_params = [{transform_indices = @transform_0, window_bounds = array<i64: 2, 1152>}, {pipeline_mode = #tpu.pipeline_mode<synchronous>, transform_indices = @transform_1, window_bounds = array<i64: 1152, 128>}, {pipeline_mode = #tpu.pipeline_mode<synchronous>, transform_indices = @transform_2, window_bounds = array<i64: 1, 128>}, {pipeline_mode = #tpu.pipeline_mode<synchronous>, transform_indices = @transform_3, window_bounds = array<i64: 1, 128>}, {transform_indices = @transform_4, window_bounds = array<i64: 2, 128>}]} {
    %c0 = arith.constant 0 : index
    %c0_0 = arith.constant 0 : index
    %0 = vector.load %arg1[%c0, %c0_0] : memref<2x1152xbf16, #tpu.memory_space<vmem>>, vector<2x1152xbf16>
    %c0_1 = arith.constant 0 : index
    %c0_2 = arith.constant 0 : index
    %1 = vector.load %arg2[%c0_1, %c0_2] : memref<1152x128xbf16, #tpu.memory_space<vmem>>, vector<1152x128xbf16>
    %cst = arith.constant dense<0.000000e+00> : vector<2x128xf32>
    %2 = tpu.matmul %0, %1, %cst {dimension_numbers = #tpu.dot_dimension_numbers<[1], [0], [0], [1], [0, 0, 1, 1], [], []>} : vector<2x1152xbf16>, vector<1152x128xbf16>, vector<2x128xf32> -> vector<2x128xf32>
    %c0_3 = arith.constant 0 : index
    %c0_4 = arith.constant 0 : index
    %3 = vector.load %arg3[%c0_3, %c0_4] : memref<1x128xf32, #tpu.memory_space<vmem>>, vector<1x128xf32>
    %4 = vector.broadcast %3 : vector<1x128xf32> to vector<2x128xf32>
    %5 = arith.mulf %2, %4 : vector<2x128xf32>
    %c0_5 = arith.constant 0 : index
    %c0_6 = arith.constant 0 : index
    %6 = vector.load %arg4[%c0_5, %c0_6] : memref<1x128xf32, #tpu.memory_space<vmem>>, vector<1x128xf32>
    %7 = vector.broadcast %6 : vector<1x128xf32> to vector<2x128xf32>
    %8 = arith.addf %5, %7 : vector<2x128xf32>
    %cst_7 = arith.constant 0.000000e+00 : f32
    %9 = vector.broadcast %cst_7 : f32 to vector<2x128xf32>
    %10 = arith.maximumf %8, %9 : vector<2x128xf32>
    %11 = arith.truncf %10 : vector<2x128xf32> to vector<2x128xbf16>
    %c0_8 = arith.constant 0 : index
    %c0_9 = arith.constant 0 : index
    %12 = vector.load %arg5[%c0_8, %c0_9] : memref<2x128xbf16, #tpu.memory_space<vmem>>, vector<2x128xbf16>
    tpu.vector_store %arg5[%c0_8, %c0_9], %11 {strides = array<i32>} : memref<2x128xbf16, #tpu.memory_space<vmem>>, vector<2x128xbf16>,
    return
  }
  func.func @transform_0(%arg0: i32) -> (i32, i32) {
    %c0_i32 = arith.constant 0 : i32
    %c0_i32_0 = arith.constant 0 : i32
    return %arg0, %c0_i32 : i32, i32
  }
  func.func @transform_1(%arg0: i32) -> (i32, i32) {
    %c0_i32 = arith.constant 0 : i32
    %c0_i32_0 = arith.constant 0 : i32
    %c0_i32_1 = arith.constant 0 : i32
    return %c0_i32, %c0_i32_0 : i32, i32
  }
  func.func @transform_2(%arg0: i32) -> (i32, i32) {
    %c0_i32 = arith.constant 0 : i32
    %c0_i32_0 = arith.constant 0 : i32
    %c0_i32_1 = arith.constant 0 : i32
    return %c0_i32, %c0_i32_0 : i32, i32
  }
  func.func @transform_3(%arg0: i32) -> (i32, i32) {
    %c0_i32 = arith.constant 0 : i32
    %c0_i32_0 = arith.constant 0 : i32
    %c0_i32_1 = arith.constant 0 : i32
    return %c0_i32, %c0_i32_0 : i32, i32
  }
  func.func @transform_4(%arg0: i32) -> (i32, i32) {
    %c0_i32 = arith.constant 0 : i32
    %c0_i32_0 = arith.constant 0 : i32
    return %arg0, %c0_i32 : i32, i32
  }
}

module attributes {stable_mosaic.version = 11 : i64} {
  func.func @_mm_bn_add_relu_kernel(%arg0: i32, %arg1: memref<2x1152xbf16, #tpu.memory_space<vmem>>, %arg2: memref<1152x128xbf16, #tpu.memory_space<vmem>>, %arg3: memref<1x128xf32, #tpu.memory_space<vmem>>, %arg4: memref<1x128xf32, #tpu.memory_space<vmem>>, %arg5: memref<2x128xbf16, #tpu.memory_space<vmem>>, %arg6: memref<2x128xbf16, #tpu.memory_space<vmem>>) attributes {dimension_semantics = [#tpu.dimension_semantics<parallel>], iteration_bounds = array<i64: 1>, scalar_prefetch = 0 : i64, scratch_operands = 0 : i64, tpu.core_type = #tpu.core_type<tc>, window_params = [{transform_indices = @transform_0, window_bounds = array<i64: 2, 1152>}, {pipeline_mode = #tpu.pipeline_mode<synchronous>, transform_indices = @transform_1, window_bounds = array<i64: 1152, 128>}, {pipeline_mode = #tpu.pipeline_mode<synchronous>, transform_indices = @transform_2, window_bounds = array<i64: 1, 128>}, {pipeline_mode = #tpu.pipeline_mode<synchronous>, transform_indices = @transform_3, window_bounds = array<i64: 1, 128>}, {transform_indices = @transform_4, window_bounds = array<i64: 2, 128>}, {transform_indices = @transform_5, window_bounds = array<i64: 2, 128>}]} {
    %c0 = arith.constant 0 : index
    %c0_0 = arith.constant 0 : index
    %0 = vector.load %arg1[%c0, %c0_0] : memref<2x1152xbf16, #tpu.memory_space<vmem>>, vector<2x1152xbf16>
    %c0_1 = arith.constant 0 : index
    %c0_2 = arith.constant 0 : index
    %1 = vector.load %arg2[%c0_1, %c0_2] : memref<1152x128xbf16, #tpu.memory_space<vmem>>, vector<1152x128xbf16>
    %cst = arith.constant dense<0.000000e+00> : vector<2x128xf32>
    %2 = tpu.matmul %0, %1, %cst {dimension_numbers = #tpu.dot_dimension_numbers<[1], [0], [0], [1], [0, 0, 1, 1], [], []>} : vector<2x1152xbf16>, vector<1152x128xbf16>, vector<2x128xf32> -> vector<2x128xf32>
    %c0_3 = arith.constant 0 : index
    %c0_4 = arith.constant 0 : index
    %3 = vector.load %arg3[%c0_3, %c0_4] : memref<1x128xf32, #tpu.memory_space<vmem>>, vector<1x128xf32>
    %4 = vector.broadcast %3 : vector<1x128xf32> to vector<2x128xf32>
    %5 = arith.mulf %2, %4 : vector<2x128xf32>
    %c0_5 = arith.constant 0 : index
    %c0_6 = arith.constant 0 : index
    %6 = vector.load %arg4[%c0_5, %c0_6] : memref<1x128xf32, #tpu.memory_space<vmem>>, vector<1x128xf32>
    %7 = vector.broadcast %6 : vector<1x128xf32> to vector<2x128xf32>
    %8 = arith.addf %5, %7 : vector<2x128xf32>
    %c0_7 = arith.constant 0 : index
    %c0_8 = arith.constant 0 : index
    %9 = vector.load %arg5[%c0_7, %c0_8] : memref<2x128xbf16, #tpu.memory_space<vmem>>, vector<2x128xbf16>
    %10 = arith.extf %9 : vector<2x128xbf16> to vector<2x128xf32>
    %11 = arith.addf %8, %10 : vector<2x128xf32>
    %cst_9 = arith.constant 0.000000e+00 : f32
    %12 = vector.broadcast %cst_9 : f32 to vector<2x128xf32>
    %13 = arith.maximumf %11, %12 : vector<2x128xf32>
    %14 = arith.truncf %13 : vector<2x128xf32> to vector<2x128xbf16>
    %c0_10 = arith.constant 0 : index
    %c0_11 = arith.constant 0 : index
    %15 = vector.load %arg6[%c0_10, %c0_11] : memref<2x128xbf16, #tpu.memory_space<vmem>>, vector<2x128xbf16>
    tpu.vector_store %arg6[%c0_10, %c0_11], %14 {strides = array<i32>} : memref<2x128xbf16, #tpu.memory_space<vmem>>, vector<2x128xbf16>,
    return
  }
  func.func @transform_0(%arg0: i32) -> (i32, i32) {
    %c0_i32 = arith.constant 0 : i32
    %c0_i32_0 = arith.constant 0 : i32
    return %arg0, %c0_i32 : i32, i32
  }
  func.func @transform_1(%arg0: i32) -> (i32, i32) {
    %c0_i32 = arith.constant 0 : i32
    %c0_i32_0 = arith.constant 0 : i32
    %c0_i32_1 = arith.constant 0 : i32
    return %c0_i32, %c0_i32_0 : i32, i32
  }
  func.func @transform_2(%arg0: i32) -> (i32, i32) {
    %c0_i32 = arith.constant 0 : i32
    %c0_i32_0 = arith.constant 0 : i32
    %c0_i32_1 = arith.constant 0 : i32
    return %c0_i32, %c0_i32_0 : i32, i32
  }
  func.func @transform_3(%arg0: i32) -> (i32, i32) {
    %c0_i32 = arith.constant 0 : i32
    %c0_i32_0 = arith.constant 0 : i32
    %c0_i32_1 = arith.constant 0 : i32
    return %c0_i32, %c0_i32_0 : i32, i32
  }
  func.func @transform_4(%arg0: i32) -> (i32, i32) {
    %c0_i32 = arith.constant 0 : i32
    %c0_i32_0 = arith.constant 0 : i32
    return %arg0, %c0_i32 : i32, i32
  }
  func.func @transform_5(%arg0: i32) -> (i32, i32) {
    %c0_i32 = arith.constant 0 : i32
    %c0_i32_0 = arith.constant 0 : i32
    return %arg0, %c0_i32 : i32, i32
  }
}

module attributes {stable_mosaic.version = 11 : i64} {
  func.func @_mm_bn_kernel(%arg0: i32, %arg1: memref<2x128xbf16, #tpu.memory_space<vmem>>, %arg2: memref<128x128xbf16, #tpu.memory_space<vmem>>, %arg3: memref<1x128xf32, #tpu.memory_space<vmem>>, %arg4: memref<1x128xf32, #tpu.memory_space<vmem>>, %arg5: memref<2x128xbf16, #tpu.memory_space<vmem>>) attributes {dimension_semantics = [#tpu.dimension_semantics<parallel>], iteration_bounds = array<i64: 1>, scalar_prefetch = 0 : i64, scratch_operands = 0 : i64, tpu.core_type = #tpu.core_type<tc>, window_params = [{transform_indices = @transform_0, window_bounds = array<i64: 2, 128>}, {pipeline_mode = #tpu.pipeline_mode<synchronous>, transform_indices = @transform_1, window_bounds = array<i64: 128, 128>}, {pipeline_mode = #tpu.pipeline_mode<synchronous>, transform_indices = @transform_2, window_bounds = array<i64: 1, 128>}, {pipeline_mode = #tpu.pipeline_mode<synchronous>, transform_indices = @transform_3, window_bounds = array<i64: 1, 128>}, {transform_indices = @transform_4, window_bounds = array<i64: 2, 128>}]} {
    %c0 = arith.constant 0 : index
    %c0_0 = arith.constant 0 : index
    %0 = vector.load %arg1[%c0, %c0_0] : memref<2x128xbf16, #tpu.memory_space<vmem>>, vector<2x128xbf16>
    %c0_1 = arith.constant 0 : index
    %c0_2 = arith.constant 0 : index
    %1 = vector.load %arg2[%c0_1, %c0_2] : memref<128x128xbf16, #tpu.memory_space<vmem>>, vector<128x128xbf16>
    %cst = arith.constant dense<0.000000e+00> : vector<2x128xf32>
    %2 = tpu.matmul %0, %1, %cst {dimension_numbers = #tpu.dot_dimension_numbers<[1], [0], [0], [1], [0, 0, 1, 1], [], []>} : vector<2x128xbf16>, vector<128x128xbf16>, vector<2x128xf32> -> vector<2x128xf32>
    %c0_3 = arith.constant 0 : index
    %c0_4 = arith.constant 0 : index
    %3 = vector.load %arg3[%c0_3, %c0_4] : memref<1x128xf32, #tpu.memory_space<vmem>>, vector<1x128xf32>
    %4 = vector.broadcast %3 : vector<1x128xf32> to vector<2x128xf32>
    %5 = arith.mulf %2, %4 : vector<2x128xf32>
    %c0_5 = arith.constant 0 : index
    %c0_6 = arith.constant 0 : index
    %6 = vector.load %arg4[%c0_5, %c0_6] : memref<1x128xf32, #tpu.memory_space<vmem>>, vector<1x128xf32>
    %7 = vector.broadcast %6 : vector<1x128xf32> to vector<2x128xf32>
    %8 = arith.addf %5, %7 : vector<2x128xf32>
    %9 = arith.truncf %8 : vector<2x128xf32> to vector<2x128xbf16>
    %c0_7 = arith.constant 0 : index
    %c0_8 = arith.constant 0 : index
    %10 = vector.load %arg5[%c0_7, %c0_8] : memref<2x128xbf16, #tpu.memory_space<vmem>>, vector<2x128xbf16>
    tpu.vector_store %arg5[%c0_7, %c0_8], %9 {strides = array<i32>} : memref<2x128xbf16, #tpu.memory_space<vmem>>, vector<2x128xbf16>,
    return
  }
  func.func @transform_0(%arg0: i32) -> (i32, i32) {
    %c0_i32 = arith.constant 0 : i32
    %c0_i32_0 = arith.constant 0 : i32
    return %arg0, %c0_i32 : i32, i32
  }
  func.func @transform_1(%arg0: i32) -> (i32, i32) {
    %c0_i32 = arith.constant 0 : i32
    %c0_i32_0 = arith.constant 0 : i32
    %c0_i32_1 = arith.constant 0 : i32
    return %c0_i32, %c0_i32_0 : i32, i32
  }
  func.func @transform_2(%arg0: i32) -> (i32, i32) {
    %c0_i32 = arith.constant 0 : i32
    %c0_i32_0 = arith.constant 0 : i32
    %c0_i32_1 = arith.constant 0 : i32
    return %c0_i32, %c0_i32_0 : i32, i32
  }
  func.func @transform_3(%arg0: i32) -> (i32, i32) {
    %c0_i32 = arith.constant 0 : i32
    %c0_i32_0 = arith.constant 0 : i32
    %c0_i32_1 = arith.constant 0 : i32
    return %c0_i32, %c0_i32_0 : i32, i32
  }
  func.func @transform_4(%arg0: i32) -> (i32, i32) {
    %c0_i32 = arith.constant 0 : i32
    %c0_i32_0 = arith.constant 0 : i32
    return %arg0, %c0_i32 : i32, i32
  }
}

module attributes {stable_mosaic.version = 11 : i64} {
  func.func @_fc_kernel(%arg0: memref<2x128xbf16, #tpu.memory_space<vmem>>, %arg1: memref<128x128xf32, #tpu.memory_space<vmem>>, %arg2: memref<2x128xf32, #tpu.memory_space<vmem>>) attributes {dimension_semantics = [], scalar_prefetch = 0 : i64, scratch_operands = 0 : i64, tpu.core_type = #tpu.core_type<tc>} {
    %c0 = arith.constant 0 : index
    %c0_0 = arith.constant 0 : index
    %0 = vector.load %arg0[%c0, %c0_0] : memref<2x128xbf16, #tpu.memory_space<vmem>>, vector<2x128xbf16>
    %1 = arith.extf %0 : vector<2x128xbf16> to vector<2x128xf32>
    %c0_1 = arith.constant 0 : index
    %c0_2 = arith.constant 0 : index
    %2 = vector.load %arg1[%c0_1, %c0_2] : memref<128x128xf32, #tpu.memory_space<vmem>>, vector<128x128xf32>
    %cst = arith.constant dense<0.000000e+00> : vector<2x128xf32>
    %3 = tpu.matmul %1, %2, %cst {dimension_numbers = #tpu.dot_dimension_numbers<[1], [0], [0], [1], [0, 0, 1, 1], [], []>} : vector<2x128xf32>, vector<128x128xf32>, vector<2x128xf32> -> vector<2x128xf32>
    %c0_3 = arith.constant 0 : index
    %c0_4 = arith.constant 0 : index
    %4 = vector.load %arg2[%c0_3, %c0_4] : memref<2x128xf32, #tpu.memory_space<vmem>>, vector<2x128xf32>
    tpu.vector_store %arg2[%c0_3, %c0_4], %3 {strides = array<i32>} : memref<2x128xf32, #tpu.memory_space<vmem>>, vector<2x128xf32>,
    return
  }
}

</mosaic_0001>

<llo_original>
// kernel: _lambda_.22
$region0: #{_lambda_.22}
  #allocation0 [shape = 'u32[]', space=smem, size = 0x4, offset = 0x4, fixed_abs, tag = 'smem constant byte address 0x4 - core index']
  #allocation1 [shape = 'u32[144,128]{1,0:T(1,128)}', space=vmem, size = 0x12000, scoped, tag = 'internal scratch']
  %s0 = inlined_call_operand.vmem [shape: bf16[512,256], index: 0, kind: input, shape index: {}]
  %s1 = inlined_call_operand.vmem [shape: bf16[256,128], index: 1, kind: input, shape index: {}]
  %s2 = inlined_call_operand.vmem [shape: f32[1,128], index: 2, kind: input, shape index: {}]
  %s3 = inlined_call_operand.vmem [shape: f32[1,128], index: 3, kind: input, shape index: {}]
  %s4 = inlined_call_operand.vmem [shape: bf16[512,128], index: 4, kind: output, shape index: {}]
  %s5 = sld [smem:[#allocation0]]
  $region49: #{_lambda_.22} parent=0
    _
  %s7 = ssub.s32 1, %s5
  %s8 = scalar_select 0, %s7, %s5
  loop: start=0, step=1, limit=4
  $region2: #{_lambda_.22} parent=0 // loop_pre_header
    _
  $region3: #{_lambda_.22} parent=0 // loop_header
    %s10 = sphi 0, %s14
    %p11 = scmp.ge.s32.totalorder %s10, 4
    %s20 = sphi 0, %s22
    %s23 = sphi 0, %s20
    %s24 = sphi 0, %s23
    %s40 = sphi 0, %s24
    %s44 = sphi 0, %s44
    %s46 = sphi 0, %s44
    %s47 = sphi 0, %s46
    %s61 = sphi 0, %s47
    %s65 = sphi 0, %s65
    %s67 = sphi 0, %s65
    %s68 = sphi 0, %s67
    %s82 = sphi 0, %s68
    %s86 = sphi 0, %s86
    %s88 = sphi 0, %s86
    %s89 = sphi 0, %s88
    %s103 = sphi 0, %s89
    %s109 = sphi 0, %s111
    %s112 = sphi 0, %s109
    %s113 = sphi 0, %s112
    %s129 = sphi 0, %s113
  $region4: #{_lambda_.22} parent=0 // loop_header_branch
    %13 = sbr.rel (%p11) target = $region8
  $region5: #{_lambda_.22} parent=0 // loop_body
    %s15 = ssub.s32 %s10, 1
    %s16 = ssub.s32 %s10, 2
    %s17 = sadd.s32 %s10, 1
    %s18 = ssub.s32 %s10, %s17
    %p19 = scmp.eq.s32.totalorder %s18, 0
    %s21 = sadd.s32 %s20, 1
    %s22 = scalar_select %p19, %s20, %s21
    %p25 = pneg %p19
    %p26 = scmp.eq.s32.totalorder %s10, 1
    %p27 = por %p25, %p26
    %p28 = scmp.ne.s32.totalorder %s20, %s23
    %p29 = scmp.eq.s32.totalorder %s10, 0
    %p30 = por %p28, %p29
    %p31 = scmp.ne.s32.totalorder %s20, %s23
    %p32 = scmp.eq.s32.totalorder %s15, 1
    %p33 = por %p31, %p32
    %p34 = scmp.ne.s32.totalorder %s23, %s24
    %p35 = scmp.eq.s32.totalorder %s15, 0
    %p36 = por %p34, %p35
    %p37 = scmp.ne.s32.totalorder %s23, %s24
    %p38 = scmp.eq.s32.totalorder %s16, 1
    %p39 = por %p37, %p38
    %p41 = scmp.ne.s32.totalorder %s24, %s40
    %p42 = scmp.eq.s32.totalorder %s16, 0
    %p43 = por %p41, %p42
    %s45 = sadd.s32 %s44, 1
    %p48 = scmp.eq.s32.totalorder %s10, 1
    %p49 = scmp.ne.s32.totalorder %s44, %s46
    %p50 = scmp.eq.s32.totalorder %s10, 0
    %p51 = por %p49, %p50
    %p52 = scmp.ne.s32.totalorder %s44, %s46
    %p53 = scmp.eq.s32.totalorder %s15, 1
    %p54 = por %p52, %p53
    %p55 = scmp.ne.s32.totalorder %s46, %s47
    %p56 = scmp.eq.s32.totalorder %s15, 0
    %p57 = por %p55, %p56
    %p58 = scmp.ne.s32.totalorder %s46, %s47
    %p59 = scmp.eq.s32.totalorder %s16, 1
    %p60 = por %p58, %p59
    %p62 = scmp.ne.s32.totalorder %s47, %s61
    %p63 = scmp.eq.s32.totalorder %s16, 0
    %p64 = por %p62, %p63
    %s66 = sadd.s32 %s65, 1
    %p69 = scmp.eq.s32.totalorder %s10, 1
    %p70 = scmp.ne.s32.totalorder %s65, %s67
    %p71 = scmp.eq.s32.totalorder %s10, 0
    %p72 = por %p70, %p71
    %p73 = scmp.ne.s32.totalorder %s65, %s67
    %p74 = scmp.eq.s32.totalorder %s15, 1
    %p75 = por %p73, %p74
    %p76 = scmp.ne.s32.totalorder %s67, %s68
    %p77 = scmp.eq.s32.totalorder %s15, 0
    %p78 = por %p76, %p77
    %p79 = scmp.ne.s32.totalorder %s67, %s68
    %p80 = scmp.eq.s32.totalorder %s16, 1
    %p81 = por %p79, %p80
    %p83 = scmp.ne.s32.totalorder %s68, %s82
    %p84 = scmp.eq.s32.totalorder %s16, 0
    %p85 = por %p83, %p84
    %s87 = sadd.s32 %s86, 1
    %p90 = scmp.eq.s32.totalorder %s10, 1
    %p91 = scmp.ne.s32.totalorder %s86, %s88
    %p92 = scmp.eq.s32.totalorder %s10, 0
    %p93 = por %p91, %p92
    %p94 = scmp.ne.s32.totalorder %s86, %s88
    %p95 = scmp.eq.s32.totalorder %s15, 1
    %p96 = por %p94, %p95
    %p97 = scmp.ne.s32.totalorder %s88, %s89
    %p98 = scmp.eq.s32.totalorder %s15, 0
    %p99 = por %p97, %p98
    %p100 = scmp.ne.s32.totalorder %s88, %s89
    %p101 = scmp.eq.s32.totalorder %s16, 1
    %p102 = por %p100, %p101
    %p104 = scmp.ne.s32.totalorder %s89, %s103
    %p105 = scmp.eq.s32.totalorder %s16, 0
    %p106 = por %p104, %p105
    %s107 = ssub.s32 %s10, %s17
    %p108 = scmp.eq.s32.totalorder %s107, 0
    %s110 = sadd.s32 %s109, 1
    %s111 = scalar_select %p108, %s109, %s110
    %p114 = pneg %p108
    %p115 = scmp.eq.s32.totalorder %s10, 1
    %p116 = por %p114, %p115
    %p117 = scmp.ne.s32.totalorder %s109, %s112
    %p118 = scmp.eq.s32.totalorder %s10, 0
    %p119 = por %p117, %p118
    %p120 = scmp.ne.s32.totalorder %s109, %s112
    %p121 = scmp.eq.s32.totalorder %s15, 1
    %p122 = por %p120, %p121
    %p123 = scmp.ne.s32.totalorder %s112, %s113
    %p124 = scmp.eq.s32.totalorder %s15, 0
    %p125 = por %p123, %p124
    %p126 = scmp.ne.s32.totalorder %s112, %s113
    %p127 = scmp.eq.s32.totalorder %s16, 1
    %p128 = por %p126, %p127
    %p130 = scmp.ne.s32.totalorder %s113, %s129
    %p131 = scmp.eq.s32.totalorder %s16, 0
    %p132 = por %p130, %p131
    %p133 = scmp.le.s32.totalorder 1, %s10
    %p134 = scmp.lt.s32.totalorder %s10, 3
    %p135 = pnand %p133, %p134
    %p136 = pneg %p135
    // Predicated region
    $region9: #{_lambda_.22} parent=5 // pred_check
      _
    $region10: #{_lambda_.22} parent=5 // pred_check_branch
      %138 = sbr.rel (%p135) target = $region12
    $region11: #{_lambda_.22} parent=5 // pred_region
      %s139 = ssub.s32 %s10, 1
      // Predicated region
      $region13: #{_lambda_.22} parent=11 // pred_check
        %p140 = pneg %p57
      $region14: #{_lambda_.22} parent=11 // pred_check_branch
        %142 = sbr.rel (%p140) target = $region16
      $region15: #{_lambda_.22} parent=11 // pred_region
        _
      $region16: #{_lambda_.22} parent=11 // pred_fallthru
        _
      // Predicated region
      $region17: #{_lambda_.22} parent=11 // pred_check
        %p143 = pneg %p78
      $region18: #{_lambda_.22} parent=11 // pred_check_branch
        %145 = sbr.rel (%p143) target = $region20
      $region19: #{_lambda_.22} parent=11 // pred_region
        _
      $region20: #{_lambda_.22} parent=11 // pred_fallthru
        _
      // Predicated region
      $region21: #{_lambda_.22} parent=11 // pred_check
        %p146 = pneg %p99
      $region22: #{_lambda_.22} parent=11 // pred_check_branch
        %148 = sbr.rel (%p146) target = $region24
      $region23: #{_lambda_.22} parent=11 // pred_region
        _
      $region24: #{_lambda_.22} parent=11 // pred_fallthru
        _
    $region12: #{_lambda_.22} parent=5 // pred_fallthru
      _
    %p149 = scmp.lt.s32.totalorder %s10, 2
    // Predicated region
    $region25: #{_lambda_.22} parent=5 // pred_check
      %p150 = pneg %p149
    $region26: #{_lambda_.22} parent=5 // pred_check_branch
      %152 = sbr.rel (%p150) target = $region28
    $region27: #{_lambda_.22} parent=5 // pred_region
      // Predicated region
      $region29: #{_lambda_.22} parent=27 // pred_check
        %p153 = pneg %p30
      $region30: #{_lambda_.22} parent=27 // pred_check_branch
        %155 = sbr.rel (%p153) target = $region32
      $region31: #{_lambda_.22} parent=27 // pred_region
        %s156 = smul.u32 32, %s10
        %p157 = scmp.lt.s32.totalorder %s156, 63
        %s158 = scalar_select %p157, %s156, 63
        %s159 = smul.addr %s158, 2
        %s160 = smul.addr %s159, 4
        %s161 = scalar_lea.vmem %s0, %s160
        %s162 = smul.u32 32, %s10
      $region32: #{_lambda_.22} parent=27 // pred_fallthru
        _
    $region28: #{_lambda_.22} parent=5 // pred_fallthru
      _
    %p163 = scmp.le.s32.totalorder 1, %s10
    %p164 = scmp.lt.s32.totalorder %s10, 3
    %p165 = pnand %p163, %p164
    %p166 = pneg %p165
    // Predicated region
    $region33: #{_lambda_.22} parent=5 // pred_check
      _
    $region34: #{_lambda_.22} parent=5 // pred_check_branch
      %168 = sbr.rel (%p165) target = $region36
    $region35: #{_lambda_.22} parent=5 // pred_region
      %s169 = ssub.s32 %s10, 1
      %s170 = smul.u32 32, %s15
      %p171 = scmp.lt.s32.totalorder %s170, 63
      %s172 = scalar_select %p171, %s170, 63
      %s173 = smul.addr %s172, 2
      %s174 = smul.addr %s173, 4
      %s175 = scalar_lea.vmem %s0, %s174
      %p176 = pneg %p36
      %p177 = pneg %p33
      %p178 = pneg %p57
      %p179 = pneg %p54
      %p180 = pneg %p78
      %p181 = pneg %p75
      %p182 = pneg %p99
      %p183 = pneg %p96
      %p184 = pneg %p125
      %p185 = pneg %p122
      %s186 = smul.u32 32, %s15
      %p187 = scmp.lt.s32.totalorder %s186, 63
      %s188 = scalar_select %p187, %s186, 63
      %s189 = smul.addr %s188, 4
      %s190 = scalar_lea.vmem %s4, %s189
      %s191 = smul.u32 32, %s15
      %p192 = scmp.lt.s32.totalorder %s191, 63
      %s193 = scalar_select %p192, %s191, 63
      %s194 = smul.addr %s193, 2
      %s195 = smul.addr %s194, 4
      %s196 = scalar_lea.vmem %s0, %s195
      %s197 = smul.u32 32, %s15
      %s198 = smul.u32 32, %s15
      %p199 = scmp.lt.s32.totalorder %s198, 63
      %s200 = scalar_select %p199, %s198, 63
      %s201 = smul.addr %s200, 4
      %s202 = scalar_lea.vmem %s4, %s201
      %s203 = smul.u32 32, %s15
      %v205 = vld [vmem:[%s196] sm:$0xff]
      %v206 = vld [vmem:[%s196 + $0x8] sm:$0xff]
      %v207 = vld [vmem:[%s196 + $0x10] sm:$0xff]
      %v208 = vld [vmem:[%s196 + $0x18] sm:$0xff]
      %v209 = vld [vmem:[%s196 + $0x20] sm:$0xff]
      %v210 = vld [vmem:[%s196 + $0x28] sm:$0xff]
      %v211 = vld [vmem:[%s196 + $0x30] sm:$0xff]
      %v212 = vld [vmem:[%s196 + $0x38] sm:$0xff]
      %v213 = vld [vmem:[%s196 + $0x40] sm:$0xff]
      %v214 = vld [vmem:[%s196 + $0x48] sm:$0xff]
      %v215 = vld [vmem:[%s196 + $0x50] sm:$0xff]
      %v216 = vld [vmem:[%s196 + $0x58] sm:$0xff]
      %v217 = vld [vmem:[%s196 + $0x60] sm:$0xff]
      %v218 = vld [vmem:[%s196 + $0x68] sm:$0xff]
      %v219 = vld [vmem:[%s196 + $0x70] sm:$0xff]
      %v220 = vld [vmem:[%s196 + $0x78] sm:$0xff]
      %v221 = vld [vmem:[%s196 + $0x80] sm:$0xff]
      %v222 = vld [vmem:[%s196 + $0x88] sm:$0xff]
      %v223 = vld [vmem:[%s196 + $0x90] sm:$0xff]
      %v224 = vld [vmem:[%s196 + $0x98] sm:$0xff]
      %v225 = vld [vmem:[%s196 + $0xa0] sm:$0xff]
      %v226 = vld [vmem:[%s196 + $0xa8] sm:$0xff]
      %v227 = vld [vmem:[%s196 + $0xb0] sm:$0xff]
      %v228 = vld [vmem:[%s196 + $0xb8] sm:$0xff]
      %v229 = vld [vmem:[%s196 + $0xc0] sm:$0xff]
      %v230 = vld [vmem:[%s196 + $0xc8] sm:$0xff]
      %v231 = vld [vmem:[%s196 + $0xd0] sm:$0xff]
      %v232 = vld [vmem:[%s196 + $0xd8] sm:$0xff]
      %v233 = vld [vmem:[%s196 + $0xe0] sm:$0xff]
      %v234 = vld [vmem:[%s196 + $0xe8] sm:$0xff]
      %v235 = vld [vmem:[%s196 + $0xf0] sm:$0xff]
      %v236 = vld [vmem:[%s196 + $0xf8] sm:$0xff]
      %v237 = vld [vmem:[%s1] sm:$0xf]
      %v238 = vld [vmem:[%s1 + $0x4] sm:$0xf]
      %v239 = vld [vmem:[%s1 + $0x8] sm:$0xf]
      %v240 = vld [vmem:[%s1 + $0xc] sm:$0xf]
      %v241 = vld [vmem:[%s1 + $0x10] sm:$0xf]
      %v242 = vld [vmem:[%s1 + $0x14] sm:$0xf]
      %v243 = vld [vmem:[%s1 + $0x18] sm:$0xf]
      %v244 = vld [vmem:[%s1 + $0x1c] sm:$0xf]
      %v245 = vld [vmem:[%s1 + $0x20] sm:$0xf]
      %v246 = vld [vmem:[%s1 + $0x24] sm:$0xf]
      %v247 = vld [vmem:[%s1 + $0x28] sm:$0xf]
      %v248 = vld [vmem:[%s1 + $0x2c] sm:$0xf]
      %v249 = vld [vmem:[%s1 + $0x30] sm:$0xf]
      %v250 = vld [vmem:[%s1 + $0x34] sm:$0xf]
      %v251 = vld [vmem:[%s1 + $0x38] sm:$0xf]
      %v252 = vld [vmem:[%s1 + $0x3c] sm:$0xf]
      %v253 = vld [vmem:[%s1 + $0x40] sm:$0xf]
      %v254 = vld [vmem:[%s1 + $0x44] sm:$0xf]
      %v255 = vld [vmem:[%s1 + $0x48] sm:$0xf]
      %v256 = vld [vmem:[%s1 + $0x4c] sm:$0xf]
      %v257 = vld [vmem:[%s1 + $0x50] sm:$0xf]
      %v258 = vld [vmem:[%s1 + $0x54] sm:$0xf]
      %v259 = vld [vmem:[%s1 + $0x58] sm:$0xf]
      %v260 = vld [vmem:[%s1 + $0x5c] sm:$0xf]
      %v261 = vld [vmem:[%s1 + $0x60] sm:$0xf]
      %v262 = vld [vmem:[%s1 + $0x64] sm:$0xf]
      %v263 = vld [vmem:[%s1 + $0x68] sm:$0xf]
      %v264 = vld [vmem:[%s1 + $0x6c] sm:$0xf]
      %v265 = vld [vmem:[%s1 + $0x70] sm:$0xf]
      %v266 = vld [vmem:[%s1 + $0x74] sm:$0xf]
      %v267 = vld [vmem:[%s1 + $0x78] sm:$0xf]
      %v268 = vld [vmem:[%s1 + $0x7c] sm:$0xf]
      %v301 = vunpack.c.l.b16 %v205
      %v302 = vunpack.c.h.b16 %v205
      %v303 = vunpack.c.l.b16 %v206
      %v304 = vunpack.c.h.b16 %v206
      %v305 = vunpack.c.l.b16 %v207
      %v306 = vunpack.c.h.b16 %v207
      %v307 = vunpack.c.l.b16 %v208
      %v308 = vunpack.c.h.b16 %v208
      %v309 = vunpack.c.l.b16 %v209
      %v310 = vunpack.c.h.b16 %v209
      %v311 = vunpack.c.l.b16 %v210
      %v312 = vunpack.c.h.b16 %v210
      %v313 = vunpack.c.l.b16 %v211
      %v314 = vunpack.c.h.b16 %v211
      %v315 = vunpack.c.l.b16 %v212
      %v316 = vunpack.c.h.b16 %v212
      %v317 = vunpack.c.l.b16 %v213
      %v318 = vunpack.c.h.b16 %v213
      %v319 = vunpack.c.l.b16 %v214
      %v320 = vunpack.c.h.b16 %v214
      %v321 = vunpack.c.l.b16 %v215
      %v322 = vunpack.c.h.b16 %v215
      %v323 = vunpack.c.l.b16 %v216
      %v324 = vunpack.c.h.b16 %v216
      %v325 = vunpack.c.l.b16 %v217
      %v326 = vunpack.c.h.b16 %v217
      %v327 = vunpack.c.l.b16 %v218
      %v328 = vunpack.c.h.b16 %v218
      %v329 = vunpack.c.l.b16 %v219
      %v330 = vunpack.c.h.b16 %v219
      %v331 = vunpack.c.l.b16 %v220
      %v332 = vunpack.c.h.b16 %v220
      %v333 = vunpack.c.l.b16 %v221
      %v334 = vunpack.c.h.b16 %v221
      %v335 = vunpack.c.l.b16 %v222
      %v336 = vunpack.c.h.b16 %v222
      %v337 = vunpack.c.l.b16 %v223
      %v338 = vunpack.c.h.b16 %v223
      %v339 = vunpack.c.l.b16 %v224
      %v340 = vunpack.c.h.b16 %v224
      %v341 = vunpack.c.l.b16 %v225
      %v342 = vunpack.c.h.b16 %v225
      %v343 = vunpack.c.l.b16 %v226
      %v344 = vunpack.c.h.b16 %v226
      %v345 = vunpack.c.l.b16 %v227
      %v346 = vunpack.c.h.b16 %v227
      %v347 = vunpack.c.l.b16 %v228
      %v348 = vunpack.c.h.b16 %v228
      %v349 = vunpack.c.l.b16 %v229
      %v350 = vunpack.c.h.b16 %v229
      %v351 = vunpack.c.l.b16 %v230
      %v352 = vunpack.c.h.b16 %v230
      %v353 = vunpack.c.l.b16 %v231
      %v354 = vunpack.c.h.b16 %v231
      %v355 = vunpack.c.l.b16 %v232
      %v356 = vunpack.c.h.b16 %v232
      %v357 = vunpack.c.l.b16 %v233
      %v358 = vunpack.c.h.b16 %v233
      %v359 = vunpack.c.l.b16 %v234
      %v360 = vunpack.c.h.b16 %v234
      %v361 = vunpack.c.l.b16 %v235
      %v362 = vunpack.c.h.b16 %v235
      %v363 = vunpack.c.l.b16 %v236
      %v364 = vunpack.c.h.b16 %v236
      %v365 = vpack.c.b16 %v303, %v301
      %v366 = vpack.c.b16 %v304, %v302
      %v367 = vpack.c.b16 %v307, %v305
      %v368 = vpack.c.b16 %v308, %v306
      %v369 = vpack.c.b16 %v311, %v309
      %v370 = vpack.c.b16 %v312, %v310
      %v371 = vpack.c.b16 %v315, %v313
      %v372 = vpack.c.b16 %v316, %v314
      %v373 = vpack.c.b16 %v319, %v317
      %v374 = vpack.c.b16 %v320, %v318
      %v375 = vpack.c.b16 %v323, %v321
      %v376 = vpack.c.b16 %v324, %v322
      %v377 = vpack.c.b16 %v327, %v325
      %v378 = vpack.c.b16 %v328, %v326
      %v379 = vpack.c.b16 %v331, %v329
      %v380 = vpack.c.b16 %v332, %v330
      %v381 = vpack.c.b16 %v335, %v333
      %v382 = vpack.c.b16 %v336, %v334
      %v383 = vpack.c.b16 %v339, %v337
      %v384 = vpack.c.b16 %v340, %v338
      %v385 = vpack.c.b16 %v343, %v341
      %v386 = vpack.c.b16 %v344, %v342
      %v387 = vpack.c.b16 %v347, %v345
      %v388 = vpack.c.b16 %v348, %v346
      %v389 = vpack.c.b16 %v351, %v349
      %v390 = vpack.c.b16 %v352, %v350
      %v391 = vpack.c.b16 %v355, %v353
      %v392 = vpack.c.b16 %v356, %v354
      %v393 = vpack.c.b16 %v359, %v357
      %v394 = vpack.c.b16 %v360, %v358
      %v395 = vpack.c.b16 %v363, %v361
      %v396 = vpack.c.b16 %v364, %v362
      %v461 = vunpack.c.l.b16 %v237
      %v462 = vunpack.c.l.b16 %v238
      %v463 = vunpack.c.l.b16 %v239
      %v464 = vunpack.c.l.b16 %v240
      %v465 = vunpack.c.l.b16 %v241
      %v466 = vunpack.c.l.b16 %v242
      %v467 = vunpack.c.l.b16 %v243
      %v468 = vunpack.c.l.b16 %v244
      %v469 = vunpack.c.l.b16 %v245
      %v470 = vunpack.c.l.b16 %v246
      %v471 = vunpack.c.l.b16 %v247
      %v472 = vunpack.c.l.b16 %v248
      %v473 = vunpack.c.l.b16 %v249
      %v474 = vunpack.c.l.b16 %v250
      %v475 = vunpack.c.l.b16 %v251
      %v476 = vunpack.c.l.b16 %v252
      %v477 = vunpack.c.l.b16 %v253
      %v478 = vunpack.c.l.b16 %v254
      %v479 = vunpack.c.l.b16 %v255
      %v480 = vunpack.c.l.b16 %v256
      %v481 = vunpack.c.l.b16 %v257
      %v482 = vunpack.c.l.b16 %v258
      %v483 = vunpack.c.l.b16 %v259
      %v484 = vunpack.c.l.b16 %v260
      %v485 = vunpack.c.l.b16 %v261
      %v486 = vunpack.c.l.b16 %v262
      %v487 = vunpack.c.l.b16 %v263
      %v488 = vunpack.c.l.b16 %v264
      %v489 = vunpack.c.l.b16 %v265
      %v490 = vunpack.c.l.b16 %v266
      %v491 = vunpack.c.l.b16 %v267
      %v492 = vunpack.c.l.b16 %v268
      %v493 = vpack.c.b16 %v462, %v461
      %v494 = vpack.c.b16 %v464, %v463
      %v495 = vpack.c.b16 %v466, %v465
      %v496 = vpack.c.b16 %v468, %v467
      %v497 = vpack.c.b16 %v470, %v469
      %v498 = vpack.c.b16 %v472, %v471
      %v499 = vpack.c.b16 %v474, %v473
      %v500 = vpack.c.b16 %v476, %v475
      %v501 = vpack.c.b16 %v478, %v477
      %v502 = vpack.c.b16 %v480, %v479
      %v503 = vpack.c.b16 %v482, %v481
      %v504 = vpack.c.b16 %v484, %v483
      %v505 = vpack.c.b16 %v486, %v485
      %v506 = vpack.c.b16 %v488, %v487
      %v507 = vpack.c.b16 %v490, %v489
      %v508 = vpack.c.b16 %v492, %v491
      %525 = vmatprep.subr.bf16.mxu0 0
      %526 = vmatpush1.bf16.msra.mxu0 %v493
      %527 = vmatprep.subr.bf16.mxu0 0
      %528 = vmatpush1.bf16.msra.mxu0 %v494
      %529 = vmatprep.subr.bf16.mxu0 0
      %530 = vmatpush1.bf16.msra.mxu0 %v495
      %531 = vmatprep.subr.bf16.mxu0 0
      %532 = vmatpush1.bf16.msra.mxu0 %v496
      %533 = vmatprep.subr.bf16.mxu0 0
      %534 = vmatpush1.bf16.msra.mxu0 %v497
      %535 = vmatprep.subr.bf16.mxu0 0
      %536 = vmatpush1.bf16.msra.mxu0 %v498
      %537 = vmatprep.subr.bf16.mxu0 0
      %538 = vmatpush1.bf16.msra.mxu0 %v499
      %539 = vmatprep.subr.bf16.mxu0 0
      %540 = vmatpush1.bf16.msra.mxu0 %v500
      %541 = vmatprep.subr.bf16.mxu0 0
      %542 = vmatpush1.bf16.msra.mxu0 %v501
      %543 = vmatprep.subr.bf16.mxu0 0
      %544 = vmatpush1.bf16.msra.mxu0 %v502
      %545 = vmatprep.subr.bf16.mxu0 0
      %546 = vmatpush1.bf16.msra.mxu0 %v503
      %547 = vmatprep.subr.bf16.mxu0 0
      %548 = vmatpush1.bf16.msra.mxu0 %v504
      %549 = vmatprep.subr.bf16.mxu0 0
      %550 = vmatpush1.bf16.msra.mxu0 %v505
      %551 = vmatprep.subr.bf16.mxu0 0
      %552 = vmatpush1.bf16.msra.mxu0 %v506
      %553 = vmatprep.subr.bf16.mxu0 0
      %554 = vmatpush1.bf16.msra.mxu0 %v507
      %555 = vmatprep.subr.bf16.mxu0 0
      %556 = vmatpush1.bf16.msra.mxu0 %v508
      %557 = vmatprep.mubr.bf16.mxu0 %v366
      %558 = vmatmul.mubr.bf16.gmra.mrb[0].mxu0 %v365
      %v559 = vpop.f32.mrb[0].mxu0
      %v560 = vadd.f32 0.0, %v559
      %v561 = vpop.f32.mrb[0].mxu0
      %v562 = vpop.f32.mrb[0].mxu0
      %v563 = vadd.f32 0.0, %v562
      %v564 = vpop.f32.mrb[0].mxu0
      %565 = vmatprep.mubr.bf16.mxu0 %v368
      %566 = vmatmul.mubr.bf16.gmra.mrb[0].mxu0 %v367
      %v567 = vpop.f32.mrb[0].mxu0
      %v568 = vadd.f32 0.0, %v567
      %v569 = vpop.f32.mrb[0].mxu0
      %v570 = vpop.f32.mrb[0].mxu0
      %v571 = vadd.f32 0.0, %v570
      %v572 = vpop.f32.mrb[0].mxu0
      %573 = vmatprep.mubr.bf16.mxu0 %v370
      %574 = vmatmul.mubr.bf16.gmra.mrb[0].mxu0 %v369
      %v575 = vpop.f32.mrb[0].mxu0
      %v576 = vadd.f32 0.0, %v575
      %v577 = vpop.f32.mrb[0].mxu0
      %v578 = vpop.f32.mrb[0].mxu0
      %v579 = vadd.f32 0.0, %v578
      %v580 = vpop.f32.mrb[0].mxu0
      %581 = vmatprep.mubr.bf16.mxu0 %v372
      %582 = vmatmul.mubr.bf16.gmra.mrb[0].mxu0 %v371
      %v583 = vpop.f32.mrb[0].mxu0
      %v584 = vadd.f32 0.0, %v583
      %v585 = vpop.f32.mrb[0].mxu0
      %v586 = vpop.f32.mrb[0].mxu0
      %v587 = vadd.f32 0.0, %v586
      %v588 = vpop.f32.mrb[0].mxu0
      %589 = vmatprep.mubr.bf16.mxu0 %v374
      %590 = vmatmul.mubr.bf16.gmra.mrb[0].mxu0 %v373
      %v591 = vpop.f32.mrb[0].mxu0
      %v592 = vadd.f32 0.0, %v591
      %v593 = vpop.f32.mrb[0].mxu0
      %v594 = vpop.f32.mrb[0].mxu0
      %v595 = vadd.f32 0.0, %v594
      %v596 = vpop.f32.mrb[0].mxu0
      %597 = vmatprep.mubr.bf16.mxu0 %v376
      %598 = vmatmul.mubr.bf16.gmra.mrb[0].mxu0 %v375
      %v599 = vpop.f32.mrb[0].mxu0
      %v600 = vadd.f32 0.0, %v599
      %v601 = vpop.f32.mrb[0].mxu0
      %v602 = vpop.f32.mrb[0].mxu0
      %v603 = vadd.f32 0.0, %v602
      %v604 = vpop.f32.mrb[0].mxu0
      %605 = vmatprep.mubr.bf16.mxu0 %v378
      %606 = vmatmul.mubr.bf16.gmra.mrb[0].mxu0 %v377
      %v607 = vpop.f32.mrb[0].mxu0
      %v608 = vadd.f32 0.0, %v607
      %v609 = vpop.f32.mrb[0].mxu0
      %v610 = vpop.f32.mrb[0].mxu0
      %v611 = vadd.f32 0.0, %v610
      %v612 = vpop.f32.mrb[0].mxu0
      %613 = vmatprep.mubr.bf16.mxu0 %v380
      %614 = vmatmul.mubr.bf16.gmra.mrb[0].mxu0 %v379
      %v615 = vpop.f32.mrb[0].mxu0
      %v616 = vadd.f32 0.0, %v615
      %v617 = vpop.f32.mrb[0].mxu0
      %v618 = vpop.f32.mrb[0].mxu0
      %v619 = vadd.f32 0.0, %v618
      %v620 = vpop.f32.mrb[0].mxu0
      %621 = vmatprep.mubr.bf16.mxu0 %v382
      %622 = vmatmul.mubr.bf16.gmra.mrb[0].mxu0 %v381
      %v623 = vpop.f32.mrb[0].mxu0
      %v624 = vadd.f32 0.0, %v623
      %v625 = vpop.f32.mrb[0].mxu0
      %v626 = vpop.f32.mrb[0].mxu0
      %v627 = vadd.f32 0.0, %v626
      %v628 = vpop.f32.mrb[0].mxu0
      %629 = vmatprep.mubr.bf16.mxu0 %v384
      %630 = vmatmul.mubr.bf16.gmra.mrb[0].mxu0 %v383
      %v631 = vpop.f32.mrb[0].mxu0
      %v632 = vadd.f32 0.0, %v631
      %v633 = vpop.f32.mrb[0].mxu0
      %v634 = vpop.f32.mrb[0].mxu0
      %v635 = vadd.f32 0.0, %v634
      %v636 = vpop.f32.mrb[0].mxu0
      %637 = vmatprep.mubr.bf16.mxu0 %v386
      %638 = vmatmul.mubr.bf16.gmra.mrb[0].mxu0 %v385
      %v639 = vpop.f32.mrb[0].mxu0
      %v640 = vadd.f32 0.0, %v639
      %v641 = vpop.f32.mrb[0].mxu0
      %v642 = vpop.f32.mrb[0].mxu0
      %v643 = vadd.f32 0.0, %v642
      %v644 = vpop.f32.mrb[0].mxu0
      %645 = vmatprep.mubr.bf16.mxu0 %v388
      %646 = vmatmul.mubr.bf16.gmra.mrb[0].mxu0 %v387
      %v647 = vpop.f32.mrb[0].mxu0
      %v648 = vadd.f32 0.0, %v647
      %v649 = vpop.f32.mrb[0].mxu0
      %v650 = vpop.f32.mrb[0].mxu0
      %v651 = vadd.f32 0.0, %v650
      %v652 = vpop.f32.mrb[0].mxu0
      %653 = vmatprep.mubr.bf16.mxu0 %v390
      %654 = vmatmul.mubr.bf16.gmra.mrb[0].mxu0 %v389
      %v655 = vpop.f32.mrb[0].mxu0
      %v656 = vadd.f32 0.0, %v655
      %v657 = vpop.f32.mrb[0].mxu0
      %v658 = vpop.f32.mrb[0].mxu0
      %v659 = vadd.f32 0.0, %v658
      %v660 = vpop.f32.mrb[0].mxu0
      %661 = vmatprep.mubr.bf16.mxu0 %v392
      %662 = vmatmul.mubr.bf16.gmra.mrb[0].mxu0 %v391
      %v663 = vpop.f32.mrb[0].mxu0
      %v664 = vadd.f32 0.0, %v663
      %v665 = vpop.f32.mrb[0].mxu0
      %v666 = vpop.f32.mrb[0].mxu0
      %v667 = vadd.f32 0.0, %v666
      %v668 = vpop.f32.mrb[0].mxu0
      %669 = vmatprep.mubr.bf16.mxu0 %v394
      %670 = vmatmul.mubr.bf16.gmra.mrb[0].mxu0 %v393
      %v671 = vpop.f32.mrb[0].mxu0
      %v672 = vadd.f32 0.0, %v671
      %v673 = vpop.f32.mrb[0].mxu0
      %v674 = vpop.f32.mrb[0].mxu0
      %v675 = vadd.f32 0.0, %v674
      %v676 = vpop.f32.mrb[0].mxu0
      %677 = vmatprep.mubr.bf16.mxu0 %v396
      %678 = vmatmul.mubr.bf16.gmra.mrb[0].mxu0 %v395
      %v679 = vpop.f32.mrb[0].mxu0
      %v680 = vadd.f32 0.0, %v679
      %v681 = vpop.f32.mrb[0].mxu0
      %v682 = vpop.f32.mrb[0].mxu0
      %v683 = vadd.f32 0.0, %v682
      %v684 = vpop.f32.mrb[0].mxu0
      %685 = vdwg.mxu0
      %v686 = vld [vmem:[%s2] sm:$0x1]
      %v688 = vlaneseq
      %v689 = vshrl.u32 %v688, 7
      %v690 = vsub.s32 0, %v689
      %v691 = vrot.slane %v686, %v690
      %v693 = vmul.f32 %v560, %v691
      %v694 = vmul.f32 %v563, %v691
      %v695 = vmul.f32 %v568, %v691
      %v696 = vmul.f32 %v571, %v691
      %v697 = vmul.f32 %v576, %v691
      %v698 = vmul.f32 %v579, %v691
      %v699 = vmul.f32 %v584, %v691
      %v700 = vmul.f32 %v587, %v691
      %v701 = vmul.f32 %v592, %v691
      %v702 = vmul.f32 %v595, %v691
      %v703 = vmul.f32 %v600, %v691
      %v704 = vmul.f32 %v603, %v691
      %v705 = vmul.f32 %v608, %v691
      %v706 = vmul.f32 %v611, %v691
      %v707 = vmul.f32 %v616, %v691
      %v708 = vmul.f32 %v619, %v691
      %v709 = vmul.f32 %v624, %v691
      %v710 = vmul.f32 %v627, %v691
      %v711 = vmul.f32 %v632, %v691
      %v712 = vmul.f32 %v635, %v691
      %v713 = vmul.f32 %v640, %v691
      %v714 = vmul.f32 %v643, %v691
      %v715 = vmul.f32 %v648, %v691
      %v716 = vmul.f32 %v651, %v691
      %v717 = vmul.f32 %v656, %v691
      %v718 = vmul.f32 %v659, %v691
      %v719 = vmul.f32 %v664, %v691
      %v720 = vmul.f32 %v667, %v691
      %v721 = vmul.f32 %v672, %v691
      %v722 = vmul.f32 %v675, %v691
      %v723 = vmul.f32 %v680, %v691
      %v724 = vmul.f32 %v683, %v691
      %v725 = vld [vmem:[%s3] sm:$0x1]
      %v727 = vlaneseq
      %v728 = vshrl.u32 %v727, 7
      %v729 = vsub.s32 0, %v728
      %v730 = vrot.slane %v725, %v729
      %v732 = vadd.f32 %v693, %v730
      %v733 = vadd.f32 %v694, %v730
      %v734 = vadd.f32 %v695, %v730
      %v735 = vadd.f32 %v696, %v730
      %v736 = vadd.f32 %v697, %v730
      %v737 = vadd.f32 %v698, %v730
      %v738 = vadd.f32 %v699, %v730
      %v739 = vadd.f32 %v700, %v730
      %v740 = vadd.f32 %v701, %v730
      %v741 = vadd.f32 %v702, %v730
      %v742 = vadd.f32 %v703, %v730
      %v743 = vadd.f32 %v704, %v730
      %v744 = vadd.f32 %v705, %v730
      %v745 = vadd.f32 %v706, %v730
      %v746 = vadd.f32 %v707, %v730
      %v747 = vadd.f32 %v708, %v730
      %v748 = vadd.f32 %v709, %v730
      %v749 = vadd.f32 %v710, %v730
      %v750 = vadd.f32 %v711, %v730
      %v751 = vadd.f32 %v712, %v730
      %v752 = vadd.f32 %v713, %v730
      %v753 = vadd.f32 %v714, %v730
      %v754 = vadd.f32 %v715, %v730
      %v755 = vadd.f32 %v716, %v730
      %v756 = vadd.f32 %v717, %v730
      %v757 = vadd.f32 %v718, %v730
      %v758 = vadd.f32 %v719, %v730
      %v759 = vadd.f32 %v720, %v730
      %v760 = vadd.f32 %v721, %v730
      %v761 = vadd.f32 %v722, %v730
      %v762 = vadd.f32 %v723, %v730
      %v763 = vadd.f32 %v724, %v730
      %v764 = vmax.f32 %v732, 0.0
      %v765 = vmax.f32 %v733, 0.0
      %v766 = vmax.f32 %v734, 0.0
      %v767 = vmax.f32 %v735, 0.0
      %v768 = vmax.f32 %v736, 0.0
      %v769 = vmax.f32 %v737, 0.0
      %v770 = vmax.f32 %v738, 0.0
      %v771 = vmax.f32 %v739, 0.0
      %v772 = vmax.f32 %v740, 0.0
      %v773 = vmax.f32 %v741, 0.0
      %v774 = vmax.f32 %v742, 0.0
      %v775 = vmax.f32 %v743, 0.0
      %v776 = vmax.f32 %v744, 0.0
      %v777 = vmax.f32 %v745, 0.0
      %v778 = vmax.f32 %v746, 0.0
      %v779 = vmax.f32 %v747, 0.0
      %v780 = vmax.f32 %v748, 0.0
      %v781 = vmax.f32 %v749, 0.0
      %v782 = vmax.f32 %v750, 0.0
      %v783 = vmax.f32 %v751, 0.0
      %v784 = vmax.f32 %v752, 0.0
      %v785 = vmax.f32 %v753, 0.0
      %v786 = vmax.f32 %v754, 0.0
      %v787 = vmax.f32 %v755, 0.0
      %v788 = vmax.f32 %v756, 0.0
      %v789 = vmax.f32 %v757, 0.0
      %v790 = vmax.f32 %v758, 0.0
      %v791 = vmax.f32 %v759, 0.0
      %v792 = vmax.f32 %v760, 0.0
      %v793 = vmax.f32 %v761, 0.0
      %v794 = vmax.f32 %v762, 0.0
      %v795 = vmax.f32 %v763, 0.0
      %v796 = vpack.c.bf16 %v765, %v764
      %v797 = vpack.c.bf16 %v767, %v766
      %v798 = vpack.c.bf16 %v769, %v768
      %v799 = vpack.c.bf16 %v771, %v770
      %v800 = vpack.c.bf16 %v773, %v772
      %v801 = vpack.c.bf16 %v775, %v774
      %v802 = vpack.c.bf16 %v777, %v776
      %v803 = vpack.c.bf16 %v779, %v778
      %v804 = vpack.c.bf16 %v781, %v780
      %v805 = vpack.c.bf16 %v783, %v782
      %v806 = vpack.c.bf16 %v785, %v784
      %v807 = vpack.c.bf16 %v787, %v786
      %v808 = vpack.c.bf16 %v789, %v788
      %v809 = vpack.c.bf16 %v791, %v790
      %v810 = vpack.c.bf16 %v793, %v792
      %v811 = vpack.c.bf16 %v795, %v794
      %v828 = vunpack.c.l.b16 %v796
      %v829 = vunpack.c.h.b16 %v796
      %v830 = vunpack.c.l.b16 %v797
      %v831 = vunpack.c.h.b16 %v797
      %v832 = vunpack.c.l.b16 %v798
      %v833 = vunpack.c.h.b16 %v798
      %v834 = vunpack.c.l.b16 %v799
      %v835 = vunpack.c.h.b16 %v799
      %v836 = vunpack.c.l.b16 %v800
      %v837 = vunpack.c.h.b16 %v800
      %v838 = vunpack.c.l.b16 %v801
      %v839 = vunpack.c.h.b16 %v801
      %v840 = vunpack.c.l.b16 %v802
      %v841 = vunpack.c.h.b16 %v802
      %v842 = vunpack.c.l.b16 %v803
      %v843 = vunpack.c.h.b16 %v803
      %v844 = vunpack.c.l.b16 %v804
      %v845 = vunpack.c.h.b16 %v804
      %v846 = vunpack.c.l.b16 %v805
      %v847 = vunpack.c.h.b16 %v805
      %v848 = vunpack.c.l.b16 %v806
      %v849 = vunpack.c.h.b16 %v806
      %v850 = vunpack.c.l.b16 %v807
      %v851 = vunpack.c.h.b16 %v807
      %v852 = vunpack.c.l.b16 %v808
      %v853 = vunpack.c.h.b16 %v808
      %v854 = vunpack.c.l.b16 %v809
      %v855 = vunpack.c.h.b16 %v809
      %v856 = vunpack.c.l.b16 %v810
      %v857 = vunpack.c.h.b16 %v810
      %v858 = vunpack.c.l.b16 %v811
      %v859 = vunpack.c.h.b16 %v811
      %v860 = vpack.c.b16 %v828, %v828
      %v861 = vpack.c.b16 %v829, %v829
      %v862 = vpack.c.b16 %v830, %v830
      %v863 = vpack.c.b16 %v831, %v831
      %v864 = vpack.c.b16 %v832, %v832
      %v865 = vpack.c.b16 %v833, %v833
      %v866 = vpack.c.b16 %v834, %v834
      %v867 = vpack.c.b16 %v835, %v835
      %v868 = vpack.c.b16 %v836, %v836
      %v869 = vpack.c.b16 %v837, %v837
      %v870 = vpack.c.b16 %v838, %v838
      %v871 = vpack.c.b16 %v839, %v839
      %v872 = vpack.c.b16 %v840, %v840
      %v873 = vpack.c.b16 %v841, %v841
      %v874 = vpack.c.b16 %v842, %v842
      %v875 = vpack.c.b16 %v843, %v843
      %v876 = vpack.c.b16 %v844, %v844
      %v877 = vpack.c.b16 %v845, %v845
      %v878 = vpack.c.b16 %v846, %v846
      %v879 = vpack.c.b16 %v847, %v847
      %v880 = vpack.c.b16 %v848, %v848
      %v881 = vpack.c.b16 %v849, %v849
      %v882 = vpack.c.b16 %v850, %v850
      %v883 = vpack.c.b16 %v851, %v851
      %v884 = vpack.c.b16 %v852, %v852
      %v885 = vpack.c.b16 %v853, %v853
      %v886 = vpack.c.b16 %v854, %v854
      %v887 = vpack.c.b16 %v855, %v855
      %v888 = vpack.c.b16 %v856, %v856
      %v889 = vpack.c.b16 %v857, %v857
      %v890 = vpack.c.b16 %v858, %v858
      %v891 = vpack.c.b16 %v859, %v859
      %924 = vst [vmem:[%s202] sm:$0xf] %v860
      %925 = vst [vmem:[%s202 + $0x4] sm:$0xf] %v861
      %926 = vst [vmem:[%s202 + $0x8] sm:$0xf] %v862
      %927 = vst [vmem:[%s202 + $0xc] sm:$0xf] %v863
      %928 = vst [vmem:[%s202 + $0x10] sm:$0xf] %v864
      %929 = vst [vmem:[%s202 + $0x14] sm:$0xf] %v865
      %930 = vst [vmem:[%s202 + $0x18] sm:$0xf] %v866
      %931 = vst [vmem:[%s202 + $0x1c] sm:$0xf] %v867
      %932 = vst [vmem:[%s202 + $0x20] sm:$0xf] %v868
      %933 = vst [vmem:[%s202 + $0x24] sm:$0xf] %v869
      %934 = vst [vmem:[%s202 + $0x28] sm:$0xf] %v870
      %935 = vst [vmem:[%s202 + $0x2c] sm:$0xf] %v871
      %936 = vst [vmem:[%s202 + $0x30] sm:$0xf] %v872
      %937 = vst [vmem:[%s202 + $0x34] sm:$0xf] %v873
      %938 = vst [vmem:[%s202 + $0x38] sm:$0xf] %v874
      %939 = vst [vmem:[%s202 + $0x3c] sm:$0xf] %v875
      %940 = vst [vmem:[%s202 + $0x40] sm:$0xf] %v876
      %941 = vst [vmem:[%s202 + $0x44] sm:$0xf] %v877
      %942 = vst [vmem:[%s202 + $0x48] sm:$0xf] %v878
      %943 = vst [vmem:[%s202 + $0x4c] sm:$0xf] %v879
      %944 = vst [vmem:[%s202 + $0x50] sm:$0xf] %v880
      %945 = vst [vmem:[%s202 + $0x54] sm:$0xf] %v881
      %946 = vst [vmem:[%s202 + $0x58] sm:$0xf] %v882
      %947 = vst [vmem:[%s202 + $0x5c] sm:$0xf] %v883
      %948 = vst [vmem:[%s202 + $0x60] sm:$0xf] %v884
      %949 = vst [vmem:[%s202 + $0x64] sm:$0xf] %v885
      %950 = vst [vmem:[%s202 + $0x68] sm:$0xf] %v886
      %951 = vst [vmem:[%s202 + $0x6c] sm:$0xf] %v887
      %952 = vst [vmem:[%s202 + $0x70] sm:$0xf] %v888
      %953 = vst [vmem:[%s202 + $0x74] sm:$0xf] %v889
      %954 = vst [vmem:[%s202 + $0x78] sm:$0xf] %v890
      %955 = vst [vmem:[%s202 + $0x7c] sm:$0xf] %v891
      %s956 = smul.u32 32, %s15
      %p957 = scmp.lt.s32.totalorder %s956, 63
      %s958 = scalar_select %p957, %s956, 63
      %s959 = smul.addr %s958, 4
      %s960 = scalar_lea.vmem %s4, %s959
      // Predicated region
      $region37: #{_lambda_.22} parent=35 // pred_check
        %p961 = pneg %p122
      $region38: #{_lambda_.22} parent=35 // pred_check_branch
        %963 = sbr.rel (%p961) target = $region40
      $region39: #{_lambda_.22} parent=35 // pred_region
        %s964 = smul.u32 32, %s15
      $region40: #{_lambda_.22} parent=35 // pred_fallthru
        _
    $region36: #{_lambda_.22} parent=5 // pred_fallthru
      _
    %p965 = scmp.le.s32.totalorder 2, %s10
    // Predicated region
    $region41: #{_lambda_.22} parent=5 // pred_check
      %p966 = pneg %p965
    $region42: #{_lambda_.22} parent=5 // pred_check_branch
      %968 = sbr.rel (%p966) target = $region44
    $region43: #{_lambda_.22} parent=5 // pred_region
      %s969 = ssub.s32 %s10, 2
      // Predicated region
      $region45: #{_lambda_.22} parent=43 // pred_check
        %p970 = pneg %p128
      $region46: #{_lambda_.22} parent=43 // pred_check_branch
        %972 = sbr.rel (%p970) target = $region48
      $region47: #{_lambda_.22} parent=43 // pred_region
        %s973 = smul.u32 32, %s16
        %p974 = scmp.lt.s32.totalorder %s973, 63
        %s975 = scalar_select %p974, %s973, 63
        %s976 = smul.addr %s975, 4
        %s977 = scalar_lea.vmem %s4, %s976
      $region48: #{_lambda_.22} parent=43 // pred_fallthru
        _
    $region44: #{_lambda_.22} parent=5 // pred_fallthru
      _
  $region6: #{_lambda_.22} parent=0 // loop_footer
    %s14 = sadd.s32 1, %s10
  $region7: #{_lambda_.22} parent=0 // loop_footer_branch
    %9 = sbr.rel target = $region3
  $region8: #{_lambda_.22} parent=0 // loop_exit
    _

// kernel: _lambda_.24
$region0: #{_lambda_.24}
  #allocation0 [shape = 'u32[]', space=smem, size = 0x4, offset = 0x4, fixed_abs, tag = 'smem constant byte address 0x4 - core index']
  #allocation1 [shape = 'u32[144,128]{1,0:T(1,128)}', space=vmem, size = 0x12000, scoped, tag = 'internal scratch']
  %s0 = inlined_call_operand.vmem [shape: bf16[128,128], index: 0, kind: input, shape index: {}]
  %s1 = inlined_call_operand.vmem [shape: bf16[128,128], index: 1, kind: input, shape index: {}]
  %s2 = inlined_call_operand.vmem [shape: f32[1,128], index: 2, kind: input, shape index: {}]
  %s3 = inlined_call_operand.vmem [shape: f32[1,128], index: 3, kind: input, shape index: {}]
  %s4 = inlined_call_operand.vmem [shape: bf16[128,128], index: 4, kind: output, shape index: {}]
  %s5 = sld [smem:[#allocation0]]
  $region26: #{_lambda_.24} parent=0
    _
  %s7 = ssub.s32 1, %s5
  %s8 = scalar_select 0, %s7, %s5
  // Predicated region
  $region2: #{_lambda_.24} parent=0 // pred_check
    _
  $region3: #{_lambda_.24} parent=0 // pred_check_branch
    %10 = sbr.rel (0) target = $region5
  $region4: #{_lambda_.24} parent=0 // pred_region
    _
  $region5: #{_lambda_.24} parent=0 // pred_fallthru
    _
  // Predicated region
  $region6: #{_lambda_.24} parent=0 // pred_check
    _
  $region7: #{_lambda_.24} parent=0 // pred_check_branch
    %12 = sbr.rel (0) target = $region9
  $region8: #{_lambda_.24} parent=0 // pred_region
    _
  $region9: #{_lambda_.24} parent=0 // pred_fallthru
    _
  // Predicated region
  $region10: #{_lambda_.24} parent=0 // pred_check
    _
  $region11: #{_lambda_.24} parent=0 // pred_check_branch
    %14 = sbr.rel (0) target = $region13
  $region12: #{_lambda_.24} parent=0 // pred_region
    _
  $region13: #{_lambda_.24} parent=0 // pred_fallthru
    _
  // Predicated region
  $region14: #{_lambda_.24} parent=0 // pred_check
    _
  $region15: #{_lambda_.24} parent=0 // pred_check_branch
    %16 = sbr.rel (0) target = $region17
  $region16: #{_lambda_.24} parent=0 // pred_region
    _
  $region17: #{_lambda_.24} parent=0 // pred_fallthru
    _
  %v18 = vld [vmem:[%s0] sm:$0xf]
  %v19 = vld [vmem:[%s0 + $0x4] sm:$0xf]
  %v20 = vld [vmem:[%s0 + $0x8] sm:$0xf]
  %v21 = vld [vmem:[%s0 + $0xc] sm:$0xf]
  %v22 = vld [vmem:[%s0 + $0x10] sm:$0xf]
  %v23 = vld [vmem:[%s0 + $0x14] sm:$0xf]
  %v24 = vld [vmem:[%s0 + $0x18] sm:$0xf]
  %v25 = vld [vmem:[%s0 + $0x1c] sm:$0xf]
  %v26 = vld [vmem:[%s0 + $0x20] sm:$0xf]
  %v27 = vld [vmem:[%s0 + $0x24] sm:$0xf]
  %v28 = vld [vmem:[%s0 + $0x28] sm:$0xf]
  %v29 = vld [vmem:[%s0 + $0x2c] sm:$0xf]
  %v30 = vld [vmem:[%s0 + $0x30] sm:$0xf]
  %v31 = vld [vmem:[%s0 + $0x34] sm:$0xf]
  %v32 = vld [vmem:[%s0 + $0x38] sm:$0xf]
  %v33 = vld [vmem:[%s0 + $0x3c] sm:$0xf]
  %v34 = vld [vmem:[%s1] sm:$0xf]
  %v35 = vld [vmem:[%s1 + $0x4] sm:$0xf]
  %v36 = vld [vmem:[%s1 + $0x8] sm:$0xf]
  %v37 = vld [vmem:[%s1 + $0xc] sm:$0xf]
  %v38 = vld [vmem:[%s1 + $0x10] sm:$0xf]
  %v39 = vld [vmem:[%s1 + $0x14] sm:$0xf]
  %v40 = vld [vmem:[%s1 + $0x18] sm:$0xf]
  %v41 = vld [vmem:[%s1 + $0x1c] sm:$0xf]
  %v42 = vld [vmem:[%s1 + $0x20] sm:$0xf]
  %v43 = vld [vmem:[%s1 + $0x24] sm:$0xf]
  %v44 = vld [vmem:[%s1 + $0x28] sm:$0xf]
  %v45 = vld [vmem:[%s1 + $0x2c] sm:$0xf]
  %v46 = vld [vmem:[%s1 + $0x30] sm:$0xf]
  %v47 = vld [vmem:[%s1 + $0x34] sm:$0xf]
  %v48 = vld [vmem:[%s1 + $0x38] sm:$0xf]
  %v49 = vld [vmem:[%s1 + $0x3c] sm:$0xf]
  %v66 = vunpack.c.l.b16 %v18
  %v67 = vunpack.c.l.b16 %v19
  %v68 = vunpack.c.l.b16 %v20
  %v69 = vunpack.c.l.b16 %v21
  %v70 = vunpack.c.l.b16 %v22
  %v71 = vunpack.c.l.b16 %v23
  %v72 = vunpack.c.l.b16 %v24
  %v73 = vunpack.c.l.b16 %v25
  %v74 = vunpack.c.l.b16 %v26
  %v75 = vunpack.c.l.b16 %v27
  %v76 = vunpack.c.l.b16 %v28
  %v77 = vunpack.c.l.b16 %v29
  %v78 = vunpack.c.l.b16 %v30
  %v79 = vunpack.c.l.b16 %v31
  %v80 = vunpack.c.l.b16 %v32
  %v81 = vunpack.c.l.b16 %v33
  %v82 = vpack.c.b16 %v67, %v66
  %v83 = vpack.c.b16 %v69, %v68
  %v84 = vpack.c.b16 %v71, %v70
  %v85 = vpack.c.b16 %v73, %v72
  %v86 = vpack.c.b16 %v75, %v74
  %v87 = vpack.c.b16 %v77, %v76
  %v88 = vpack.c.b16 %v79, %v78
  %v89 = vpack.c.b16 %v81, %v80
  %v114 = vunpack.c.l.b16 %v34
  %v115 = vunpack.c.l.b16 %v35
  %v116 = vunpack.c.l.b16 %v36
  %v117 = vunpack.c.l.b16 %v37
  %v118 = vunpack.c.l.b16 %v38
  %v119 = vunpack.c.l.b16 %v39
  %v120 = vunpack.c.l.b16 %v40
  %v121 = vunpack.c.l.b16 %v41
  %v122 = vunpack.c.l.b16 %v42
  %v123 = vunpack.c.l.b16 %v43
  %v124 = vunpack.c.l.b16 %v44
  %v125 = vunpack.c.l.b16 %v45
  %v126 = vunpack.c.l.b16 %v46
  %v127 = vunpack.c.l.b16 %v47
  %v128 = vunpack.c.l.b16 %v48
  %v129 = vunpack.c.l.b16 %v49
  %v130 = vpack.c.b16 %v115, %v114
  %v131 = vpack.c.b16 %v117, %v116
  %v132 = vpack.c.b16 %v119, %v118
  %v133 = vpack.c.b16 %v121, %v120
  %v134 = vpack.c.b16 %v123, %v122
  %v135 = vpack.c.b16 %v125, %v124
  %v136 = vpack.c.b16 %v127, %v126
  %v137 = vpack.c.b16 %v129, %v128
  %146 = vmatprep.subr.bf16.mxu0 0
  %147 = vmatpush1.bf16.msra.mxu0 %v130
  %148 = vmatprep.subr.bf16.mxu0 0
  %149 = vmatpush1.bf16.msra.mxu0 %v131
  %150 = vmatprep.subr.bf16.mxu0 0
  %151 = vmatpush1.bf16.msra.mxu0 %v132
  %152 = vmatprep.subr.bf16.mxu0 0
  %153 = vmatpush1.bf16.msra.mxu0 %v133
  %154 = vmatprep.subr.bf16.mxu0 0
  %155 = vmatpush1.bf16.msra.mxu0 %v134
  %156 = vmatprep.subr.bf16.mxu0 0
  %157 = vmatpush1.bf16.msra.mxu0 %v135
  %158 = vmatprep.subr.bf16.mxu0 0
  %159 = vmatpush1.bf16.msra.mxu0 %v136
  %160 = vmatprep.subr.bf16.mxu0 0
  %161 = vmatpush1.bf16.msra.mxu0 %v137
  %162 = vmatprep.subr.bf16.mxu0 0
  %163 = vmatpush1.bf16.msra.mxu0 0
  %164 = vmatprep.subr.bf16.mxu0 0
  %165 = vmatpush1.bf16.msra.mxu0 0
  %166 = vmatprep.subr.bf16.mxu0 0
  %167 = vmatpush1.bf16.msra.mxu0 0
  %168 = vmatprep.subr.bf16.mxu0 0
  %169 = vmatpush1.bf16.msra.mxu0 0
  %170 = vmatprep.subr.bf16.mxu0 0
  %171 = vmatpush1.bf16.msra.mxu0 0
  %172 = vmatprep.subr.bf16.mxu0 0
  %173 = vmatpush1.bf16.msra.mxu0 0
  %174 = vmatprep.subr.bf16.mxu0 0
  %175 = vmatpush1.bf16.msra.mxu0 0
  %176 = vmatprep.subr.bf16.mxu0 0
  %177 = vmatpush1.bf16.msra.mxu0 0
  %178 = vmatprep.mubr.bf16.mxu0 0
  %179 = vmatmul.mubr.bf16.gmra.mrb[0].mxu0 %v82
  %v180 = vpop.f32.mrb[0].mxu0
  %v181 = vadd.f32 0.0, %v180
  %v182 = vpop.f32.mrb[0].mxu0
  %v183 = vpop.f32.mrb[0].mxu0
  %v184 = vadd.f32 0.0, %v183
  %v185 = vpop.f32.mrb[0].mxu0
  %186 = vmatprep.mubr.bf16.mxu0 0
  %187 = vmatmul.mubr.bf16.gmra.mrb[0].mxu0 %v83
  %v188 = vpop.f32.mrb[0].mxu0
  %v189 = vadd.f32 0.0, %v188
  %v190 = vpop.f32.mrb[0].mxu0
  %v191 = vpop.f32.mrb[0].mxu0
  %v192 = vadd.f32 0.0, %v191
  %v193 = vpop.f32.mrb[0].mxu0
  %194 = vmatprep.mubr.bf16.mxu0 0
  %195 = vmatmul.mubr.bf16.gmra.mrb[0].mxu0 %v84
  %v196 = vpop.f32.mrb[0].mxu0
  %v197 = vadd.f32 0.0, %v196
  %v198 = vpop.f32.mrb[0].mxu0
  %v199 = vpop.f32.mrb[0].mxu0
  %v200 = vadd.f32 0.0, %v199
  %v201 = vpop.f32.mrb[0].mxu0
  %202 = vmatprep.mubr.bf16.mxu0 0
  %203 = vmatmul.mubr.bf16.gmra.mrb[0].mxu0 %v85
  %v204 = vpop.f32.mrb[0].mxu0
  %v205 = vadd.f32 0.0, %v204
  %v206 = vpop.f32.mrb[0].mxu0
  %v207 = vpop.f32.mrb[0].mxu0
  %v208 = vadd.f32 0.0, %v207
  %v209 = vpop.f32.mrb[0].mxu0
  %210 = vmatprep.mubr.bf16.mxu0 0
  %211 = vmatmul.mubr.bf16.gmra.mrb[0].mxu0 %v86
  %v212 = vpop.f32.mrb[0].mxu0
  %v213 = vadd.f32 0.0, %v212
  %v214 = vpop.f32.mrb[0].mxu0
  %v215 = vpop.f32.mrb[0].mxu0
  %v216 = vadd.f32 0.0, %v215
  %v217 = vpop.f32.mrb[0].mxu0
  %218 = vmatprep.mubr.bf16.mxu0 0
  %219 = vmatmul.mubr.bf16.gmra.mrb[0].mxu0 %v87
  %v220 = vpop.f32.mrb[0].mxu0
  %v221 = vadd.f32 0.0, %v220
  %v222 = vpop.f32.mrb[0].mxu0
  %v223 = vpop.f32.mrb[0].mxu0
  %v224 = vadd.f32 0.0, %v223
  %v225 = vpop.f32.mrb[0].mxu0
  %226 = vmatprep.mubr.bf16.mxu0 0
  %227 = vmatmul.mubr.bf16.gmra.mrb[0].mxu0 %v88
  %v228 = vpop.f32.mrb[0].mxu0
  %v229 = vadd.f32 0.0, %v228
  %v230 = vpop.f32.mrb[0].mxu0
  %v231 = vpop.f32.mrb[0].mxu0
  %v232 = vadd.f32 0.0, %v231
  %v233 = vpop.f32.mrb[0].mxu0
  %234 = vmatprep.mubr.bf16.mxu0 0
  %235 = vmatmul.mubr.bf16.gmra.mrb[0].mxu0 %v89
  %v236 = vpop.f32.mrb[0].mxu0
  %v237 = vadd.f32 0.0, %v236
  %v238 = vpop.f32.mrb[0].mxu0
  %v239 = vpop.f32.mrb[0].mxu0
  %v240 = vadd.f32 0.0, %v239
  %v241 = vpop.f32.mrb[0].mxu0
  %242 = vdwg.mxu0
  %v243 = vld [vmem:[%s2] sm:$0x1]
  %v245 = vlaneseq
  %v246 = vshrl.u32 %v245, 7
  %v247 = vsub.s32 0, %v246
  %v248 = vrot.slane %v243, %v247
  %v250 = vmul.f32 %v181, %v248
  %v251 = vmul.f32 %v184, %v248
  %v252 = vmul.f32 %v189, %v248
  %v253 = vmul.f32 %v192, %v248
  %v254 = vmul.f32 %v197, %v248
  %v255 = vmul.f32 %v200, %v248
  %v256 = vmul.f32 %v205, %v248
  %v257 = vmul.f32 %v208, %v248
  %v258 = vmul.f32 %v213, %v248
  %v259 = vmul.f32 %v216, %v248
  %v260 = vmul.f32 %v221, %v248
  %v261 = vmul.f32 %v224, %v248
  %v262 = vmul.f32 %v229, %v248
  %v263 = vmul.f32 %v232, %v248
  %v264 = vmul.f32 %v237, %v248
  %v265 = vmul.f32 %v240, %v248
  %v266 = vld [vmem:[%s3] sm:$0x1]
  %v268 = vlaneseq
  %v269 = vshrl.u32 %v268, 7
  %v270 = vsub.s32 0, %v269
  %v271 = vrot.slane %v266, %v270
  %v273 = vadd.f32 %v250, %v271
  %v274 = vadd.f32 %v251, %v271
  %v275 = vadd.f32 %v252, %v271
  %v276 = vadd.f32 %v253, %v271
  %v277 = vadd.f32 %v254, %v271
  %v278 = vadd.f32 %v255, %v271
  %v279 = vadd.f32 %v256, %v271
  %v280 = vadd.f32 %v257, %v271
  %v281 = vadd.f32 %v258, %v271
  %v282 = vadd.f32 %v259, %v271
  %v283 = vadd.f32 %v260, %v271
  %v284 = vadd.f32 %v261, %v271
  %v285 = vadd.f32 %v262, %v271
  %v286 = vadd.f32 %v263, %v271
  %v287 = vadd.f32 %v264, %v271
  %v288 = vadd.f32 %v265, %v271
  %v289 = vpack.c.bf16 %v274, %v273
  %v290 = vpack.c.bf16 %v276, %v275
  %v291 = vpack.c.bf16 %v278, %v277
  %v292 = vpack.c.bf16 %v280, %v279
  %v293 = vpack.c.bf16 %v282, %v281
  %v294 = vpack.c.bf16 %v284, %v283
  %v295 = vpack.c.bf16 %v286, %v285
  %v296 = vpack.c.bf16 %v288, %v287
  %v305 = vunpack.c.l.b16 %v289
  %v306 = vunpack.c.h.b16 %v289
  %v307 = vunpack.c.l.b16 %v290
  %v308 = vunpack.c.h.b16 %v290
  %v309 = vunpack.c.l.b16 %v291
  %v310 = vunpack.c.h.b16 %v291
  %v311 = vunpack.c.l.b16 %v292
  %v312 = vunpack.c.h.b16 %v292
  %v313 = vunpack.c.l.b16 %v293
  %v314 = vunpack.c.h.b16 %v293
  %v315 = vunpack.c.l.b16 %v294
  %v316 = vunpack.c.h.b16 %v294
  %v317 = vunpack.c.l.b16 %v295
  %v318 = vunpack.c.h.b16 %v295
  %v319 = vunpack.c.l.b16 %v296
  %v320 = vunpack.c.h.b16 %v296
  %v321 = vpack.c.b16 %v305, %v305
  %v322 = vpack.c.b16 %v306, %v306
  %v323 = vpack.c.b16 %v307, %v307
  %v324 = vpack.c.b16 %v308, %v308
  %v325 = vpack.c.b16 %v309, %v309
  %v326 = vpack.c.b16 %v310, %v310
  %v327 = vpack.c.b16 %v311, %v311
  %v328 = vpack.c.b16 %v312, %v312
  %v329 = vpack.c.b16 %v313, %v313
  %v330 = vpack.c.b16 %v314, %v314
  %v331 = vpack.c.b16 %v315, %v315
  %v332 = vpack.c.b16 %v316, %v316
  %v333 = vpack.c.b16 %v317, %v317
  %v334 = vpack.c.b16 %v318, %v318
  %v335 = vpack.c.b16 %v319, %v319
  %v336 = vpack.c.b16 %v320, %v320
  %353 = vst [vmem:[%s4] sm:$0xf] %v321
  %354 = vst [vmem:[%s4 + $0x4] sm:$0xf] %v322
  %355 = vst [vmem:[%s4 + $0x8] sm:$0xf] %v323
  %356 = vst [vmem:[%s4 + $0xc] sm:$0xf] %v324
  %357 = vst [vmem:[%s4 + $0x10] sm:$0xf] %v325
  %358 = vst [vmem:[%s4 + $0x14] sm:$0xf] %v326
  %359 = vst [vmem:[%s4 + $0x18] sm:$0xf] %v327
  %360 = vst [vmem:[%s4 + $0x1c] sm:$0xf] %v328
  %361 = vst [vmem:[%s4 + $0x20] sm:$0xf] %v329
  %362 = vst [vmem:[%s4 + $0x24] sm:$0xf] %v330
  %363 = vst [vmem:[%s4 + $0x28] sm:$0xf] %v331
  %364 = vst [vmem:[%s4 + $0x2c] sm:$0xf] %v332
  %365 = vst [vmem:[%s4 + $0x30] sm:$0xf] %v333
  %366 = vst [vmem:[%s4 + $0x34] sm:$0xf] %v334
  %367 = vst [vmem:[%s4 + $0x38] sm:$0xf] %v335
  %368 = vst [vmem:[%s4 + $0x3c] sm:$0xf] %v336
  // Predicated region
  $region18: #{_lambda_.24} parent=0 // pred_check
    _
  $region19: #{_lambda_.24} parent=0 // pred_check_branch
    %370 = sbr.rel (0) target = $region21
  $region20: #{_lambda_.24} parent=0 // pred_region
    _
  $region21: #{_lambda_.24} parent=0 // pred_fallthru
    _
  // Predicated region
  $region22: #{_lambda_.24} parent=0 // pred_check
    _
  $region23: #{_lambda_.24} parent=0 // pred_check_branch
    %372 = sbr.rel (0) target = $region25
  $region24: #{_lambda_.24} parent=0 // pred_region
    _
  $region25: #{_lambda_.24} parent=0 // pred_fallthru
    _

// kernel: _lambda_.23
$region0: #{_lambda_.23}
  #allocation0 [shape = 'u32[]', space=smem, size = 0x4, offset = 0x4, fixed_abs, tag = 'smem constant byte address 0x4 - core index']
  #allocation1 [shape = 'u32[144,128]{1,0:T(1,128)}', space=vmem, size = 0x12000, scoped, tag = 'internal scratch']
  %s0 = inlined_call_operand.vmem [shape: bf16[128,1152], index: 0, kind: input, shape index: {}]
  %s1 = inlined_call_operand.vmem [shape: bf16[1152,128], index: 1, kind: input, shape index: {}]
  %s2 = inlined_call_operand.vmem [shape: f32[1,128], index: 2, kind: input, shape index: {}]
  %s3 = inlined_call_operand.vmem [shape: f32[1,128], index: 3, kind: input, shape index: {}]
  %s4 = inlined_call_operand.vmem [shape: bf16[128,128], index: 4, kind: output, shape index: {}]
  %s5 = sld [smem:[#allocation0]]
  $region26: #{_lambda_.23} parent=0
    _
  %s7 = ssub.s32 1, %s5
  %s8 = scalar_select 0, %s7, %s5
  // Predicated region
  $region2: #{_lambda_.23} parent=0 // pred_check
    _
  $region3: #{_lambda_.23} parent=0 // pred_check_branch
    %10 = sbr.rel (0) target = $region5
  $region4: #{_lambda_.23} parent=0 // pred_region
    _
  $region5: #{_lambda_.23} parent=0 // pred_fallthru
    _
  // Predicated region
  $region6: #{_lambda_.23} parent=0 // pred_check
    _
  $region7: #{_lambda_.23} parent=0 // pred_check_branch
    %12 = sbr.rel (0) target = $region9
  $region8: #{_lambda_.23} parent=0 // pred_region
    _
  $region9: #{_lambda_.23} parent=0 // pred_fallthru
    _
  // Predicated region
  $region10: #{_lambda_.23} parent=0 // pred_check
    _
  $region11: #{_lambda_.23} parent=0 // pred_check_branch
    %14 = sbr.rel (0) target = $region13
  $region12: #{_lambda_.23} parent=0 // pred_region
    _
  $region13: #{_lambda_.23} parent=0 // pred_fallthru
    _
  // Predicated region
  $region14: #{_lambda_.23} parent=0 // pred_check
    _
  $region15: #{_lambda_.23} parent=0 // pred_check_branch
    %16 = sbr.rel (0) target = $region17
  $region16: #{_lambda_.23} parent=0 // pred_region
    _
  $region17: #{_lambda_.23} parent=0 // pred_fallthru
    _
  %v18 = vld [vmem:[%s0] sm:$0xff]
  %v19 = vld [vmem:[%s0 + $0x8] sm:$0xff]
  %v20 = vld [vmem:[%s0 + $0x10] sm:$0xff]
  %v21 = vld [vmem:[%s0 + $0x18] sm:$0xff]
  %v22 = vld [vmem:[%s0 + $0x20] sm:$0xf]
  %v23 = vld [vmem:[%s0 + $0x24] sm:$0xff]
  %v24 = vld [vmem:[%s0 + $0x2c] sm:$0xff]
  %v25 = vld [vmem:[%s0 + $0x34] sm:$0xff]
  %v26 = vld [vmem:[%s0 + $0x3c] sm:$0xff]
  %v27 = vld [vmem:[%s0 + $0x44] sm:$0xf]
  %v28 = vld [vmem:[%s0 + $0x48] sm:$0xff]
  %v29 = vld [vmem:[%s0 + $0x50] sm:$0xff]
  %v30 = vld [vmem:[%s0 + $0x58] sm:$0xff]
  %v31 = vld [vmem:[%s0 + $0x60] sm:$0xff]
  %v32 = vld [vmem:[%s0 + $0x68] sm:$0xf]
  %v33 = vld [vmem:[%s0 + $0x6c] sm:$0xff]
  %v34 = vld [vmem:[%s0 + $0x74] sm:$0xff]
  %v35 = vld [vmem:[%s0 + $0x7c] sm:$0xff]
  %v36 = vld [vmem:[%s0 + $0x84] sm:$0xff]
  %v37 = vld [vmem:[%s0 + $0x8c] sm:$0xf]
  %v38 = vld [vmem:[%s0 + $0x90] sm:$0xff]
  %v39 = vld [vmem:[%s0 + $0x98] sm:$0xff]
  %v40 = vld [vmem:[%s0 + $0xa0] sm:$0xff]
  %v41 = vld [vmem:[%s0 + $0xa8] sm:$0xff]
  %v42 = vld [vmem:[%s0 + $0xb0] sm:$0xf]
  %v43 = vld [vmem:[%s0 + $0xb4] sm:$0xff]
  %v44 = vld [vmem:[%s0 + $0xbc] sm:$0xff]
  %v45 = vld [vmem:[%s0 + $0xc4] sm:$0xff]
  %v46 = vld [vmem:[%s0 + $0xcc] sm:$0xff]
  %v47 = vld [vmem:[%s0 + $0xd4] sm:$0xf]
  %v48 = vld [vmem:[%s0 + $0xd8] sm:$0xff]
  %v49 = vld [vmem:[%s0 + $0xe0] sm:$0xff]
  %v50 = vld [vmem:[%s0 + $0xe8] sm:$0xff]
  %v51 = vld [vmem:[%s0 + $0xf0] sm:$0xff]
  %v52 = vld [vmem:[%s0 + $0xf8] sm:$0xf]
  %v53 = vld [vmem:[%s0 + $0xfc] sm:$0xff]
  %v54 = vld [vmem:[%s0 + $0x104] sm:$0xff]
  %v55 = vld [vmem:[%s0 + $0x10c] sm:$0xff]
  %v56 = vld [vmem:[%s0 + $0x114] sm:$0xff]
  %v57 = vld [vmem:[%s0 + $0x11c] sm:$0xf]
  %v58 = vld [vmem:[%s0 + $0x120] sm:$0xff]
  %v59 = vld [vmem:[%s0 + $0x128] sm:$0xff]
  %v60 = vld [vmem:[%s0 + $0x130] sm:$0xff]
  %v61 = vld [vmem:[%s0 + $0x138] sm:$0xff]
  %v62 = vld [vmem:[%s0 + $0x140] sm:$0xf]
  %v63 = vld [vmem:[%s0 + $0x144] sm:$0xff]
  %v64 = vld [vmem:[%s0 + $0x14c] sm:$0xff]
  %v65 = vld [vmem:[%s0 + $0x154] sm:$0xff]
  %v66 = vld [vmem:[%s0 + $0x15c] sm:$0xff]
  %v67 = vld [vmem:[%s0 + $0x164] sm:$0xf]
  %v68 = vld [vmem:[%s0 + $0x168] sm:$0xff]
  %v69 = vld [vmem:[%s0 + $0x170] sm:$0xff]
  %v70 = vld [vmem:[%s0 + $0x178] sm:$0xff]
  %v71 = vld [vmem:[%s0 + $0x180] sm:$0xff]
  %v72 = vld [vmem:[%s0 + $0x188] sm:$0xf]
  %v73 = vld [vmem:[%s0 + $0x18c] sm:$0xff]
  %v74 = vld [vmem:[%s0 + $0x194] sm:$0xff]
  %v75 = vld [vmem:[%s0 + $0x19c] sm:$0xff]
  %v76 = vld [vmem:[%s0 + $0x1a4] sm:$0xff]
  %v77 = vld [vmem:[%s0 + $0x1ac] sm:$0xf]
  %v78 = vld [vmem:[%s0 + $0x1b0] sm:$0xff]
  %v79 = vld [vmem:[%s0 + $0x1b8] sm:$0xff]
  %v80 = vld [vmem:[%s0 + $0x1c0] sm:$0xff]
  %v81 = vld [vmem:[%s0 + $0x1c8] sm:$0xff]
  %v82 = vld [vmem:[%s0 + $0x1d0] sm:$0xf]
  %v83 = vld [vmem:[%s0 + $0x1d4] sm:$0xff]
  %v84 = vld [vmem:[%s0 + $0x1dc] sm:$0xff]
  %v85 = vld [vmem:[%s0 + $0x1e4] sm:$0xff]
  %v86 = vld [vmem:[%s0 + $0x1ec] sm:$0xff]
  %v87 = vld [vmem:[%s0 + $0x1f4] sm:$0xf]
  %v88 = vld [vmem:[%s0 + $0x1f8] sm:$0xff]
  %v89 = vld [vmem:[%s0 + $0x200] sm:$0xff]
  %v90 = vld [vmem:[%s0 + $0x208] sm:$0xff]
  %v91 = vld [vmem:[%s0 + $0x210] sm:$0xff]
  %v92 = vld [vmem:[%s0 + $0x218] sm:$0xf]
  %v93 = vld [vmem:[%s0 + $0x21c] sm:$0xff]
  %v94 = vld [vmem:[%s0 + $0x224] sm:$0xff]
  %v95 = vld [vmem:[%s0 + $0x22c] sm:$0xff]
  %v96 = vld [vmem:[%s0 + $0x234] sm:$0xff]
  %v97 = vld [vmem:[%s0 + $0x23c] sm:$0xf]
  %v98 = vld [vmem:[%s1] sm:$0xf]
  %v99 = vld [vmem:[%s1 + $0x4] sm:$0xf]
  %v100 = vld [vmem:[%s1 + $0x8] sm:$0xf]
  %v101 = vld [vmem:[%s1 + $0xc] sm:$0xf]
  %v102 = vld [vmem:[%s1 + $0x10] sm:$0xf]
  %v103 = vld [vmem:[%s1 + $0x14] sm:$0xf]
  %v104 = vld [vmem:[%s1 + $0x18] sm:$0xf]
  %v105 = vld [vmem:[%s1 + $0x1c] sm:$0xf]
  %v106 = vld [vmem:[%s1 + $0x20] sm:$0xf]
  %v107 = vld [vmem:[%s1 + $0x24] sm:$0xf]
  %v108 = vld [vmem:[%s1 + $0x28] sm:$0xf]
  %v109 = vld [vmem:[%s1 + $0x2c] sm:$0xf]
  %v110 = vld [vmem:[%s1 + $0x30] sm:$0xf]
  %v111 = vld [vmem:[%s1 + $0x34] sm:$0xf]
  %v112 = vld [vmem:[%s1 + $0x38] sm:$0xf]
  %v113 = vld [vmem:[%s1 + $0x3c] sm:$0xf]
  %v114 = vld [vmem:[%s1 + $0x40] sm:$0xf]
  %v115 = vld [vmem:[%s1 + $0x44] sm:$0xf]
  %v116 = vld [vmem:[%s1 + $0x48] sm:$0xf]
  %v117 = vld [vmem:[%s1 + $0x4c] sm:$0xf]
  %v118 = vld [vmem:[%s1 + $0x50] sm:$0xf]
  %v119 = vld [vmem:[%s1 + $0x54] sm:$0xf]
  %v120 = vld [vmem:[%s1 + $0x58] sm:$0xf]
  %v121 = vld [vmem:[%s1 + $0x5c] sm:$0xf]
  %v122 = vld [vmem:[%s1 + $0x60] sm:$0xf]
  %v123 = vld [vmem:[%s1 + $0x64] sm:$0xf]
  %v124 = vld [vmem:[%s1 + $0x68] sm:$0xf]
  %v125 = vld [vmem:[%s1 + $0x6c] sm:$0xf]
  %v126 = vld [vmem:[%s1 + $0x70] sm:$0xf]
  %v127 = vld [vmem:[%s1 + $0x74] sm:$0xf]
  %v128 = vld [vmem:[%s1 + $0x78] sm:$0xf]
  %v129 = vld [vmem:[%s1 + $0x7c] sm:$0xf]
  %v130 = vld [vmem:[%s1 + $0x80] sm:$0xf]
  %v131 = vld [vmem:[%s1 + $0x84] sm:$0xf]
  %v132 = vld [vmem:[%s1 + $0x88] sm:$0xf]
  %v133 = vld [vmem:[%s1 + $0x8c] sm:$0xf]
  %v134 = vld [vmem:[%s1 + $0x90] sm:$0xf]
  %v135 = vld [vmem:[%s1 + $0x94] sm:$0xf]
  %v136 = vld [vmem:[%s1 + $0x98] sm:$0xf]
  %v137 = vld [vmem:[%s1 + $0x9c] sm:$0xf]
  %v138 = vld [vmem:[%s1 + $0xa0] sm:$0xf]
  %v139 = vld [vmem:[%s1 + $0xa4] sm:$0xf]
  %v140 = vld [vmem:[%s1 + $0xa8] sm:$0xf]
  %v141 = vld [vmem:[%s1 + $0xac] sm:$0xf]
  %v142 = vld [vmem:[%s1 + $0xb0] sm:$0xf]
  %v143 = vld [vmem:[%s1 + $0xb4] sm:$0xf]
  %v144 = vld [vmem:[%s1 + $0xb8] sm:$0xf]
  %v145 = vld [vmem:[%s1 + $0xbc] sm:$0xf]
  %v146 = vld [vmem:[%s1 + $0xc0] sm:$0xf]
  %v147 = vld [vmem:[%s1 + $0xc4] sm:$0xf]
  %v148 = vld [vmem:[%s1 + $0xc8] sm:$0xf]
  %v149 = vld [vmem:[%s1 + $0xcc] sm:$0xf]
  %v150 = vld [vmem:[%s1 + $0xd0] sm:$0xf]
  %v151 = vld [vmem:[%s1 + $0xd4] sm:$0xf]
  %v152 = vld [vmem:[%s1 + $0xd8] sm:$0xf]
  %v153 = vld [vmem:[%s1 + $0xdc] sm:$0xf]
  %v154 = vld [vmem:[%s1 + $0xe0] sm:$0xf]
  %v155 = vld [vmem:[%s1 + $0xe4] sm:$0xf]
  %v156 = vld [vmem:[%s1 + $0xe8] sm:$0xf]
  %v157 = vld [vmem:[%s1 + $0xec] sm:$0xf]
  %v158 = vld [vmem:[%s1 + $0xf0] sm:$0xf]
  %v159 = vld [vmem:[%s1 + $0xf4] sm:$0xf]
  %v160 = vld [vmem:[%s1 + $0xf8] sm:$0xf]
  %v161 = vld [vmem:[%s1 + $0xfc] sm:$0xf]
  %v162 = vld [vmem:[%s1 + $0x100] sm:$0xf]
  %v163 = vld [vmem:[%s1 + $0x104] sm:$0xf]
  %v164 = vld [vmem:[%s1 + $0x108] sm:$0xf]
  %v165 = vld [vmem:[%s1 + $0x10c] sm:$0xf]
  %v166 = vld [vmem:[%s1 + $0x110] sm:$0xf]
  %v167 = vld [vmem:[%s1 + $0x114] sm:$0xf]
  %v168 = vld [vmem:[%s1 + $0x118] sm:$0xf]
  %v169 = vld [vmem:[%s1 + $0x11c] sm:$0xf]
  %v170 = vld [vmem:[%s1 + $0x120] sm:$0xf]
  %v171 = vld [vmem:[%s1 + $0x124] sm:$0xf]
  %v172 = vld [vmem:[%s1 + $0x128] sm:$0xf]
  %v173 = vld [vmem:[%s1 + $0x12c] sm:$0xf]
  %v174 = vld [vmem:[%s1 + $0x130] sm:$0xf]
  %v175 = vld [vmem:[%s1 + $0x134] sm:$0xf]
  %v176 = vld [vmem:[%s1 + $0x138] sm:$0xf]
  %v177 = vld [vmem:[%s1 + $0x13c] sm:$0xf]
  %v178 = vld [vmem:[%s1 + $0x140] sm:$0xf]
  %v179 = vld [vmem:[%s1 + $0x144] sm:$0xf]
  %v180 = vld [vmem:[%s1 + $0x148] sm:$0xf]
  %v181 = vld [vmem:[%s1 + $0x14c] sm:$0xf]
  %v182 = vld [vmem:[%s1 + $0x150] sm:$0xf]
  %v183 = vld [vmem:[%s1 + $0x154] sm:$0xf]
  %v184 = vld [vmem:[%s1 + $0x158] sm:$0xf]
  %v185 = vld [vmem:[%s1 + $0x15c] sm:$0xf]
  %v186 = vld [vmem:[%s1 + $0x160] sm:$0xf]
  %v187 = vld [vmem:[%s1 + $0x164] sm:$0xf]
  %v188 = vld [vmem:[%s1 + $0x168] sm:$0xf]
  %v189 = vld [vmem:[%s1 + $0x16c] sm:$0xf]
  %v190 = vld [vmem:[%s1 + $0x170] sm:$0xf]
  %v191 = vld [vmem:[%s1 + $0x174] sm:$0xf]
  %v192 = vld [vmem:[%s1 + $0x178] sm:$0xf]
  %v193 = vld [vmem:[%s1 + $0x17c] sm:$0xf]
  %v194 = vld [vmem:[%s1 + $0x180] sm:$0xf]
  %v195 = vld [vmem:[%s1 + $0x184] sm:$0xf]
  %v196 = vld [vmem:[%s1 + $0x188] sm:$0xf]
  %v197 = vld [vmem:[%s1 + $0x18c] sm:$0xf]
  %v198 = vld [vmem:[%s1 + $0x190] sm:$0xf]
  %v199 = vld [vmem:[%s1 + $0x194] sm:$0xf]
  %v200 = vld [vmem:[%s1 + $0x198] sm:$0xf]
  %v201 = vld [vmem:[%s1 + $0x19c] sm:$0xf]
  %v202 = vld [vmem:[%s1 + $0x1a0] sm:$0xf]
  %v203 = vld [vmem:[%s1 + $0x1a4] sm:$0xf]
  %v204 = vld [vmem:[%s1 + $0x1a8] sm:$0xf]
  %v205 = vld [vmem:[%s1 + $0x1ac] sm:$0xf]
  %v206 = vld [vmem:[%s1 + $0x1b0] sm:$0xf]
  %v207 = vld [vmem:[%s1 + $0x1b4] sm:$0xf]
  %v208 = vld [vmem:[%s1 + $0x1b8] sm:$0xf]
  %v209 = vld [vmem:[%s1 + $0x1bc] sm:$0xf]
  %v210 = vld [vmem:[%s1 + $0x1c0] sm:$0xf]
  %v211 = vld [vmem:[%s1 + $0x1c4] sm:$0xf]
  %v212 = vld [vmem:[%s1 + $0x1c8] sm:$0xf]
  %v213 = vld [vmem:[%s1 + $0x1cc] sm:$0xf]
  %v214 = vld [vmem:[%s1 + $0x1d0] sm:$0xf]
  %v215 = vld [vmem:[%s1 + $0x1d4] sm:$0xf]
  %v216 = vld [vmem:[%s1 + $0x1d8] sm:$0xf]
  %v217 = vld [vmem:[%s1 + $0x1dc] sm:$0xf]
  %v218 = vld [vmem:[%s1 + $0x1e0] sm:$0xf]
  %v219 = vld [vmem:[%s1 + $0x1e4] sm:$0xf]
  %v220 = vld [vmem:[%s1 + $0x1e8] sm:$0xf]
  %v221 = vld [vmem:[%s1 + $0x1ec] sm:$0xf]
  %v222 = vld [vmem:[%s1 + $0x1f0] sm:$0xf]
  %v223 = vld [vmem:[%s1 + $0x1f4] sm:$0xf]
  %v224 = vld [vmem:[%s1 + $0x1f8] sm:$0xf]
  %v225 = vld [vmem:[%s1 + $0x1fc] sm:$0xf]
  %v226 = vld [vmem:[%s1 + $0x200] sm:$0xf]
  %v227 = vld [vmem:[%s1 + $0x204] sm:$0xf]
  %v228 = vld [vmem:[%s1 + $0x208] sm:$0xf]
  %v229 = vld [vmem:[%s1 + $0x20c] sm:$0xf]
  %v230 = vld [vmem:[%s1 + $0x210] sm:$0xf]
  %v231 = vld [vmem:[%s1 + $0x214] sm:$0xf]
  %v232 = vld [vmem:[%s1 + $0x218] sm:$0xf]
  %v233 = vld [vmem:[%s1 + $0x21c] sm:$0xf]
  %v234 = vld [vmem:[%s1 + $0x220] sm:$0xf]
  %v235 = vld [vmem:[%s1 + $0x224] sm:$0xf]
  %v236 = vld [vmem:[%s1 + $0x228] sm:$0xf]
  %v237 = vld [vmem:[%s1 + $0x22c] sm:$0xf]
  %v238 = vld [vmem:[%s1 + $0x230] sm:$0xf]
  %v239 = vld [vmem:[%s1 + $0x234] sm:$0xf]
  %v240 = vld [vmem:[%s1 + $0x238] sm:$0xf]
  %v241 = vld [vmem:[%s1 + $0x23c] sm:$0xf]
  %v322 = vunpack.c.l.b16 %v18
  %v323 = vunpack.c.h.b16 %v18
  %v324 = vunpack.c.l.b16 %v19
  %v325 = vunpack.c.h.b16 %v19
  %v326 = vunpack.c.l.b16 %v20
  %v327 = vunpack.c.h.b16 %v20
  %v328 = vunpack.c.l.b16 %v21
  %v329 = vunpack.c.h.b16 %v21
  %v330 = vunpack.c.l.b16 %v22
  %v331 = vunpack.c.l.b16 %v23
  %v332 = vunpack.c.h.b16 %v23
  %v333 = vunpack.c.l.b16 %v24
  %v334 = vunpack.c.h.b16 %v24
  %v335 = vunpack.c.l.b16 %v25
  %v336 = vunpack.c.h.b16 %v25
  %v337 = vunpack.c.l.b16 %v26
  %v338 = vunpack.c.h.b16 %v26
  %v339 = vunpack.c.l.b16 %v27
  %v340 = vunpack.c.l.b16 %v28
  %v341 = vunpack.c.h.b16 %v28
  %v342 = vunpack.c.l.b16 %v29
  %v343 = vunpack.c.h.b16 %v29
  %v344 = vunpack.c.l.b16 %v30
  %v345 = vunpack.c.h.b16 %v30
  %v346 = vunpack.c.l.b16 %v31
  %v347 = vunpack.c.h.b16 %v31
  %v348 = vunpack.c.l.b16 %v32
  %v349 = vunpack.c.l.b16 %v33
  %v350 = vunpack.c.h.b16 %v33
  %v351 = vunpack.c.l.b16 %v34
  %v352 = vunpack.c.h.b16 %v34
  %v353 = vunpack.c.l.b16 %v35
  %v354 = vunpack.c.h.b16 %v35
  %v355 = vunpack.c.l.b16 %v36
  %v356 = vunpack.c.h.b16 %v36
  %v357 = vunpack.c.l.b16 %v37
  %v358 = vunpack.c.l.b16 %v38
  %v359 = vunpack.c.h.b16 %v38
  %v360 = vunpack.c.l.b16 %v39
  %v361 = vunpack.c.h.b16 %v39
  %v362 = vunpack.c.l.b16 %v40
  %v363 = vunpack.c.h.b16 %v40
  %v364 = vunpack.c.l.b16 %v41
  %v365 = vunpack.c.h.b16 %v41
  %v366 = vunpack.c.l.b16 %v42
  %v367 = vunpack.c.l.b16 %v43
  %v368 = vunpack.c.h.b16 %v43
  %v369 = vunpack.c.l.b16 %v44
  %v370 = vunpack.c.h.b16 %v44
  %v371 = vunpack.c.l.b16 %v45
  %v372 = vunpack.c.h.b16 %v45
  %v373 = vunpack.c.l.b16 %v46
  %v374 = vunpack.c.h.b16 %v46
  %v375 = vunpack.c.l.b16 %v47
  %v376 = vunpack.c.l.b16 %v48
  %v377 = vunpack.c.h.b16 %v48
  %v378 = vunpack.c.l.b16 %v49
  %v379 = vunpack.c.h.b16 %v49
  %v380 = vunpack.c.l.b16 %v50
  %v381 = vunpack.c.h.b16 %v50
  %v382 = vunpack.c.l.b16 %v51
  %v383 = vunpack.c.h.b16 %v51
  %v384 = vunpack.c.l.b16 %v52
  %v385 = vunpack.c.l.b16 %v53
  %v386 = vunpack.c.h.b16 %v53
  %v387 = vunpack.c.l.b16 %v54
  %v388 = vunpack.c.h.b16 %v54
  %v389 = vunpack.c.l.b16 %v55
  %v390 = vunpack.c.h.b16 %v55
  %v391 = vunpack.c.l.b16 %v56
  %v392 = vunpack.c.h.b16 %v56
  %v393 = vunpack.c.l.b16 %v57
  %v394 = vunpack.c.l.b16 %v58
  %v395 = vunpack.c.h.b16 %v58
  %v396 = vunpack.c.l.b16 %v59
  %v397 = vunpack.c.h.b16 %v59
  %v398 = vunpack.c.l.b16 %v60
  %v399 = vunpack.c.h.b16 %v60
  %v400 = vunpack.c.l.b16 %v61
  %v401 = vunpack.c.h.b16 %v61
  %v402 = vunpack.c.l.b16 %v62
  %v403 = vunpack.c.l.b16 %v63
  %v404 = vunpack.c.h.b16 %v63
  %v405 = vunpack.c.l.b16 %v64
  %v406 = vunpack.c.h.b16 %v64
  %v407 = vunpack.c.l.b16 %v65
  %v408 = vunpack.c.h.b16 %v65
  %v409 = vunpack.c.l.b16 %v66
  %v410 = vunpack.c.h.b16 %v66
  %v411 = vunpack.c.l.b16 %v67
  %v412 = vunpack.c.l.b16 %v68
  %v413 = vunpack.c.h.b16 %v68
  %v414 = vunpack.c.l.b16 %v69
  %v415 = vunpack.c.h.b16 %v69
  %v416 = vunpack.c.l.b16 %v70
  %v417 = vunpack.c.h.b16 %v70
  %v418 = vunpack.c.l.b16 %v71
  %v419 = vunpack.c.h.b16 %v71
  %v420 = vunpack.c.l.b16 %v72
  %v421 = vunpack.c.l.b16 %v73
  %v422 = vunpack.c.h.b16 %v73
  %v423 = vunpack.c.l.b16 %v74
  %v424 = vunpack.c.h.b16 %v74
  %v425 = vunpack.c.l.b16 %v75
  %v426 = vunpack.c.h.b16 %v75
  %v427 = vunpack.c.l.b16 %v76
  %v428 = vunpack.c.h.b16 %v76
  %v429 = vunpack.c.l.b16 %v77
  %v430 = vunpack.c.l.b16 %v78
  %v431 = vunpack.c.h.b16 %v78
  %v432 = vunpack.c.l.b16 %v79
  %v433 = vunpack.c.h.b16 %v79
  %v434 = vunpack.c.l.b16 %v80
  %v435 = vunpack.c.h.b16 %v80
  %v436 = vunpack.c.l.b16 %v81
  %v437 = vunpack.c.h.b16 %v81
  %v438 = vunpack.c.l.b16 %v82
  %v439 = vunpack.c.l.b16 %v83
  %v440 = vunpack.c.h.b16 %v83
  %v441 = vunpack.c.l.b16 %v84
  %v442 = vunpack.c.h.b16 %v84
  %v443 = vunpack.c.l.b16 %v85
  %v444 = vunpack.c.h.b16 %v85
  %v445 = vunpack.c.l.b16 %v86
  %v446 = vunpack.c.h.b16 %v86
  %v447 = vunpack.c.l.b16 %v87
  %v448 = vunpack.c.l.b16 %v88
  %v449 = vunpack.c.h.b16 %v88
  %v450 = vunpack.c.l.b16 %v89
  %v451 = vunpack.c.h.b16 %v89
  %v452 = vunpack.c.l.b16 %v90
  %v453 = vunpack.c.h.b16 %v90
  %v454 = vunpack.c.l.b16 %v91
  %v455 = vunpack.c.h.b16 %v91
  %v456 = vunpack.c.l.b16 %v92
  %v457 = vunpack.c.l.b16 %v93
  %v458 = vunpack.c.h.b16 %v93
  %v459 = vunpack.c.l.b16 %v94
  %v460 = vunpack.c.h.b16 %v94
  %v461 = vunpack.c.l.b16 %v95
  %v462 = vunpack.c.h.b16 %v95
  %v463 = vunpack.c.l.b16 %v96
  %v464 = vunpack.c.h.b16 %v96
  %v465 = vunpack.c.l.b16 %v97
  %v466 = vpack.c.b16 %v331, %v322
  %v467 = vpack.c.b16 %v332, %v323
  %v468 = vpack.c.b16 %v333, %v324
  %v469 = vpack.c.b16 %v334, %v325
  %v470 = vpack.c.b16 %v335, %v326
  %v471 = vpack.c.b16 %v336, %v327
  %v472 = vpack.c.b16 %v337, %v328
  %v473 = vpack.c.b16 %v338, %v329
  %v474 = vpack.c.b16 %v339, %v330
  %v475 = vpack.c.b16 %v349, %v340
  %v476 = vpack.c.b16 %v350, %v341
  %v477 = vpack.c.b16 %v351, %v342
  %v478 = vpack.c.b16 %v352, %v343
  %v479 = vpack.c.b16 %v353, %v344
  %v480 = vpack.c.b16 %v354, %v345
  %v481 = vpack.c.b16 %v355, %v346
  %v482 = vpack.c.b16 %v356, %v347
  %v483 = vpack.c.b16 %v357, %v348
  %v484 = vpack.c.b16 %v367, %v358
  %v485 = vpack.c.b16 %v368, %v359
  %v486 = vpack.c.b16 %v369, %v360
  %v487 = vpack.c.b16 %v370, %v361
  %v488 = vpack.c.b16 %v371, %v362
  %v489 = vpack.c.b16 %v372, %v363
  %v490 = vpack.c.b16 %v373, %v364
  %v491 = vpack.c.b16 %v374, %v365
  %v492 = vpack.c.b16 %v375, %v366
  %v493 = vpack.c.b16 %v385, %v376
  %v494 = vpack.c.b16 %v386, %v377
  %v495 = vpack.c.b16 %v387, %v378
  %v496 = vpack.c.b16 %v388, %v379
  %v497 = vpack.c.b16 %v389, %v380
  %v498 = vpack.c.b16 %v390, %v381
  %v499 = vpack.c.b16 %v391, %v382
  %v500 = vpack.c.b16 %v392, %v383
  %v501 = vpack.c.b16 %v393, %v384
  %v502 = vpack.c.b16 %v403, %v394
  %v503 = vpack.c.b16 %v404, %v395
  %v504 = vpack.c.b16 %v405, %v396
  %v505 = vpack.c.b16 %v406, %v397
  %v506 = vpack.c.b16 %v407, %v398
  %v507 = vpack.c.b16 %v408, %v399
  %v508 = vpack.c.b16 %v409, %v400
  %v509 = vpack.c.b16 %v410, %v401
  %v510 = vpack.c.b16 %v411, %v402
  %v511 = vpack.c.b16 %v421, %v412
  %v512 = vpack.c.b16 %v422, %v413
  %v513 = vpack.c.b16 %v423, %v414
  %v514 = vpack.c.b16 %v424, %v415
  %v515 = vpack.c.b16 %v425, %v416
  %v516 = vpack.c.b16 %v426, %v417
  %v517 = vpack.c.b16 %v427, %v418
  %v518 = vpack.c.b16 %v428, %v419
  %v519 = vpack.c.b16 %v429, %v420
  %v520 = vpack.c.b16 %v439, %v430
  %v521 = vpack.c.b16 %v440, %v431
  %v522 = vpack.c.b16 %v441, %v432
  %v523 = vpack.c.b16 %v442, %v433
  %v524 = vpack.c.b16 %v443, %v434
  %v525 = vpack.c.b16 %v444, %v435
  %v526 = vpack.c.b16 %v445, %v436
  %v527 = vpack.c.b16 %v446, %v437
  %v528 = vpack.c.b16 %v447, %v438
  %v529 = vpack.c.b16 %v457, %v448
  %v530 = vpack.c.b16 %v458, %v449
  %v531 = vpack.c.b16 %v459, %v450
  %v532 = vpack.c.b16 %v460, %v451
  %v533 = vpack.c.b16 %v461, %v452
  %v534 = vpack.c.b16 %v462, %v453
  %v535 = vpack.c.b16 %v463, %v454
  %v536 = vpack.c.b16 %v464, %v455
  %v537 = vpack.c.b16 %v465, %v456
  %v754 = vunpack.c.l.b16 %v98
  %v755 = vunpack.c.l.b16 %v99
  %v756 = vunpack.c.l.b16 %v100
  %v757 = vunpack.c.l.b16 %v101
  %v758 = vunpack.c.l.b16 %v102
  %v759 = vunpack.c.l.b16 %v103
  %v760 = vunpack.c.l.b16 %v104
  %v761 = vunpack.c.l.b16 %v105
  %v762 = vunpack.c.l.b16 %v106
  %v763 = vunpack.c.l.b16 %v107
  %v764 = vunpack.c.l.b16 %v108
  %v765 = vunpack.c.l.b16 %v109
  %v766 = vunpack.c.l.b16 %v110
  %v767 = vunpack.c.l.b16 %v111
  %v768 = vunpack.c.l.b16 %v112
  %v769 = vunpack.c.l.b16 %v113
  %v770 = vunpack.c.l.b16 %v114
  %v771 = vunpack.c.l.b16 %v115
  %v772 = vunpack.c.l.b16 %v116
  %v773 = vunpack.c.l.b16 %v117
  %v774 = vunpack.c.l.b16 %v118
  %v775 = vunpack.c.l.b16 %v119
  %v776 = vunpack.c.l.b16 %v120
  %v777 = vunpack.c.l.b16 %v121
  %v778 = vunpack.c.l.b16 %v122
  %v779 = vunpack.c.l.b16 %v123
  %v780 = vunpack.c.l.b16 %v124
  %v781 = vunpack.c.l.b16 %v125
  %v782 = vunpack.c.l.b16 %v126
  %v783 = vunpack.c.l.b16 %v127
  %v784 = vunpack.c.l.b16 %v128
  %v785 = vunpack.c.l.b16 %v129
  %v786 = vunpack.c.l.b16 %v130
  %v787 = vunpack.c.l.b16 %v131
  %v788 = vunpack.c.l.b16 %v132
  %v789 = vunpack.c.l.b16 %v133
  %v790 = vunpack.c.l.b16 %v134
  %v791 = vunpack.c.l.b16 %v135
  %v792 = vunpack.c.l.b16 %v136
  %v793 = vunpack.c.l.b16 %v137
  %v794 = vunpack.c.l.b16 %v138
  %v795 = vunpack.c.l.b16 %v139
  %v796 = vunpack.c.l.b16 %v140
  %v797 = vunpack.c.l.b16 %v141
  %v798 = vunpack.c.l.b16 %v142
  %v799 = vunpack.c.l.b16 %v143
  %v800 = vunpack.c.l.b16 %v144
  %v801 = vunpack.c.l.b16 %v145
  %v802 = vunpack.c.l.b16 %v146
  %v803 = vunpack.c.l.b16 %v147
  %v804 = vunpack.c.l.b16 %v148
  %v805 = vunpack.c.l.b16 %v149
  %v806 = vunpack.c.l.b16 %v150
  %v807 = vunpack.c.l.b16 %v151
  %v808 = vunpack.c.l.b16 %v152
  %v809 = vunpack.c.l.b16 %v153
  %v810 = vunpack.c.l.b16 %v154
  %v811 = vunpack.c.l.b16 %v155
  %v812 = vunpack.c.l.b16 %v156
  %v813 = vunpack.c.l.b16 %v157
  %v814 = vunpack.c.l.b16 %v158
  %v815 = vunpack.c.l.b16 %v159
  %v816 = vunpack.c.l.b16 %v160
  %v817 = vunpack.c.l.b16 %v161
  %v818 = vunpack.c.l.b16 %v162
  %v819 = vunpack.c.l.b16 %v163
  %v820 = vunpack.c.l.b16 %v164
  %v821 = vunpack.c.l.b16 %v165
  %v822 = vunpack.c.l.b16 %v166
  %v823 = vunpack.c.l.b16 %v167
  %v824 = vunpack.c.l.b16 %v168
  %v825 = vunpack.c.l.b16 %v169
  %v826 = vunpack.c.l.b16 %v170
  %v827 = vunpack.c.l.b16 %v171
  %v828 = vunpack.c.l.b16 %v172
  %v829 = vunpack.c.l.b16 %v173
  %v830 = vunpack.c.l.b16 %v174
  %v831 = vunpack.c.l.b16 %v175
  %v832 = vunpack.c.l.b16 %v176
  %v833 = vunpack.c.l.b16 %v177
  %v834 = vunpack.c.l.b16 %v178
  %v835 = vunpack.c.l.b16 %v179
  %v836 = vunpack.c.l.b16 %v180
  %v837 = vunpack.c.l.b16 %v181
  %v838 = vunpack.c.l.b16 %v182
  %v839 = vunpack.c.l.b16 %v183
  %v840 = vunpack.c.l.b16 %v184
  %v841 = vunpack.c.l.b16 %v185
  %v842 = vunpack.c.l.b16 %v186
  %v843 = vunpack.c.l.b16 %v187
  %v844 = vunpack.c.l.b16 %v188
  %v845 = vunpack.c.l.b16 %v189
  %v846 = vunpack.c.l.b16 %v190
  %v847 = vunpack.c.l.b16 %v191
  %v848 = vunpack.c.l.b16 %v192
  %v849 = vunpack.c.l.b16 %v193
  %v850 = vunpack.c.l.b16 %v194
  %v851 = vunpack.c.l.b16 %v195
  %v852 = vunpack.c.l.b16 %v196
  %v853 = vunpack.c.l.b16 %v197
  %v854 = vunpack.c.l.b16 %v198
  %v855 = vunpack.c.l.b16 %v199
  %v856 = vunpack.c.l.b16 %v200
  %v857 = vunpack.c.l.b16 %v201
  %v858 = vunpack.c.l.b16 %v202
  %v859 = vunpack.c.l.b16 %v203
  %v860 = vunpack.c.l.b16 %v204
  %v861 = vunpack.c.l.b16 %v205
  %v862 = vunpack.c.l.b16 %v206
  %v863 = vunpack.c.l.b16 %v207
  %v864 = vunpack.c.l.b16 %v208
  %v865 = vunpack.c.l.b16 %v209
  %v866 = vunpack.c.l.b16 %v210
  %v867 = vunpack.c.l.b16 %v211
  %v868 = vunpack.c.l.b16 %v212
  %v869 = vunpack.c.l.b16 %v213
  %v870 = vunpack.c.l.b16 %v214
  %v871 = vunpack.c.l.b16 %v215
  %v872 = vunpack.c.l.b16 %v216
  %v873 = vunpack.c.l.b16 %v217
  %v874 = vunpack.c.l.b16 %v218
  %v875 = vunpack.c.l.b16 %v219
  %v876 = vunpack.c.l.b16 %v220
  %v877 = vunpack.c.l.b16 %v221
  %v878 = vunpack.c.l.b16 %v222
  %v879 = vunpack.c.l.b16 %v223
  %v880 = vunpack.c.l.b16 %v224
  %v881 = vunpack.c.l.b16 %v225
  %v882 = vunpack.c.l.b16 %v226
  %v883 = vunpack.c.l.b16 %v227
  %v884 = vunpack.c.l.b16 %v228
  %v885 = vunpack.c.l.b16 %v229
  %v886 = vunpack.c.l.b16 %v230
  %v887 = vunpack.c.l.b16 %v231
  %v888 = vunpack.c.l.b16 %v232
  %v889 = vunpack.c.l.b16 %v233
  %v890 = vunpack.c.l.b16 %v234
  %v891 = vunpack.c.l.b16 %v235
  %v892 = vunpack.c.l.b16 %v236
  %v893 = vunpack.c.l.b16 %v237
  %v894 = vunpack.c.l.b16 %v238
  %v895 = vunpack.c.l.b16 %v239
  %v896 = vunpack.c.l.b16 %v240
  %v897 = vunpack.c.l.b16 %v241
  %v898 = vpack.c.b16 %v755, %v754
  %v899 = vpack.c.b16 %v757, %v756
  %v900 = vpack.c.b16 %v759, %v758
  %v901 = vpack.c.b16 %v761, %v760
  %v902 = vpack.c.b16 %v763, %v762
  %v903 = vpack.c.b16 %v765, %v764
  %v904 = vpack.c.b16 %v767, %v766
  %v905 = vpack.c.b16 %v769, %v768
  %v906 = vpack.c.b16 %v771, %v770
  %v907 = vpack.c.b16 %v773, %v772
  %v908 = vpack.c.b16 %v775, %v774
  %v909 = vpack.c.b16 %v777, %v776
  %v910 = vpack.c.b16 %v779, %v778
  %v911 = vpack.c.b16 %v781, %v780
  %v912 = vpack.c.b16 %v783, %v782
  %v913 = vpack.c.b16 %v785, %v784
  %v914 = vpack.c.b16 %v787, %v786
  %v915 = vpack.c.b16 %v789, %v788
  %v916 = vpack.c.b16 %v791, %v790
  %v917 = vpack.c.b16 %v793, %v792
  %v918 = vpack.c.b16 %v795, %v794
  %v919 = vpack.c.b16 %v797, %v796
  %v920 = vpack.c.b16 %v799, %v798
  %v921 = vpack.c.b16 %v801, %v800
  %v922 = vpack.c.b16 %v803, %v802
  %v923 = vpack.c.b16 %v805, %v804
  %v924 = vpack.c.b16 %v807, %v806
  %v925 = vpack.c.b16 %v809, %v808
  %v926 = vpack.c.b16 %v811, %v810
  %v927 = vpack.c.b16 %v813, %v812
  %v928 = vpack.c.b16 %v815, %v814
  %v929 = vpack.c.b16 %v817, %v816
  %v930 = vpack.c.b16 %v819, %v818
  %v931 = vpack.c.b16 %v821, %v820
  %v932 = vpack.c.b16 %v823, %v822
  %v933 = vpack.c.b16 %v825, %v824
  %v934 = vpack.c.b16 %v827, %v826
  %v935 = vpack.c.b16 %v829, %v828
  %v936 = vpack.c.b16 %v831, %v830
  %v937 = vpack.c.b16 %v833, %v832
  %v938 = vpack.c.b16 %v835, %v834
  %v939 = vpack.c.b16 %v837, %v836
  %v940 = vpack.c.b16 %v839, %v838
  %v941 = vpack.c.b16 %v841, %v840
  %v942 = vpack.c.b16 %v843, %v842
  %v943 = vpack.c.b16 %v845, %v844
  %v944 = vpack.c.b16 %v847, %v846
  %v945 = vpack.c.b16 %v849, %v848
  %v946 = vpack.c.b16 %v851, %v850
  %v947 = vpack.c.b16 %v853, %v852
  %v948 = vpack.c.b16 %v855, %v854
  %v949 = vpack.c.b16 %v857, %v856
  %v950 = vpack.c.b16 %v859, %v858
  %v951 = vpack.c.b16 %v861, %v860
  %v952 = vpack.c.b16 %v863, %v862
  %v953 = vpack.c.b16 %v865, %v864
  %v954 = vpack.c.b16 %v867, %v866
  %v955 = vpack.c.b16 %v869, %v868
  %v956 = vpack.c.b16 %v871, %v870
  %v957 = vpack.c.b16 %v873, %v872
  %v958 = vpack.c.b16 %v875, %v874
  %v959 = vpack.c.b16 %v877, %v876
  %v960 = vpack.c.b16 %v879, %v878
  %v961 = vpack.c.b16 %v881, %v880
  %v962 = vpack.c.b16 %v883, %v882
  %v963 = vpack.c.b16 %v885, %v884
  %v964 = vpack.c.b16 %v887, %v886
  %v965 = vpack.c.b16 %v889, %v888
  %v966 = vpack.c.b16 %v891, %v890
  %v967 = vpack.c.b16 %v893, %v892
  %v968 = vpack.c.b16 %v895, %v894
  %v969 = vpack.c.b16 %v897, %v896
  %1042 = vmatprep.subr.bf16.mxu0 0
  %1043 = vmatpush1.bf16.msra.mxu0 %v898
  %1044 = vmatprep.subr.bf16.mxu0 0
  %1045 = vmatpush1.bf16.msra.mxu0 %v899
  %1046 = vmatprep.subr.bf16.mxu0 0
  %1047 = vmatpush1.bf16.msra.mxu0 %v900
  %1048 = vmatprep.subr.bf16.mxu0 0
  %1049 = vmatpush1.bf16.msra.mxu0 %v901
  %1050 = vmatprep.subr.bf16.mxu0 0
  %1051 = vmatpush1.bf16.msra.mxu0 %v902
  %1052 = vmatprep.subr.bf16.mxu0 0
  %1053 = vmatpush1.bf16.msra.mxu0 %v903
  %1054 = vmatprep.subr.bf16.mxu0 0
  %1055 = vmatpush1.bf16.msra.mxu0 %v904
  %1056 = vmatprep.subr.bf16.mxu0 0
  %1057 = vmatpush1.bf16.msra.mxu0 %v905
  %1058 = vmatprep.subr.bf16.mxu0 0
  %1059 = vmatpush1.bf16.msra.mxu0 %v906
  %1060 = vmatprep.subr.bf16.mxu0 0
  %1061 = vmatpush1.bf16.msra.mxu0 %v907
  %1062 = vmatprep.subr.bf16.mxu0 0
  %1063 = vmatpush1.bf16.msra.mxu0 %v908
  %1064 = vmatprep.subr.bf16.mxu0 0
  %1065 = vmatpush1.bf16.msra.mxu0 %v909
  %1066 = vmatprep.subr.bf16.mxu0 0
  %1067 = vmatpush1.bf16.msra.mxu0 %v910
  %1068 = vmatprep.subr.bf16.mxu0 0
  %1069 = vmatpush1.bf16.msra.mxu0 %v911
  %1070 = vmatprep.subr.bf16.mxu0 0
  %1071 = vmatpush1.bf16.msra.mxu0 %v912
  %1072 = vmatprep.subr.bf16.mxu0 0
  %1073 = vmatpush1.bf16.msra.mxu0 %v913
  %1074 = vmatprep.mubr.bf16.mxu0 %v467
  %1075 = vmatmul.mubr.bf16.gmra.mrb[0].mxu0 %v466
  %v1076 = vpop.f32.mrb[0].mxu0
  %v1077 = vadd.f32 0.0, %v1076
  %v1078 = vpop.f32.mrb[0].mxu0
  %v1079 = vpop.f32.mrb[0].mxu0
  %v1080 = vadd.f32 0.0, %v1079
  %v1081 = vpop.f32.mrb[0].mxu0
  %1082 = vmatprep.mubr.bf16.mxu0 %v476
  %1083 = vmatmul.mubr.bf16.gmra.mrb[0].mxu0 %v475
  %v1084 = vpop.f32.mrb[0].mxu0
  %v1085 = vadd.f32 0.0, %v1084
  %v1086 = vpop.f32.mrb[0].mxu0
  %v1087 = vpop.f32.mrb[0].mxu0
  %v1088 = vadd.f32 0.0, %v1087
  %v1089 = vpop.f32.mrb[0].mxu0
  %1090 = vmatprep.mubr.bf16.mxu0 %v485
  %1091 = vmatmul.mubr.bf16.gmra.mrb[0].mxu0 %v484
  %v1092 = vpop.f32.mrb[0].mxu0
  %v1093 = vadd.f32 0.0, %v1092
  %v1094 = vpop.f32.mrb[0].mxu0
  %v1095 = vpop.f32.mrb[0].mxu0
  %v1096 = vadd.f32 0.0, %v1095
  %v1097 = vpop.f32.mrb[0].mxu0
  %1098 = vmatprep.mubr.bf16.mxu0 %v494
  %1099 = vmatmul.mubr.bf16.gmra.mrb[0].mxu0 %v493
  %v1100 = vpop.f32.mrb[0].mxu0
  %v1101 = vadd.f32 0.0, %v1100
  %v1102 = vpop.f32.mrb[0].mxu0
  %v1103 = vpop.f32.mrb[0].mxu0
  %v1104 = vadd.f32 0.0, %v1103
  %v1105 = vpop.f32.mrb[0].mxu0
  %1106 = vmatprep.mubr.bf16.mxu0 %v503
  %1107 = vmatmul.mubr.bf16.gmra.mrb[0].mxu0 %v502
  %v1108 = vpop.f32.mrb[0].mxu0
  %v1109 = vadd.f32 0.0, %v1108
  %v1110 = vpop.f32.mrb[0].mxu0
  %v1111 = vpop.f32.mrb[0].mxu0
  %v1112 = vadd.f32 0.0, %v1111
  %v1113 = vpop.f32.mrb[0].mxu0
  %1114 = vmatprep.mubr.bf16.mxu0 %v512
  %1115 = vmatmul.mubr.bf16.gmra.mrb[0].mxu0 %v511
  %v1116 = vpop.f32.mrb[0].mxu0
  %v1117 = vadd.f32 0.0, %v1116
  %v1118 = vpop.f32.mrb[0].mxu0
  %v1119 = vpop.f32.mrb[0].mxu0
  %v1120 = vadd.f32 0.0, %v1119
  %v1121 = vpop.f32.mrb[0].mxu0
  %1122 = vmatprep.mubr.bf16.mxu0 %v521
  %1123 = vmatmul.mubr.bf16.gmra.mrb[0].mxu0 %v520
  %v1124 = vpop.f32.mrb[0].mxu0
  %v1125 = vadd.f32 0.0, %v1124
  %v1126 = vpop.f32.mrb[0].mxu0
  %v1127 = vpop.f32.mrb[0].mxu0
  %v1128 = vadd.f32 0.0, %v1127
  %v1129 = vpop.f32.mrb[0].mxu0
  %1130 = vmatprep.mubr.bf16.mxu0 %v530
  %1131 = vmatmul.mubr.bf16.gmra.mrb[0].mxu0 %v529
  %v1132 = vpop.f32.mrb[0].mxu0
  %v1133 = vadd.f32 0.0, %v1132
  %v1134 = vpop.f32.mrb[0].mxu0
  %v1135 = vpop.f32.mrb[0].mxu0
  %v1136 = vadd.f32 0.0, %v1135
  %v1137 = vpop.f32.mrb[0].mxu0
  %1138 = vdwg.mxu0
  %1139 = vmatprep.subr.bf16.mxu0 0
  %1140 = vmatpush1.bf16.msra.mxu0 %v914
  %1141 = vmatprep.subr.bf16.mxu0 0
  %1142 = vmatpush1.bf16.msra.mxu0 %v915
  %1143 = vmatprep.subr.bf16.mxu0 0
  %1144 = vmatpush1.bf16.msra.mxu0 %v916
  %1145 = vmatprep.subr.bf16.mxu0 0
  %1146 = vmatpush1.bf16.msra.mxu0 %v917
  %1147 = vmatprep.subr.bf16.mxu0 0
  %1148 = vmatpush1.bf16.msra.mxu0 %v918
  %1149 = vmatprep.subr.bf16.mxu0 0
  %1150 = vmatpush1.bf16.msra.mxu0 %v919
  %1151 = vmatprep.subr.bf16.mxu0 0
  %1152 = vmatpush1.bf16.msra.mxu0 %v920
  %1153 = vmatprep.subr.bf16.mxu0 0
  %1154 = vmatpush1.bf16.msra.mxu0 %v921
  %1155 = vmatprep.subr.bf16.mxu0 0
  %1156 = vmatpush1.bf16.msra.mxu0 %v922
  %1157 = vmatprep.subr.bf16.mxu0 0
  %1158 = vmatpush1.bf16.msra.mxu0 %v923
  %1159 = vmatprep.subr.bf16.mxu0 0
  %1160 = vmatpush1.bf16.msra.mxu0 %v924
  %1161 = vmatprep.subr.bf16.mxu0 0
  %1162 = vmatpush1.bf16.msra.mxu0 %v925
  %1163 = vmatprep.subr.bf16.mxu0 0
  %1164 = vmatpush1.bf16.msra.mxu0 %v926
  %1165 = vmatprep.subr.bf16.mxu0 0
  %1166 = vmatpush1.bf16.msra.mxu0 %v927
  %1167 = vmatprep.subr.bf16.mxu0 0
  %1168 = vmatpush1.bf16.msra.mxu0 %v928
  %1169 = vmatprep.subr.bf16.mxu0 0
  %1170 = vmatpush1.bf16.msra.mxu0 %v929
  %1171 = vmatprep.mubr.bf16.mxu0 %v469
  %1172 = vmatmul.mubr.bf16.gmra.mrb[0].mxu0 %v468
  %v1173 = vpop.f32.mrb[0].mxu0
  %v1174 = vadd.f32 %v1077, %v1173
  %v1175 = vpop.f32.mrb[0].mxu0
  %v1176 = vpop.f32.mrb[0].mxu0
  %v1177 = vadd.f32 %v1080, %v1176
  %v1178 = vpop.f32.mrb[0].mxu0
  %1179 = vmatprep.mubr.bf16.mxu0 %v478
  %1180 = vmatmul.mubr.bf16.gmra.mrb[0].mxu0 %v477
  %v1181 = vpop.f32.mrb[0].mxu0
  %v1182 = vadd.f32 %v1085, %v1181
  %v1183 = vpop.f32.mrb[0].mxu0
  %v1184 = vpop.f32.mrb[0].mxu0
  %v1185 = vadd.f32 %v1088, %v1184
  %v1186 = vpop.f32.mrb[0].mxu0
  %1187 = vmatprep.mubr.bf16.mxu0 %v487
  %1188 = vmatmul.mubr.bf16.gmra.mrb[0].mxu0 %v486
  %v1189 = vpop.f32.mrb[0].mxu0
  %v1190 = vadd.f32 %v1093, %v1189
  %v1191 = vpop.f32.mrb[0].mxu0
  %v1192 = vpop.f32.mrb[0].mxu0
  %v1193 = vadd.f32 %v1096, %v1192
  %v1194 = vpop.f32.mrb[0].mxu0
  %1195 = vmatprep.mubr.bf16.mxu0 %v496
  %1196 = vmatmul.mubr.bf16.gmra.mrb[0].mxu0 %v495
  %v1197 = vpop.f32.mrb[0].mxu0
  %v1198 = vadd.f32 %v1101, %v1197
  %v1199 = vpop.f32.mrb[0].mxu0
  %v1200 = vpop.f32.mrb[0].mxu0
  %v1201 = vadd.f32 %v1104, %v1200
  %v1202 = vpop.f32.mrb[0].mxu0
  %1203 = vmatprep.mubr.bf16.mxu0 %v505
  %1204 = vmatmul.mubr.bf16.gmra.mrb[0].mxu0 %v504
  %v1205 = vpop.f32.mrb[0].mxu0
  %v1206 = vadd.f32 %v1109, %v1205
  %v1207 = vpop.f32.mrb[0].mxu0
  %v1208 = vpop.f32.mrb[0].mxu0
  %v1209 = vadd.f32 %v1112, %v1208
  %v1210 = vpop.f32.mrb[0].mxu0
  %1211 = vmatprep.mubr.bf16.mxu0 %v514
  %1212 = vmatmul.mubr.bf16.gmra.mrb[0].mxu0 %v513
  %v1213 = vpop.f32.mrb[0].mxu0
  %v1214 = vadd.f32 %v1117, %v1213
  %v1215 = vpop.f32.mrb[0].mxu0
  %v1216 = vpop.f32.mrb[0].mxu0
  %v1217 = vadd.f32 %v1120, %v1216
  %v1218 = vpop.f32.mrb[0].mxu0
  %1219 = vmatprep.mubr.bf16.mxu0 %v523
  %1220 = vmatmul.mubr.bf16.gmra.mrb[0].mxu0 %v522
  %v1221 = vpop.f32.mrb[0].mxu0
  %v1222 = vadd.f32 %v1125, %v1221
  %v1223 = vpop.f32.mrb[0].mxu0
  %v1224 = vpop.f32.mrb[0].mxu0
  %v1225 = vadd.f32 %v1128, %v1224
  %v1226 = vpop.f32.mrb[0].mxu0
  %1227 = vmatprep.mubr.bf16.mxu0 %v532
  %1228 = vmatmul.mubr.bf16.gmra.mrb[0].mxu0 %v531
  %v1229 = vpop.f32.mrb[0].mxu0
  %v1230 = vadd.f32 %v1133, %v1229
  %v1231 = vpop.f32.mrb[0].mxu0
  %v1232 = vpop.f32.mrb[0].mxu0
  %v1233 = vadd.f32 %v1136, %v1232
  %v1234 = vpop.f32.mrb[0].mxu0
  %1235 = vdwg.mxu0
  %1236 = vmatprep.subr.bf16.mxu0 0
  %1237 = vmatpush1.bf16.msra.mxu0 %v930
  %1238 = vmatprep.subr.bf16.mxu0 0
  %1239 = vmatpush1.bf16.msra.mxu0 %v931
  %1240 = vmatprep.subr.bf16.mxu0 0
  %1241 = vmatpush1.bf16.msra.mxu0 %v932
  %1242 = vmatprep.subr.bf16.mxu0 0
  %1243 = vmatpush1.bf16.msra.mxu0 %v933
  %1244 = vmatprep.subr.bf16.mxu0 0
  %1245 = vmatpush1.bf16.msra.mxu0 %v934
  %1246 = vmatprep.subr.bf16.mxu0 0
  %1247 = vmatpush1.bf16.msra.mxu0 %v935
  %1248 = vmatprep.subr.bf16.mxu0 0
  %1249 = vmatpush1.bf16.msra.mxu0 %v936
  %1250 = vmatprep.subr.bf16.mxu0 0
  %1251 = vmatpush1.bf16.msra.mxu0 %v937
  %1252 = vmatprep.subr.bf16.mxu0 0
  %1253 = vmatpush1.bf16.msra.mxu0 %v938
  %1254 = vmatprep.subr.bf16.mxu0 0
  %1255 = vmatpush1.bf16.msra.mxu0 %v939
  %1256 = vmatprep.subr.bf16.mxu0 0
  %1257 = vmatpush1.bf16.msra.mxu0 %v940
  %1258 = vmatprep.subr.bf16.mxu0 0
  %1259 = vmatpush1.bf16.msra.mxu0 %v941
  %1260 = vmatprep.subr.bf16.mxu0 0
  %1261 = vmatpush1.bf16.msra.mxu0 %v942
  %1262 = vmatprep.subr.bf16.mxu0 0
  %1263 = vmatpush1.bf16.msra.mxu0 %v943
  %1264 = vmatprep.subr.bf16.mxu0 0
  %1265 = vmatpush1.bf16.msra.mxu0 %v944
  %1266 = vmatprep.subr.bf16.mxu0 0
  %1267 = vmatpush1.bf16.msra.mxu0 %v945
  %1268 = vmatprep.mubr.bf16.mxu0 %v471
  %1269 = vmatmul.mubr.bf16.gmra.mrb[0].mxu0 %v470
  %v1270 = vpop.f32.mrb[0].mxu0
  %v1271 = vadd.f32 %v1174, %v1270
  %v1272 = vpop.f32.mrb[0].mxu0
  %v1273 = vpop.f32.mrb[0].mxu0
  %v1274 = vadd.f32 %v1177, %v1273
  %v1275 = vpop.f32.mrb[0].mxu0
  %1276 = vmatprep.mubr.bf16.mxu0 %v480
  %1277 = vmatmul.mubr.bf16.gmra.mrb[0].mxu0 %v479
  %v1278 = vpop.f32.mrb[0].mxu0
  %v1279 = vadd.f32 %v1182, %v1278
  %v1280 = vpop.f32.mrb[0].mxu0
  %v1281 = vpop.f32.mrb[0].mxu0
  %v1282 = vadd.f32 %v1185, %v1281
  %v1283 = vpop.f32.mrb[0].mxu0
  %1284 = vmatprep.mubr.bf16.mxu0 %v489
  %1285 = vmatmul.mubr.bf16.gmra.mrb[0].mxu0 %v488
  %v1286 = vpop.f32.mrb[0].mxu0
  %v1287 = vadd.f32 %v1190, %v1286
  %v1288 = vpop.f32.mrb[0].mxu0
  %v1289 = vpop.f32.mrb[0].mxu0
  %v1290 = vadd.f32 %v1193, %v1289
  %v1291 = vpop.f32.mrb[0].mxu0
  %1292 = vmatprep.mubr.bf16.mxu0 %v498
  %1293 = vmatmul.mubr.bf16.gmra.mrb[0].mxu0 %v497
  %v1294 = vpop.f32.mrb[0].mxu0
  %v1295 = vadd.f32 %v1198, %v1294
  %v1296 = vpop.f32.mrb[0].mxu0
  %v1297 = vpop.f32.mrb[0].mxu0
  %v1298 = vadd.f32 %v1201, %v1297
  %v1299 = vpop.f32.mrb[0].mxu0
  %1300 = vmatprep.mubr.bf16.mxu0 %v507
  %1301 = vmatmul.mubr.bf16.gmra.mrb[0].mxu0 %v506
  %v1302 = vpop.f32.mrb[0].mxu0
  %v1303 = vadd.f32 %v1206, %v1302
  %v1304 = vpop.f32.mrb[0].mxu0
  %v1305 = vpop.f32.mrb[0].mxu0
  %v1306 = vadd.f32 %v1209, %v1305
  %v1307 = vpop.f32.mrb[0].mxu0
  %1308 = vmatprep.mubr.bf16.mxu0 %v516
  %1309 = vmatmul.mubr.bf16.gmra.mrb[0].mxu0 %v515
  %v1310 = vpop.f32.mrb[0].mxu0
  %v1311 = vadd.f32 %v1214, %v1310
  %v1312 = vpop.f32.mrb[0].mxu0
  %v1313 = vpop.f32.mrb[0].mxu0
  %v1314 = vadd.f32 %v1217, %v1313
  %v1315 = vpop.f32.mrb[0].mxu0
  %1316 = vmatprep.mubr.bf16.mxu0 %v525
  %1317 = vmatmul.mubr.bf16.gmra.mrb[0].mxu0 %v524
  %v1318 = vpop.f32.mrb[0].mxu0
  %v1319 = vadd.f32 %v1222, %v1318
  %v1320 = vpop.f32.mrb[0].mxu0
  %v1321 = vpop.f32.mrb[0].mxu0
  %v1322 = vadd.f32 %v1225, %v1321
  %v1323 = vpop.f32.mrb[0].mxu0
  %1324 = vmatprep.mubr.bf16.mxu0 %v534
  %1325 = vmatmul.mubr.bf16.gmra.mrb[0].mxu0 %v533
  %v1326 = vpop.f32.mrb[0].mxu0
  %v1327 = vadd.f32 %v1230, %v1326
  %v1328 = vpop.f32.mrb[0].mxu0
  %v1329 = vpop.f32.mrb[0].mxu0
  %v1330 = vadd.f32 %v1233, %v1329
  %v1331 = vpop.f32.mrb[0].mxu0
  %1332 = vdwg.mxu0
  %1333 = vmatprep.subr.bf16.mxu0 0
  %1334 = vmatpush1.bf16.msra.mxu0 %v946
  %1335 = vmatprep.subr.bf16.mxu0 0
  %1336 = vmatpush1.bf16.msra.mxu0 %v947
  %1337 = vmatprep.subr.bf16.mxu0 0
  %1338 = vmatpush1.bf16.msra.mxu0 %v948
  %1339 = vmatprep.subr.bf16.mxu0 0
  %1340 = vmatpush1.bf16.msra.mxu0 %v949
  %1341 = vmatprep.subr.bf16.mxu0 0
  %1342 = vmatpush1.bf16.msra.mxu0 %v950
  %1343 = vmatprep.subr.bf16.mxu0 0
  %1344 = vmatpush1.bf16.msra.mxu0 %v951
  %1345 = vmatprep.subr.bf16.mxu0 0
  %1346 = vmatpush1.bf16.msra.mxu0 %v952
  %1347 = vmatprep.subr.bf16.mxu0 0
  %1348 = vmatpush1.bf16.msra.mxu0 %v953
  %1349 = vmatprep.subr.bf16.mxu0 0
  %1350 = vmatpush1.bf16.msra.mxu0 %v954
  %1351 = vmatprep.subr.bf16.mxu0 0
  %1352 = vmatpush1.bf16.msra.mxu0 %v955
  %1353 = vmatprep.subr.bf16.mxu0 0
  %1354 = vmatpush1.bf16.msra.mxu0 %v956
  %1355 = vmatprep.subr.bf16.mxu0 0
  %1356 = vmatpush1.bf16.msra.mxu0 %v957
  %1357 = vmatprep.subr.bf16.mxu0 0
  %1358 = vmatpush1.bf16.msra.mxu0 %v958
  %1359 = vmatprep.subr.bf16.mxu0 0
  %1360 = vmatpush1.bf16.msra.mxu0 %v959
  %1361 = vmatprep.subr.bf16.mxu0 0
  %1362 = vmatpush1.bf16.msra.mxu0 %v960
  %1363 = vmatprep.subr.bf16.mxu0 0
  %1364 = vmatpush1.bf16.msra.mxu0 %v961
  %1365 = vmatprep.mubr.bf16.mxu0 %v473
  %1366 = vmatmul.mubr.bf16.gmra.mrb[0].mxu0 %v472
  %v1367 = vpop.f32.mrb[0].mxu0
  %v1368 = vadd.f32 %v1271, %v1367
  %v1369 = vpop.f32.mrb[0].mxu0
  %v1370 = vpop.f32.mrb[0].mxu0
  %v1371 = vadd.f32 %v1274, %v1370
  %v1372 = vpop.f32.mrb[0].mxu0
  %1373 = vmatprep.mubr.bf16.mxu0 %v482
  %1374 = vmatmul.mubr.bf16.gmra.mrb[0].mxu0 %v481
  %v1375 = vpop.f32.mrb[0].mxu0
  %v1376 = vadd.f32 %v1279, %v1375
  %v1377 = vpop.f32.mrb[0].mxu0
  %v1378 = vpop.f32.mrb[0].mxu0
  %v1379 = vadd.f32 %v1282, %v1378
  %v1380 = vpop.f32.mrb[0].mxu0
  %1381 = vmatprep.mubr.bf16.mxu0 %v491
  %1382 = vmatmul.mubr.bf16.gmra.mrb[0].mxu0 %v490
  %v1383 = vpop.f32.mrb[0].mxu0
  %v1384 = vadd.f32 %v1287, %v1383
  %v1385 = vpop.f32.mrb[0].mxu0
  %v1386 = vpop.f32.mrb[0].mxu0
  %v1387 = vadd.f32 %v1290, %v1386
  %v1388 = vpop.f32.mrb[0].mxu0
  %1389 = vmatprep.mubr.bf16.mxu0 %v500
  %1390 = vmatmul.mubr.bf16.gmra.mrb[0].mxu0 %v499
  %v1391 = vpop.f32.mrb[0].mxu0
  %v1392 = vadd.f32 %v1295, %v1391
  %v1393 = vpop.f32.mrb[0].mxu0
  %v1394 = vpop.f32.mrb[0].mxu0
  %v1395 = vadd.f32 %v1298, %v1394
  %v1396 = vpop.f32.mrb[0].mxu0
  %1397 = vmatprep.mubr.bf16.mxu0 %v509
  %1398 = vmatmul.mubr.bf16.gmra.mrb[0].mxu0 %v508
  %v1399 = vpop.f32.mrb[0].mxu0
  %v1400 = vadd.f32 %v1303, %v1399
  %v1401 = vpop.f32.mrb[0].mxu0
  %v1402 = vpop.f32.mrb[0].mxu0
  %v1403 = vadd.f32 %v1306, %v1402
  %v1404 = vpop.f32.mrb[0].mxu0
  %1405 = vmatprep.mubr.bf16.mxu0 %v518
  %1406 = vmatmul.mubr.bf16.gmra.mrb[0].mxu0 %v517
  %v1407 = vpop.f32.mrb[0].mxu0
  %v1408 = vadd.f32 %v1311, %v1407
  %v1409 = vpop.f32.mrb[0].mxu0
  %v1410 = vpop.f32.mrb[0].mxu0
  %v1411 = vadd.f32 %v1314, %v1410
  %v1412 = vpop.f32.mrb[0].mxu0
  %1413 = vmatprep.mubr.bf16.mxu0 %v527
  %1414 = vmatmul.mubr.bf16.gmra.mrb[0].mxu0 %v526
  %v1415 = vpop.f32.mrb[0].mxu0
  %v1416 = vadd.f32 %v1319, %v1415
  %v1417 = vpop.f32.mrb[0].mxu0
  %v1418 = vpop.f32.mrb[0].mxu0
  %v1419 = vadd.f32 %v1322, %v1418
  %v1420 = vpop.f32.mrb[0].mxu0
  %1421 = vmatprep.mubr.bf16.mxu0 %v536
  %1422 = vmatmul.mubr.bf16.gmra.mrb[0].mxu0 %v535
  %v1423 = vpop.f32.mrb[0].mxu0
  %v1424 = vadd.f32 %v1327, %v1423
  %v1425 = vpop.f32.mrb[0].mxu0
  %v1426 = vpop.f32.mrb[0].mxu0
  %v1427 = vadd.f32 %v1330, %v1426
  %v1428 = vpop.f32.mrb[0].mxu0
  %1429 = vdwg.mxu0
  %1430 = vmatprep.subr.bf16.mxu0 0
  %1431 = vmatpush1.bf16.msra.mxu0 %v962
  %1432 = vmatprep.subr.bf16.mxu0 0
  %1433 = vmatpush1.bf16.msra.mxu0 %v963
  %1434 = vmatprep.subr.bf16.mxu0 0
  %1435 = vmatpush1.bf16.msra.mxu0 %v964
  %1436 = vmatprep.subr.bf16.mxu0 0
  %1437 = vmatpush1.bf16.msra.mxu0 %v965
  %1438 = vmatprep.subr.bf16.mxu0 0
  %1439 = vmatpush1.bf16.msra.mxu0 %v966
  %1440 = vmatprep.subr.bf16.mxu0 0
  %1441 = vmatpush1.bf16.msra.mxu0 %v967
  %1442 = vmatprep.subr.bf16.mxu0 0
  %1443 = vmatpush1.bf16.msra.mxu0 %v968
  %1444 = vmatprep.subr.bf16.mxu0 0
  %1445 = vmatpush1.bf16.msra.mxu0 %v969
  %1446 = vmatprep.subr.bf16.mxu0 0
  %1447 = vmatpush1.bf16.msra.mxu0 0
  %1448 = vmatprep.subr.bf16.mxu0 0
  %1449 = vmatpush1.bf16.msra.mxu0 0
  %1450 = vmatprep.subr.bf16.mxu0 0
  %1451 = vmatpush1.bf16.msra.mxu0 0
  %1452 = vmatprep.subr.bf16.mxu0 0
  %1453 = vmatpush1.bf16.msra.mxu0 0
  %1454 = vmatprep.subr.bf16.mxu0 0
  %1455 = vmatpush1.bf16.msra.mxu0 0
  %1456 = vmatprep.subr.bf16.mxu0 0
  %1457 = vmatpush1.bf16.msra.mxu0 0
  %1458 = vmatprep.subr.bf16.mxu0 0
  %1459 = vmatpush1.bf16.msra.mxu0 0
  %1460 = vmatprep.subr.bf16.mxu0 0
  %1461 = vmatpush1.bf16.msra.mxu0 0
  %1462 = vmatprep.mubr.bf16.mxu0 0
  %1463 = vmatmul.mubr.bf16.gmra.mrb[0].mxu0 %v474
  %v1464 = vpop.f32.mrb[0].mxu0
  %v1465 = vadd.f32 %v1368, %v1464
  %v1466 = vpop.f32.mrb[0].mxu0
  %v1467 = vpop.f32.mrb[0].mxu0
  %v1468 = vadd.f32 %v1371, %v1467
  %v1469 = vpop.f32.mrb[0].mxu0
  %1470 = vmatprep.mubr.bf16.mxu0 0
  %1471 = vmatmul.mubr.bf16.gmra.mrb[0].mxu0 %v483
  %v1472 = vpop.f32.mrb[0].mxu0
  %v1473 = vadd.f32 %v1376, %v1472
  %v1474 = vpop.f32.mrb[0].mxu0
  %v1475 = vpop.f32.mrb[0].mxu0
  %v1476 = vadd.f32 %v1379, %v1475
  %v1477 = vpop.f32.mrb[0].mxu0
  %1478 = vmatprep.mubr.bf16.mxu0 0
  %1479 = vmatmul.mubr.bf16.gmra.mrb[0].mxu0 %v492
  %v1480 = vpop.f32.mrb[0].mxu0
  %v1481 = vadd.f32 %v1384, %v1480
  %v1482 = vpop.f32.mrb[0].mxu0
  %v1483 = vpop.f32.mrb[0].mxu0
  %v1484 = vadd.f32 %v1387, %v1483
  %v1485 = vpop.f32.mrb[0].mxu0
  %1486 = vmatprep.mubr.bf16.mxu0 0
  %1487 = vmatmul.mubr.bf16.gmra.mrb[0].mxu0 %v501
  %v1488 = vpop.f32.mrb[0].mxu0
  %v1489 = vadd.f32 %v1392, %v1488
  %v1490 = vpop.f32.mrb[0].mxu0
  %v1491 = vpop.f32.mrb[0].mxu0
  %v1492 = vadd.f32 %v1395, %v1491
  %v1493 = vpop.f32.mrb[0].mxu0
  %1494 = vmatprep.mubr.bf16.mxu0 0
  %1495 = vmatmul.mubr.bf16.gmra.mrb[0].mxu0 %v510
  %v1496 = vpop.f32.mrb[0].mxu0
  %v1497 = vadd.f32 %v1400, %v1496
  %v1498 = vpop.f32.mrb[0].mxu0
  %v1499 = vpop.f32.mrb[0].mxu0
  %v1500 = vadd.f32 %v1403, %v1499
  %v1501 = vpop.f32.mrb[0].mxu0
  %1502 = vmatprep.mubr.bf16.mxu0 0
  %1503 = vmatmul.mubr.bf16.gmra.mrb[0].mxu0 %v519
  %v1504 = vpop.f32.mrb[0].mxu0
  %v1505 = vadd.f32 %v1408, %v1504
  %v1506 = vpop.f32.mrb[0].mxu0
  %v1507 = vpop.f32.mrb[0].mxu0
  %v1508 = vadd.f32 %v1411, %v1507
  %v1509 = vpop.f32.mrb[0].mxu0
  %1510 = vmatprep.mubr.bf16.mxu0 0
  %1511 = vmatmul.mubr.bf16.gmra.mrb[0].mxu0 %v528
  %v1512 = vpop.f32.mrb[0].mxu0
  %v1513 = vadd.f32 %v1416, %v1512
  %v1514 = vpop.f32.mrb[0].mxu0
  %v1515 = vpop.f32.mrb[0].mxu0
  %v1516 = vadd.f32 %v1419, %v1515
  %v1517 = vpop.f32.mrb[0].mxu0
  %1518 = vmatprep.mubr.bf16.mxu0 0
  %1519 = vmatmul.mubr.bf16.gmra.mrb[0].mxu0 %v537
  %v1520 = vpop.f32.mrb[0].mxu0
  %v1521 = vadd.f32 %v1424, %v1520
  %v1522 = vpop.f32.mrb[0].mxu0
  %v1523 = vpop.f32.mrb[0].mxu0
  %v1524 = vadd.f32 %v1427, %v1523
  %v1525 = vpop.f32.mrb[0].mxu0
  %1526 = vdwg.mxu0
  %v1527 = vld [vmem:[%s2] sm:$0x1]
  %v1529 = vlaneseq
  %v1530 = vshrl.u32 %v1529, 7
  %v1531 = vsub.s32 0, %v1530
  %v1532 = vrot.slane %v1527, %v1531
  %v1534 = vmul.f32 %v1465, %v1532
  %v1535 = vmul.f32 %v1468, %v1532
  %v1536 = vmul.f32 %v1473, %v1532
  %v1537 = vmul.f32 %v1476, %v1532
  %v1538 = vmul.f32 %v1481, %v1532
  %v1539 = vmul.f32 %v1484, %v1532
  %v1540 = vmul.f32 %v1489, %v1532
  %v1541 = vmul.f32 %v1492, %v1532
  %v1542 = vmul.f32 %v1497, %v1532
  %v1543 = vmul.f32 %v1500, %v1532
  %v1544 = vmul.f32 %v1505, %v1532
  %v1545 = vmul.f32 %v1508, %v1532
  %v1546 = vmul.f32 %v1513, %v1532
  %v1547 = vmul.f32 %v1516, %v1532
  %v1548 = vmul.f32 %v1521, %v1532
  %v1549 = vmul.f32 %v1524, %v1532
  %v1550 = vld [vmem:[%s3] sm:$0x1]
  %v1552 = vlaneseq
  %v1553 = vshrl.u32 %v1552, 7
  %v1554 = vsub.s32 0, %v1553
  %v1555 = vrot.slane %v1550, %v1554
  %v1557 = vadd.f32 %v1534, %v1555
  %v1558 = vadd.f32 %v1535, %v1555
  %v1559 = vadd.f32 %v1536, %v1555
  %v1560 = vadd.f32 %v1537, %v1555
  %v1561 = vadd.f32 %v1538, %v1555
  %v1562 = vadd.f32 %v1539, %v1555
  %v1563 = vadd.f32 %v1540, %v1555
  %v1564 = vadd.f32 %v1541, %v1555
  %v1565 = vadd.f32 %v1542, %v1555
  %v1566 = vadd.f32 %v1543, %v1555
  %v1567 = vadd.f32 %v1544, %v1555
  %v1568 = vadd.f32 %v1545, %v1555
  %v1569 = vadd.f32 %v1546, %v1555
  %v1570 = vadd.f32 %v1547, %v1555
  %v1571 = vadd.f32 %v1548, %v1555
  %v1572 = vadd.f32 %v1549, %v1555
  %v1573 = vmax.f32 %v1557, 0.0
  %v1574 = vmax.f32 %v1558, 0.0
  %v1575 = vmax.f32 %v1559, 0.0
  %v1576 = vmax.f32 %v1560, 0.0
  %v1577 = vmax.f32 %v1561, 0.0
  %v1578 = vmax.f32 %v1562, 0.0
  %v1579 = vmax.f32 %v1563, 0.0
  %v1580 = vmax.f32 %v1564, 0.0
  %v1581 = vmax.f32 %v1565, 0.0
  %v1582 = vmax.f32 %v1566, 0.0
  %v1583 = vmax.f32 %v1567, 0.0
  %v1584 = vmax.f32 %v1568, 0.0
  %v1585 = vmax.f32 %v1569, 0.0
  %v1586 = vmax.f32 %v1570, 0.0
  %v1587 = vmax.f32 %v1571, 0.0
  %v1588 = vmax.f32 %v1572, 0.0
  %v1589 = vpack.c.bf16 %v1574, %v1573
  %v1590 = vpack.c.bf16 %v1576, %v1575
  %v1591 = vpack.c.bf16 %v1578, %v1577
  %v1592 = vpack.c.bf16 %v1580, %v1579
  %v1593 = vpack.c.bf16 %v1582, %v1581
  %v1594 = vpack.c.bf16 %v1584, %v1583
  %v1595 = vpack.c.bf16 %v1586, %v1585
  %v1596 = vpack.c.bf16 %v1588, %v1587
  %v1605 = vunpack.c.l.b16 %v1589
  %v1606 = vunpack.c.h.b16 %v1589
  %v1607 = vunpack.c.l.b16 %v1590
  %v1608 = vunpack.c.h.b16 %v1590
  %v1609 = vunpack.c.l.b16 %v1591
  %v1610 = vunpack.c.h.b16 %v1591
  %v1611 = vunpack.c.l.b16 %v1592
  %v1612 = vunpack.c.h.b16 %v1592
  %v1613 = vunpack.c.l.b16 %v1593
  %v1614 = vunpack.c.h.b16 %v1593
  %v1615 = vunpack.c.l.b16 %v1594
  %v1616 = vunpack.c.h.b16 %v1594
  %v1617 = vunpack.c.l.b16 %v1595
  %v1618 = vunpack.c.h.b16 %v1595
  %v1619 = vunpack.c.l.b16 %v1596
  %v1620 = vunpack.c.h.b16 %v1596
  %v1621 = vpack.c.b16 %v1605, %v1605
  %v1622 = vpack.c.b16 %v1606, %v1606
  %v1623 = vpack.c.b16 %v1607, %v1607
  %v1624 = vpack.c.b16 %v1608, %v1608
  %v1625 = vpack.c.b16 %v1609, %v1609
  %v1626 = vpack.c.b16 %v1610, %v1610
  %v1627 = vpack.c.b16 %v1611, %v1611
  %v1628 = vpack.c.b16 %v1612, %v1612
  %v1629 = vpack.c.b16 %v1613, %v1613
  %v1630 = vpack.c.b16 %v1614, %v1614
  %v1631 = vpack.c.b16 %v1615, %v1615
  %v1632 = vpack.c.b16 %v1616, %v1616
  %v1633 = vpack.c.b16 %v1617, %v1617
  %v1634 = vpack.c.b16 %v1618, %v1618
  %v1635 = vpack.c.b16 %v1619, %v1619
  %v1636 = vpack.c.b16 %v1620, %v1620
  %1653 = vst [vmem:[%s4] sm:$0xf] %v1621
  %1654 = vst [vmem:[%s4 + $0x4] sm:$0xf] %v1622
  %1655 = vst [vmem:[%s4 + $0x8] sm:$0xf] %v1623
  %1656 = vst [vmem:[%s4 + $0xc] sm:$0xf] %v1624
  %1657 = vst [vmem:[%s4 + $0x10] sm:$0xf] %v1625
  %1658 = vst [vmem:[%s4 + $0x14] sm:$0xf] %v1626
  %1659 = vst [vmem:[%s4 + $0x18] sm:$0xf] %v1627
  %1660 = vst [vmem:[%s4 + $0x1c] sm:$0xf] %v1628
  %1661 = vst [vmem:[%s4 + $0x20] sm:$0xf] %v1629
  %1662 = vst [vmem:[%s4 + $0x24] sm:$0xf] %v1630
  %1663 = vst [vmem:[%s4 + $0x28] sm:$0xf] %v1631
  %1664 = vst [vmem:[%s4 + $0x2c] sm:$0xf] %v1632
  %1665 = vst [vmem:[%s4 + $0x30] sm:$0xf] %v1633
  %1666 = vst [vmem:[%s4 + $0x34] sm:$0xf] %v1634
  %1667 = vst [vmem:[%s4 + $0x38] sm:$0xf] %v1635
  %1668 = vst [vmem:[%s4 + $0x3c] sm:$0xf] %v1636
  // Predicated region
  $region18: #{_lambda_.23} parent=0 // pred_check
    _
  $region19: #{_lambda_.23} parent=0 // pred_check_branch
    %1670 = sbr.rel (0) target = $region21
  $region20: #{_lambda_.23} parent=0 // pred_region
    _
  $region21: #{_lambda_.23} parent=0 // pred_fallthru
    _
  // Predicated region
  $region22: #{_lambda_.23} parent=0 // pred_check
    _
  $region23: #{_lambda_.23} parent=0 // pred_check_branch
    %1672 = sbr.rel (0) target = $region25
  $region24: #{_lambda_.23} parent=0 // pred_region
    _
  $region25: #{_lambda_.23} parent=0 // pred_fallthru
    _

// kernel: _lambda_.25
$region0: #{_lambda_.25}
  #allocation0 [shape = 'u32[]', space=smem, size = 0x4, offset = 0x4, fixed_abs, tag = 'smem constant byte address 0x4 - core index']
  #allocation1 [shape = 'u32[144,128]{1,0:T(1,128)}', space=vmem, size = 0x12000, scoped, tag = 'internal scratch']
  %s0 = inlined_call_operand.vmem [shape: bf16[128,1152], index: 0, kind: input, shape index: {}]
  %s1 = inlined_call_operand.vmem [shape: bf16[1152,128], index: 1, kind: input, shape index: {}]
  %s2 = inlined_call_operand.vmem [shape: f32[1,128], index: 2, kind: input, shape index: {}]
  %s3 = inlined_call_operand.vmem [shape: f32[1,128], index: 3, kind: input, shape index: {}]
  %s4 = inlined_call_operand.vmem [shape: bf16[128,128], index: 4, kind: input, shape index: {}]
  %s5 = inlined_call_operand.vmem [shape: bf16[128,128], index: 5, kind: output, shape index: {}]
  %s6 = sld [smem:[#allocation0]]
  $region30: #{_lambda_.25} parent=0
    _
  %s8 = ssub.s32 1, %s6
  %s9 = scalar_select 0, %s8, %s6
  // Predicated region
  $region2: #{_lambda_.25} parent=0 // pred_check
    _
  $region3: #{_lambda_.25} parent=0 // pred_check_branch
    %11 = sbr.rel (0) target = $region5
  $region4: #{_lambda_.25} parent=0 // pred_region
    _
  $region5: #{_lambda_.25} parent=0 // pred_fallthru
    _
  // Predicated region
  $region6: #{_lambda_.25} parent=0 // pred_check
    _
  $region7: #{_lambda_.25} parent=0 // pred_check_branch
    %13 = sbr.rel (0) target = $region9
  $region8: #{_lambda_.25} parent=0 // pred_region
    _
  $region9: #{_lambda_.25} parent=0 // pred_fallthru
    _
  // Predicated region
  $region10: #{_lambda_.25} parent=0 // pred_check
    _
  $region11: #{_lambda_.25} parent=0 // pred_check_branch
    %15 = sbr.rel (0) target = $region13
  $region12: #{_lambda_.25} parent=0 // pred_region
    _
  $region13: #{_lambda_.25} parent=0 // pred_fallthru
    _
  // Predicated region
  $region14: #{_lambda_.25} parent=0 // pred_check
    _
  $region15: #{_lambda_.25} parent=0 // pred_check_branch
    %17 = sbr.rel (0) target = $region17
  $region16: #{_lambda_.25} parent=0 // pred_region
    _
  $region17: #{_lambda_.25} parent=0 // pred_fallthru
    _
  // Predicated region
  $region18: #{_lambda_.25} parent=0 // pred_check
    _
  $region19: #{_lambda_.25} parent=0 // pred_check_branch
    %19 = sbr.rel (0) target = $region21
  $region20: #{_lambda_.25} parent=0 // pred_region
    _
  $region21: #{_lambda_.25} parent=0 // pred_fallthru
    _
  %v21 = vld [vmem:[%s0] sm:$0xff]
  %v22 = vld [vmem:[%s0 + $0x8] sm:$0xff]
  %v23 = vld [vmem:[%s0 + $0x10] sm:$0xff]
  %v24 = vld [vmem:[%s0 + $0x18] sm:$0xff]
  %v25 = vld [vmem:[%s0 + $0x20] sm:$0xf]
  %v26 = vld [vmem:[%s0 + $0x24] sm:$0xff]
  %v27 = vld [vmem:[%s0 + $0x2c] sm:$0xff]
  %v28 = vld [vmem:[%s0 + $0x34] sm:$0xff]
  %v29 = vld [vmem:[%s0 + $0x3c] sm:$0xff]
  %v30 = vld [vmem:[%s0 + $0x44] sm:$0xf]
  %v31 = vld [vmem:[%s0 + $0x48] sm:$0xff]
  %v32 = vld [vmem:[%s0 + $0x50] sm:$0xff]
  %v33 = vld [vmem:[%s0 + $0x58] sm:$0xff]
  %v34 = vld [vmem:[%s0 + $0x60] sm:$0xff]
  %v35 = vld [vmem:[%s0 + $0x68] sm:$0xf]
  %v36 = vld [vmem:[%s0 + $0x6c] sm:$0xff]
  %v37 = vld [vmem:[%s0 + $0x74] sm:$0xff]
  %v38 = vld [vmem:[%s0 + $0x7c] sm:$0xff]
  %v39 = vld [vmem:[%s0 + $0x84] sm:$0xff]
  %v40 = vld [vmem:[%s0 + $0x8c] sm:$0xf]
  %v41 = vld [vmem:[%s0 + $0x90] sm:$0xff]
  %v42 = vld [vmem:[%s0 + $0x98] sm:$0xff]
  %v43 = vld [vmem:[%s0 + $0xa0] sm:$0xff]
  %v44 = vld [vmem:[%s0 + $0xa8] sm:$0xff]
  %v45 = vld [vmem:[%s0 + $0xb0] sm:$0xf]
  %v46 = vld [vmem:[%s0 + $0xb4] sm:$0xff]
  %v47 = vld [vmem:[%s0 + $0xbc] sm:$0xff]
  %v48 = vld [vmem:[%s0 + $0xc4] sm:$0xff]
  %v49 = vld [vmem:[%s0 + $0xcc] sm:$0xff]
  %v50 = vld [vmem:[%s0 + $0xd4] sm:$0xf]
  %v51 = vld [vmem:[%s0 + $0xd8] sm:$0xff]
  %v52 = vld [vmem:[%s0 + $0xe0] sm:$0xff]
  %v53 = vld [vmem:[%s0 + $0xe8] sm:$0xff]
  %v54 = vld [vmem:[%s0 + $0xf0] sm:$0xff]
  %v55 = vld [vmem:[%s0 + $0xf8] sm:$0xf]
  %v56 = vld [vmem:[%s0 + $0xfc] sm:$0xff]
  %v57 = vld [vmem:[%s0 + $0x104] sm:$0xff]
  %v58 = vld [vmem:[%s0 + $0x10c] sm:$0xff]
  %v59 = vld [vmem:[%s0 + $0x114] sm:$0xff]
  %v60 = vld [vmem:[%s0 + $0x11c] sm:$0xf]
  %v61 = vld [vmem:[%s0 + $0x120] sm:$0xff]
  %v62 = vld [vmem:[%s0 + $0x128] sm:$0xff]
  %v63 = vld [vmem:[%s0 + $0x130] sm:$0xff]
  %v64 = vld [vmem:[%s0 + $0x138] sm:$0xff]
  %v65 = vld [vmem:[%s0 + $0x140] sm:$0xf]
  %v66 = vld [vmem:[%s0 + $0x144] sm:$0xff]
  %v67 = vld [vmem:[%s0 + $0x14c] sm:$0xff]
  %v68 = vld [vmem:[%s0 + $0x154] sm:$0xff]
  %v69 = vld [vmem:[%s0 + $0x15c] sm:$0xff]
  %v70 = vld [vmem:[%s0 + $0x164] sm:$0xf]
  %v71 = vld [vmem:[%s0 + $0x168] sm:$0xff]
  %v72 = vld [vmem:[%s0 + $0x170] sm:$0xff]
  %v73 = vld [vmem:[%s0 + $0x178] sm:$0xff]
  %v74 = vld [vmem:[%s0 + $0x180] sm:$0xff]
  %v75 = vld [vmem:[%s0 + $0x188] sm:$0xf]
  %v76 = vld [vmem:[%s0 + $0x18c] sm:$0xff]
  %v77 = vld [vmem:[%s0 + $0x194] sm:$0xff]
  %v78 = vld [vmem:[%s0 + $0x19c] sm:$0xff]
  %v79 = vld [vmem:[%s0 + $0x1a4] sm:$0xff]
  %v80 = vld [vmem:[%s0 + $0x1ac] sm:$0xf]
  %v81 = vld [vmem:[%s0 + $0x1b0] sm:$0xff]
  %v82 = vld [vmem:[%s0 + $0x1b8] sm:$0xff]
  %v83 = vld [vmem:[%s0 + $0x1c0] sm:$0xff]
  %v84 = vld [vmem:[%s0 + $0x1c8] sm:$0xff]
  %v85 = vld [vmem:[%s0 + $0x1d0] sm:$0xf]
  %v86 = vld [vmem:[%s0 + $0x1d4] sm:$0xff]
  %v87 = vld [vmem:[%s0 + $0x1dc] sm:$0xff]
  %v88 = vld [vmem:[%s0 + $0x1e4] sm:$0xff]
  %v89 = vld [vmem:[%s0 + $0x1ec] sm:$0xff]
  %v90 = vld [vmem:[%s0 + $0x1f4] sm:$0xf]
  %v91 = vld [vmem:[%s0 + $0x1f8] sm:$0xff]
  %v92 = vld [vmem:[%s0 + $0x200] sm:$0xff]
  %v93 = vld [vmem:[%s0 + $0x208] sm:$0xff]
  %v94 = vld [vmem:[%s0 + $0x210] sm:$0xff]
  %v95 = vld [vmem:[%s0 + $0x218] sm:$0xf]
  %v96 = vld [vmem:[%s0 + $0x21c] sm:$0xff]
  %v97 = vld [vmem:[%s0 + $0x224] sm:$0xff]
  %v98 = vld [vmem:[%s0 + $0x22c] sm:$0xff]
  %v99 = vld [vmem:[%s0 + $0x234] sm:$0xff]
  %v100 = vld [vmem:[%s0 + $0x23c] sm:$0xf]
  %v101 = vld [vmem:[%s1] sm:$0xf]
  %v102 = vld [vmem:[%s1 + $0x4] sm:$0xf]
  %v103 = vld [vmem:[%s1 + $0x8] sm:$0xf]
  %v104 = vld [vmem:[%s1 + $0xc] sm:$0xf]
  %v105 = vld [vmem:[%s1 + $0x10] sm:$0xf]
  %v106 = vld [vmem:[%s1 + $0x14] sm:$0xf]
  %v107 = vld [vmem:[%s1 + $0x18] sm:$0xf]
  %v108 = vld [vmem:[%s1 + $0x1c] sm:$0xf]
  %v109 = vld [vmem:[%s1 + $0x20] sm:$0xf]
  %v110 = vld [vmem:[%s1 + $0x24] sm:$0xf]
  %v111 = vld [vmem:[%s1 + $0x28] sm:$0xf]
  %v112 = vld [vmem:[%s1 + $0x2c] sm:$0xf]
  %v113 = vld [vmem:[%s1 + $0x30] sm:$0xf]
  %v114 = vld [vmem:[%s1 + $0x34] sm:$0xf]
  %v115 = vld [vmem:[%s1 + $0x38] sm:$0xf]
  %v116 = vld [vmem:[%s1 + $0x3c] sm:$0xf]
  %v117 = vld [vmem:[%s1 + $0x40] sm:$0xf]
  %v118 = vld [vmem:[%s1 + $0x44] sm:$0xf]
  %v119 = vld [vmem:[%s1 + $0x48] sm:$0xf]
  %v120 = vld [vmem:[%s1 + $0x4c] sm:$0xf]
  %v121 = vld [vmem:[%s1 + $0x50] sm:$0xf]
  %v122 = vld [vmem:[%s1 + $0x54] sm:$0xf]
  %v123 = vld [vmem:[%s1 + $0x58] sm:$0xf]
  %v124 = vld [vmem:[%s1 + $0x5c] sm:$0xf]
  %v125 = vld [vmem:[%s1 + $0x60] sm:$0xf]
  %v126 = vld [vmem:[%s1 + $0x64] sm:$0xf]
  %v127 = vld [vmem:[%s1 + $0x68] sm:$0xf]
  %v128 = vld [vmem:[%s1 + $0x6c] sm:$0xf]
  %v129 = vld [vmem:[%s1 + $0x70] sm:$0xf]
  %v130 = vld [vmem:[%s1 + $0x74] sm:$0xf]
  %v131 = vld [vmem:[%s1 + $0x78] sm:$0xf]
  %v132 = vld [vmem:[%s1 + $0x7c] sm:$0xf]
  %v133 = vld [vmem:[%s1 + $0x80] sm:$0xf]
  %v134 = vld [vmem:[%s1 + $0x84] sm:$0xf]
  %v135 = vld [vmem:[%s1 + $0x88] sm:$0xf]
  %v136 = vld [vmem:[%s1 + $0x8c] sm:$0xf]
  %v137 = vld [vmem:[%s1 + $0x90] sm:$0xf]
  %v138 = vld [vmem:[%s1 + $0x94] sm:$0xf]
  %v139 = vld [vmem:[%s1 + $0x98] sm:$0xf]
  %v140 = vld [vmem:[%s1 + $0x9c] sm:$0xf]
  %v141 = vld [vmem:[%s1 + $0xa0] sm:$0xf]
  %v142 = vld [vmem:[%s1 + $0xa4] sm:$0xf]
  %v143 = vld [vmem:[%s1 + $0xa8] sm:$0xf]
  %v144 = vld [vmem:[%s1 + $0xac] sm:$0xf]
  %v145 = vld [vmem:[%s1 + $0xb0] sm:$0xf]
  %v146 = vld [vmem:[%s1 + $0xb4] sm:$0xf]
  %v147 = vld [vmem:[%s1 + $0xb8] sm:$0xf]
  %v148 = vld [vmem:[%s1 + $0xbc] sm:$0xf]
  %v149 = vld [vmem:[%s1 + $0xc0] sm:$0xf]
  %v150 = vld [vmem:[%s1 + $0xc4] sm:$0xf]
  %v151 = vld [vmem:[%s1 + $0xc8] sm:$0xf]
  %v152 = vld [vmem:[%s1 + $0xcc] sm:$0xf]
  %v153 = vld [vmem:[%s1 + $0xd0] sm:$0xf]
  %v154 = vld [vmem:[%s1 + $0xd4] sm:$0xf]
  %v155 = vld [vmem:[%s1 + $0xd8] sm:$0xf]
  %v156 = vld [vmem:[%s1 + $0xdc] sm:$0xf]
  %v157 = vld [vmem:[%s1 + $0xe0] sm:$0xf]
  %v158 = vld [vmem:[%s1 + $0xe4] sm:$0xf]
  %v159 = vld [vmem:[%s1 + $0xe8] sm:$0xf]
  %v160 = vld [vmem:[%s1 + $0xec] sm:$0xf]
  %v161 = vld [vmem:[%s1 + $0xf0] sm:$0xf]
  %v162 = vld [vmem:[%s1 + $0xf4] sm:$0xf]
  %v163 = vld [vmem:[%s1 + $0xf8] sm:$0xf]
  %v164 = vld [vmem:[%s1 + $0xfc] sm:$0xf]
  %v165 = vld [vmem:[%s1 + $0x100] sm:$0xf]
  %v166 = vld [vmem:[%s1 + $0x104] sm:$0xf]
  %v167 = vld [vmem:[%s1 + $0x108] sm:$0xf]
  %v168 = vld [vmem:[%s1 + $0x10c] sm:$0xf]
  %v169 = vld [vmem:[%s1 + $0x110] sm:$0xf]
  %v170 = vld [vmem:[%s1 + $0x114] sm:$0xf]
  %v171 = vld [vmem:[%s1 + $0x118] sm:$0xf]
  %v172 = vld [vmem:[%s1 + $0x11c] sm:$0xf]
  %v173 = vld [vmem:[%s1 + $0x120] sm:$0xf]
  %v174 = vld [vmem:[%s1 + $0x124] sm:$0xf]
  %v175 = vld [vmem:[%s1 + $0x128] sm:$0xf]
  %v176 = vld [vmem:[%s1 + $0x12c] sm:$0xf]
  %v177 = vld [vmem:[%s1 + $0x130] sm:$0xf]
  %v178 = vld [vmem:[%s1 + $0x134] sm:$0xf]
  %v179 = vld [vmem:[%s1 + $0x138] sm:$0xf]
  %v180 = vld [vmem:[%s1 + $0x13c] sm:$0xf]
  %v181 = vld [vmem:[%s1 + $0x140] sm:$0xf]
  %v182 = vld [vmem:[%s1 + $0x144] sm:$0xf]
  %v183 = vld [vmem:[%s1 + $0x148] sm:$0xf]
  %v184 = vld [vmem:[%s1 + $0x14c] sm:$0xf]
  %v185 = vld [vmem:[%s1 + $0x150] sm:$0xf]
  %v186 = vld [vmem:[%s1 + $0x154] sm:$0xf]
  %v187 = vld [vmem:[%s1 + $0x158] sm:$0xf]
  %v188 = vld [vmem:[%s1 + $0x15c] sm:$0xf]
  %v189 = vld [vmem:[%s1 + $0x160] sm:$0xf]
  %v190 = vld [vmem:[%s1 + $0x164] sm:$0xf]
  %v191 = vld [vmem:[%s1 + $0x168] sm:$0xf]
  %v192 = vld [vmem:[%s1 + $0x16c] sm:$0xf]
  %v193 = vld [vmem:[%s1 + $0x170] sm:$0xf]
  %v194 = vld [vmem:[%s1 + $0x174] sm:$0xf]
  %v195 = vld [vmem:[%s1 + $0x178] sm:$0xf]
  %v196 = vld [vmem:[%s1 + $0x17c] sm:$0xf]
  %v197 = vld [vmem:[%s1 + $0x180] sm:$0xf]
  %v198 = vld [vmem:[%s1 + $0x184] sm:$0xf]
  %v199 = vld [vmem:[%s1 + $0x188] sm:$0xf]
  %v200 = vld [vmem:[%s1 + $0x18c] sm:$0xf]
  %v201 = vld [vmem:[%s1 + $0x190] sm:$0xf]
  %v202 = vld [vmem:[%s1 + $0x194] sm:$0xf]
  %v203 = vld [vmem:[%s1 + $0x198] sm:$0xf]
  %v204 = vld [vmem:[%s1 + $0x19c] sm:$0xf]
  %v205 = vld [vmem:[%s1 + $0x1a0] sm:$0xf]
  %v206 = vld [vmem:[%s1 + $0x1a4] sm:$0xf]
  %v207 = vld [vmem:[%s1 + $0x1a8] sm:$0xf]
  %v208 = vld [vmem:[%s1 + $0x1ac] sm:$0xf]
  %v209 = vld [vmem:[%s1 + $0x1b0] sm:$0xf]
  %v210 = vld [vmem:[%s1 + $0x1b4] sm:$0xf]
  %v211 = vld [vmem:[%s1 + $0x1b8] sm:$0xf]
  %v212 = vld [vmem:[%s1 + $0x1bc] sm:$0xf]
  %v213 = vld [vmem:[%s1 + $0x1c0] sm:$0xf]
  %v214 = vld [vmem:[%s1 + $0x1c4] sm:$0xf]
  %v215 = vld [vmem:[%s1 + $0x1c8] sm:$0xf]
  %v216 = vld [vmem:[%s1 + $0x1cc] sm:$0xf]
  %v217 = vld [vmem:[%s1 + $0x1d0] sm:$0xf]
  %v218 = vld [vmem:[%s1 + $0x1d4] sm:$0xf]
  %v219 = vld [vmem:[%s1 + $0x1d8] sm:$0xf]
  %v220 = vld [vmem:[%s1 + $0x1dc] sm:$0xf]
  %v221 = vld [vmem:[%s1 + $0x1e0] sm:$0xf]
  %v222 = vld [vmem:[%s1 + $0x1e4] sm:$0xf]
  %v223 = vld [vmem:[%s1 + $0x1e8] sm:$0xf]
  %v224 = vld [vmem:[%s1 + $0x1ec] sm:$0xf]
  %v225 = vld [vmem:[%s1 + $0x1f0] sm:$0xf]
  %v226 = vld [vmem:[%s1 + $0x1f4] sm:$0xf]
  %v227 = vld [vmem:[%s1 + $0x1f8] sm:$0xf]
  %v228 = vld [vmem:[%s1 + $0x1fc] sm:$0xf]
  %v229 = vld [vmem:[%s1 + $0x200] sm:$0xf]
  %v230 = vld [vmem:[%s1 + $0x204] sm:$0xf]
  %v231 = vld [vmem:[%s1 + $0x208] sm:$0xf]
  %v232 = vld [vmem:[%s1 + $0x20c] sm:$0xf]
  %v233 = vld [vmem:[%s1 + $0x210] sm:$0xf]
  %v234 = vld [vmem:[%s1 + $0x214] sm:$0xf]
  %v235 = vld [vmem:[%s1 + $0x218] sm:$0xf]
  %v236 = vld [vmem:[%s1 + $0x21c] sm:$0xf]
  %v237 = vld [vmem:[%s1 + $0x220] sm:$0xf]
  %v238 = vld [vmem:[%s1 + $0x224] sm:$0xf]
  %v239 = vld [vmem:[%s1 + $0x228] sm:$0xf]
  %v240 = vld [vmem:[%s1 + $0x22c] sm:$0xf]
  %v241 = vld [vmem:[%s1 + $0x230] sm:$0xf]
  %v242 = vld [vmem:[%s1 + $0x234] sm:$0xf]
  %v243 = vld [vmem:[%s1 + $0x238] sm:$0xf]
  %v244 = vld [vmem:[%s1 + $0x23c] sm:$0xf]
  %v325 = vunpack.c.l.b16 %v21
  %v326 = vunpack.c.h.b16 %v21
  %v327 = vunpack.c.l.b16 %v22
  %v328 = vunpack.c.h.b16 %v22
  %v329 = vunpack.c.l.b16 %v23
  %v330 = vunpack.c.h.b16 %v23
  %v331 = vunpack.c.l.b16 %v24
  %v332 = vunpack.c.h.b16 %v24
  %v333 = vunpack.c.l.b16 %v25
  %v334 = vunpack.c.l.b16 %v26
  %v335 = vunpack.c.h.b16 %v26
  %v336 = vunpack.c.l.b16 %v27
  %v337 = vunpack.c.h.b16 %v27
  %v338 = vunpack.c.l.b16 %v28
  %v339 = vunpack.c.h.b16 %v28
  %v340 = vunpack.c.l.b16 %v29
  %v341 = vunpack.c.h.b16 %v29
  %v342 = vunpack.c.l.b16 %v30
  %v343 = vunpack.c.l.b16 %v31
  %v344 = vunpack.c.h.b16 %v31
  %v345 = vunpack.c.l.b16 %v32
  %v346 = vunpack.c.h.b16 %v32
  %v347 = vunpack.c.l.b16 %v33
  %v348 = vunpack.c.h.b16 %v33
  %v349 = vunpack.c.l.b16 %v34
  %v350 = vunpack.c.h.b16 %v34
  %v351 = vunpack.c.l.b16 %v35
  %v352 = vunpack.c.l.b16 %v36
  %v353 = vunpack.c.h.b16 %v36
  %v354 = vunpack.c.l.b16 %v37
  %v355 = vunpack.c.h.b16 %v37
  %v356 = vunpack.c.l.b16 %v38
  %v357 = vunpack.c.h.b16 %v38
  %v358 = vunpack.c.l.b16 %v39
  %v359 = vunpack.c.h.b16 %v39
  %v360 = vunpack.c.l.b16 %v40
  %v361 = vunpack.c.l.b16 %v41
  %v362 = vunpack.c.h.b16 %v41
  %v363 = vunpack.c.l.b16 %v42
  %v364 = vunpack.c.h.b16 %v42
  %v365 = vunpack.c.l.b16 %v43
  %v366 = vunpack.c.h.b16 %v43
  %v367 = vunpack.c.l.b16 %v44
  %v368 = vunpack.c.h.b16 %v44
  %v369 = vunpack.c.l.b16 %v45
  %v370 = vunpack.c.l.b16 %v46
  %v371 = vunpack.c.h.b16 %v46
  %v372 = vunpack.c.l.b16 %v47
  %v373 = vunpack.c.h.b16 %v47
  %v374 = vunpack.c.l.b16 %v48
  %v375 = vunpack.c.h.b16 %v48
  %v376 = vunpack.c.l.b16 %v49
  %v377 = vunpack.c.h.b16 %v49
  %v378 = vunpack.c.l.b16 %v50
  %v379 = vunpack.c.l.b16 %v51
  %v380 = vunpack.c.h.b16 %v51
  %v381 = vunpack.c.l.b16 %v52
  %v382 = vunpack.c.h.b16 %v52
  %v383 = vunpack.c.l.b16 %v53
  %v384 = vunpack.c.h.b16 %v53
  %v385 = vunpack.c.l.b16 %v54
  %v386 = vunpack.c.h.b16 %v54
  %v387 = vunpack.c.l.b16 %v55
  %v388 = vunpack.c.l.b16 %v56
  %v389 = vunpack.c.h.b16 %v56
  %v390 = vunpack.c.l.b16 %v57
  %v391 = vunpack.c.h.b16 %v57
  %v392 = vunpack.c.l.b16 %v58
  %v393 = vunpack.c.h.b16 %v58
  %v394 = vunpack.c.l.b16 %v59
  %v395 = vunpack.c.h.b16 %v59
  %v396 = vunpack.c.l.b16 %v60
  %v397 = vunpack.c.l.b16 %v61
  %v398 = vunpack.c.h.b16 %v61
  %v399 = vunpack.c.l.b16 %v62
  %v400 = vunpack.c.h.b16 %v62
  %v401 = vunpack.c.l.b16 %v63
  %v402 = vunpack.c.h.b16 %v63
  %v403 = vunpack.c.l.b16 %v64
  %v404 = vunpack.c.h.b16 %v64
  %v405 = vunpack.c.l.b16 %v65
  %v406 = vunpack.c.l.b16 %v66
  %v407 = vunpack.c.h.b16 %v66
  %v408 = vunpack.c.l.b16 %v67
  %v409 = vunpack.c.h.b16 %v67
  %v410 = vunpack.c.l.b16 %v68
  %v411 = vunpack.c.h.b16 %v68
  %v412 = vunpack.c.l.b16 %v69
  %v413 = vunpack.c.h.b16 %v69
  %v414 = vunpack.c.l.b16 %v70
  %v415 = vunpack.c.l.b16 %v71
  %v416 = vunpack.c.h.b16 %v71
  %v417 = vunpack.c.l.b16 %v72
  %v418 = vunpack.c.h.b16 %v72
  %v419 = vunpack.c.l.b16 %v73
  %v420 = vunpack.c.h.b16 %v73
  %v421 = vunpack.c.l.b16 %v74
  %v422 = vunpack.c.h.b16 %v74
  %v423 = vunpack.c.l.b16 %v75
  %v424 = vunpack.c.l.b16 %v76
  %v425 = vunpack.c.h.b16 %v76
  %v426 = vunpack.c.l.b16 %v77
  %v427 = vunpack.c.h.b16 %v77
  %v428 = vunpack.c.l.b16 %v78
  %v429 = vunpack.c.h.b16 %v78
  %v430 = vunpack.c.l.b16 %v79
  %v431 = vunpack.c.h.b16 %v79
  %v432 = vunpack.c.l.b16 %v80
  %v433 = vunpack.c.l.b16 %v81
  %v434 = vunpack.c.h.b16 %v81
  %v435 = vunpack.c.l.b16 %v82
  %v436 = vunpack.c.h.b16 %v82
  %v437 = vunpack.c.l.b16 %v83
  %v438 = vunpack.c.h.b16 %v83
  %v439 = vunpack.c.l.b16 %v84
  %v440 = vunpack.c.h.b16 %v84
  %v441 = vunpack.c.l.b16 %v85
  %v442 = vunpack.c.l.b16 %v86
  %v443 = vunpack.c.h.b16 %v86
  %v444 = vunpack.c.l.b16 %v87
  %v445 = vunpack.c.h.b16 %v87
  %v446 = vunpack.c.l.b16 %v88
  %v447 = vunpack.c.h.b16 %v88
  %v448 = vunpack.c.l.b16 %v89
  %v449 = vunpack.c.h.b16 %v89
  %v450 = vunpack.c.l.b16 %v90
  %v451 = vunpack.c.l.b16 %v91
  %v452 = vunpack.c.h.b16 %v91
  %v453 = vunpack.c.l.b16 %v92
  %v454 = vunpack.c.h.b16 %v92
  %v455 = vunpack.c.l.b16 %v93
  %v456 = vunpack.c.h.b16 %v93
  %v457 = vunpack.c.l.b16 %v94
  %v458 = vunpack.c.h.b16 %v94
  %v459 = vunpack.c.l.b16 %v95
  %v460 = vunpack.c.l.b16 %v96
  %v461 = vunpack.c.h.b16 %v96
  %v462 = vunpack.c.l.b16 %v97
  %v463 = vunpack.c.h.b16 %v97
  %v464 = vunpack.c.l.b16 %v98
  %v465 = vunpack.c.h.b16 %v98
  %v466 = vunpack.c.l.b16 %v99
  %v467 = vunpack.c.h.b16 %v99
  %v468 = vunpack.c.l.b16 %v100
  %v469 = vpack.c.b16 %v334, %v325
  %v470 = vpack.c.b16 %v335, %v326
  %v471 = vpack.c.b16 %v336, %v327
  %v472 = vpack.c.b16 %v337, %v328
  %v473 = vpack.c.b16 %v338, %v329
  %v474 = vpack.c.b16 %v339, %v330
  %v475 = vpack.c.b16 %v340, %v331
  %v476 = vpack.c.b16 %v341, %v332
  %v477 = vpack.c.b16 %v342, %v333
  %v478 = vpack.c.b16 %v352, %v343
  %v479 = vpack.c.b16 %v353, %v344
  %v480 = vpack.c.b16 %v354, %v345
  %v481 = vpack.c.b16 %v355, %v346
  %v482 = vpack.c.b16 %v356, %v347
  %v483 = vpack.c.b16 %v357, %v348
  %v484 = vpack.c.b16 %v358, %v349
  %v485 = vpack.c.b16 %v359, %v350
  %v486 = vpack.c.b16 %v360, %v351
  %v487 = vpack.c.b16 %v370, %v361
  %v488 = vpack.c.b16 %v371, %v362
  %v489 = vpack.c.b16 %v372, %v363
  %v490 = vpack.c.b16 %v373, %v364
  %v491 = vpack.c.b16 %v374, %v365
  %v492 = vpack.c.b16 %v375, %v366
  %v493 = vpack.c.b16 %v376, %v367
  %v494 = vpack.c.b16 %v377, %v368
  %v495 = vpack.c.b16 %v378, %v369
  %v496 = vpack.c.b16 %v388, %v379
  %v497 = vpack.c.b16 %v389, %v380
  %v498 = vpack.c.b16 %v390, %v381
  %v499 = vpack.c.b16 %v391, %v382
  %v500 = vpack.c.b16 %v392, %v383
  %v501 = vpack.c.b16 %v393, %v384
  %v502 = vpack.c.b16 %v394, %v385
  %v503 = vpack.c.b16 %v395, %v386
  %v504 = vpack.c.b16 %v396, %v387
  %v505 = vpack.c.b16 %v406, %v397
  %v506 = vpack.c.b16 %v407, %v398
  %v507 = vpack.c.b16 %v408, %v399
  %v508 = vpack.c.b16 %v409, %v400
  %v509 = vpack.c.b16 %v410, %v401
  %v510 = vpack.c.b16 %v411, %v402
  %v511 = vpack.c.b16 %v412, %v403
  %v512 = vpack.c.b16 %v413, %v404
  %v513 = vpack.c.b16 %v414, %v405
  %v514 = vpack.c.b16 %v424, %v415
  %v515 = vpack.c.b16 %v425, %v416
  %v516 = vpack.c.b16 %v426, %v417
  %v517 = vpack.c.b16 %v427, %v418
  %v518 = vpack.c.b16 %v428, %v419
  %v519 = vpack.c.b16 %v429, %v420
  %v520 = vpack.c.b16 %v430, %v421
  %v521 = vpack.c.b16 %v431, %v422
  %v522 = vpack.c.b16 %v432, %v423
  %v523 = vpack.c.b16 %v442, %v433
  %v524 = vpack.c.b16 %v443, %v434
  %v525 = vpack.c.b16 %v444, %v435
  %v526 = vpack.c.b16 %v445, %v436
  %v527 = vpack.c.b16 %v446, %v437
  %v528 = vpack.c.b16 %v447, %v438
  %v529 = vpack.c.b16 %v448, %v439
  %v530 = vpack.c.b16 %v449, %v440
  %v531 = vpack.c.b16 %v450, %v441
  %v532 = vpack.c.b16 %v460, %v451
  %v533 = vpack.c.b16 %v461, %v452
  %v534 = vpack.c.b16 %v462, %v453
  %v535 = vpack.c.b16 %v463, %v454
  %v536 = vpack.c.b16 %v464, %v455
  %v537 = vpack.c.b16 %v465, %v456
  %v538 = vpack.c.b16 %v466, %v457
  %v539 = vpack.c.b16 %v467, %v458
  %v540 = vpack.c.b16 %v468, %v459
  %v757 = vunpack.c.l.b16 %v101
  %v758 = vunpack.c.l.b16 %v102
  %v759 = vunpack.c.l.b16 %v103
  %v760 = vunpack.c.l.b16 %v104
  %v761 = vunpack.c.l.b16 %v105
  %v762 = vunpack.c.l.b16 %v106
  %v763 = vunpack.c.l.b16 %v107
  %v764 = vunpack.c.l.b16 %v108
  %v765 = vunpack.c.l.b16 %v109
  %v766 = vunpack.c.l.b16 %v110
  %v767 = vunpack.c.l.b16 %v111
  %v768 = vunpack.c.l.b16 %v112
  %v769 = vunpack.c.l.b16 %v113
  %v770 = vunpack.c.l.b16 %v114
  %v771 = vunpack.c.l.b16 %v115
  %v772 = vunpack.c.l.b16 %v116
  %v773 = vunpack.c.l.b16 %v117
  %v774 = vunpack.c.l.b16 %v118
  %v775 = vunpack.c.l.b16 %v119
  %v776 = vunpack.c.l.b16 %v120
  %v777 = vunpack.c.l.b16 %v121
  %v778 = vunpack.c.l.b16 %v122
  %v779 = vunpack.c.l.b16 %v123
  %v780 = vunpack.c.l.b16 %v124
  %v781 = vunpack.c.l.b16 %v125
  %v782 = vunpack.c.l.b16 %v126
  %v783 = vunpack.c.l.b16 %v127
  %v784 = vunpack.c.l.b16 %v128
  %v785 = vunpack.c.l.b16 %v129
  %v786 = vunpack.c.l.b16 %v130
  %v787 = vunpack.c.l.b16 %v131
  %v788 = vunpack.c.l.b16 %v132
  %v789 = vunpack.c.l.b16 %v133
  %v790 = vunpack.c.l.b16 %v134
  %v791 = vunpack.c.l.b16 %v135
  %v792 = vunpack.c.l.b16 %v136
  %v793 = vunpack.c.l.b16 %v137
  %v794 = vunpack.c.l.b16 %v138
  %v795 = vunpack.c.l.b16 %v139
  %v796 = vunpack.c.l.b16 %v140
  %v797 = vunpack.c.l.b16 %v141
  %v798 = vunpack.c.l.b16 %v142
  %v799 = vunpack.c.l.b16 %v143
  %v800 = vunpack.c.l.b16 %v144
  %v801 = vunpack.c.l.b16 %v145
  %v802 = vunpack.c.l.b16 %v146
  %v803 = vunpack.c.l.b16 %v147
  %v804 = vunpack.c.l.b16 %v148
  %v805 = vunpack.c.l.b16 %v149
  %v806 = vunpack.c.l.b16 %v150
  %v807 = vunpack.c.l.b16 %v151
  %v808 = vunpack.c.l.b16 %v152
  %v809 = vunpack.c.l.b16 %v153
  %v810 = vunpack.c.l.b16 %v154
  %v811 = vunpack.c.l.b16 %v155
  %v812 = vunpack.c.l.b16 %v156
  %v813 = vunpack.c.l.b16 %v157
  %v814 = vunpack.c.l.b16 %v158
  %v815 = vunpack.c.l.b16 %v159
  %v816 = vunpack.c.l.b16 %v160
  %v817 = vunpack.c.l.b16 %v161
  %v818 = vunpack.c.l.b16 %v162
  %v819 = vunpack.c.l.b16 %v163
  %v820 = vunpack.c.l.b16 %v164
  %v821 = vunpack.c.l.b16 %v165
  %v822 = vunpack.c.l.b16 %v166
  %v823 = vunpack.c.l.b16 %v167
  %v824 = vunpack.c.l.b16 %v168
  %v825 = vunpack.c.l.b16 %v169
  %v826 = vunpack.c.l.b16 %v170
  %v827 = vunpack.c.l.b16 %v171
  %v828 = vunpack.c.l.b16 %v172
  %v829 = vunpack.c.l.b16 %v173
  %v830 = vunpack.c.l.b16 %v174
  %v831 = vunpack.c.l.b16 %v175
  %v832 = vunpack.c.l.b16 %v176
  %v833 = vunpack.c.l.b16 %v177
  %v834 = vunpack.c.l.b16 %v178
  %v835 = vunpack.c.l.b16 %v179
  %v836 = vunpack.c.l.b16 %v180
  %v837 = vunpack.c.l.b16 %v181
  %v838 = vunpack.c.l.b16 %v182
  %v839 = vunpack.c.l.b16 %v183
  %v840 = vunpack.c.l.b16 %v184
  %v841 = vunpack.c.l.b16 %v185
  %v842 = vunpack.c.l.b16 %v186
  %v843 = vunpack.c.l.b16 %v187
  %v844 = vunpack.c.l.b16 %v188
  %v845 = vunpack.c.l.b16 %v189
  %v846 = vunpack.c.l.b16 %v190
  %v847 = vunpack.c.l.b16 %v191
  %v848 = vunpack.c.l.b16 %v192
  %v849 = vunpack.c.l.b16 %v193
  %v850 = vunpack.c.l.b16 %v194
  %v851 = vunpack.c.l.b16 %v195
  %v852 = vunpack.c.l.b16 %v196
  %v853 = vunpack.c.l.b16 %v197
  %v854 = vunpack.c.l.b16 %v198
  %v855 = vunpack.c.l.b16 %v199
  %v856 = vunpack.c.l.b16 %v200
  %v857 = vunpack.c.l.b16 %v201
  %v858 = vunpack.c.l.b16 %v202
  %v859 = vunpack.c.l.b16 %v203
  %v860 = vunpack.c.l.b16 %v204
  %v861 = vunpack.c.l.b16 %v205
  %v862 = vunpack.c.l.b16 %v206
  %v863 = vunpack.c.l.b16 %v207
  %v864 = vunpack.c.l.b16 %v208
  %v865 = vunpack.c.l.b16 %v209
  %v866 = vunpack.c.l.b16 %v210
  %v867 = vunpack.c.l.b16 %v211
  %v868 = vunpack.c.l.b16 %v212
  %v869 = vunpack.c.l.b16 %v213
  %v870 = vunpack.c.l.b16 %v214
  %v871 = vunpack.c.l.b16 %v215
  %v872 = vunpack.c.l.b16 %v216
  %v873 = vunpack.c.l.b16 %v217
  %v874 = vunpack.c.l.b16 %v218
  %v875 = vunpack.c.l.b16 %v219
  %v876 = vunpack.c.l.b16 %v220
  %v877 = vunpack.c.l.b16 %v221
  %v878 = vunpack.c.l.b16 %v222
  %v879 = vunpack.c.l.b16 %v223
  %v880 = vunpack.c.l.b16 %v224
  %v881 = vunpack.c.l.b16 %v225
  %v882 = vunpack.c.l.b16 %v226
  %v883 = vunpack.c.l.b16 %v227
  %v884 = vunpack.c.l.b16 %v228
  %v885 = vunpack.c.l.b16 %v229
  %v886 = vunpack.c.l.b16 %v230
  %v887 = vunpack.c.l.b16 %v231
  %v888 = vunpack.c.l.b16 %v232
  %v889 = vunpack.c.l.b16 %v233
  %v890 = vunpack.c.l.b16 %v234
  %v891 = vunpack.c.l.b16 %v235
  %v892 = vunpack.c.l.b16 %v236
  %v893 = vunpack.c.l.b16 %v237
  %v894 = vunpack.c.l.b16 %v238
  %v895 = vunpack.c.l.b16 %v239
  %v896 = vunpack.c.l.b16 %v240
  %v897 = vunpack.c.l.b16 %v241
  %v898 = vunpack.c.l.b16 %v242
  %v899 = vunpack.c.l.b16 %v243
  %v900 = vunpack.c.l.b16 %v244
  %v901 = vpack.c.b16 %v758, %v757
  %v902 = vpack.c.b16 %v760, %v759
  %v903 = vpack.c.b16 %v762, %v761
  %v904 = vpack.c.b16 %v764, %v763
  %v905 = vpack.c.b16 %v766, %v765
  %v906 = vpack.c.b16 %v768, %v767
  %v907 = vpack.c.b16 %v770, %v769
  %v908 = vpack.c.b16 %v772, %v771
  %v909 = vpack.c.b16 %v774, %v773
  %v910 = vpack.c.b16 %v776, %v775
  %v911 = vpack.c.b16 %v778, %v777
  %v912 = vpack.c.b16 %v780, %v779
  %v913 = vpack.c.b16 %v782, %v781
  %v914 = vpack.c.b16 %v784, %v783
  %v915 = vpack.c.b16 %v786, %v785
  %v916 = vpack.c.b16 %v788, %v787
  %v917 = vpack.c.b16 %v790, %v789
  %v918 = vpack.c.b16 %v792, %v791
  %v919 = vpack.c.b16 %v794, %v793
  %v920 = vpack.c.b16 %v796, %v795
  %v921 = vpack.c.b16 %v798, %v797
  %v922 = vpack.c.b16 %v800, %v799
  %v923 = vpack.c.b16 %v802, %v801
  %v924 = vpack.c.b16 %v804, %v803
  %v925 = vpack.c.b16 %v806, %v805
  %v926 = vpack.c.b16 %v808, %v807
  %v927 = vpack.c.b16 %v810, %v809
  %v928 = vpack.c.b16 %v812, %v811
  %v929 = vpack.c.b16 %v814, %v813
  %v930 = vpack.c.b16 %v816, %v815
  %v931 = vpack.c.b16 %v818, %v817
  %v932 = vpack.c.b16 %v820, %v819
  %v933 = vpack.c.b16 %v822, %v821
  %v934 = vpack.c.b16 %v824, %v823
  %v935 = vpack.c.b16 %v826, %v825
  %v936 = vpack.c.b16 %v828, %v827
  %v937 = vpack.c.b16 %v830, %v829
  %v938 = vpack.c.b16 %v832, %v831
  %v939 = vpack.c.b16 %v834, %v833
  %v940 = vpack.c.b16 %v836, %v835
  %v941 = vpack.c.b16 %v838, %v837
  %v942 = vpack.c.b16 %v840, %v839
  %v943 = vpack.c.b16 %v842, %v841
  %v944 = vpack.c.b16 %v844, %v843
  %v945 = vpack.c.b16 %v846, %v845
  %v946 = vpack.c.b16 %v848, %v847
  %v947 = vpack.c.b16 %v850, %v849
  %v948 = vpack.c.b16 %v852, %v851
  %v949 = vpack.c.b16 %v854, %v853
  %v950 = vpack.c.b16 %v856, %v855
  %v951 = vpack.c.b16 %v858, %v857
  %v952 = vpack.c.b16 %v860, %v859
  %v953 = vpack.c.b16 %v862, %v861
  %v954 = vpack.c.b16 %v864, %v863
  %v955 = vpack.c.b16 %v866, %v865
  %v956 = vpack.c.b16 %v868, %v867
  %v957 = vpack.c.b16 %v870, %v869
  %v958 = vpack.c.b16 %v872, %v871
  %v959 = vpack.c.b16 %v874, %v873
  %v960 = vpack.c.b16 %v876, %v875
  %v961 = vpack.c.b16 %v878, %v877
  %v962 = vpack.c.b16 %v880, %v879
  %v963 = vpack.c.b16 %v882, %v881
  %v964 = vpack.c.b16 %v884, %v883
  %v965 = vpack.c.b16 %v886, %v885
  %v966 = vpack.c.b16 %v888, %v887
  %v967 = vpack.c.b16 %v890, %v889
  %v968 = vpack.c.b16 %v892, %v891
  %v969 = vpack.c.b16 %v894, %v893
  %v970 = vpack.c.b16 %v896, %v895
  %v971 = vpack.c.b16 %v898, %v897
  %v972 = vpack.c.b16 %v900, %v899
  %1045 = vmatprep.subr.bf16.mxu0 0
  %1046 = vmatpush1.bf16.msra.mxu0 %v901
  %1047 = vmatprep.subr.bf16.mxu0 0
  %1048 = vmatpush1.bf16.msra.mxu0 %v902
  %1049 = vmatprep.subr.bf16.mxu0 0
  %1050 = vmatpush1.bf16.msra.mxu0 %v903
  %1051 = vmatprep.subr.bf16.mxu0 0
  %1052 = vmatpush1.bf16.msra.mxu0 %v904
  %1053 = vmatprep.subr.bf16.mxu0 0
  %1054 = vmatpush1.bf16.msra.mxu0 %v905
  %1055 = vmatprep.subr.bf16.mxu0 0
  %1056 = vmatpush1.bf16.msra.mxu0 %v906
  %1057 = vmatprep.subr.bf16.mxu0 0
  %1058 = vmatpush1.bf16.msra.mxu0 %v907
  %1059 = vmatprep.subr.bf16.mxu0 0
  %1060 = vmatpush1.bf16.msra.mxu0 %v908
  %1061 = vmatprep.subr.bf16.mxu0 0
  %1062 = vmatpush1.bf16.msra.mxu0 %v909
  %1063 = vmatprep.subr.bf16.mxu0 0
  %1064 = vmatpush1.bf16.msra.mxu0 %v910
  %1065 = vmatprep.subr.bf16.mxu0 0
  %1066 = vmatpush1.bf16.msra.mxu0 %v911
  %1067 = vmatprep.subr.bf16.mxu0 0
  %1068 = vmatpush1.bf16.msra.mxu0 %v912
  %1069 = vmatprep.subr.bf16.mxu0 0
  %1070 = vmatpush1.bf16.msra.mxu0 %v913
  %1071 = vmatprep.subr.bf16.mxu0 0
  %1072 = vmatpush1.bf16.msra.mxu0 %v914
  %1073 = vmatprep.subr.bf16.mxu0 0
  %1074 = vmatpush1.bf16.msra.mxu0 %v915
  %1075 = vmatprep.subr.bf16.mxu0 0
  %1076 = vmatpush1.bf16.msra.mxu0 %v916
  %1077 = vmatprep.mubr.bf16.mxu0 %v470
  %1078 = vmatmul.mubr.bf16.gmra.mrb[0].mxu0 %v469
  %v1079 = vpop.f32.mrb[0].mxu0
  %v1080 = vadd.f32 0.0, %v1079
  %v1081 = vpop.f32.mrb[0].mxu0
  %v1082 = vpop.f32.mrb[0].mxu0
  %v1083 = vadd.f32 0.0, %v1082
  %v1084 = vpop.f32.mrb[0].mxu0
  %1085 = vmatprep.mubr.bf16.mxu0 %v479
  %1086 = vmatmul.mubr.bf16.gmra.mrb[0].mxu0 %v478
  %v1087 = vpop.f32.mrb[0].mxu0
  %v1088 = vadd.f32 0.0, %v1087
  %v1089 = vpop.f32.mrb[0].mxu0
  %v1090 = vpop.f32.mrb[0].mxu0
  %v1091 = vadd.f32 0.0, %v1090
  %v1092 = vpop.f32.mrb[0].mxu0
  %1093 = vmatprep.mubr.bf16.mxu0 %v488
  %1094 = vmatmul.mubr.bf16.gmra.mrb[0].mxu0 %v487
  %v1095 = vpop.f32.mrb[0].mxu0
  %v1096 = vadd.f32 0.0, %v1095
  %v1097 = vpop.f32.mrb[0].mxu0
  %v1098 = vpop.f32.mrb[0].mxu0
  %v1099 = vadd.f32 0.0, %v1098
  %v1100 = vpop.f32.mrb[0].mxu0
  %1101 = vmatprep.mubr.bf16.mxu0 %v497
  %1102 = vmatmul.mubr.bf16.gmra.mrb[0].mxu0 %v496
  %v1103 = vpop.f32.mrb[0].mxu0
  %v1104 = vadd.f32 0.0, %v1103
  %v1105 = vpop.f32.mrb[0].mxu0
  %v1106 = vpop.f32.mrb[0].mxu0
  %v1107 = vadd.f32 0.0, %v1106
  %v1108 = vpop.f32.mrb[0].mxu0
  %1109 = vmatprep.mubr.bf16.mxu0 %v506
  %1110 = vmatmul.mubr.bf16.gmra.mrb[0].mxu0 %v505
  %v1111 = vpop.f32.mrb[0].mxu0
  %v1112 = vadd.f32 0.0, %v1111
  %v1113 = vpop.f32.mrb[0].mxu0
  %v1114 = vpop.f32.mrb[0].mxu0
  %v1115 = vadd.f32 0.0, %v1114
  %v1116 = vpop.f32.mrb[0].mxu0
  %1117 = vmatprep.mubr.bf16.mxu0 %v515
  %1118 = vmatmul.mubr.bf16.gmra.mrb[0].mxu0 %v514
  %v1119 = vpop.f32.mrb[0].mxu0
  %v1120 = vadd.f32 0.0, %v1119
  %v1121 = vpop.f32.mrb[0].mxu0
  %v1122 = vpop.f32.mrb[0].mxu0
  %v1123 = vadd.f32 0.0, %v1122
  %v1124 = vpop.f32.mrb[0].mxu0
  %1125 = vmatprep.mubr.bf16.mxu0 %v524
  %1126 = vmatmul.mubr.bf16.gmra.mrb[0].mxu0 %v523
  %v1127 = vpop.f32.mrb[0].mxu0
  %v1128 = vadd.f32 0.0, %v1127
  %v1129 = vpop.f32.mrb[0].mxu0
  %v1130 = vpop.f32.mrb[0].mxu0
  %v1131 = vadd.f32 0.0, %v1130
  %v1132 = vpop.f32.mrb[0].mxu0
  %1133 = vmatprep.mubr.bf16.mxu0 %v533
  %1134 = vmatmul.mubr.bf16.gmra.mrb[0].mxu0 %v532
  %v1135 = vpop.f32.mrb[0].mxu0
  %v1136 = vadd.f32 0.0, %v1135
  %v1137 = vpop.f32.mrb[0].mxu0
  %v1138 = vpop.f32.mrb[0].mxu0
  %v1139 = vadd.f32 0.0, %v1138
  %v1140 = vpop.f32.mrb[0].mxu0
  %1141 = vdwg.mxu0
  %1142 = vmatprep.subr.bf16.mxu0 0
  %1143 = vmatpush1.bf16.msra.mxu0 %v917
  %1144 = vmatprep.subr.bf16.mxu0 0
  %1145 = vmatpush1.bf16.msra.mxu0 %v918
  %1146 = vmatprep.subr.bf16.mxu0 0
  %1147 = vmatpush1.bf16.msra.mxu0 %v919
  %1148 = vmatprep.subr.bf16.mxu0 0
  %1149 = vmatpush1.bf16.msra.mxu0 %v920
  %1150 = vmatprep.subr.bf16.mxu0 0
  %1151 = vmatpush1.bf16.msra.mxu0 %v921
  %1152 = vmatprep.subr.bf16.mxu0 0
  %1153 = vmatpush1.bf16.msra.mxu0 %v922
  %1154 = vmatprep.subr.bf16.mxu0 0
  %1155 = vmatpush1.bf16.msra.mxu0 %v923
  %1156 = vmatprep.subr.bf16.mxu0 0
  %1157 = vmatpush1.bf16.msra.mxu0 %v924
  %1158 = vmatprep.subr.bf16.mxu0 0
  %1159 = vmatpush1.bf16.msra.mxu0 %v925
  %1160 = vmatprep.subr.bf16.mxu0 0
  %1161 = vmatpush1.bf16.msra.mxu0 %v926
  %1162 = vmatprep.subr.bf16.mxu0 0
  %1163 = vmatpush1.bf16.msra.mxu0 %v927
  %1164 = vmatprep.subr.bf16.mxu0 0
  %1165 = vmatpush1.bf16.msra.mxu0 %v928
  %1166 = vmatprep.subr.bf16.mxu0 0
  %1167 = vmatpush1.bf16.msra.mxu0 %v929
  %1168 = vmatprep.subr.bf16.mxu0 0
  %1169 = vmatpush1.bf16.msra.mxu0 %v930
  %1170 = vmatprep.subr.bf16.mxu0 0
  %1171 = vmatpush1.bf16.msra.mxu0 %v931
  %1172 = vmatprep.subr.bf16.mxu0 0
  %1173 = vmatpush1.bf16.msra.mxu0 %v932
  %1174 = vmatprep.mubr.bf16.mxu0 %v472
  %1175 = vmatmul.mubr.bf16.gmra.mrb[0].mxu0 %v471
  %v1176 = vpop.f32.mrb[0].mxu0
  %v1177 = vadd.f32 %v1080, %v1176
  %v1178 = vpop.f32.mrb[0].mxu0
  %v1179 = vpop.f32.mrb[0].mxu0
  %v1180 = vadd.f32 %v1083, %v1179
  %v1181 = vpop.f32.mrb[0].mxu0
  %1182 = vmatprep.mubr.bf16.mxu0 %v481
  %1183 = vmatmul.mubr.bf16.gmra.mrb[0].mxu0 %v480
  %v1184 = vpop.f32.mrb[0].mxu0
  %v1185 = vadd.f32 %v1088, %v1184
  %v1186 = vpop.f32.mrb[0].mxu0
  %v1187 = vpop.f32.mrb[0].mxu0
  %v1188 = vadd.f32 %v1091, %v1187
  %v1189 = vpop.f32.mrb[0].mxu0
  %1190 = vmatprep.mubr.bf16.mxu0 %v490
  %1191 = vmatmul.mubr.bf16.gmra.mrb[0].mxu0 %v489
  %v1192 = vpop.f32.mrb[0].mxu0
  %v1193 = vadd.f32 %v1096, %v1192
  %v1194 = vpop.f32.mrb[0].mxu0
  %v1195 = vpop.f32.mrb[0].mxu0
  %v1196 = vadd.f32 %v1099, %v1195
  %v1197 = vpop.f32.mrb[0].mxu0
  %1198 = vmatprep.mubr.bf16.mxu0 %v499
  %1199 = vmatmul.mubr.bf16.gmra.mrb[0].mxu0 %v498
  %v1200 = vpop.f32.mrb[0].mxu0
  %v1201 = vadd.f32 %v1104, %v1200
  %v1202 = vpop.f32.mrb[0].mxu0
  %v1203 = vpop.f32.mrb[0].mxu0
  %v1204 = vadd.f32 %v1107, %v1203
  %v1205 = vpop.f32.mrb[0].mxu0
  %1206 = vmatprep.mubr.bf16.mxu0 %v508
  %1207 = vmatmul.mubr.bf16.gmra.mrb[0].mxu0 %v507
  %v1208 = vpop.f32.mrb[0].mxu0
  %v1209 = vadd.f32 %v1112, %v1208
  %v1210 = vpop.f32.mrb[0].mxu0
  %v1211 = vpop.f32.mrb[0].mxu0
  %v1212 = vadd.f32 %v1115, %v1211
  %v1213 = vpop.f32.mrb[0].mxu0
  %1214 = vmatprep.mubr.bf16.mxu0 %v517
  %1215 = vmatmul.mubr.bf16.gmra.mrb[0].mxu0 %v516
  %v1216 = vpop.f32.mrb[0].mxu0
  %v1217 = vadd.f32 %v1120, %v1216
  %v1218 = vpop.f32.mrb[0].mxu0
  %v1219 = vpop.f32.mrb[0].mxu0
  %v1220 = vadd.f32 %v1123, %v1219
  %v1221 = vpop.f32.mrb[0].mxu0
  %1222 = vmatprep.mubr.bf16.mxu0 %v526
  %1223 = vmatmul.mubr.bf16.gmra.mrb[0].mxu0 %v525
  %v1224 = vpop.f32.mrb[0].mxu0
  %v1225 = vadd.f32 %v1128, %v1224
  %v1226 = vpop.f32.mrb[0].mxu0
  %v1227 = vpop.f32.mrb[0].mxu0
  %v1228 = vadd.f32 %v1131, %v1227
  %v1229 = vpop.f32.mrb[0].mxu0
  %1230 = vmatprep.mubr.bf16.mxu0 %v535
  %1231 = vmatmul.mubr.bf16.gmra.mrb[0].mxu0 %v534
  %v1232 = vpop.f32.mrb[0].mxu0
  %v1233 = vadd.f32 %v1136, %v1232
  %v1234 = vpop.f32.mrb[0].mxu0
  %v1235 = vpop.f32.mrb[0].mxu0
  %v1236 = vadd.f32 %v1139, %v1235
  %v1237 = vpop.f32.mrb[0].mxu0
  %1238 = vdwg.mxu0
  %1239 = vmatprep.subr.bf16.mxu0 0
  %1240 = vmatpush1.bf16.msra.mxu0 %v933
  %1241 = vmatprep.subr.bf16.mxu0 0
  %1242 = vmatpush1.bf16.msra.mxu0 %v934
  %1243 = vmatprep.subr.bf16.mxu0 0
  %1244 = vmatpush1.bf16.msra.mxu0 %v935
  %1245 = vmatprep.subr.bf16.mxu0 0
  %1246 = vmatpush1.bf16.msra.mxu0 %v936
  %1247 = vmatprep.subr.bf16.mxu0 0
  %1248 = vmatpush1.bf16.msra.mxu0 %v937
  %1249 = vmatprep.subr.bf16.mxu0 0
  %1250 = vmatpush1.bf16.msra.mxu0 %v938
  %1251 = vmatprep.subr.bf16.mxu0 0
  %1252 = vmatpush1.bf16.msra.mxu0 %v939
  %1253 = vmatprep.subr.bf16.mxu0 0
  %1254 = vmatpush1.bf16.msra.mxu0 %v940
  %1255 = vmatprep.subr.bf16.mxu0 0
  %1256 = vmatpush1.bf16.msra.mxu0 %v941
  %1257 = vmatprep.subr.bf16.mxu0 0
  %1258 = vmatpush1.bf16.msra.mxu0 %v942
  %1259 = vmatprep.subr.bf16.mxu0 0
  %1260 = vmatpush1.bf16.msra.mxu0 %v943
  %1261 = vmatprep.subr.bf16.mxu0 0
  %1262 = vmatpush1.bf16.msra.mxu0 %v944
  %1263 = vmatprep.subr.bf16.mxu0 0
  %1264 = vmatpush1.bf16.msra.mxu0 %v945
  %1265 = vmatprep.subr.bf16.mxu0 0
  %1266 = vmatpush1.bf16.msra.mxu0 %v946
  %1267 = vmatprep.subr.bf16.mxu0 0
  %1268 = vmatpush1.bf16.msra.mxu0 %v947
  %1269 = vmatprep.subr.bf16.mxu0 0
  %1270 = vmatpush1.bf16.msra.mxu0 %v948
  %1271 = vmatprep.mubr.bf16.mxu0 %v474
  %1272 = vmatmul.mubr.bf16.gmra.mrb[0].mxu0 %v473
  %v1273 = vpop.f32.mrb[0].mxu0
  %v1274 = vadd.f32 %v1177, %v1273
  %v1275 = vpop.f32.mrb[0].mxu0
  %v1276 = vpop.f32.mrb[0].mxu0
  %v1277 = vadd.f32 %v1180, %v1276
  %v1278 = vpop.f32.mrb[0].mxu0
  %1279 = vmatprep.mubr.bf16.mxu0 %v483
  %1280 = vmatmul.mubr.bf16.gmra.mrb[0].mxu0 %v482
  %v1281 = vpop.f32.mrb[0].mxu0
  %v1282 = vadd.f32 %v1185, %v1281
  %v1283 = vpop.f32.mrb[0].mxu0
  %v1284 = vpop.f32.mrb[0].mxu0
  %v1285 = vadd.f32 %v1188, %v1284
  %v1286 = vpop.f32.mrb[0].mxu0
  %1287 = vmatprep.mubr.bf16.mxu0 %v492
  %1288 = vmatmul.mubr.bf16.gmra.mrb[0].mxu0 %v491
  %v1289 = vpop.f32.mrb[0].mxu0
  %v1290 = vadd.f32 %v1193, %v1289
  %v1291 = vpop.f32.mrb[0].mxu0
  %v1292 = vpop.f32.mrb[0].mxu0
  %v1293 = vadd.f32 %v1196, %v1292
  %v1294 = vpop.f32.mrb[0].mxu0
  %1295 = vmatprep.mubr.bf16.mxu0 %v501
  %1296 = vmatmul.mubr.bf16.gmra.mrb[0].mxu0 %v500
  %v1297 = vpop.f32.mrb[0].mxu0
  %v1298 = vadd.f32 %v1201, %v1297
  %v1299 = vpop.f32.mrb[0].mxu0
  %v1300 = vpop.f32.mrb[0].mxu0
  %v1301 = vadd.f32 %v1204, %v1300
  %v1302 = vpop.f32.mrb[0].mxu0
  %1303 = vmatprep.mubr.bf16.mxu0 %v510
  %1304 = vmatmul.mubr.bf16.gmra.mrb[0].mxu0 %v509
  %v1305 = vpop.f32.mrb[0].mxu0
  %v1306 = vadd.f32 %v1209, %v1305
  %v1307 = vpop.f32.mrb[0].mxu0
  %v1308 = vpop.f32.mrb[0].mxu0
  %v1309 = vadd.f32 %v1212, %v1308
  %v1310 = vpop.f32.mrb[0].mxu0
  %1311 = vmatprep.mubr.bf16.mxu0 %v519
  %1312 = vmatmul.mubr.bf16.gmra.mrb[0].mxu0 %v518
  %v1313 = vpop.f32.mrb[0].mxu0
  %v1314 = vadd.f32 %v1217, %v1313
  %v1315 = vpop.f32.mrb[0].mxu0
  %v1316 = vpop.f32.mrb[0].mxu0
  %v1317 = vadd.f32 %v1220, %v1316
  %v1318 = vpop.f32.mrb[0].mxu0
  %1319 = vmatprep.mubr.bf16.mxu0 %v528
  %1320 = vmatmul.mubr.bf16.gmra.mrb[0].mxu0 %v527
  %v1321 = vpop.f32.mrb[0].mxu0
  %v1322 = vadd.f32 %v1225, %v1321
  %v1323 = vpop.f32.mrb[0].mxu0
  %v1324 = vpop.f32.mrb[0].mxu0
  %v1325 = vadd.f32 %v1228, %v1324
  %v1326 = vpop.f32.mrb[0].mxu0
  %1327 = vmatprep.mubr.bf16.mxu0 %v537
  %1328 = vmatmul.mubr.bf16.gmra.mrb[0].mxu0 %v536
  %v1329 = vpop.f32.mrb[0].mxu0
  %v1330 = vadd.f32 %v1233, %v1329
  %v1331 = vpop.f32.mrb[0].mxu0
  %v1332 = vpop.f32.mrb[0].mxu0
  %v1333 = vadd.f32 %v1236, %v1332
  %v1334 = vpop.f32.mrb[0].mxu0
  %1335 = vdwg.mxu0
  %1336 = vmatprep.subr.bf16.mxu0 0
  %1337 = vmatpush1.bf16.msra.mxu0 %v949
  %1338 = vmatprep.subr.bf16.mxu0 0
  %1339 = vmatpush1.bf16.msra.mxu0 %v950
  %1340 = vmatprep.subr.bf16.mxu0 0
  %1341 = vmatpush1.bf16.msra.mxu0 %v951
  %1342 = vmatprep.subr.bf16.mxu0 0
  %1343 = vmatpush1.bf16.msra.mxu0 %v952
  %1344 = vmatprep.subr.bf16.mxu0 0
  %1345 = vmatpush1.bf16.msra.mxu0 %v953
  %1346 = vmatprep.subr.bf16.mxu0 0
  %1347 = vmatpush1.bf16.msra.mxu0 %v954
  %1348 = vmatprep.subr.bf16.mxu0 0
  %1349 = vmatpush1.bf16.msra.mxu0 %v955
  %1350 = vmatprep.subr.bf16.mxu0 0
  %1351 = vmatpush1.bf16.msra.mxu0 %v956
  %1352 = vmatprep.subr.bf16.mxu0 0
  %1353 = vmatpush1.bf16.msra.mxu0 %v957
  %1354 = vmatprep.subr.bf16.mxu0 0
  %1355 = vmatpush1.bf16.msra.mxu0 %v958
  %1356 = vmatprep.subr.bf16.mxu0 0
  %1357 = vmatpush1.bf16.msra.mxu0 %v959
  %1358 = vmatprep.subr.bf16.mxu0 0
  %1359 = vmatpush1.bf16.msra.mxu0 %v960
  %1360 = vmatprep.subr.bf16.mxu0 0
  %1361 = vmatpush1.bf16.msra.mxu0 %v961
  %1362 = vmatprep.subr.bf16.mxu0 0
  %1363 = vmatpush1.bf16.msra.mxu0 %v962
  %1364 = vmatprep.subr.bf16.mxu0 0
  %1365 = vmatpush1.bf16.msra.mxu0 %v963
  %1366 = vmatprep.subr.bf16.mxu0 0
  %1367 = vmatpush1.bf16.msra.mxu0 %v964
  %1368 = vmatprep.mubr.bf16.mxu0 %v476
  %1369 = vmatmul.mubr.bf16.gmra.mrb[0].mxu0 %v475
  %v1370 = vpop.f32.mrb[0].mxu0
  %v1371 = vadd.f32 %v1274, %v1370
  %v1372 = vpop.f32.mrb[0].mxu0
  %v1373 = vpop.f32.mrb[0].mxu0
  %v1374 = vadd.f32 %v1277, %v1373
  %v1375 = vpop.f32.mrb[0].mxu0
  %1376 = vmatprep.mubr.bf16.mxu0 %v485
  %1377 = vmatmul.mubr.bf16.gmra.mrb[0].mxu0 %v484
  %v1378 = vpop.f32.mrb[0].mxu0
  %v1379 = vadd.f32 %v1282, %v1378
  %v1380 = vpop.f32.mrb[0].mxu0
  %v1381 = vpop.f32.mrb[0].mxu0
  %v1382 = vadd.f32 %v1285, %v1381
  %v1383 = vpop.f32.mrb[0].mxu0
  %1384 = vmatprep.mubr.bf16.mxu0 %v494
  %1385 = vmatmul.mubr.bf16.gmra.mrb[0].mxu0 %v493
  %v1386 = vpop.f32.mrb[0].mxu0
  %v1387 = vadd.f32 %v1290, %v1386
  %v1388 = vpop.f32.mrb[0].mxu0
  %v1389 = vpop.f32.mrb[0].mxu0
  %v1390 = vadd.f32 %v1293, %v1389
  %v1391 = vpop.f32.mrb[0].mxu0
  %1392 = vmatprep.mubr.bf16.mxu0 %v503
  %1393 = vmatmul.mubr.bf16.gmra.mrb[0].mxu0 %v502
  %v1394 = vpop.f32.mrb[0].mxu0
  %v1395 = vadd.f32 %v1298, %v1394
  %v1396 = vpop.f32.mrb[0].mxu0
  %v1397 = vpop.f32.mrb[0].mxu0
  %v1398 = vadd.f32 %v1301, %v1397
  %v1399 = vpop.f32.mrb[0].mxu0
  %1400 = vmatprep.mubr.bf16.mxu0 %v512
  %1401 = vmatmul.mubr.bf16.gmra.mrb[0].mxu0 %v511
  %v1402 = vpop.f32.mrb[0].mxu0
  %v1403 = vadd.f32 %v1306, %v1402
  %v1404 = vpop.f32.mrb[0].mxu0
  %v1405 = vpop.f32.mrb[0].mxu0
  %v1406 = vadd.f32 %v1309, %v1405
  %v1407 = vpop.f32.mrb[0].mxu0
  %1408 = vmatprep.mubr.bf16.mxu0 %v521
  %1409 = vmatmul.mubr.bf16.gmra.mrb[0].mxu0 %v520
  %v1410 = vpop.f32.mrb[0].mxu0
  %v1411 = vadd.f32 %v1314, %v1410
  %v1412 = vpop.f32.mrb[0].mxu0
  %v1413 = vpop.f32.mrb[0].mxu0
  %v1414 = vadd.f32 %v1317, %v1413
  %v1415 = vpop.f32.mrb[0].mxu0
  %1416 = vmatprep.mubr.bf16.mxu0 %v530
  %1417 = vmatmul.mubr.bf16.gmra.mrb[0].mxu0 %v529
  %v1418 = vpop.f32.mrb[0].mxu0
  %v1419 = vadd.f32 %v1322, %v1418
  %v1420 = vpop.f32.mrb[0].mxu0
  %v1421 = vpop.f32.mrb[0].mxu0
  %v1422 = vadd.f32 %v1325, %v1421
  %v1423 = vpop.f32.mrb[0].mxu0
  %1424 = vmatprep.mubr.bf16.mxu0 %v539
  %1425 = vmatmul.mubr.bf16.gmra.mrb[0].mxu0 %v538
  %v1426 = vpop.f32.mrb[0].mxu0
  %v1427 = vadd.f32 %v1330, %v1426
  %v1428 = vpop.f32.mrb[0].mxu0
  %v1429 = vpop.f32.mrb[0].mxu0
  %v1430 = vadd.f32 %v1333, %v1429
  %v1431 = vpop.f32.mrb[0].mxu0
  %1432 = vdwg.mxu0
  %1433 = vmatprep.subr.bf16.mxu0 0
  %1434 = vmatpush1.bf16.msra.mxu0 %v965
  %1435 = vmatprep.subr.bf16.mxu0 0
  %1436 = vmatpush1.bf16.msra.mxu0 %v966
  %1437 = vmatprep.subr.bf16.mxu0 0
  %1438 = vmatpush1.bf16.msra.mxu0 %v967
  %1439 = vmatprep.subr.bf16.mxu0 0
  %1440 = vmatpush1.bf16.msra.mxu0 %v968
  %1441 = vmatprep.subr.bf16.mxu0 0
  %1442 = vmatpush1.bf16.msra.mxu0 %v969
  %1443 = vmatprep.subr.bf16.mxu0 0
  %1444 = vmatpush1.bf16.msra.mxu0 %v970
  %1445 = vmatprep.subr.bf16.mxu0 0
  %1446 = vmatpush1.bf16.msra.mxu0 %v971
  %1447 = vmatprep.subr.bf16.mxu0 0
  %1448 = vmatpush1.bf16.msra.mxu0 %v972
  %1449 = vmatprep.subr.bf16.mxu0 0
  %1450 = vmatpush1.bf16.msra.mxu0 0
  %1451 = vmatprep.subr.bf16.mxu0 0
  %1452 = vmatpush1.bf16.msra.mxu0 0
  %1453 = vmatprep.subr.bf16.mxu0 0
  %1454 = vmatpush1.bf16.msra.mxu0 0
  %1455 = vmatprep.subr.bf16.mxu0 0
  %1456 = vmatpush1.bf16.msra.mxu0 0
  %1457 = vmatprep.subr.bf16.mxu0 0
  %1458 = vmatpush1.bf16.msra.mxu0 0
  %1459 = vmatprep.subr.bf16.mxu0 0
  %1460 = vmatpush1.bf16.msra.mxu0 0
  %1461 = vmatprep.subr.bf16.mxu0 0
  %1462 = vmatpush1.bf16.msra.mxu0 0
  %1463 = vmatprep.subr.bf16.mxu0 0
  %1464 = vmatpush1.bf16.msra.mxu0 0
  %1465 = vmatprep.mubr.bf16.mxu0 0
  %1466 = vmatmul.mubr.bf16.gmra.mrb[0].mxu0 %v477
  %v1467 = vpop.f32.mrb[0].mxu0
  %v1468 = vadd.f32 %v1371, %v1467
  %v1469 = vpop.f32.mrb[0].mxu0
  %v1470 = vpop.f32.mrb[0].mxu0
  %v1471 = vadd.f32 %v1374, %v1470
  %v1472 = vpop.f32.mrb[0].mxu0
  %1473 = vmatprep.mubr.bf16.mxu0 0
  %1474 = vmatmul.mubr.bf16.gmra.mrb[0].mxu0 %v486
  %v1475 = vpop.f32.mrb[0].mxu0
  %v1476 = vadd.f32 %v1379, %v1475
  %v1477 = vpop.f32.mrb[0].mxu0
  %v1478 = vpop.f32.mrb[0].mxu0
  %v1479 = vadd.f32 %v1382, %v1478
  %v1480 = vpop.f32.mrb[0].mxu0
  %1481 = vmatprep.mubr.bf16.mxu0 0
  %1482 = vmatmul.mubr.bf16.gmra.mrb[0].mxu0 %v495
  %v1483 = vpop.f32.mrb[0].mxu0
  %v1484 = vadd.f32 %v1387, %v1483
  %v1485 = vpop.f32.mrb[0].mxu0
  %v1486 = vpop.f32.mrb[0].mxu0
  %v1487 = vadd.f32 %v1390, %v1486
  %v1488 = vpop.f32.mrb[0].mxu0
  %1489 = vmatprep.mubr.bf16.mxu0 0
  %1490 = vmatmul.mubr.bf16.gmra.mrb[0].mxu0 %v504
  %v1491 = vpop.f32.mrb[0].mxu0
  %v1492 = vadd.f32 %v1395, %v1491
  %v1493 = vpop.f32.mrb[0].mxu0
  %v1494 = vpop.f32.mrb[0].mxu0
  %v1495 = vadd.f32 %v1398, %v1494
  %v1496 = vpop.f32.mrb[0].mxu0
  %1497 = vmatprep.mubr.bf16.mxu0 0
  %1498 = vmatmul.mubr.bf16.gmra.mrb[0].mxu0 %v513
  %v1499 = vpop.f32.mrb[0].mxu0
  %v1500 = vadd.f32 %v1403, %v1499
  %v1501 = vpop.f32.mrb[0].mxu0
  %v1502 = vpop.f32.mrb[0].mxu0
  %v1503 = vadd.f32 %v1406, %v1502
  %v1504 = vpop.f32.mrb[0].mxu0
  %1505 = vmatprep.mubr.bf16.mxu0 0
  %1506 = vmatmul.mubr.bf16.gmra.mrb[0].mxu0 %v522
  %v1507 = vpop.f32.mrb[0].mxu0
  %v1508 = vadd.f32 %v1411, %v1507
  %v1509 = vpop.f32.mrb[0].mxu0
  %v1510 = vpop.f32.mrb[0].mxu0
  %v1511 = vadd.f32 %v1414, %v1510
  %v1512 = vpop.f32.mrb[0].mxu0
  %1513 = vmatprep.mubr.bf16.mxu0 0
  %1514 = vmatmul.mubr.bf16.gmra.mrb[0].mxu0 %v531
  %v1515 = vpop.f32.mrb[0].mxu0
  %v1516 = vadd.f32 %v1419, %v1515
  %v1517 = vpop.f32.mrb[0].mxu0
  %v1518 = vpop.f32.mrb[0].mxu0
  %v1519 = vadd.f32 %v1422, %v1518
  %v1520 = vpop.f32.mrb[0].mxu0
  %1521 = vmatprep.mubr.bf16.mxu0 0
  %1522 = vmatmul.mubr.bf16.gmra.mrb[0].mxu0 %v540
  %v1523 = vpop.f32.mrb[0].mxu0
  %v1524 = vadd.f32 %v1427, %v1523
  %v1525 = vpop.f32.mrb[0].mxu0
  %v1526 = vpop.f32.mrb[0].mxu0
  %v1527 = vadd.f32 %v1430, %v1526
  %v1528 = vpop.f32.mrb[0].mxu0
  %1529 = vdwg.mxu0
  %v1530 = vld [vmem:[%s2] sm:$0x1]
  %v1532 = vlaneseq
  %v1533 = vshrl.u32 %v1532, 7
  %v1534 = vsub.s32 0, %v1533
  %v1535 = vrot.slane %v1530, %v1534
  %v1537 = vmul.f32 %v1468, %v1535
  %v1538 = vmul.f32 %v1471, %v1535
  %v1539 = vmul.f32 %v1476, %v1535
  %v1540 = vmul.f32 %v1479, %v1535
  %v1541 = vmul.f32 %v1484, %v1535
  %v1542 = vmul.f32 %v1487, %v1535
  %v1543 = vmul.f32 %v1492, %v1535
  %v1544 = vmul.f32 %v1495, %v1535
  %v1545 = vmul.f32 %v1500, %v1535
  %v1546 = vmul.f32 %v1503, %v1535
  %v1547 = vmul.f32 %v1508, %v1535
  %v1548 = vmul.f32 %v1511, %v1535
  %v1549 = vmul.f32 %v1516, %v1535
  %v1550 = vmul.f32 %v1519, %v1535
  %v1551 = vmul.f32 %v1524, %v1535
  %v1552 = vmul.f32 %v1527, %v1535
  %v1553 = vld [vmem:[%s3] sm:$0x1]
  %v1555 = vlaneseq
  %v1556 = vshrl.u32 %v1555, 7
  %v1557 = vsub.s32 0, %v1556
  %v1558 = vrot.slane %v1553, %v1557
  %v1560 = vadd.f32 %v1537, %v1558
  %v1561 = vadd.f32 %v1538, %v1558
  %v1562 = vadd.f32 %v1539, %v1558
  %v1563 = vadd.f32 %v1540, %v1558
  %v1564 = vadd.f32 %v1541, %v1558
  %v1565 = vadd.f32 %v1542, %v1558
  %v1566 = vadd.f32 %v1543, %v1558
  %v1567 = vadd.f32 %v1544, %v1558
  %v1568 = vadd.f32 %v1545, %v1558
  %v1569 = vadd.f32 %v1546, %v1558
  %v1570 = vadd.f32 %v1547, %v1558
  %v1571 = vadd.f32 %v1548, %v1558
  %v1572 = vadd.f32 %v1549, %v1558
  %v1573 = vadd.f32 %v1550, %v1558
  %v1574 = vadd.f32 %v1551, %v1558
  %v1575 = vadd.f32 %v1552, %v1558
  %v1576 = vld [vmem:[%s4] sm:$0xf]
  %v1577 = vld [vmem:[%s4 + $0x4] sm:$0xf]
  %v1578 = vld [vmem:[%s4 + $0x8] sm:$0xf]
  %v1579 = vld [vmem:[%s4 + $0xc] sm:$0xf]
  %v1580 = vld [vmem:[%s4 + $0x10] sm:$0xf]
  %v1581 = vld [vmem:[%s4 + $0x14] sm:$0xf]
  %v1582 = vld [vmem:[%s4 + $0x18] sm:$0xf]
  %v1583 = vld [vmem:[%s4 + $0x1c] sm:$0xf]
  %v1584 = vld [vmem:[%s4 + $0x20] sm:$0xf]
  %v1585 = vld [vmem:[%s4 + $0x24] sm:$0xf]
  %v1586 = vld [vmem:[%s4 + $0x28] sm:$0xf]
  %v1587 = vld [vmem:[%s4 + $0x2c] sm:$0xf]
  %v1588 = vld [vmem:[%s4 + $0x30] sm:$0xf]
  %v1589 = vld [vmem:[%s4 + $0x34] sm:$0xf]
  %v1590 = vld [vmem:[%s4 + $0x38] sm:$0xf]
  %v1591 = vld [vmem:[%s4 + $0x3c] sm:$0xf]
  %v1592 = vunpack.c.l.bf16 %v1576
  %v1593 = vunpack.c.l.bf16 %v1577
  %v1594 = vunpack.c.l.bf16 %v1578
  %v1595 = vunpack.c.l.bf16 %v1579
  %v1596 = vunpack.c.l.bf16 %v1580
  %v1597 = vunpack.c.l.bf16 %v1581
  %v1598 = vunpack.c.l.bf16 %v1582
  %v1599 = vunpack.c.l.bf16 %v1583
  %v1600 = vunpack.c.l.bf16 %v1584
  %v1601 = vunpack.c.l.bf16 %v1585
  %v1602 = vunpack.c.l.bf16 %v1586
  %v1603 = vunpack.c.l.bf16 %v1587
  %v1604 = vunpack.c.l.bf16 %v1588
  %v1605 = vunpack.c.l.bf16 %v1589
  %v1606 = vunpack.c.l.bf16 %v1590
  %v1607 = vunpack.c.l.bf16 %v1591
  %v1608 = vadd.f32 %v1560, %v1592
  %v1609 = vadd.f32 %v1561, %v1593
  %v1610 = vadd.f32 %v1562, %v1594
  %v1611 = vadd.f32 %v1563, %v1595
  %v1612 = vadd.f32 %v1564, %v1596
  %v1613 = vadd.f32 %v1565, %v1597
  %v1614 = vadd.f32 %v1566, %v1598
  %v1615 = vadd.f32 %v1567, %v1599
  %v1616 = vadd.f32 %v1568, %v1600
  %v1617 = vadd.f32 %v1569, %v1601
  %v1618 = vadd.f32 %v1570, %v1602
  %v1619 = vadd.f32 %v1571, %v1603
  %v1620 = vadd.f32 %v1572, %v1604
  %v1621 = vadd.f32 %v1573, %v1605
  %v1622 = vadd.f32 %v1574, %v1606
  %v1623 = vadd.f32 %v1575, %v1607
  %v1624 = vmax.f32 %v1608, 0.0
  %v1625 = vmax.f32 %v1609, 0.0
  %v1626 = vmax.f32 %v1610, 0.0
  %v1627 = vmax.f32 %v1611, 0.0
  %v1628 = vmax.f32 %v1612, 0.0
  %v1629 = vmax.f32 %v1613, 0.0
  %v1630 = vmax.f32 %v1614, 0.0
  %v1631 = vmax.f32 %v1615, 0.0
  %v1632 = vmax.f32 %v1616, 0.0
  %v1633 = vmax.f32 %v1617, 0.0
  %v1634 = vmax.f32 %v1618, 0.0
  %v1635 = vmax.f32 %v1619, 0.0
  %v1636 = vmax.f32 %v1620, 0.0
  %v1637 = vmax.f32 %v1621, 0.0
  %v1638 = vmax.f32 %v1622, 0.0
  %v1639 = vmax.f32 %v1623, 0.0
  %v1640 = vpack.c.bf16 %v1625, %v1624
  %v1641 = vpack.c.bf16 %v1627, %v1626
  %v1642 = vpack.c.bf16 %v1629, %v1628
  %v1643 = vpack.c.bf16 %v1631, %v1630
  %v1644 = vpack.c.bf16 %v1633, %v1632
  %v1645 = vpack.c.bf16 %v1635, %v1634
  %v1646 = vpack.c.bf16 %v1637, %v1636
  %v1647 = vpack.c.bf16 %v1639, %v1638
  %v1656 = vunpack.c.l.b16 %v1640
  %v1657 = vunpack.c.h.b16 %v1640
  %v1658 = vunpack.c.l.b16 %v1641
  %v1659 = vunpack.c.h.b16 %v1641
  %v1660 = vunpack.c.l.b16 %v1642
  %v1661 = vunpack.c.h.b16 %v1642
  %v1662 = vunpack.c.l.b16 %v1643
  %v1663 = vunpack.c.h.b16 %v1643
  %v1664 = vunpack.c.l.b16 %v1644
  %v1665 = vunpack.c.h.b16 %v1644
  %v1666 = vunpack.c.l.b16 %v1645
  %v1667 = vunpack.c.h.b16 %v1645
  %v1668 = vunpack.c.l.b16 %v1646
  %v1669 = vunpack.c.h.b16 %v1646
  %v1670 = vunpack.c.l.b16 %v1647
  %v1671 = vunpack.c.h.b16 %v1647
  %v1672 = vpack.c.b16 %v1656, %v1656
  %v1673 = vpack.c.b16 %v1657, %v1657
  %v1674 = vpack.c.b16 %v1658, %v1658
  %v1675 = vpack.c.b16 %v1659, %v1659
  %v1676 = vpack.c.b16 %v1660, %v1660
  %v1677 = vpack.c.b16 %v1661, %v1661
  %v1678 = vpack.c.b16 %v1662, %v1662
  %v1679 = vpack.c.b16 %v1663, %v1663
  %v1680 = vpack.c.b16 %v1664, %v1664
  %v1681 = vpack.c.b16 %v1665, %v1665
  %v1682 = vpack.c.b16 %v1666, %v1666
  %v1683 = vpack.c.b16 %v1667, %v1667
  %v1684 = vpack.c.b16 %v1668, %v1668
  %v1685 = vpack.c.b16 %v1669, %v1669
  %v1686 = vpack.c.b16 %v1670, %v1670
  %v1687 = vpack.c.b16 %v1671, %v1671
  %1704 = vst [vmem:[%s5] sm:$0xf] %v1672
  %1705 = vst [vmem:[%s5 + $0x4] sm:$0xf] %v1673
  %1706 = vst [vmem:[%s5 + $0x8] sm:$0xf] %v1674
  %1707 = vst [vmem:[%s5 + $0xc] sm:$0xf] %v1675
  %1708 = vst [vmem:[%s5 + $0x10] sm:$0xf] %v1676
  %1709 = vst [vmem:[%s5 + $0x14] sm:$0xf] %v1677
  %1710 = vst [vmem:[%s5 + $0x18] sm:$0xf] %v1678
  %1711 = vst [vmem:[%s5 + $0x1c] sm:$0xf] %v1679
  %1712 = vst [vmem:[%s5 + $0x20] sm:$0xf] %v1680
  %1713 = vst [vmem:[%s5 + $0x24] sm:$0xf] %v1681
  %1714 = vst [vmem:[%s5 + $0x28] sm:$0xf] %v1682
  %1715 = vst [vmem:[%s5 + $0x2c] sm:$0xf] %v1683
  %1716 = vst [vmem:[%s5 + $0x30] sm:$0xf] %v1684
  %1717 = vst [vmem:[%s5 + $0x34] sm:$0xf] %v1685
  %1718 = vst [vmem:[%s5 + $0x38] sm:$0xf] %v1686
  %1719 = vst [vmem:[%s5 + $0x3c] sm:$0xf] %v1687
  // Predicated region
  $region22: #{_lambda_.25} parent=0 // pred_check
    _
  $region23: #{_lambda_.25} parent=0 // pred_check_branch
    %1721 = sbr.rel (0) target = $region25
  $region24: #{_lambda_.25} parent=0 // pred_region
    _
  $region25: #{_lambda_.25} parent=0 // pred_fallthru
    _
  // Predicated region
  $region26: #{_lambda_.25} parent=0 // pred_check
    _
  $region27: #{_lambda_.25} parent=0 // pred_check_branch
    %1723 = sbr.rel (0) target = $region29
  $region28: #{_lambda_.25} parent=0 // pred_region
    _
  $region29: #{_lambda_.25} parent=0 // pred_fallthru
    _

// kernel: _lambda_.29
$region0: #{_lambda_.29}
  #allocation0 [shape = 'u32[]', space=smem, size = 0x4, offset = 0x4, fixed_abs, tag = 'smem constant byte address 0x4 - core index']
  #allocation1 [shape = 'u32[144,128]{1,0:T(1,128)}', space=vmem, size = 0x12000, scoped, tag = 'internal scratch']
  %s0 = inlined_call_operand.vmem [shape: bf16[32,128], index: 0, kind: input, shape index: {}]
  %s1 = inlined_call_operand.vmem [shape: bf16[128,128], index: 1, kind: input, shape index: {}]
  %s2 = inlined_call_operand.vmem [shape: f32[1,128], index: 2, kind: input, shape index: {}]
  %s3 = inlined_call_operand.vmem [shape: f32[1,128], index: 3, kind: input, shape index: {}]
  %s4 = inlined_call_operand.vmem [shape: bf16[32,128], index: 4, kind: output, shape index: {}]
  %s5 = sld [smem:[#allocation0]]
  $region26: #{_lambda_.29} parent=0
    _
  %s7 = ssub.s32 1, %s5
  %s8 = scalar_select 0, %s7, %s5
  // Predicated region
  $region2: #{_lambda_.29} parent=0 // pred_check
    _
  $region3: #{_lambda_.29} parent=0 // pred_check_branch
    %10 = sbr.rel (0) target = $region5
  $region4: #{_lambda_.29} parent=0 // pred_region
    _
  $region5: #{_lambda_.29} parent=0 // pred_fallthru
    _
  // Predicated region
  $region6: #{_lambda_.29} parent=0 // pred_check
    _
  $region7: #{_lambda_.29} parent=0 // pred_check_branch
    %12 = sbr.rel (0) target = $region9
  $region8: #{_lambda_.29} parent=0 // pred_region
    _
  $region9: #{_lambda_.29} parent=0 // pred_fallthru
    _
  // Predicated region
  $region10: #{_lambda_.29} parent=0 // pred_check
    _
  $region11: #{_lambda_.29} parent=0 // pred_check_branch
    %14 = sbr.rel (0) target = $region13
  $region12: #{_lambda_.29} parent=0 // pred_region
    _
  $region13: #{_lambda_.29} parent=0 // pred_fallthru
    _
  // Predicated region
  $region14: #{_lambda_.29} parent=0 // pred_check
    _
  $region15: #{_lambda_.29} parent=0 // pred_check_branch
    %16 = sbr.rel (0) target = $region17
  $region16: #{_lambda_.29} parent=0 // pred_region
    _
  $region17: #{_lambda_.29} parent=0 // pred_fallthru
    _
  %v18 = vld [vmem:[%s0] sm:$0xf]
  %v19 = vld [vmem:[%s0 + $0x4] sm:$0xf]
  %v20 = vld [vmem:[%s0 + $0x8] sm:$0xf]
  %v21 = vld [vmem:[%s0 + $0xc] sm:$0xf]
  %v22 = vld [vmem:[%s1] sm:$0xf]
  %v23 = vld [vmem:[%s1 + $0x4] sm:$0xf]
  %v24 = vld [vmem:[%s1 + $0x8] sm:$0xf]
  %v25 = vld [vmem:[%s1 + $0xc] sm:$0xf]
  %v26 = vld [vmem:[%s1 + $0x10] sm:$0xf]
  %v27 = vld [vmem:[%s1 + $0x14] sm:$0xf]
  %v28 = vld [vmem:[%s1 + $0x18] sm:$0xf]
  %v29 = vld [vmem:[%s1 + $0x1c] sm:$0xf]
  %v30 = vld [vmem:[%s1 + $0x20] sm:$0xf]
  %v31 = vld [vmem:[%s1 + $0x24] sm:$0xf]
  %v32 = vld [vmem:[%s1 + $0x28] sm:$0xf]
  %v33 = vld [vmem:[%s1 + $0x2c] sm:$0xf]
  %v34 = vld [vmem:[%s1 + $0x30] sm:$0xf]
  %v35 = vld [vmem:[%s1 + $0x34] sm:$0xf]
  %v36 = vld [vmem:[%s1 + $0x38] sm:$0xf]
  %v37 = vld [vmem:[%s1 + $0x3c] sm:$0xf]
  %v42 = vunpack.c.l.b16 %v18
  %v43 = vunpack.c.l.b16 %v19
  %v44 = vunpack.c.l.b16 %v20
  %v45 = vunpack.c.l.b16 %v21
  %v46 = vpack.c.b16 %v43, %v42
  %v47 = vpack.c.b16 %v45, %v44
  %v66 = vunpack.c.l.b16 %v22
  %v67 = vunpack.c.l.b16 %v23
  %v68 = vunpack.c.l.b16 %v24
  %v69 = vunpack.c.l.b16 %v25
  %v70 = vunpack.c.l.b16 %v26
  %v71 = vunpack.c.l.b16 %v27
  %v72 = vunpack.c.l.b16 %v28
  %v73 = vunpack.c.l.b16 %v29
  %v74 = vunpack.c.l.b16 %v30
  %v75 = vunpack.c.l.b16 %v31
  %v76 = vunpack.c.l.b16 %v32
  %v77 = vunpack.c.l.b16 %v33
  %v78 = vunpack.c.l.b16 %v34
  %v79 = vunpack.c.l.b16 %v35
  %v80 = vunpack.c.l.b16 %v36
  %v81 = vunpack.c.l.b16 %v37
  %v82 = vpack.c.b16 %v67, %v66
  %v83 = vpack.c.b16 %v69, %v68
  %v84 = vpack.c.b16 %v71, %v70
  %v85 = vpack.c.b16 %v73, %v72
  %v86 = vpack.c.b16 %v75, %v74
  %v87 = vpack.c.b16 %v77, %v76
  %v88 = vpack.c.b16 %v79, %v78
  %v89 = vpack.c.b16 %v81, %v80
  %98 = vmatprep.subr.bf16.mxu0 0
  %99 = vmatpush1.bf16.msra.mxu0 %v82
  %100 = vmatprep.subr.bf16.mxu0 0
  %101 = vmatpush1.bf16.msra.mxu0 %v83
  %102 = vmatprep.subr.bf16.mxu0 0
  %103 = vmatpush1.bf16.msra.mxu0 %v84
  %104 = vmatprep.subr.bf16.mxu0 0
  %105 = vmatpush1.bf16.msra.mxu0 %v85
  %106 = vmatprep.subr.bf16.mxu0 0
  %107 = vmatpush1.bf16.msra.mxu0 %v86
  %108 = vmatprep.subr.bf16.mxu0 0
  %109 = vmatpush1.bf16.msra.mxu0 %v87
  %110 = vmatprep.subr.bf16.mxu0 0
  %111 = vmatpush1.bf16.msra.mxu0 %v88
  %112 = vmatprep.subr.bf16.mxu0 0
  %113 = vmatpush1.bf16.msra.mxu0 %v89
  %114 = vmatprep.subr.bf16.mxu0 0
  %115 = vmatpush1.bf16.msra.mxu0 0
  %116 = vmatprep.subr.bf16.mxu0 0
  %117 = vmatpush1.bf16.msra.mxu0 0
  %118 = vmatprep.subr.bf16.mxu0 0
  %119 = vmatpush1.bf16.msra.mxu0 0
  %120 = vmatprep.subr.bf16.mxu0 0
  %121 = vmatpush1.bf16.msra.mxu0 0
  %122 = vmatprep.subr.bf16.mxu0 0
  %123 = vmatpush1.bf16.msra.mxu0 0
  %124 = vmatprep.subr.bf16.mxu0 0
  %125 = vmatpush1.bf16.msra.mxu0 0
  %126 = vmatprep.subr.bf16.mxu0 0
  %127 = vmatpush1.bf16.msra.mxu0 0
  %128 = vmatprep.subr.bf16.mxu0 0
  %129 = vmatpush1.bf16.msra.mxu0 0
  %130 = vmatprep.mubr.bf16.mxu0 0
  %131 = vmatmul.mubr.bf16.gmra.mrb[0].mxu0 %v46
  %v132 = vpop.f32.mrb[0].mxu0
  %v133 = vadd.f32 0.0, %v132
  %v134 = vpop.f32.mrb[0].mxu0
  %v135 = vpop.f32.mrb[0].mxu0
  %v136 = vadd.f32 0.0, %v135
  %v137 = vpop.f32.mrb[0].mxu0
  %138 = vmatprep.mubr.bf16.mxu0 0
  %139 = vmatmul.mubr.bf16.gmra.mrb[0].mxu0 %v47
  %v140 = vpop.f32.mrb[0].mxu0
  %v141 = vadd.f32 0.0, %v140
  %v142 = vpop.f32.mrb[0].mxu0
  %v143 = vpop.f32.mrb[0].mxu0
  %v144 = vadd.f32 0.0, %v143
  %v145 = vpop.f32.mrb[0].mxu0
  %146 = vdwg.mxu0
  %v147 = vld [vmem:[%s2] sm:$0x1]
  %v149 = vlaneseq
  %v150 = vshrl.u32 %v149, 7
  %v151 = vsub.s32 0, %v150
  %v152 = vrot.slane %v147, %v151
  %v154 = vmul.f32 %v133, %v152
  %v155 = vmul.f32 %v136, %v152
  %v156 = vmul.f32 %v141, %v152
  %v157 = vmul.f32 %v144, %v152
  %v158 = vld [vmem:[%s3] sm:$0x1]
  %v160 = vlaneseq
  %v161 = vshrl.u32 %v160, 7
  %v162 = vsub.s32 0, %v161
  %v163 = vrot.slane %v158, %v162
  %v165 = vadd.f32 %v154, %v163
  %v166 = vadd.f32 %v155, %v163
  %v167 = vadd.f32 %v156, %v163
  %v168 = vadd.f32 %v157, %v163
  %v169 = vpack.c.bf16 %v166, %v165
  %v170 = vpack.c.bf16 %v168, %v167
  %v173 = vunpack.c.l.b16 %v169
  %v174 = vunpack.c.h.b16 %v169
  %v175 = vunpack.c.l.b16 %v170
  %v176 = vunpack.c.h.b16 %v170
  %v177 = vpack.c.b16 %v173, %v173
  %v178 = vpack.c.b16 %v174, %v174
  %v179 = vpack.c.b16 %v175, %v175
  %v180 = vpack.c.b16 %v176, %v176
  %185 = vst [vmem:[%s4] sm:$0xf] %v177
  %186 = vst [vmem:[%s4 + $0x4] sm:$0xf] %v178
  %187 = vst [vmem:[%s4 + $0x8] sm:$0xf] %v179
  %188 = vst [vmem:[%s4 + $0xc] sm:$0xf] %v180
  // Predicated region
  $region18: #{_lambda_.29} parent=0 // pred_check
    _
  $region19: #{_lambda_.29} parent=0 // pred_check_branch
    %190 = sbr.rel (0) target = $region21
  $region20: #{_lambda_.29} parent=0 // pred_region
    _
  $region21: #{_lambda_.29} parent=0 // pred_fallthru
    _
  // Predicated region
  $region22: #{_lambda_.29} parent=0 // pred_check
    _
  $region23: #{_lambda_.29} parent=0 // pred_check_branch
    %192 = sbr.rel (0) target = $region25
  $region24: #{_lambda_.29} parent=0 // pred_region
    _
  $region25: #{_lambda_.29} parent=0 // pred_fallthru
    _

// kernel: _lambda_.28
$region0: #{_lambda_.28}
  #allocation0 [shape = 'u32[]', space=smem, size = 0x4, offset = 0x4, fixed_abs, tag = 'smem constant byte address 0x4 - core index']
  #allocation1 [shape = 'u32[144,128]{1,0:T(1,128)}', space=vmem, size = 0x12000, scoped, tag = 'internal scratch']
  %s0 = inlined_call_operand.vmem [shape: bf16[32,1152], index: 0, kind: input, shape index: {}]
  %s1 = inlined_call_operand.vmem [shape: bf16[1152,128], index: 1, kind: input, shape index: {}]
  %s2 = inlined_call_operand.vmem [shape: f32[1,128], index: 2, kind: input, shape index: {}]
  %s3 = inlined_call_operand.vmem [shape: f32[1,128], index: 3, kind: input, shape index: {}]
  %s4 = inlined_call_operand.vmem [shape: bf16[32,128], index: 4, kind: output, shape index: {}]
  %s5 = sld [smem:[#allocation0]]
  $region26: #{_lambda_.28} parent=0
    _
  %s7 = ssub.s32 1, %s5
  %s8 = scalar_select 0, %s7, %s5
  // Predicated region
  $region2: #{_lambda_.28} parent=0 // pred_check
    _
  $region3: #{_lambda_.28} parent=0 // pred_check_branch
    %10 = sbr.rel (0) target = $region5
  $region4: #{_lambda_.28} parent=0 // pred_region
    _
  $region5: #{_lambda_.28} parent=0 // pred_fallthru
    _
  // Predicated region
  $region6: #{_lambda_.28} parent=0 // pred_check
    _
  $region7: #{_lambda_.28} parent=0 // pred_check_branch
    %12 = sbr.rel (0) target = $region9
  $region8: #{_lambda_.28} parent=0 // pred_region
    _
  $region9: #{_lambda_.28} parent=0 // pred_fallthru
    _
  // Predicated region
  $region10: #{_lambda_.28} parent=0 // pred_check
    _
  $region11: #{_lambda_.28} parent=0 // pred_check_branch
    %14 = sbr.rel (0) target = $region13
  $region12: #{_lambda_.28} parent=0 // pred_region
    _
  $region13: #{_lambda_.28} parent=0 // pred_fallthru
    _
  // Predicated region
  $region14: #{_lambda_.28} parent=0 // pred_check
    _
  $region15: #{_lambda_.28} parent=0 // pred_check_branch
    %16 = sbr.rel (0) target = $region17
  $region16: #{_lambda_.28} parent=0 // pred_region
    _
  $region17: #{_lambda_.28} parent=0 // pred_fallthru
    _
  %v18 = vld [vmem:[%s0] sm:$0xff]
  %v19 = vld [vmem:[%s0 + $0x8] sm:$0xff]
  %v20 = vld [vmem:[%s0 + $0x10] sm:$0xff]
  %v21 = vld [vmem:[%s0 + $0x18] sm:$0xff]
  %v22 = vld [vmem:[%s0 + $0x20] sm:$0xf]
  %v23 = vld [vmem:[%s0 + $0x24] sm:$0xff]
  %v24 = vld [vmem:[%s0 + $0x2c] sm:$0xff]
  %v25 = vld [vmem:[%s0 + $0x34] sm:$0xff]
  %v26 = vld [vmem:[%s0 + $0x3c] sm:$0xff]
  %v27 = vld [vmem:[%s0 + $0x44] sm:$0xf]
  %v28 = vld [vmem:[%s0 + $0x48] sm:$0xff]
  %v29 = vld [vmem:[%s0 + $0x50] sm:$0xff]
  %v30 = vld [vmem:[%s0 + $0x58] sm:$0xff]
  %v31 = vld [vmem:[%s0 + $0x60] sm:$0xff]
  %v32 = vld [vmem:[%s0 + $0x68] sm:$0xf]
  %v33 = vld [vmem:[%s0 + $0x6c] sm:$0xff]
  %v34 = vld [vmem:[%s0 + $0x74] sm:$0xff]
  %v35 = vld [vmem:[%s0 + $0x7c] sm:$0xff]
  %v36 = vld [vmem:[%s0 + $0x84] sm:$0xff]
  %v37 = vld [vmem:[%s0 + $0x8c] sm:$0xf]
  %v38 = vld [vmem:[%s1] sm:$0xf]
  %v39 = vld [vmem:[%s1 + $0x4] sm:$0xf]
  %v40 = vld [vmem:[%s1 + $0x8] sm:$0xf]
  %v41 = vld [vmem:[%s1 + $0xc] sm:$0xf]
  %v42 = vld [vmem:[%s1 + $0x10] sm:$0xf]
  %v43 = vld [vmem:[%s1 + $0x14] sm:$0xf]
  %v44 = vld [vmem:[%s1 + $0x18] sm:$0xf]
  %v45 = vld [vmem:[%s1 + $0x1c] sm:$0xf]
  %v46 = vld [vmem:[%s1 + $0x20] sm:$0xf]
  %v47 = vld [vmem:[%s1 + $0x24] sm:$0xf]
  %v48 = vld [vmem:[%s1 + $0x28] sm:$0xf]
  %v49 = vld [vmem:[%s1 + $0x2c] sm:$0xf]
  %v50 = vld [vmem:[%s1 + $0x30] sm:$0xf]
  %v51 = vld [vmem:[%s1 + $0x34] sm:$0xf]
  %v52 = vld [vmem:[%s1 + $0x38] sm:$0xf]
  %v53 = vld [vmem:[%s1 + $0x3c] sm:$0xf]
  %v54 = vld [vmem:[%s1 + $0x40] sm:$0xf]
  %v55 = vld [vmem:[%s1 + $0x44] sm:$0xf]
  %v56 = vld [vmem:[%s1 + $0x48] sm:$0xf]
  %v57 = vld [vmem:[%s1 + $0x4c] sm:$0xf]
  %v58 = vld [vmem:[%s1 + $0x50] sm:$0xf]
  %v59 = vld [vmem:[%s1 + $0x54] sm:$0xf]
  %v60 = vld [vmem:[%s1 + $0x58] sm:$0xf]
  %v61 = vld [vmem:[%s1 + $0x5c] sm:$0xf]
  %v62 = vld [vmem:[%s1 + $0x60] sm:$0xf]
  %v63 = vld [vmem:[%s1 + $0x64] sm:$0xf]
  %v64 = vld [vmem:[%s1 + $0x68] sm:$0xf]
  %v65 = vld [vmem:[%s1 + $0x6c] sm:$0xf]
  %v66 = vld [vmem:[%s1 + $0x70] sm:$0xf]
  %v67 = vld [vmem:[%s1 + $0x74] sm:$0xf]
  %v68 = vld [vmem:[%s1 + $0x78] sm:$0xf]
  %v69 = vld [vmem:[%s1 + $0x7c] sm:$0xf]
  %v70 = vld [vmem:[%s1 + $0x80] sm:$0xf]
  %v71 = vld [vmem:[%s1 + $0x84] sm:$0xf]
  %v72 = vld [vmem:[%s1 + $0x88] sm:$0xf]
  %v73 = vld [vmem:[%s1 + $0x8c] sm:$0xf]
  %v74 = vld [vmem:[%s1 + $0x90] sm:$0xf]
  %v75 = vld [vmem:[%s1 + $0x94] sm:$0xf]
  %v76 = vld [vmem:[%s1 + $0x98] sm:$0xf]
  %v77 = vld [vmem:[%s1 + $0x9c] sm:$0xf]
  %v78 = vld [vmem:[%s1 + $0xa0] sm:$0xf]
  %v79 = vld [vmem:[%s1 + $0xa4] sm:$0xf]
  %v80 = vld [vmem:[%s1 + $0xa8] sm:$0xf]
  %v81 = vld [vmem:[%s1 + $0xac] sm:$0xf]
  %v82 = vld [vmem:[%s1 + $0xb0] sm:$0xf]
  %v83 = vld [vmem:[%s1 + $0xb4] sm:$0xf]
  %v84 = vld [vmem:[%s1 + $0xb8] sm:$0xf]
  %v85 = vld [vmem:[%s1 + $0xbc] sm:$0xf]
  %v86 = vld [vmem:[%s1 + $0xc0] sm:$0xf]
  %v87 = vld [vmem:[%s1 + $0xc4] sm:$0xf]
  %v88 = vld [vmem:[%s1 + $0xc8] sm:$0xf]
  %v89 = vld [vmem:[%s1 + $0xcc] sm:$0xf]
  %v90 = vld [vmem:[%s1 + $0xd0] sm:$0xf]
  %v91 = vld [vmem:[%s1 + $0xd4] sm:$0xf]
  %v92 = vld [vmem:[%s1 + $0xd8] sm:$0xf]
  %v93 = vld [vmem:[%s1 + $0xdc] sm:$0xf]
  %v94 = vld [vmem:[%s1 + $0xe0] sm:$0xf]
  %v95 = vld [vmem:[%s1 + $0xe4] sm:$0xf]
  %v96 = vld [vmem:[%s1 + $0xe8] sm:$0xf]
  %v97 = vld [vmem:[%s1 + $0xec] sm:$0xf]
  %v98 = vld [vmem:[%s1 + $0xf0] sm:$0xf]
  %v99 = vld [vmem:[%s1 + $0xf4] sm:$0xf]
  %v100 = vld [vmem:[%s1 + $0xf8] sm:$0xf]
  %v101 = vld [vmem:[%s1 + $0xfc] sm:$0xf]
  %v102 = vld [vmem:[%s1 + $0x100] sm:$0xf]
  %v103 = vld [vmem:[%s1 + $0x104] sm:$0xf]
  %v104 = vld [vmem:[%s1 + $0x108] sm:$0xf]
  %v105 = vld [vmem:[%s1 + $0x10c] sm:$0xf]
  %v106 = vld [vmem:[%s1 + $0x110] sm:$0xf]
  %v107 = vld [vmem:[%s1 + $0x114] sm:$0xf]
  %v108 = vld [vmem:[%s1 + $0x118] sm:$0xf]
  %v109 = vld [vmem:[%s1 + $0x11c] sm:$0xf]
  %v110 = vld [vmem:[%s1 + $0x120] sm:$0xf]
  %v111 = vld [vmem:[%s1 + $0x124] sm:$0xf]
  %v112 = vld [vmem:[%s1 + $0x128] sm:$0xf]
  %v113 = vld [vmem:[%s1 + $0x12c] sm:$0xf]
  %v114 = vld [vmem:[%s1 + $0x130] sm:$0xf]
  %v115 = vld [vmem:[%s1 + $0x134] sm:$0xf]
  %v116 = vld [vmem:[%s1 + $0x138] sm:$0xf]
  %v117 = vld [vmem:[%s1 + $0x13c] sm:$0xf]
  %v118 = vld [vmem:[%s1 + $0x140] sm:$0xf]
  %v119 = vld [vmem:[%s1 + $0x144] sm:$0xf]
  %v120 = vld [vmem:[%s1 + $0x148] sm:$0xf]
  %v121 = vld [vmem:[%s1 + $0x14c] sm:$0xf]
  %v122 = vld [vmem:[%s1 + $0x150] sm:$0xf]
  %v123 = vld [vmem:[%s1 + $0x154] sm:$0xf]
  %v124 = vld [vmem:[%s1 + $0x158] sm:$0xf]
  %v125 = vld [vmem:[%s1 + $0x15c] sm:$0xf]
  %v126 = vld [vmem:[%s1 + $0x160] sm:$0xf]
  %v127 = vld [vmem:[%s1 + $0x164] sm:$0xf]
  %v128 = vld [vmem:[%s1 + $0x168] sm:$0xf]
  %v129 = vld [vmem:[%s1 + $0x16c] sm:$0xf]
  %v130 = vld [vmem:[%s1 + $0x170] sm:$0xf]
  %v131 = vld [vmem:[%s1 + $0x174] sm:$0xf]
  %v132 = vld [vmem:[%s1 + $0x178] sm:$0xf]
  %v133 = vld [vmem:[%s1 + $0x17c] sm:$0xf]
  %v134 = vld [vmem:[%s1 + $0x180] sm:$0xf]
  %v135 = vld [vmem:[%s1 + $0x184] sm:$0xf]
  %v136 = vld [vmem:[%s1 + $0x188] sm:$0xf]
  %v137 = vld [vmem:[%s1 + $0x18c] sm:$0xf]
  %v138 = vld [vmem:[%s1 + $0x190] sm:$0xf]
  %v139 = vld [vmem:[%s1 + $0x194] sm:$0xf]
  %v140 = vld [vmem:[%s1 + $0x198] sm:$0xf]
  %v141 = vld [vmem:[%s1 + $0x19c] sm:$0xf]
  %v142 = vld [vmem:[%s1 + $0x1a0] sm:$0xf]
  %v143 = vld [vmem:[%s1 + $0x1a4] sm:$0xf]
  %v144 = vld [vmem:[%s1 + $0x1a8] sm:$0xf]
  %v145 = vld [vmem:[%s1 + $0x1ac] sm:$0xf]
  %v146 = vld [vmem:[%s1 + $0x1b0] sm:$0xf]
  %v147 = vld [vmem:[%s1 + $0x1b4] sm:$0xf]
  %v148 = vld [vmem:[%s1 + $0x1b8] sm:$0xf]
  %v149 = vld [vmem:[%s1 + $0x1bc] sm:$0xf]
  %v150 = vld [vmem:[%s1 + $0x1c0] sm:$0xf]
  %v151 = vld [vmem:[%s1 + $0x1c4] sm:$0xf]
  %v152 = vld [vmem:[%s1 + $0x1c8] sm:$0xf]
  %v153 = vld [vmem:[%s1 + $0x1cc] sm:$0xf]
  %v154 = vld [vmem:[%s1 + $0x1d0] sm:$0xf]
  %v155 = vld [vmem:[%s1 + $0x1d4] sm:$0xf]
  %v156 = vld [vmem:[%s1 + $0x1d8] sm:$0xf]
  %v157 = vld [vmem:[%s1 + $0x1dc] sm:$0xf]
  %v158 = vld [vmem:[%s1 + $0x1e0] sm:$0xf]
  %v159 = vld [vmem:[%s1 + $0x1e4] sm:$0xf]
  %v160 = vld [vmem:[%s1 + $0x1e8] sm:$0xf]
  %v161 = vld [vmem:[%s1 + $0x1ec] sm:$0xf]
  %v162 = vld [vmem:[%s1 + $0x1f0] sm:$0xf]
  %v163 = vld [vmem:[%s1 + $0x1f4] sm:$0xf]
  %v164 = vld [vmem:[%s1 + $0x1f8] sm:$0xf]
  %v165 = vld [vmem:[%s1 + $0x1fc] sm:$0xf]
  %v166 = vld [vmem:[%s1 + $0x200] sm:$0xf]
  %v167 = vld [vmem:[%s1 + $0x204] sm:$0xf]
  %v168 = vld [vmem:[%s1 + $0x208] sm:$0xf]
  %v169 = vld [vmem:[%s1 + $0x20c] sm:$0xf]
  %v170 = vld [vmem:[%s1 + $0x210] sm:$0xf]
  %v171 = vld [vmem:[%s1 + $0x214] sm:$0xf]
  %v172 = vld [vmem:[%s1 + $0x218] sm:$0xf]
  %v173 = vld [vmem:[%s1 + $0x21c] sm:$0xf]
  %v174 = vld [vmem:[%s1 + $0x220] sm:$0xf]
  %v175 = vld [vmem:[%s1 + $0x224] sm:$0xf]
  %v176 = vld [vmem:[%s1 + $0x228] sm:$0xf]
  %v177 = vld [vmem:[%s1 + $0x22c] sm:$0xf]
  %v178 = vld [vmem:[%s1 + $0x230] sm:$0xf]
  %v179 = vld [vmem:[%s1 + $0x234] sm:$0xf]
  %v180 = vld [vmem:[%s1 + $0x238] sm:$0xf]
  %v181 = vld [vmem:[%s1 + $0x23c] sm:$0xf]
  %v202 = vunpack.c.l.b16 %v18
  %v203 = vunpack.c.h.b16 %v18
  %v204 = vunpack.c.l.b16 %v19
  %v205 = vunpack.c.h.b16 %v19
  %v206 = vunpack.c.l.b16 %v20
  %v207 = vunpack.c.h.b16 %v20
  %v208 = vunpack.c.l.b16 %v21
  %v209 = vunpack.c.h.b16 %v21
  %v210 = vunpack.c.l.b16 %v22
  %v211 = vunpack.c.l.b16 %v23
  %v212 = vunpack.c.h.b16 %v23
  %v213 = vunpack.c.l.b16 %v24
  %v214 = vunpack.c.h.b16 %v24
  %v215 = vunpack.c.l.b16 %v25
  %v216 = vunpack.c.h.b16 %v25
  %v217 = vunpack.c.l.b16 %v26
  %v218 = vunpack.c.h.b16 %v26
  %v219 = vunpack.c.l.b16 %v27
  %v220 = vunpack.c.l.b16 %v28
  %v221 = vunpack.c.h.b16 %v28
  %v222 = vunpack.c.l.b16 %v29
  %v223 = vunpack.c.h.b16 %v29
  %v224 = vunpack.c.l.b16 %v30
  %v225 = vunpack.c.h.b16 %v30
  %v226 = vunpack.c.l.b16 %v31
  %v227 = vunpack.c.h.b16 %v31
  %v228 = vunpack.c.l.b16 %v32
  %v229 = vunpack.c.l.b16 %v33
  %v230 = vunpack.c.h.b16 %v33
  %v231 = vunpack.c.l.b16 %v34
  %v232 = vunpack.c.h.b16 %v34
  %v233 = vunpack.c.l.b16 %v35
  %v234 = vunpack.c.h.b16 %v35
  %v235 = vunpack.c.l.b16 %v36
  %v236 = vunpack.c.h.b16 %v36
  %v237 = vunpack.c.l.b16 %v37
  %v238 = vpack.c.b16 %v211, %v202
  %v239 = vpack.c.b16 %v212, %v203
  %v240 = vpack.c.b16 %v213, %v204
  %v241 = vpack.c.b16 %v214, %v205
  %v242 = vpack.c.b16 %v215, %v206
  %v243 = vpack.c.b16 %v216, %v207
  %v244 = vpack.c.b16 %v217, %v208
  %v245 = vpack.c.b16 %v218, %v209
  %v246 = vpack.c.b16 %v219, %v210
  %v247 = vpack.c.b16 %v229, %v220
  %v248 = vpack.c.b16 %v230, %v221
  %v249 = vpack.c.b16 %v231, %v222
  %v250 = vpack.c.b16 %v232, %v223
  %v251 = vpack.c.b16 %v233, %v224
  %v252 = vpack.c.b16 %v234, %v225
  %v253 = vpack.c.b16 %v235, %v226
  %v254 = vpack.c.b16 %v236, %v227
  %v255 = vpack.c.b16 %v237, %v228
  %v418 = vunpack.c.l.b16 %v38
  %v419 = vunpack.c.l.b16 %v39
  %v420 = vunpack.c.l.b16 %v40
  %v421 = vunpack.c.l.b16 %v41
  %v422 = vunpack.c.l.b16 %v42
  %v423 = vunpack.c.l.b16 %v43
  %v424 = vunpack.c.l.b16 %v44
  %v425 = vunpack.c.l.b16 %v45
  %v426 = vunpack.c.l.b16 %v46
  %v427 = vunpack.c.l.b16 %v47
  %v428 = vunpack.c.l.b16 %v48
  %v429 = vunpack.c.l.b16 %v49
  %v430 = vunpack.c.l.b16 %v50
  %v431 = vunpack.c.l.b16 %v51
  %v432 = vunpack.c.l.b16 %v52
  %v433 = vunpack.c.l.b16 %v53
  %v434 = vunpack.c.l.b16 %v54
  %v435 = vunpack.c.l.b16 %v55
  %v436 = vunpack.c.l.b16 %v56
  %v437 = vunpack.c.l.b16 %v57
  %v438 = vunpack.c.l.b16 %v58
  %v439 = vunpack.c.l.b16 %v59
  %v440 = vunpack.c.l.b16 %v60
  %v441 = vunpack.c.l.b16 %v61
  %v442 = vunpack.c.l.b16 %v62
  %v443 = vunpack.c.l.b16 %v63
  %v444 = vunpack.c.l.b16 %v64
  %v445 = vunpack.c.l.b16 %v65
  %v446 = vunpack.c.l.b16 %v66
  %v447 = vunpack.c.l.b16 %v67
  %v448 = vunpack.c.l.b16 %v68
  %v449 = vunpack.c.l.b16 %v69
  %v450 = vunpack.c.l.b16 %v70
  %v451 = vunpack.c.l.b16 %v71
  %v452 = vunpack.c.l.b16 %v72
  %v453 = vunpack.c.l.b16 %v73
  %v454 = vunpack.c.l.b16 %v74
  %v455 = vunpack.c.l.b16 %v75
  %v456 = vunpack.c.l.b16 %v76
  %v457 = vunpack.c.l.b16 %v77
  %v458 = vunpack.c.l.b16 %v78
  %v459 = vunpack.c.l.b16 %v79
  %v460 = vunpack.c.l.b16 %v80
  %v461 = vunpack.c.l.b16 %v81
  %v462 = vunpack.c.l.b16 %v82
  %v463 = vunpack.c.l.b16 %v83
  %v464 = vunpack.c.l.b16 %v84
  %v465 = vunpack.c.l.b16 %v85
  %v466 = vunpack.c.l.b16 %v86
  %v467 = vunpack.c.l.b16 %v87
  %v468 = vunpack.c.l.b16 %v88
  %v469 = vunpack.c.l.b16 %v89
  %v470 = vunpack.c.l.b16 %v90
  %v471 = vunpack.c.l.b16 %v91
  %v472 = vunpack.c.l.b16 %v92
  %v473 = vunpack.c.l.b16 %v93
  %v474 = vunpack.c.l.b16 %v94
  %v475 = vunpack.c.l.b16 %v95
  %v476 = vunpack.c.l.b16 %v96
  %v477 = vunpack.c.l.b16 %v97
  %v478 = vunpack.c.l.b16 %v98
  %v479 = vunpack.c.l.b16 %v99
  %v480 = vunpack.c.l.b16 %v100
  %v481 = vunpack.c.l.b16 %v101
  %v482 = vunpack.c.l.b16 %v102
  %v483 = vunpack.c.l.b16 %v103
  %v484 = vunpack.c.l.b16 %v104
  %v485 = vunpack.c.l.b16 %v105
  %v486 = vunpack.c.l.b16 %v106
  %v487 = vunpack.c.l.b16 %v107
  %v488 = vunpack.c.l.b16 %v108
  %v489 = vunpack.c.l.b16 %v109
  %v490 = vunpack.c.l.b16 %v110
  %v491 = vunpack.c.l.b16 %v111
  %v492 = vunpack.c.l.b16 %v112
  %v493 = vunpack.c.l.b16 %v113
  %v494 = vunpack.c.l.b16 %v114
  %v495 = vunpack.c.l.b16 %v115
  %v496 = vunpack.c.l.b16 %v116
  %v497 = vunpack.c.l.b16 %v117
  %v498 = vunpack.c.l.b16 %v118
  %v499 = vunpack.c.l.b16 %v119
  %v500 = vunpack.c.l.b16 %v120
  %v501 = vunpack.c.l.b16 %v121
  %v502 = vunpack.c.l.b16 %v122
  %v503 = vunpack.c.l.b16 %v123
  %v504 = vunpack.c.l.b16 %v124
  %v505 = vunpack.c.l.b16 %v125
  %v506 = vunpack.c.l.b16 %v126
  %v507 = vunpack.c.l.b16 %v127
  %v508 = vunpack.c.l.b16 %v128
  %v509 = vunpack.c.l.b16 %v129
  %v510 = vunpack.c.l.b16 %v130
  %v511 = vunpack.c.l.b16 %v131
  %v512 = vunpack.c.l.b16 %v132
  %v513 = vunpack.c.l.b16 %v133
  %v514 = vunpack.c.l.b16 %v134
  %v515 = vunpack.c.l.b16 %v135
  %v516 = vunpack.c.l.b16 %v136
  %v517 = vunpack.c.l.b16 %v137
  %v518 = vunpack.c.l.b16 %v138
  %v519 = vunpack.c.l.b16 %v139
  %v520 = vunpack.c.l.b16 %v140
  %v521 = vunpack.c.l.b16 %v141
  %v522 = vunpack.c.l.b16 %v142
  %v523 = vunpack.c.l.b16 %v143
  %v524 = vunpack.c.l.b16 %v144
  %v525 = vunpack.c.l.b16 %v145
  %v526 = vunpack.c.l.b16 %v146
  %v527 = vunpack.c.l.b16 %v147
  %v528 = vunpack.c.l.b16 %v148
  %v529 = vunpack.c.l.b16 %v149
  %v530 = vunpack.c.l.b16 %v150
  %v531 = vunpack.c.l.b16 %v151
  %v532 = vunpack.c.l.b16 %v152
  %v533 = vunpack.c.l.b16 %v153
  %v534 = vunpack.c.l.b16 %v154
  %v535 = vunpack.c.l.b16 %v155
  %v536 = vunpack.c.l.b16 %v156
  %v537 = vunpack.c.l.b16 %v157
  %v538 = vunpack.c.l.b16 %v158
  %v539 = vunpack.c.l.b16 %v159
  %v540 = vunpack.c.l.b16 %v160
  %v541 = vunpack.c.l.b16 %v161
  %v542 = vunpack.c.l.b16 %v162
  %v543 = vunpack.c.l.b16 %v163
  %v544 = vunpack.c.l.b16 %v164
  %v545 = vunpack.c.l.b16 %v165
  %v546 = vunpack.c.l.b16 %v166
  %v547 = vunpack.c.l.b16 %v167
  %v548 = vunpack.c.l.b16 %v168
  %v549 = vunpack.c.l.b16 %v169
  %v550 = vunpack.c.l.b16 %v170
  %v551 = vunpack.c.l.b16 %v171
  %v552 = vunpack.c.l.b16 %v172
  %v553 = vunpack.c.l.b16 %v173
  %v554 = vunpack.c.l.b16 %v174
  %v555 = vunpack.c.l.b16 %v175
  %v556 = vunpack.c.l.b16 %v176
  %v557 = vunpack.c.l.b16 %v177
  %v558 = vunpack.c.l.b16 %v178
  %v559 = vunpack.c.l.b16 %v179
  %v560 = vunpack.c.l.b16 %v180
  %v561 = vunpack.c.l.b16 %v181
  %v562 = vpack.c.b16 %v419, %v418
  %v563 = vpack.c.b16 %v421, %v420
  %v564 = vpack.c.b16 %v423, %v422
  %v565 = vpack.c.b16 %v425, %v424
  %v566 = vpack.c.b16 %v427, %v426
  %v567 = vpack.c.b16 %v429, %v428
  %v568 = vpack.c.b16 %v431, %v430
  %v569 = vpack.c.b16 %v433, %v432
  %v570 = vpack.c.b16 %v435, %v434
  %v571 = vpack.c.b16 %v437, %v436
  %v572 = vpack.c.b16 %v439, %v438
  %v573 = vpack.c.b16 %v441, %v440
  %v574 = vpack.c.b16 %v443, %v442
  %v575 = vpack.c.b16 %v445, %v444
  %v576 = vpack.c.b16 %v447, %v446
  %v577 = vpack.c.b16 %v449, %v448
  %v578 = vpack.c.b16 %v451, %v450
  %v579 = vpack.c.b16 %v453, %v452
  %v580 = vpack.c.b16 %v455, %v454
  %v581 = vpack.c.b16 %v457, %v456
  %v582 = vpack.c.b16 %v459, %v458
  %v583 = vpack.c.b16 %v461, %v460
  %v584 = vpack.c.b16 %v463, %v462
  %v585 = vpack.c.b16 %v465, %v464
  %v586 = vpack.c.b16 %v467, %v466
  %v587 = vpack.c.b16 %v469, %v468
  %v588 = vpack.c.b16 %v471, %v470
  %v589 = vpack.c.b16 %v473, %v472
  %v590 = vpack.c.b16 %v475, %v474
  %v591 = vpack.c.b16 %v477, %v476
  %v592 = vpack.c.b16 %v479, %v478
  %v593 = vpack.c.b16 %v481, %v480
  %v594 = vpack.c.b16 %v483, %v482
  %v595 = vpack.c.b16 %v485, %v484
  %v596 = vpack.c.b16 %v487, %v486
  %v597 = vpack.c.b16 %v489, %v488
  %v598 = vpack.c.b16 %v491, %v490
  %v599 = vpack.c.b16 %v493, %v492
  %v600 = vpack.c.b16 %v495, %v494
  %v601 = vpack.c.b16 %v497, %v496
  %v602 = vpack.c.b16 %v499, %v498
  %v603 = vpack.c.b16 %v501, %v500
  %v604 = vpack.c.b16 %v503, %v502
  %v605 = vpack.c.b16 %v505, %v504
  %v606 = vpack.c.b16 %v507, %v506
  %v607 = vpack.c.b16 %v509, %v508
  %v608 = vpack.c.b16 %v511, %v510
  %v609 = vpack.c.b16 %v513, %v512
  %v610 = vpack.c.b16 %v515, %v514
  %v611 = vpack.c.b16 %v517, %v516
  %v612 = vpack.c.b16 %v519, %v518
  %v613 = vpack.c.b16 %v521, %v520
  %v614 = vpack.c.b16 %v523, %v522
  %v615 = vpack.c.b16 %v525, %v524
  %v616 = vpack.c.b16 %v527, %v526
  %v617 = vpack.c.b16 %v529, %v528
  %v618 = vpack.c.b16 %v531, %v530
  %v619 = vpack.c.b16 %v533, %v532
  %v620 = vpack.c.b16 %v535, %v534
  %v621 = vpack.c.b16 %v537, %v536
  %v622 = vpack.c.b16 %v539, %v538
  %v623 = vpack.c.b16 %v541, %v540
  %v624 = vpack.c.b16 %v543, %v542
  %v625 = vpack.c.b16 %v545, %v544
  %v626 = vpack.c.b16 %v547, %v546
  %v627 = vpack.c.b16 %v549, %v548
  %v628 = vpack.c.b16 %v551, %v550
  %v629 = vpack.c.b16 %v553, %v552
  %v630 = vpack.c.b16 %v555, %v554
  %v631 = vpack.c.b16 %v557, %v556
  %v632 = vpack.c.b16 %v559, %v558
  %v633 = vpack.c.b16 %v561, %v560
  %706 = vmatprep.subr.bf16.mxu0 0
  %707 = vmatpush1.bf16.msra.mxu0 %v562
  %708 = vmatprep.subr.bf16.mxu0 0
  %709 = vmatpush1.bf16.msra.mxu0 %v563
  %710 = vmatprep.subr.bf16.mxu0 0
  %711 = vmatpush1.bf16.msra.mxu0 %v564
  %712 = vmatprep.subr.bf16.mxu0 0
  %713 = vmatpush1.bf16.msra.mxu0 %v565
  %714 = vmatprep.subr.bf16.mxu0 0
  %715 = vmatpush1.bf16.msra.mxu0 %v566
  %716 = vmatprep.subr.bf16.mxu0 0
  %717 = vmatpush1.bf16.msra.mxu0 %v567
  %718 = vmatprep.subr.bf16.mxu0 0
  %719 = vmatpush1.bf16.msra.mxu0 %v568
  %720 = vmatprep.subr.bf16.mxu0 0
  %721 = vmatpush1.bf16.msra.mxu0 %v569
  %722 = vmatprep.subr.bf16.mxu0 0
  %723 = vmatpush1.bf16.msra.mxu0 %v570
  %724 = vmatprep.subr.bf16.mxu0 0
  %725 = vmatpush1.bf16.msra.mxu0 %v571
  %726 = vmatprep.subr.bf16.mxu0 0
  %727 = vmatpush1.bf16.msra.mxu0 %v572
  %728 = vmatprep.subr.bf16.mxu0 0
  %729 = vmatpush1.bf16.msra.mxu0 %v573
  %730 = vmatprep.subr.bf16.mxu0 0
  %731 = vmatpush1.bf16.msra.mxu0 %v574
  %732 = vmatprep.subr.bf16.mxu0 0
  %733 = vmatpush1.bf16.msra.mxu0 %v575
  %734 = vmatprep.subr.bf16.mxu0 0
  %735 = vmatpush1.bf16.msra.mxu0 %v576
  %736 = vmatprep.subr.bf16.mxu0 0
  %737 = vmatpush1.bf16.msra.mxu0 %v577
  %738 = vmatprep.mubr.bf16.mxu0 %v239
  %739 = vmatmul.mubr.bf16.gmra.mrb[0].mxu0 %v238
  %v740 = vpop.f32.mrb[0].mxu0
  %v741 = vadd.f32 0.0, %v740
  %v742 = vpop.f32.mrb[0].mxu0
  %v743 = vpop.f32.mrb[0].mxu0
  %v744 = vadd.f32 0.0, %v743
  %v745 = vpop.f32.mrb[0].mxu0
  %746 = vmatprep.mubr.bf16.mxu0 %v248
  %747 = vmatmul.mubr.bf16.gmra.mrb[0].mxu0 %v247
  %v748 = vpop.f32.mrb[0].mxu0
  %v749 = vadd.f32 0.0, %v748
  %v750 = vpop.f32.mrb[0].mxu0
  %v751 = vpop.f32.mrb[0].mxu0
  %v752 = vadd.f32 0.0, %v751
  %v753 = vpop.f32.mrb[0].mxu0
  %754 = vdwg.mxu0
  %755 = vmatprep.subr.bf16.mxu0 0
  %756 = vmatpush1.bf16.msra.mxu0 %v578
  %757 = vmatprep.subr.bf16.mxu0 0
  %758 = vmatpush1.bf16.msra.mxu0 %v579
  %759 = vmatprep.subr.bf16.mxu0 0
  %760 = vmatpush1.bf16.msra.mxu0 %v580
  %761 = vmatprep.subr.bf16.mxu0 0
  %762 = vmatpush1.bf16.msra.mxu0 %v581
  %763 = vmatprep.subr.bf16.mxu0 0
  %764 = vmatpush1.bf16.msra.mxu0 %v582
  %765 = vmatprep.subr.bf16.mxu0 0
  %766 = vmatpush1.bf16.msra.mxu0 %v583
  %767 = vmatprep.subr.bf16.mxu0 0
  %768 = vmatpush1.bf16.msra.mxu0 %v584
  %769 = vmatprep.subr.bf16.mxu0 0
  %770 = vmatpush1.bf16.msra.mxu0 %v585
  %771 = vmatprep.subr.bf16.mxu0 0
  %772 = vmatpush1.bf16.msra.mxu0 %v586
  %773 = vmatprep.subr.bf16.mxu0 0
  %774 = vmatpush1.bf16.msra.mxu0 %v587
  %775 = vmatprep.subr.bf16.mxu0 0
  %776 = vmatpush1.bf16.msra.mxu0 %v588
  %777 = vmatprep.subr.bf16.mxu0 0
  %778 = vmatpush1.bf16.msra.mxu0 %v589
  %779 = vmatprep.subr.bf16.mxu0 0
  %780 = vmatpush1.bf16.msra.mxu0 %v590
  %781 = vmatprep.subr.bf16.mxu0 0
  %782 = vmatpush1.bf16.msra.mxu0 %v591
  %783 = vmatprep.subr.bf16.mxu0 0
  %784 = vmatpush1.bf16.msra.mxu0 %v592
  %785 = vmatprep.subr.bf16.mxu0 0
  %786 = vmatpush1.bf16.msra.mxu0 %v593
  %787 = vmatprep.mubr.bf16.mxu0 %v241
  %788 = vmatmul.mubr.bf16.gmra.mrb[0].mxu0 %v240
  %v789 = vpop.f32.mrb[0].mxu0
  %v790 = vadd.f32 %v741, %v789
  %v791 = vpop.f32.mrb[0].mxu0
  %v792 = vpop.f32.mrb[0].mxu0
  %v793 = vadd.f32 %v744, %v792
  %v794 = vpop.f32.mrb[0].mxu0
  %795 = vmatprep.mubr.bf16.mxu0 %v250
  %796 = vmatmul.mubr.bf16.gmra.mrb[0].mxu0 %v249
  %v797 = vpop.f32.mrb[0].mxu0
  %v798 = vadd.f32 %v749, %v797
  %v799 = vpop.f32.mrb[0].mxu0
  %v800 = vpop.f32.mrb[0].mxu0
  %v801 = vadd.f32 %v752, %v800
  %v802 = vpop.f32.mrb[0].mxu0
  %803 = vdwg.mxu0
  %804 = vmatprep.subr.bf16.mxu0 0
  %805 = vmatpush1.bf16.msra.mxu0 %v594
  %806 = vmatprep.subr.bf16.mxu0 0
  %807 = vmatpush1.bf16.msra.mxu0 %v595
  %808 = vmatprep.subr.bf16.mxu0 0
  %809 = vmatpush1.bf16.msra.mxu0 %v596
  %810 = vmatprep.subr.bf16.mxu0 0
  %811 = vmatpush1.bf16.msra.mxu0 %v597
  %812 = vmatprep.subr.bf16.mxu0 0
  %813 = vmatpush1.bf16.msra.mxu0 %v598
  %814 = vmatprep.subr.bf16.mxu0 0
  %815 = vmatpush1.bf16.msra.mxu0 %v599
  %816 = vmatprep.subr.bf16.mxu0 0
  %817 = vmatpush1.bf16.msra.mxu0 %v600
  %818 = vmatprep.subr.bf16.mxu0 0
  %819 = vmatpush1.bf16.msra.mxu0 %v601
  %820 = vmatprep.subr.bf16.mxu0 0
  %821 = vmatpush1.bf16.msra.mxu0 %v602
  %822 = vmatprep.subr.bf16.mxu0 0
  %823 = vmatpush1.bf16.msra.mxu0 %v603
  %824 = vmatprep.subr.bf16.mxu0 0
  %825 = vmatpush1.bf16.msra.mxu0 %v604
  %826 = vmatprep.subr.bf16.mxu0 0
  %827 = vmatpush1.bf16.msra.mxu0 %v605
  %828 = vmatprep.subr.bf16.mxu0 0
  %829 = vmatpush1.bf16.msra.mxu0 %v606
  %830 = vmatprep.subr.bf16.mxu0 0
  %831 = vmatpush1.bf16.msra.mxu0 %v607
  %832 = vmatprep.subr.bf16.mxu0 0
  %833 = vmatpush1.bf16.msra.mxu0 %v608
  %834 = vmatprep.subr.bf16.mxu0 0
  %835 = vmatpush1.bf16.msra.mxu0 %v609
  %836 = vmatprep.mubr.bf16.mxu0 %v243
  %837 = vmatmul.mubr.bf16.gmra.mrb[0].mxu0 %v242
  %v838 = vpop.f32.mrb[0].mxu0
  %v839 = vadd.f32 %v790, %v838
  %v840 = vpop.f32.mrb[0].mxu0
  %v841 = vpop.f32.mrb[0].mxu0
  %v842 = vadd.f32 %v793, %v841
  %v843 = vpop.f32.mrb[0].mxu0
  %844 = vmatprep.mubr.bf16.mxu0 %v252
  %845 = vmatmul.mubr.bf16.gmra.mrb[0].mxu0 %v251
  %v846 = vpop.f32.mrb[0].mxu0
  %v847 = vadd.f32 %v798, %v846
  %v848 = vpop.f32.mrb[0].mxu0
  %v849 = vpop.f32.mrb[0].mxu0
  %v850 = vadd.f32 %v801, %v849
  %v851 = vpop.f32.mrb[0].mxu0
  %852 = vdwg.mxu0
  %853 = vmatprep.subr.bf16.mxu0 0
  %854 = vmatpush1.bf16.msra.mxu0 %v610
  %855 = vmatprep.subr.bf16.mxu0 0
  %856 = vmatpush1.bf16.msra.mxu0 %v611
  %857 = vmatprep.subr.bf16.mxu0 0
  %858 = vmatpush1.bf16.msra.mxu0 %v612
  %859 = vmatprep.subr.bf16.mxu0 0
  %860 = vmatpush1.bf16.msra.mxu0 %v613
  %861 = vmatprep.subr.bf16.mxu0 0
  %862 = vmatpush1.bf16.msra.mxu0 %v614
  %863 = vmatprep.subr.bf16.mxu0 0
  %864 = vmatpush1.bf16.msra.mxu0 %v615
  %865 = vmatprep.subr.bf16.mxu0 0
  %866 = vmatpush1.bf16.msra.mxu0 %v616
  %867 = vmatprep.subr.bf16.mxu0 0
  %868 = vmatpush1.bf16.msra.mxu0 %v617
  %869 = vmatprep.subr.bf16.mxu0 0
  %870 = vmatpush1.bf16.msra.mxu0 %v618
  %871 = vmatprep.subr.bf16.mxu0 0
  %872 = vmatpush1.bf16.msra.mxu0 %v619
  %873 = vmatprep.subr.bf16.mxu0 0
  %874 = vmatpush1.bf16.msra.mxu0 %v620
  %875 = vmatprep.subr.bf16.mxu0 0
  %876 = vmatpush1.bf16.msra.mxu0 %v621
  %877 = vmatprep.subr.bf16.mxu0 0
  %878 = vmatpush1.bf16.msra.mxu0 %v622
  %879 = vmatprep.subr.bf16.mxu0 0
  %880 = vmatpush1.bf16.msra.mxu0 %v623
  %881 = vmatprep.subr.bf16.mxu0 0
  %882 = vmatpush1.bf16.msra.mxu0 %v624
  %883 = vmatprep.subr.bf16.mxu0 0
  %884 = vmatpush1.bf16.msra.mxu0 %v625
  %885 = vmatprep.mubr.bf16.mxu0 %v245
  %886 = vmatmul.mubr.bf16.gmra.mrb[0].mxu0 %v244
  %v887 = vpop.f32.mrb[0].mxu0
  %v888 = vadd.f32 %v839, %v887
  %v889 = vpop.f32.mrb[0].mxu0
  %v890 = vpop.f32.mrb[0].mxu0
  %v891 = vadd.f32 %v842, %v890
  %v892 = vpop.f32.mrb[0].mxu0
  %893 = vmatprep.mubr.bf16.mxu0 %v254
  %894 = vmatmul.mubr.bf16.gmra.mrb[0].mxu0 %v253
  %v895 = vpop.f32.mrb[0].mxu0
  %v896 = vadd.f32 %v847, %v895
  %v897 = vpop.f32.mrb[0].mxu0
  %v898 = vpop.f32.mrb[0].mxu0
  %v899 = vadd.f32 %v850, %v898
  %v900 = vpop.f32.mrb[0].mxu0
  %901 = vdwg.mxu0
  %902 = vmatprep.subr.bf16.mxu0 0
  %903 = vmatpush1.bf16.msra.mxu0 %v626
  %904 = vmatprep.subr.bf16.mxu0 0
  %905 = vmatpush1.bf16.msra.mxu0 %v627
  %906 = vmatprep.subr.bf16.mxu0 0
  %907 = vmatpush1.bf16.msra.mxu0 %v628
  %908 = vmatprep.subr.bf16.mxu0 0
  %909 = vmatpush1.bf16.msra.mxu0 %v629
  %910 = vmatprep.subr.bf16.mxu0 0
  %911 = vmatpush1.bf16.msra.mxu0 %v630
  %912 = vmatprep.subr.bf16.mxu0 0
  %913 = vmatpush1.bf16.msra.mxu0 %v631
  %914 = vmatprep.subr.bf16.mxu0 0
  %915 = vmatpush1.bf16.msra.mxu0 %v632
  %916 = vmatprep.subr.bf16.mxu0 0
  %917 = vmatpush1.bf16.msra.mxu0 %v633
  %918 = vmatprep.subr.bf16.mxu0 0
  %919 = vmatpush1.bf16.msra.mxu0 0
  %920 = vmatprep.subr.bf16.mxu0 0
  %921 = vmatpush1.bf16.msra.mxu0 0
  %922 = vmatprep.subr.bf16.mxu0 0
  %923 = vmatpush1.bf16.msra.mxu0 0
  %924 = vmatprep.subr.bf16.mxu0 0
  %925 = vmatpush1.bf16.msra.mxu0 0
  %926 = vmatprep.subr.bf16.mxu0 0
  %927 = vmatpush1.bf16.msra.mxu0 0
  %928 = vmatprep.subr.bf16.mxu0 0
  %929 = vmatpush1.bf16.msra.mxu0 0
  %930 = vmatprep.subr.bf16.mxu0 0
  %931 = vmatpush1.bf16.msra.mxu0 0
  %932 = vmatprep.subr.bf16.mxu0 0
  %933 = vmatpush1.bf16.msra.mxu0 0
  %934 = vmatprep.mubr.bf16.mxu0 0
  %935 = vmatmul.mubr.bf16.gmra.mrb[0].mxu0 %v246
  %v936 = vpop.f32.mrb[0].mxu0
  %v937 = vadd.f32 %v888, %v936
  %v938 = vpop.f32.mrb[0].mxu0
  %v939 = vpop.f32.mrb[0].mxu0
  %v940 = vadd.f32 %v891, %v939
  %v941 = vpop.f32.mrb[0].mxu0
  %942 = vmatprep.mubr.bf16.mxu0 0
  %943 = vmatmul.mubr.bf16.gmra.mrb[0].mxu0 %v255
  %v944 = vpop.f32.mrb[0].mxu0
  %v945 = vadd.f32 %v896, %v944
  %v946 = vpop.f32.mrb[0].mxu0
  %v947 = vpop.f32.mrb[0].mxu0
  %v948 = vadd.f32 %v899, %v947
  %v949 = vpop.f32.mrb[0].mxu0
  %950 = vdwg.mxu0
  %v951 = vld [vmem:[%s2] sm:$0x1]
  %v953 = vlaneseq
  %v954 = vshrl.u32 %v953, 7
  %v955 = vsub.s32 0, %v954
  %v956 = vrot.slane %v951, %v955
  %v958 = vmul.f32 %v937, %v956
  %v959 = vmul.f32 %v940, %v956
  %v960 = vmul.f32 %v945, %v956
  %v961 = vmul.f32 %v948, %v956
  %v962 = vld [vmem:[%s3] sm:$0x1]
  %v964 = vlaneseq
  %v965 = vshrl.u32 %v964, 7
  %v966 = vsub.s32 0, %v965
  %v967 = vrot.slane %v962, %v966
  %v969 = vadd.f32 %v958, %v967
  %v970 = vadd.f32 %v959, %v967
  %v971 = vadd.f32 %v960, %v967
  %v972 = vadd.f32 %v961, %v967
  %v973 = vmax.f32 %v969, 0.0
  %v974 = vmax.f32 %v970, 0.0
  %v975 = vmax.f32 %v971, 0.0
  %v976 = vmax.f32 %v972, 0.0
  %v977 = vpack.c.bf16 %v974, %v973
  %v978 = vpack.c.bf16 %v976, %v975
  %v981 = vunpack.c.l.b16 %v977
  %v982 = vunpack.c.h.b16 %v977
  %v983 = vunpack.c.l.b16 %v978
  %v984 = vunpack.c.h.b16 %v978
  %v985 = vpack.c.b16 %v981, %v981
  %v986 = vpack.c.b16 %v982, %v982
  %v987 = vpack.c.b16 %v983, %v983
  %v988 = vpack.c.b16 %v984, %v984
  %993 = vst [vmem:[%s4] sm:$0xf] %v985
  %994 = vst [vmem:[%s4 + $0x4] sm:$0xf] %v986
  %995 = vst [vmem:[%s4 + $0x8] sm:$0xf] %v987
  %996 = vst [vmem:[%s4 + $0xc] sm:$0xf] %v988
  // Predicated region
  $region18: #{_lambda_.28} parent=0 // pred_check
    _
  $region19: #{_lambda_.28} parent=0 // pred_check_branch
    %998 = sbr.rel (0) target = $region21
  $region20: #{_lambda_.28} parent=0 // pred_region
    _
  $region21: #{_lambda_.28} parent=0 // pred_fallthru
    _
  // Predicated region
  $region22: #{_lambda_.28} parent=0 // pred_check
    _
  $region23: #{_lambda_.28} parent=0 // pred_check_branch
    %1000 = sbr.rel (0) target = $region25
  $region24: #{_lambda_.28} parent=0 // pred_region
    _
  $region25: #{_lambda_.28} parent=0 // pred_fallthru
    _

// kernel: _lambda_.30
$region0: #{_lambda_.30}
  #allocation0 [shape = 'u32[]', space=smem, size = 0x4, offset = 0x4, fixed_abs, tag = 'smem constant byte address 0x4 - core index']
  #allocation1 [shape = 'u32[144,128]{1,0:T(1,128)}', space=vmem, size = 0x12000, scoped, tag = 'internal scratch']
  %s0 = inlined_call_operand.vmem [shape: bf16[32,1152], index: 0, kind: input, shape index: {}]
  %s1 = inlined_call_operand.vmem [shape: bf16[1152,128], index: 1, kind: input, shape index: {}]
  %s2 = inlined_call_operand.vmem [shape: f32[1,128], index: 2, kind: input, shape index: {}]
  %s3 = inlined_call_operand.vmem [shape: f32[1,128], index: 3, kind: input, shape index: {}]
  %s4 = inlined_call_operand.vmem [shape: bf16[32,128], index: 4, kind: input, shape index: {}]
  %s5 = inlined_call_operand.vmem [shape: bf16[32,128], index: 5, kind: output, shape index: {}]
  %s6 = sld [smem:[#allocation0]]
  $region30: #{_lambda_.30} parent=0
    _
  %s8 = ssub.s32 1, %s6
  %s9 = scalar_select 0, %s8, %s6
  // Predicated region
  $region2: #{_lambda_.30} parent=0 // pred_check
    _
  $region3: #{_lambda_.30} parent=0 // pred_check_branch
    %11 = sbr.rel (0) target = $region5
  $region4: #{_lambda_.30} parent=0 // pred_region
    _
  $region5: #{_lambda_.30} parent=0 // pred_fallthru
    _
  // Predicated region
  $region6: #{_lambda_.30} parent=0 // pred_check
    _
  $region7: #{_lambda_.30} parent=0 // pred_check_branch
    %13 = sbr.rel (0) target = $region9
  $region8: #{_lambda_.30} parent=0 // pred_region
    _
  $region9: #{_lambda_.30} parent=0 // pred_fallthru
    _
  // Predicated region
  $region10: #{_lambda_.30} parent=0 // pred_check
    _
  $region11: #{_lambda_.30} parent=0 // pred_check_branch
    %15 = sbr.rel (0) target = $region13
  $region12: #{_lambda_.30} parent=0 // pred_region
    _
  $region13: #{_lambda_.30} parent=0 // pred_fallthru
    _
  // Predicated region
  $region14: #{_lambda_.30} parent=0 // pred_check
    _
  $region15: #{_lambda_.30} parent=0 // pred_check_branch
    %17 = sbr.rel (0) target = $region17
  $region16: #{_lambda_.30} parent=0 // pred_region
    _
  $region17: #{_lambda_.30} parent=0 // pred_fallthru
    _
  // Predicated region
  $region18: #{_lambda_.30} parent=0 // pred_check
    _
  $region19: #{_lambda_.30} parent=0 // pred_check_branch
    %19 = sbr.rel (0) target = $region21
  $region20: #{_lambda_.30} parent=0 // pred_region
    _
  $region21: #{_lambda_.30} parent=0 // pred_fallthru
    _
  %v21 = vld [vmem:[%s0] sm:$0xff]
  %v22 = vld [vmem:[%s0 + $0x8] sm:$0xff]
  %v23 = vld [vmem:[%s0 + $0x10] sm:$0xff]
  %v24 = vld [vmem:[%s0 + $0x18] sm:$0xff]
  %v25 = vld [vmem:[%s0 + $0x20] sm:$0xf]
  %v26 = vld [vmem:[%s0 + $0x24] sm:$0xff]
  %v27 = vld [vmem:[%s0 + $0x2c] sm:$0xff]
  %v28 = vld [vmem:[%s0 + $0x34] sm:$0xff]
  %v29 = vld [vmem:[%s0 + $0x3c] sm:$0xff]
  %v30 = vld [vmem:[%s0 + $0x44] sm:$0xf]
  %v31 = vld [vmem:[%s0 + $0x48] sm:$0xff]
  %v32 = vld [vmem:[%s0 + $0x50] sm:$0xff]
  %v33 = vld [vmem:[%s0 + $0x58] sm:$0xff]
  %v34 = vld [vmem:[%s0 + $0x60] sm:$0xff]
  %v35 = vld [vmem:[%s0 + $0x68] sm:$0xf]
  %v36 = vld [vmem:[%s0 + $0x6c] sm:$0xff]
  %v37 = vld [vmem:[%s0 + $0x74] sm:$0xff]
  %v38 = vld [vmem:[%s0 + $0x7c] sm:$0xff]
  %v39 = vld [vmem:[%s0 + $0x84] sm:$0xff]
  %v40 = vld [vmem:[%s0 + $0x8c] sm:$0xf]
  %v41 = vld [vmem:[%s1] sm:$0xf]
  %v42 = vld [vmem:[%s1 + $0x4] sm:$0xf]
  %v43 = vld [vmem:[%s1 + $0x8] sm:$0xf]
  %v44 = vld [vmem:[%s1 + $0xc] sm:$0xf]
  %v45 = vld [vmem:[%s1 + $0x10] sm:$0xf]
  %v46 = vld [vmem:[%s1 + $0x14] sm:$0xf]
  %v47 = vld [vmem:[%s1 + $0x18] sm:$0xf]
  %v48 = vld [vmem:[%s1 + $0x1c] sm:$0xf]
  %v49 = vld [vmem:[%s1 + $0x20] sm:$0xf]
  %v50 = vld [vmem:[%s1 + $0x24] sm:$0xf]
  %v51 = vld [vmem:[%s1 + $0x28] sm:$0xf]
  %v52 = vld [vmem:[%s1 + $0x2c] sm:$0xf]
  %v53 = vld [vmem:[%s1 + $0x30] sm:$0xf]
  %v54 = vld [vmem:[%s1 + $0x34] sm:$0xf]
  %v55 = vld [vmem:[%s1 + $0x38] sm:$0xf]
  %v56 = vld [vmem:[%s1 + $0x3c] sm:$0xf]
  %v57 = vld [vmem:[%s1 + $0x40] sm:$0xf]
  %v58 = vld [vmem:[%s1 + $0x44] sm:$0xf]
  %v59 = vld [vmem:[%s1 + $0x48] sm:$0xf]
  %v60 = vld [vmem:[%s1 + $0x4c] sm:$0xf]
  %v61 = vld [vmem:[%s1 + $0x50] sm:$0xf]
  %v62 = vld [vmem:[%s1 + $0x54] sm:$0xf]
  %v63 = vld [vmem:[%s1 + $0x58] sm:$0xf]
  %v64 = vld [vmem:[%s1 + $0x5c] sm:$0xf]
  %v65 = vld [vmem:[%s1 + $0x60] sm:$0xf]
  %v66 = vld [vmem:[%s1 + $0x64] sm:$0xf]
  %v67 = vld [vmem:[%s1 + $0x68] sm:$0xf]
  %v68 = vld [vmem:[%s1 + $0x6c] sm:$0xf]
  %v69 = vld [vmem:[%s1 + $0x70] sm:$0xf]
  %v70 = vld [vmem:[%s1 + $0x74] sm:$0xf]
  %v71 = vld [vmem:[%s1 + $0x78] sm:$0xf]
  %v72 = vld [vmem:[%s1 + $0x7c] sm:$0xf]
  %v73 = vld [vmem:[%s1 + $0x80] sm:$0xf]
  %v74 = vld [vmem:[%s1 + $0x84] sm:$0xf]
  %v75 = vld [vmem:[%s1 + $0x88] sm:$0xf]
  %v76 = vld [vmem:[%s1 + $0x8c] sm:$0xf]
  %v77 = vld [vmem:[%s1 + $0x90] sm:$0xf]
  %v78 = vld [vmem:[%s1 + $0x94] sm:$0xf]
  %v79 = vld [vmem:[%s1 + $0x98] sm:$0xf]
  %v80 = vld [vmem:[%s1 + $0x9c] sm:$0xf]
  %v81 = vld [vmem:[%s1 + $0xa0] sm:$0xf]
  %v82 = vld [vmem:[%s1 + $0xa4] sm:$0xf]
  %v83 = vld [vmem:[%s1 + $0xa8] sm:$0xf]
  %v84 = vld [vmem:[%s1 + $0xac] sm:$0xf]
  %v85 = vld [vmem:[%s1 + $0xb0] sm:$0xf]
  %v86 = vld [vmem:[%s1 + $0xb4] sm:$0xf]
  %v87 = vld [vmem:[%s1 + $0xb8] sm:$0xf]
  %v88 = vld [vmem:[%s1 + $0xbc] sm:$0xf]
  %v89 = vld [vmem:[%s1 + $0xc0] sm:$0xf]
  %v90 = vld [vmem:[%s1 + $0xc4] sm:$0xf]
  %v91 = vld [vmem:[%s1 + $0xc8] sm:$0xf]
  %v92 = vld [vmem:[%s1 + $0xcc] sm:$0xf]
  %v93 = vld [vmem:[%s1 + $0xd0] sm:$0xf]
  %v94 = vld [vmem:[%s1 + $0xd4] sm:$0xf]
  %v95 = vld [vmem:[%s1 + $0xd8] sm:$0xf]
  %v96 = vld [vmem:[%s1 + $0xdc] sm:$0xf]
  %v97 = vld [vmem:[%s1 + $0xe0] sm:$0xf]
  %v98 = vld [vmem:[%s1 + $0xe4] sm:$0xf]
  %v99 = vld [vmem:[%s1 + $0xe8] sm:$0xf]
  %v100 = vld [vmem:[%s1 + $0xec] sm:$0xf]
  %v101 = vld [vmem:[%s1 + $0xf0] sm:$0xf]
  %v102 = vld [vmem:[%s1 + $0xf4] sm:$0xf]
  %v103 = vld [vmem:[%s1 + $0xf8] sm:$0xf]
  %v104 = vld [vmem:[%s1 + $0xfc] sm:$0xf]
  %v105 = vld [vmem:[%s1 + $0x100] sm:$0xf]
  %v106 = vld [vmem:[%s1 + $0x104] sm:$0xf]
  %v107 = vld [vmem:[%s1 + $0x108] sm:$0xf]
  %v108 = vld [vmem:[%s1 + $0x10c] sm:$0xf]
  %v109 = vld [vmem:[%s1 + $0x110] sm:$0xf]
  %v110 = vld [vmem:[%s1 + $0x114] sm:$0xf]
  %v111 = vld [vmem:[%s1 + $0x118] sm:$0xf]
  %v112 = vld [vmem:[%s1 + $0x11c] sm:$0xf]
  %v113 = vld [vmem:[%s1 + $0x120] sm:$0xf]
  %v114 = vld [vmem:[%s1 + $0x124] sm:$0xf]
  %v115 = vld [vmem:[%s1 + $0x128] sm:$0xf]
  %v116 = vld [vmem:[%s1 + $0x12c] sm:$0xf]
  %v117 = vld [vmem:[%s1 + $0x130] sm:$0xf]
  %v118 = vld [vmem:[%s1 + $0x134] sm:$0xf]
  %v119 = vld [vmem:[%s1 + $0x138] sm:$0xf]
  %v120 = vld [vmem:[%s1 + $0x13c] sm:$0xf]
  %v121 = vld [vmem:[%s1 + $0x140] sm:$0xf]
  %v122 = vld [vmem:[%s1 + $0x144] sm:$0xf]
  %v123 = vld [vmem:[%s1 + $0x148] sm:$0xf]
  %v124 = vld [vmem:[%s1 + $0x14c] sm:$0xf]
  %v125 = vld [vmem:[%s1 + $0x150] sm:$0xf]
  %v126 = vld [vmem:[%s1 + $0x154] sm:$0xf]
  %v127 = vld [vmem:[%s1 + $0x158] sm:$0xf]
  %v128 = vld [vmem:[%s1 + $0x15c] sm:$0xf]
  %v129 = vld [vmem:[%s1 + $0x160] sm:$0xf]
  %v130 = vld [vmem:[%s1 + $0x164] sm:$0xf]
  %v131 = vld [vmem:[%s1 + $0x168] sm:$0xf]
  %v132 = vld [vmem:[%s1 + $0x16c] sm:$0xf]
  %v133 = vld [vmem:[%s1 + $0x170] sm:$0xf]
  %v134 = vld [vmem:[%s1 + $0x174] sm:$0xf]
  %v135 = vld [vmem:[%s1 + $0x178] sm:$0xf]
  %v136 = vld [vmem:[%s1 + $0x17c] sm:$0xf]
  %v137 = vld [vmem:[%s1 + $0x180] sm:$0xf]
  %v138 = vld [vmem:[%s1 + $0x184] sm:$0xf]
  %v139 = vld [vmem:[%s1 + $0x188] sm:$0xf]
  %v140 = vld [vmem:[%s1 + $0x18c] sm:$0xf]
  %v141 = vld [vmem:[%s1 + $0x190] sm:$0xf]
  %v142 = vld [vmem:[%s1 + $0x194] sm:$0xf]
  %v143 = vld [vmem:[%s1 + $0x198] sm:$0xf]
  %v144 = vld [vmem:[%s1 + $0x19c] sm:$0xf]
  %v145 = vld [vmem:[%s1 + $0x1a0] sm:$0xf]
  %v146 = vld [vmem:[%s1 + $0x1a4] sm:$0xf]
  %v147 = vld [vmem:[%s1 + $0x1a8] sm:$0xf]
  %v148 = vld [vmem:[%s1 + $0x1ac] sm:$0xf]
  %v149 = vld [vmem:[%s1 + $0x1b0] sm:$0xf]
  %v150 = vld [vmem:[%s1 + $0x1b4] sm:$0xf]
  %v151 = vld [vmem:[%s1 + $0x1b8] sm:$0xf]
  %v152 = vld [vmem:[%s1 + $0x1bc] sm:$0xf]
  %v153 = vld [vmem:[%s1 + $0x1c0] sm:$0xf]
  %v154 = vld [vmem:[%s1 + $0x1c4] sm:$0xf]
  %v155 = vld [vmem:[%s1 + $0x1c8] sm:$0xf]
  %v156 = vld [vmem:[%s1 + $0x1cc] sm:$0xf]
  %v157 = vld [vmem:[%s1 + $0x1d0] sm:$0xf]
  %v158 = vld [vmem:[%s1 + $0x1d4] sm:$0xf]
  %v159 = vld [vmem:[%s1 + $0x1d8] sm:$0xf]
  %v160 = vld [vmem:[%s1 + $0x1dc] sm:$0xf]
  %v161 = vld [vmem:[%s1 + $0x1e0] sm:$0xf]
  %v162 = vld [vmem:[%s1 + $0x1e4] sm:$0xf]
  %v163 = vld [vmem:[%s1 + $0x1e8] sm:$0xf]
  %v164 = vld [vmem:[%s1 + $0x1ec] sm:$0xf]
  %v165 = vld [vmem:[%s1 + $0x1f0] sm:$0xf]
  %v166 = vld [vmem:[%s1 + $0x1f4] sm:$0xf]
  %v167 = vld [vmem:[%s1 + $0x1f8] sm:$0xf]
  %v168 = vld [vmem:[%s1 + $0x1fc] sm:$0xf]
  %v169 = vld [vmem:[%s1 + $0x200] sm:$0xf]
  %v170 = vld [vmem:[%s1 + $0x204] sm:$0xf]
  %v171 = vld [vmem:[%s1 + $0x208] sm:$0xf]
  %v172 = vld [vmem:[%s1 + $0x20c] sm:$0xf]
  %v173 = vld [vmem:[%s1 + $0x210] sm:$0xf]
  %v174 = vld [vmem:[%s1 + $0x214] sm:$0xf]
  %v175 = vld [vmem:[%s1 + $0x218] sm:$0xf]
  %v176 = vld [vmem:[%s1 + $0x21c] sm:$0xf]
  %v177 = vld [vmem:[%s1 + $0x220] sm:$0xf]
  %v178 = vld [vmem:[%s1 + $0x224] sm:$0xf]
  %v179 = vld [vmem:[%s1 + $0x228] sm:$0xf]
  %v180 = vld [vmem:[%s1 + $0x22c] sm:$0xf]
  %v181 = vld [vmem:[%s1 + $0x230] sm:$0xf]
  %v182 = vld [vmem:[%s1 + $0x234] sm:$0xf]
  %v183 = vld [vmem:[%s1 + $0x238] sm:$0xf]
  %v184 = vld [vmem:[%s1 + $0x23c] sm:$0xf]
  %v205 = vunpack.c.l.b16 %v21
  %v206 = vunpack.c.h.b16 %v21
  %v207 = vunpack.c.l.b16 %v22
  %v208 = vunpack.c.h.b16 %v22
  %v209 = vunpack.c.l.b16 %v23
  %v210 = vunpack.c.h.b16 %v23
  %v211 = vunpack.c.l.b16 %v24
  %v212 = vunpack.c.h.b16 %v24
  %v213 = vunpack.c.l.b16 %v25
  %v214 = vunpack.c.l.b16 %v26
  %v215 = vunpack.c.h.b16 %v26
  %v216 = vunpack.c.l.b16 %v27
  %v217 = vunpack.c.h.b16 %v27
  %v218 = vunpack.c.l.b16 %v28
  %v219 = vunpack.c.h.b16 %v28
  %v220 = vunpack.c.l.b16 %v29
  %v221 = vunpack.c.h.b16 %v29
  %v222 = vunpack.c.l.b16 %v30
  %v223 = vunpack.c.l.b16 %v31
  %v224 = vunpack.c.h.b16 %v31
  %v225 = vunpack.c.l.b16 %v32
  %v226 = vunpack.c.h.b16 %v32
  %v227 = vunpack.c.l.b16 %v33
  %v228 = vunpack.c.h.b16 %v33
  %v229 = vunpack.c.l.b16 %v34
  %v230 = vunpack.c.h.b16 %v34
  %v231 = vunpack.c.l.b16 %v35
  %v232 = vunpack.c.l.b16 %v36
  %v233 = vunpack.c.h.b16 %v36
  %v234 = vunpack.c.l.b16 %v37
  %v235 = vunpack.c.h.b16 %v37
  %v236 = vunpack.c.l.b16 %v38
  %v237 = vunpack.c.h.b16 %v38
  %v238 = vunpack.c.l.b16 %v39
  %v239 = vunpack.c.h.b16 %v39
  %v240 = vunpack.c.l.b16 %v40
  %v241 = vpack.c.b16 %v214, %v205
  %v242 = vpack.c.b16 %v215, %v206
  %v243 = vpack.c.b16 %v216, %v207
  %v244 = vpack.c.b16 %v217, %v208
  %v245 = vpack.c.b16 %v218, %v209
  %v246 = vpack.c.b16 %v219, %v210
  %v247 = vpack.c.b16 %v220, %v211
  %v248 = vpack.c.b16 %v221, %v212
  %v249 = vpack.c.b16 %v222, %v213
  %v250 = vpack.c.b16 %v232, %v223
  %v251 = vpack.c.b16 %v233, %v224
  %v252 = vpack.c.b16 %v234, %v225
  %v253 = vpack.c.b16 %v235, %v226
  %v254 = vpack.c.b16 %v236, %v227
  %v255 = vpack.c.b16 %v237, %v228
  %v256 = vpack.c.b16 %v238, %v229
  %v257 = vpack.c.b16 %v239, %v230
  %v258 = vpack.c.b16 %v240, %v231
  %v421 = vunpack.c.l.b16 %v41
  %v422 = vunpack.c.l.b16 %v42
  %v423 = vunpack.c.l.b16 %v43
  %v424 = vunpack.c.l.b16 %v44
  %v425 = vunpack.c.l.b16 %v45
  %v426 = vunpack.c.l.b16 %v46
  %v427 = vunpack.c.l.b16 %v47
  %v428 = vunpack.c.l.b16 %v48
  %v429 = vunpack.c.l.b16 %v49
  %v430 = vunpack.c.l.b16 %v50
  %v431 = vunpack.c.l.b16 %v51
  %v432 = vunpack.c.l.b16 %v52
  %v433 = vunpack.c.l.b16 %v53
  %v434 = vunpack.c.l.b16 %v54
  %v435 = vunpack.c.l.b16 %v55
  %v436 = vunpack.c.l.b16 %v56
  %v437 = vunpack.c.l.b16 %v57
  %v438 = vunpack.c.l.b16 %v58
  %v439 = vunpack.c.l.b16 %v59
  %v440 = vunpack.c.l.b16 %v60
  %v441 = vunpack.c.l.b16 %v61
  %v442 = vunpack.c.l.b16 %v62
  %v443 = vunpack.c.l.b16 %v63
  %v444 = vunpack.c.l.b16 %v64
  %v445 = vunpack.c.l.b16 %v65
  %v446 = vunpack.c.l.b16 %v66
  %v447 = vunpack.c.l.b16 %v67
  %v448 = vunpack.c.l.b16 %v68
  %v449 = vunpack.c.l.b16 %v69
  %v450 = vunpack.c.l.b16 %v70
  %v451 = vunpack.c.l.b16 %v71
  %v452 = vunpack.c.l.b16 %v72
  %v453 = vunpack.c.l.b16 %v73
  %v454 = vunpack.c.l.b16 %v74
  %v455 = vunpack.c.l.b16 %v75
  %v456 = vunpack.c.l.b16 %v76
  %v457 = vunpack.c.l.b16 %v77
  %v458 = vunpack.c.l.b16 %v78
  %v459 = vunpack.c.l.b16 %v79
  %v460 = vunpack.c.l.b16 %v80
  %v461 = vunpack.c.l.b16 %v81
  %v462 = vunpack.c.l.b16 %v82
  %v463 = vunpack.c.l.b16 %v83
  %v464 = vunpack.c.l.b16 %v84
  %v465 = vunpack.c.l.b16 %v85
  %v466 = vunpack.c.l.b16 %v86
  %v467 = vunpack.c.l.b16 %v87
  %v468 = vunpack.c.l.b16 %v88
  %v469 = vunpack.c.l.b16 %v89
  %v470 = vunpack.c.l.b16 %v90
  %v471 = vunpack.c.l.b16 %v91
  %v472 = vunpack.c.l.b16 %v92
  %v473 = vunpack.c.l.b16 %v93
  %v474 = vunpack.c.l.b16 %v94
  %v475 = vunpack.c.l.b16 %v95
  %v476 = vunpack.c.l.b16 %v96
  %v477 = vunpack.c.l.b16 %v97
  %v478 = vunpack.c.l.b16 %v98
  %v479 = vunpack.c.l.b16 %v99
  %v480 = vunpack.c.l.b16 %v100
  %v481 = vunpack.c.l.b16 %v101
  %v482 = vunpack.c.l.b16 %v102
  %v483 = vunpack.c.l.b16 %v103
  %v484 = vunpack.c.l.b16 %v104
  %v485 = vunpack.c.l.b16 %v105
  %v486 = vunpack.c.l.b16 %v106
  %v487 = vunpack.c.l.b16 %v107
  %v488 = vunpack.c.l.b16 %v108
  %v489 = vunpack.c.l.b16 %v109
  %v490 = vunpack.c.l.b16 %v110
  %v491 = vunpack.c.l.b16 %v111
  %v492 = vunpack.c.l.b16 %v112
  %v493 = vunpack.c.l.b16 %v113
  %v494 = vunpack.c.l.b16 %v114
  %v495 = vunpack.c.l.b16 %v115
  %v496 = vunpack.c.l.b16 %v116
  %v497 = vunpack.c.l.b16 %v117
  %v498 = vunpack.c.l.b16 %v118
  %v499 = vunpack.c.l.b16 %v119
  %v500 = vunpack.c.l.b16 %v120
  %v501 = vunpack.c.l.b16 %v121
  %v502 = vunpack.c.l.b16 %v122
  %v503 = vunpack.c.l.b16 %v123
  %v504 = vunpack.c.l.b16 %v124
  %v505 = vunpack.c.l.b16 %v125
  %v506 = vunpack.c.l.b16 %v126
  %v507 = vunpack.c.l.b16 %v127
  %v508 = vunpack.c.l.b16 %v128
  %v509 = vunpack.c.l.b16 %v129
  %v510 = vunpack.c.l.b16 %v130
  %v511 = vunpack.c.l.b16 %v131
  %v512 = vunpack.c.l.b16 %v132
  %v513 = vunpack.c.l.b16 %v133
  %v514 = vunpack.c.l.b16 %v134
  %v515 = vunpack.c.l.b16 %v135
  %v516 = vunpack.c.l.b16 %v136
  %v517 = vunpack.c.l.b16 %v137
  %v518 = vunpack.c.l.b16 %v138
  %v519 = vunpack.c.l.b16 %v139
  %v520 = vunpack.c.l.b16 %v140
  %v521 = vunpack.c.l.b16 %v141
  %v522 = vunpack.c.l.b16 %v142
  %v523 = vunpack.c.l.b16 %v143
  %v524 = vunpack.c.l.b16 %v144
  %v525 = vunpack.c.l.b16 %v145
  %v526 = vunpack.c.l.b16 %v146
  %v527 = vunpack.c.l.b16 %v147
  %v528 = vunpack.c.l.b16 %v148
  %v529 = vunpack.c.l.b16 %v149
  %v530 = vunpack.c.l.b16 %v150
  %v531 = vunpack.c.l.b16 %v151
  %v532 = vunpack.c.l.b16 %v152
  %v533 = vunpack.c.l.b16 %v153
  %v534 = vunpack.c.l.b16 %v154
  %v535 = vunpack.c.l.b16 %v155
  %v536 = vunpack.c.l.b16 %v156
  %v537 = vunpack.c.l.b16 %v157
  %v538 = vunpack.c.l.b16 %v158
  %v539 = vunpack.c.l.b16 %v159
  %v540 = vunpack.c.l.b16 %v160
  %v541 = vunpack.c.l.b16 %v161
  %v542 = vunpack.c.l.b16 %v162
  %v543 = vunpack.c.l.b16 %v163
  %v544 = vunpack.c.l.b16 %v164
  %v545 = vunpack.c.l.b16 %v165
  %v546 = vunpack.c.l.b16 %v166
  %v547 = vunpack.c.l.b16 %v167
  %v548 = vunpack.c.l.b16 %v168
  %v549 = vunpack.c.l.b16 %v169
  %v550 = vunpack.c.l.b16 %v170
  %v551 = vunpack.c.l.b16 %v171
  %v552 = vunpack.c.l.b16 %v172
  %v553 = vunpack.c.l.b16 %v173
  %v554 = vunpack.c.l.b16 %v174
  %v555 = vunpack.c.l.b16 %v175
  %v556 = vunpack.c.l.b16 %v176
  %v557 = vunpack.c.l.b16 %v177
  %v558 = vunpack.c.l.b16 %v178
  %v559 = vunpack.c.l.b16 %v179
  %v560 = vunpack.c.l.b16 %v180
  %v561 = vunpack.c.l.b16 %v181
  %v562 = vunpack.c.l.b16 %v182
  %v563 = vunpack.c.l.b16 %v183
  %v564 = vunpack.c.l.b16 %v184
  %v565 = vpack.c.b16 %v422, %v421
  %v566 = vpack.c.b16 %v424, %v423
  %v567 = vpack.c.b16 %v426, %v425
  %v568 = vpack.c.b16 %v428, %v427
  %v569 = vpack.c.b16 %v430, %v429
  %v570 = vpack.c.b16 %v432, %v431
  %v571 = vpack.c.b16 %v434, %v433
  %v572 = vpack.c.b16 %v436, %v435
  %v573 = vpack.c.b16 %v438, %v437
  %v574 = vpack.c.b16 %v440, %v439
  %v575 = vpack.c.b16 %v442, %v441
  %v576 = vpack.c.b16 %v444, %v443
  %v577 = vpack.c.b16 %v446, %v445
  %v578 = vpack.c.b16 %v448, %v447
  %v579 = vpack.c.b16 %v450, %v449
  %v580 = vpack.c.b16 %v452, %v451
  %v581 = vpack.c.b16 %v454, %v453
  %v582 = vpack.c.b16 %v456, %v455
  %v583 = vpack.c.b16 %v458, %v457
  %v584 = vpack.c.b16 %v460, %v459
  %v585 = vpack.c.b16 %v462, %v461
  %v586 = vpack.c.b16 %v464, %v463
  %v587 = vpack.c.b16 %v466, %v465
  %v588 = vpack.c.b16 %v468, %v467
  %v589 = vpack.c.b16 %v470, %v469
  %v590 = vpack.c.b16 %v472, %v471
  %v591 = vpack.c.b16 %v474, %v473
  %v592 = vpack.c.b16 %v476, %v475
  %v593 = vpack.c.b16 %v478, %v477
  %v594 = vpack.c.b16 %v480, %v479
  %v595 = vpack.c.b16 %v482, %v481
  %v596 = vpack.c.b16 %v484, %v483
  %v597 = vpack.c.b16 %v486, %v485
  %v598 = vpack.c.b16 %v488, %v487
  %v599 = vpack.c.b16 %v490, %v489
  %v600 = vpack.c.b16 %v492, %v491
  %v601 = vpack.c.b16 %v494, %v493
  %v602 = vpack.c.b16 %v496, %v495
  %v603 = vpack.c.b16 %v498, %v497
  %v604 = vpack.c.b16 %v500, %v499
  %v605 = vpack.c.b16 %v502, %v501
  %v606 = vpack.c.b16 %v504, %v503
  %v607 = vpack.c.b16 %v506, %v505
  %v608 = vpack.c.b16 %v508, %v507
  %v609 = vpack.c.b16 %v510, %v509
  %v610 = vpack.c.b16 %v512, %v511
  %v611 = vpack.c.b16 %v514, %v513
  %v612 = vpack.c.b16 %v516, %v515
  %v613 = vpack.c.b16 %v518, %v517
  %v614 = vpack.c.b16 %v520, %v519
  %v615 = vpack.c.b16 %v522, %v521
  %v616 = vpack.c.b16 %v524, %v523
  %v617 = vpack.c.b16 %v526, %v525
  %v618 = vpack.c.b16 %v528, %v527
  %v619 = vpack.c.b16 %v530, %v529
  %v620 = vpack.c.b16 %v532, %v531
  %v621 = vpack.c.b16 %v534, %v533
  %v622 = vpack.c.b16 %v536, %v535
  %v623 = vpack.c.b16 %v538, %v537
  %v624 = vpack.c.b16 %v540, %v539
  %v625 = vpack.c.b16 %v542, %v541
  %v626 = vpack.c.b16 %v544, %v543
  %v627 = vpack.c.b16 %v546, %v545
  %v628 = vpack.c.b16 %v548, %v547
  %v629 = vpack.c.b16 %v550, %v549
  %v630 = vpack.c.b16 %v552, %v551
  %v631 = vpack.c.b16 %v554, %v553
  %v632 = vpack.c.b16 %v556, %v555
  %v633 = vpack.c.b16 %v558, %v557
  %v634 = vpack.c.b16 %v560, %v559
  %v635 = vpack.c.b16 %v562, %v561
  %v636 = vpack.c.b16 %v564, %v563
  %709 = vmatprep.subr.bf16.mxu0 0
  %710 = vmatpush1.bf16.msra.mxu0 %v565
  %711 = vmatprep.subr.bf16.mxu0 0
  %712 = vmatpush1.bf16.msra.mxu0 %v566
  %713 = vmatprep.subr.bf16.mxu0 0
  %714 = vmatpush1.bf16.msra.mxu0 %v567
  %715 = vmatprep.subr.bf16.mxu0 0
  %716 = vmatpush1.bf16.msra.mxu0 %v568
  %717 = vmatprep.subr.bf16.mxu0 0
  %718 = vmatpush1.bf16.msra.mxu0 %v569
  %719 = vmatprep.subr.bf16.mxu0 0
  %720 = vmatpush1.bf16.msra.mxu0 %v570
  %721 = vmatprep.subr.bf16.mxu0 0
  %722 = vmatpush1.bf16.msra.mxu0 %v571
  %723 = vmatprep.subr.bf16.mxu0 0
  %724 = vmatpush1.bf16.msra.mxu0 %v572
  %725 = vmatprep.subr.bf16.mxu0 0
  %726 = vmatpush1.bf16.msra.mxu0 %v573
  %727 = vmatprep.subr.bf16.mxu0 0
  %728 = vmatpush1.bf16.msra.mxu0 %v574
  %729 = vmatprep.subr.bf16.mxu0 0
  %730 = vmatpush1.bf16.msra.mxu0 %v575
  %731 = vmatprep.subr.bf16.mxu0 0
  %732 = vmatpush1.bf16.msra.mxu0 %v576
  %733 = vmatprep.subr.bf16.mxu0 0
  %734 = vmatpush1.bf16.msra.mxu0 %v577
  %735 = vmatprep.subr.bf16.mxu0 0
  %736 = vmatpush1.bf16.msra.mxu0 %v578
  %737 = vmatprep.subr.bf16.mxu0 0
  %738 = vmatpush1.bf16.msra.mxu0 %v579
  %739 = vmatprep.subr.bf16.mxu0 0
  %740 = vmatpush1.bf16.msra.mxu0 %v580
  %741 = vmatprep.mubr.bf16.mxu0 %v242
  %742 = vmatmul.mubr.bf16.gmra.mrb[0].mxu0 %v241
  %v743 = vpop.f32.mrb[0].mxu0
  %v744 = vadd.f32 0.0, %v743
  %v745 = vpop.f32.mrb[0].mxu0
  %v746 = vpop.f32.mrb[0].mxu0
  %v747 = vadd.f32 0.0, %v746
  %v748 = vpop.f32.mrb[0].mxu0
  %749 = vmatprep.mubr.bf16.mxu0 %v251
  %750 = vmatmul.mubr.bf16.gmra.mrb[0].mxu0 %v250
  %v751 = vpop.f32.mrb[0].mxu0
  %v752 = vadd.f32 0.0, %v751
  %v753 = vpop.f32.mrb[0].mxu0
  %v754 = vpop.f32.mrb[0].mxu0
  %v755 = vadd.f32 0.0, %v754
  %v756 = vpop.f32.mrb[0].mxu0
  %757 = vdwg.mxu0
  %758 = vmatprep.subr.bf16.mxu0 0
  %759 = vmatpush1.bf16.msra.mxu0 %v581
  %760 = vmatprep.subr.bf16.mxu0 0
  %761 = vmatpush1.bf16.msra.mxu0 %v582
  %762 = vmatprep.subr.bf16.mxu0 0
  %763 = vmatpush1.bf16.msra.mxu0 %v583
  %764 = vmatprep.subr.bf16.mxu0 0
  %765 = vmatpush1.bf16.msra.mxu0 %v584
  %766 = vmatprep.subr.bf16.mxu0 0
  %767 = vmatpush1.bf16.msra.mxu0 %v585
  %768 = vmatprep.subr.bf16.mxu0 0
  %769 = vmatpush1.bf16.msra.mxu0 %v586
  %770 = vmatprep.subr.bf16.mxu0 0
  %771 = vmatpush1.bf16.msra.mxu0 %v587
  %772 = vmatprep.subr.bf16.mxu0 0
  %773 = vmatpush1.bf16.msra.mxu0 %v588
  %774 = vmatprep.subr.bf16.mxu0 0
  %775 = vmatpush1.bf16.msra.mxu0 %v589
  %776 = vmatprep.subr.bf16.mxu0 0
  %777 = vmatpush1.bf16.msra.mxu0 %v590
  %778 = vmatprep.subr.bf16.mxu0 0
  %779 = vmatpush1.bf16.msra.mxu0 %v591
  %780 = vmatprep.subr.bf16.mxu0 0
  %781 = vmatpush1.bf16.msra.mxu0 %v592
  %782 = vmatprep.subr.bf16.mxu0 0
  %783 = vmatpush1.bf16.msra.mxu0 %v593
  %784 = vmatprep.subr.bf16.mxu0 0
  %785 = vmatpush1.bf16.msra.mxu0 %v594
  %786 = vmatprep.subr.bf16.mxu0 0
  %787 = vmatpush1.bf16.msra.mxu0 %v595
  %788 = vmatprep.subr.bf16.mxu0 0
  %789 = vmatpush1.bf16.msra.mxu0 %v596
  %790 = vmatprep.mubr.bf16.mxu0 %v244
  %791 = vmatmul.mubr.bf16.gmra.mrb[0].mxu0 %v243
  %v792 = vpop.f32.mrb[0].mxu0
  %v793 = vadd.f32 %v744, %v792
  %v794 = vpop.f32.mrb[0].mxu0
  %v795 = vpop.f32.mrb[0].mxu0
  %v796 = vadd.f32 %v747, %v795
  %v797 = vpop.f32.mrb[0].mxu0
  %798 = vmatprep.mubr.bf16.mxu0 %v253
  %799 = vmatmul.mubr.bf16.gmra.mrb[0].mxu0 %v252
  %v800 = vpop.f32.mrb[0].mxu0
  %v801 = vadd.f32 %v752, %v800
  %v802 = vpop.f32.mrb[0].mxu0
  %v803 = vpop.f32.mrb[0].mxu0
  %v804 = vadd.f32 %v755, %v803
  %v805 = vpop.f32.mrb[0].mxu0
  %806 = vdwg.mxu0
  %807 = vmatprep.subr.bf16.mxu0 0
  %808 = vmatpush1.bf16.msra.mxu0 %v597
  %809 = vmatprep.subr.bf16.mxu0 0
  %810 = vmatpush1.bf16.msra.mxu0 %v598
  %811 = vmatprep.subr.bf16.mxu0 0
  %812 = vmatpush1.bf16.msra.mxu0 %v599
  %813 = vmatprep.subr.bf16.mxu0 0
  %814 = vmatpush1.bf16.msra.mxu0 %v600
  %815 = vmatprep.subr.bf16.mxu0 0
  %816 = vmatpush1.bf16.msra.mxu0 %v601
  %817 = vmatprep.subr.bf16.mxu0 0
  %818 = vmatpush1.bf16.msra.mxu0 %v602
  %819 = vmatprep.subr.bf16.mxu0 0
  %820 = vmatpush1.bf16.msra.mxu0 %v603
  %821 = vmatprep.subr.bf16.mxu0 0
  %822 = vmatpush1.bf16.msra.mxu0 %v604
  %823 = vmatprep.subr.bf16.mxu0 0
  %824 = vmatpush1.bf16.msra.mxu0 %v605
  %825 = vmatprep.subr.bf16.mxu0 0
  %826 = vmatpush1.bf16.msra.mxu0 %v606
  %827 = vmatprep.subr.bf16.mxu0 0
  %828 = vmatpush1.bf16.msra.mxu0 %v607
  %829 = vmatprep.subr.bf16.mxu0 0
  %830 = vmatpush1.bf16.msra.mxu0 %v608
  %831 = vmatprep.subr.bf16.mxu0 0
  %832 = vmatpush1.bf16.msra.mxu0 %v609
  %833 = vmatprep.subr.bf16.mxu0 0
  %834 = vmatpush1.bf16.msra.mxu0 %v610
  %835 = vmatprep.subr.bf16.mxu0 0
  %836 = vmatpush1.bf16.msra.mxu0 %v611
  %837 = vmatprep.subr.bf16.mxu0 0
  %838 = vmatpush1.bf16.msra.mxu0 %v612
  %839 = vmatprep.mubr.bf16.mxu0 %v246
  %840 = vmatmul.mubr.bf16.gmra.mrb[0].mxu0 %v245
  %v841 = vpop.f32.mrb[0].mxu0
  %v842 = vadd.f32 %v793, %v841
  %v843 = vpop.f32.mrb[0].mxu0
  %v844 = vpop.f32.mrb[0].mxu0
  %v845 = vadd.f32 %v796, %v844
  %v846 = vpop.f32.mrb[0].mxu0
  %847 = vmatprep.mubr.bf16.mxu0 %v255
  %848 = vmatmul.mubr.bf16.gmra.mrb[0].mxu0 %v254
  %v849 = vpop.f32.mrb[0].mxu0
  %v850 = vadd.f32 %v801, %v849
  %v851 = vpop.f32.mrb[0].mxu0
  %v852 = vpop.f32.mrb[0].mxu0
  %v853 = vadd.f32 %v804, %v852
  %v854 = vpop.f32.mrb[0].mxu0
  %855 = vdwg.mxu0
  %856 = vmatprep.subr.bf16.mxu0 0
  %857 = vmatpush1.bf16.msra.mxu0 %v613
  %858 = vmatprep.subr.bf16.mxu0 0
  %859 = vmatpush1.bf16.msra.mxu0 %v614
  %860 = vmatprep.subr.bf16.mxu0 0
  %861 = vmatpush1.bf16.msra.mxu0 %v615
  %862 = vmatprep.subr.bf16.mxu0 0
  %863 = vmatpush1.bf16.msra.mxu0 %v616
  %864 = vmatprep.subr.bf16.mxu0 0
  %865 = vmatpush1.bf16.msra.mxu0 %v617
  %866 = vmatprep.subr.bf16.mxu0 0
  %867 = vmatpush1.bf16.msra.mxu0 %v618
  %868 = vmatprep.subr.bf16.mxu0 0
  %869 = vmatpush1.bf16.msra.mxu0 %v619
  %870 = vmatprep.subr.bf16.mxu0 0
  %871 = vmatpush1.bf16.msra.mxu0 %v620
  %872 = vmatprep.subr.bf16.mxu0 0
  %873 = vmatpush1.bf16.msra.mxu0 %v621
  %874 = vmatprep.subr.bf16.mxu0 0
  %875 = vmatpush1.bf16.msra.mxu0 %v622
  %876 = vmatprep.subr.bf16.mxu0 0
  %877 = vmatpush1.bf16.msra.mxu0 %v623
  %878 = vmatprep.subr.bf16.mxu0 0
  %879 = vmatpush1.bf16.msra.mxu0 %v624
  %880 = vmatprep.subr.bf16.mxu0 0
  %881 = vmatpush1.bf16.msra.mxu0 %v625
  %882 = vmatprep.subr.bf16.mxu0 0
  %883 = vmatpush1.bf16.msra.mxu0 %v626
  %884 = vmatprep.subr.bf16.mxu0 0
  %885 = vmatpush1.bf16.msra.mxu0 %v627
  %886 = vmatprep.subr.bf16.mxu0 0
  %887 = vmatpush1.bf16.msra.mxu0 %v628
  %888 = vmatprep.mubr.bf16.mxu0 %v248
  %889 = vmatmul.mubr.bf16.gmra.mrb[0].mxu0 %v247
  %v890 = vpop.f32.mrb[0].mxu0
  %v891 = vadd.f32 %v842, %v890
  %v892 = vpop.f32.mrb[0].mxu0
  %v893 = vpop.f32.mrb[0].mxu0
  %v894 = vadd.f32 %v845, %v893
  %v895 = vpop.f32.mrb[0].mxu0
  %896 = vmatprep.mubr.bf16.mxu0 %v257
  %897 = vmatmul.mubr.bf16.gmra.mrb[0].mxu0 %v256
  %v898 = vpop.f32.mrb[0].mxu0
  %v899 = vadd.f32 %v850, %v898
  %v900 = vpop.f32.mrb[0].mxu0
  %v901 = vpop.f32.mrb[0].mxu0
  %v902 = vadd.f32 %v853, %v901
  %v903 = vpop.f32.mrb[0].mxu0
  %904 = vdwg.mxu0
  %905 = vmatprep.subr.bf16.mxu0 0
  %906 = vmatpush1.bf16.msra.mxu0 %v629
  %907 = vmatprep.subr.bf16.mxu0 0
  %908 = vmatpush1.bf16.msra.mxu0 %v630
  %909 = vmatprep.subr.bf16.mxu0 0
  %910 = vmatpush1.bf16.msra.mxu0 %v631
  %911 = vmatprep.subr.bf16.mxu0 0
  %912 = vmatpush1.bf16.msra.mxu0 %v632
  %913 = vmatprep.subr.bf16.mxu0 0
  %914 = vmatpush1.bf16.msra.mxu0 %v633
  %915 = vmatprep.subr.bf16.mxu0 0
  %916 = vmatpush1.bf16.msra.mxu0 %v634
  %917 = vmatprep.subr.bf16.mxu0 0
  %918 = vmatpush1.bf16.msra.mxu0 %v635
  %919 = vmatprep.subr.bf16.mxu0 0
  %920 = vmatpush1.bf16.msra.mxu0 %v636
  %921 = vmatprep.subr.bf16.mxu0 0
  %922 = vmatpush1.bf16.msra.mxu0 0
  %923 = vmatprep.subr.bf16.mxu0 0
  %924 = vmatpush1.bf16.msra.mxu0 0
  %925 = vmatprep.subr.bf16.mxu0 0
  %926 = vmatpush1.bf16.msra.mxu0 0
  %927 = vmatprep.subr.bf16.mxu0 0
  %928 = vmatpush1.bf16.msra.mxu0 0
  %929 = vmatprep.subr.bf16.mxu0 0
  %930 = vmatpush1.bf16.msra.mxu0 0
  %931 = vmatprep.subr.bf16.mxu0 0
  %932 = vmatpush1.bf16.msra.mxu0 0
  %933 = vmatprep.subr.bf16.mxu0 0
  %934 = vmatpush1.bf16.msra.mxu0 0
  %935 = vmatprep.subr.bf16.mxu0 0
  %936 = vmatpush1.bf16.msra.mxu0 0
  %937 = vmatprep.mubr.bf16.mxu0 0
  %938 = vmatmul.mubr.bf16.gmra.mrb[0].mxu0 %v249
  %v939 = vpop.f32.mrb[0].mxu0
  %v940 = vadd.f32 %v891, %v939
  %v941 = vpop.f32.mrb[0].mxu0
  %v942 = vpop.f32.mrb[0].mxu0
  %v943 = vadd.f32 %v894, %v942
  %v944 = vpop.f32.mrb[0].mxu0
  %945 = vmatprep.mubr.bf16.mxu0 0
  %946 = vmatmul.mubr.bf16.gmra.mrb[0].mxu0 %v258
  %v947 = vpop.f32.mrb[0].mxu0
  %v948 = vadd.f32 %v899, %v947
  %v949 = vpop.f32.mrb[0].mxu0
  %v950 = vpop.f32.mrb[0].mxu0
  %v951 = vadd.f32 %v902, %v950
  %v952 = vpop.f32.mrb[0].mxu0
  %953 = vdwg.mxu0
  %v954 = vld [vmem:[%s2] sm:$0x1]
  %v956 = vlaneseq
  %v957 = vshrl.u32 %v956, 7
  %v958 = vsub.s32 0, %v957
  %v959 = vrot.slane %v954, %v958
  %v961 = vmul.f32 %v940, %v959
  %v962 = vmul.f32 %v943, %v959
  %v963 = vmul.f32 %v948, %v959
  %v964 = vmul.f32 %v951, %v959
  %v965 = vld [vmem:[%s3] sm:$0x1]
  %v967 = vlaneseq
  %v968 = vshrl.u32 %v967, 7
  %v969 = vsub.s32 0, %v968
  %v970 = vrot.slane %v965, %v969
  %v972 = vadd.f32 %v961, %v970
  %v973 = vadd.f32 %v962, %v970
  %v974 = vadd.f32 %v963, %v970
  %v975 = vadd.f32 %v964, %v970
  %v976 = vld [vmem:[%s4] sm:$0xf]
  %v977 = vld [vmem:[%s4 + $0x4] sm:$0xf]
  %v978 = vld [vmem:[%s4 + $0x8] sm:$0xf]
  %v979 = vld [vmem:[%s4 + $0xc] sm:$0xf]
  %v980 = vunpack.c.l.bf16 %v976
  %v981 = vunpack.c.l.bf16 %v977
  %v982 = vunpack.c.l.bf16 %v978
  %v983 = vunpack.c.l.bf16 %v979
  %v984 = vadd.f32 %v972, %v980
  %v985 = vadd.f32 %v973, %v981
  %v986 = vadd.f32 %v974, %v982
  %v987 = vadd.f32 %v975, %v983
  %v988 = vmax.f32 %v984, 0.0
  %v989 = vmax.f32 %v985, 0.0
  %v990 = vmax.f32 %v986, 0.0
  %v991 = vmax.f32 %v987, 0.0
  %v992 = vpack.c.bf16 %v989, %v988
  %v993 = vpack.c.bf16 %v991, %v990
  %v996 = vunpack.c.l.b16 %v992
  %v997 = vunpack.c.h.b16 %v992
  %v998 = vunpack.c.l.b16 %v993
  %v999 = vunpack.c.h.b16 %v993
  %v1000 = vpack.c.b16 %v996, %v996
  %v1001 = vpack.c.b16 %v997, %v997
  %v1002 = vpack.c.b16 %v998, %v998
  %v1003 = vpack.c.b16 %v999, %v999
  %1008 = vst [vmem:[%s5] sm:$0xf] %v1000
  %1009 = vst [vmem:[%s5 + $0x4] sm:$0xf] %v1001
  %1010 = vst [vmem:[%s5 + $0x8] sm:$0xf] %v1002
  %1011 = vst [vmem:[%s5 + $0xc] sm:$0xf] %v1003
  // Predicated region
  $region22: #{_lambda_.30} parent=0 // pred_check
    _
  $region23: #{_lambda_.30} parent=0 // pred_check_branch
    %1013 = sbr.rel (0) target = $region25
  $region24: #{_lambda_.30} parent=0 // pred_region
    _
  $region25: #{_lambda_.30} parent=0 // pred_fallthru
    _
  // Predicated region
  $region26: #{_lambda_.30} parent=0 // pred_check
    _
  $region27: #{_lambda_.30} parent=0 // pred_check_branch
    %1015 = sbr.rel (0) target = $region29
  $region28: #{_lambda_.30} parent=0 // pred_region
    _
  $region29: #{_lambda_.30} parent=0 // pred_fallthru
    _

// kernel: _lambda_.34
$region0: #{_lambda_.34}
  #allocation0 [shape = 'u32[]', space=smem, size = 0x4, offset = 0x4, fixed_abs, tag = 'smem constant byte address 0x4 - core index']
  #allocation1 [shape = 'u32[144,128]{1,0:T(1,128)}', space=vmem, size = 0x12000, scoped, tag = 'internal scratch']
  %s0 = inlined_call_operand.vmem [shape: bf16[8,128], index: 0, kind: input, shape index: {}]
  %s1 = inlined_call_operand.vmem [shape: bf16[128,128], index: 1, kind: input, shape index: {}]
  %s2 = inlined_call_operand.vmem [shape: f32[1,128], index: 2, kind: input, shape index: {}]
  %s3 = inlined_call_operand.vmem [shape: f32[1,128], index: 3, kind: input, shape index: {}]
  %s4 = inlined_call_operand.vmem [shape: bf16[8,128], index: 4, kind: output, shape index: {}]
  %s5 = sld [smem:[#allocation0]]
  $region26: #{_lambda_.34} parent=0
    _
  %s7 = ssub.s32 1, %s5
  %s8 = scalar_select 0, %s7, %s5
  // Predicated region
  $region2: #{_lambda_.34} parent=0 // pred_check
    _
  $region3: #{_lambda_.34} parent=0 // pred_check_branch
    %10 = sbr.rel (0) target = $region5
  $region4: #{_lambda_.34} parent=0 // pred_region
    _
  $region5: #{_lambda_.34} parent=0 // pred_fallthru
    _
  // Predicated region
  $region6: #{_lambda_.34} parent=0 // pred_check
    _
  $region7: #{_lambda_.34} parent=0 // pred_check_branch
    %12 = sbr.rel (0) target = $region9
  $region8: #{_lambda_.34} parent=0 // pred_region
    _
  $region9: #{_lambda_.34} parent=0 // pred_fallthru
    _
  // Predicated region
  $region10: #{_lambda_.34} parent=0 // pred_check
    _
  $region11: #{_lambda_.34} parent=0 // pred_check_branch
    %14 = sbr.rel (0) target = $region13
  $region12: #{_lambda_.34} parent=0 // pred_region
    _
  $region13: #{_lambda_.34} parent=0 // pred_fallthru
    _
  // Predicated region
  $region14: #{_lambda_.34} parent=0 // pred_check
    _
  $region15: #{_lambda_.34} parent=0 // pred_check_branch
    %16 = sbr.rel (0) target = $region17
  $region16: #{_lambda_.34} parent=0 // pred_region
    _
  $region17: #{_lambda_.34} parent=0 // pred_fallthru
    _
  %v18 = vld [vmem:[%s0] sm:$0xf]
  %v19 = vld [vmem:[%s1] sm:$0xf]
  %v20 = vld [vmem:[%s1 + $0x4] sm:$0xf]
  %v21 = vld [vmem:[%s1 + $0x8] sm:$0xf]
  %v22 = vld [vmem:[%s1 + $0xc] sm:$0xf]
  %v23 = vld [vmem:[%s1 + $0x10] sm:$0xf]
  %v24 = vld [vmem:[%s1 + $0x14] sm:$0xf]
  %v25 = vld [vmem:[%s1 + $0x18] sm:$0xf]
  %v26 = vld [vmem:[%s1 + $0x1c] sm:$0xf]
  %v27 = vld [vmem:[%s1 + $0x20] sm:$0xf]
  %v28 = vld [vmem:[%s1 + $0x24] sm:$0xf]
  %v29 = vld [vmem:[%s1 + $0x28] sm:$0xf]
  %v30 = vld [vmem:[%s1 + $0x2c] sm:$0xf]
  %v31 = vld [vmem:[%s1 + $0x30] sm:$0xf]
  %v32 = vld [vmem:[%s1 + $0x34] sm:$0xf]
  %v33 = vld [vmem:[%s1 + $0x38] sm:$0xf]
  %v34 = vld [vmem:[%s1 + $0x3c] sm:$0xf]
  %v51 = vunpack.c.l.b16 %v19
  %v52 = vunpack.c.l.b16 %v20
  %v53 = vunpack.c.l.b16 %v21
  %v54 = vunpack.c.l.b16 %v22
  %v55 = vunpack.c.l.b16 %v23
  %v56 = vunpack.c.l.b16 %v24
  %v57 = vunpack.c.l.b16 %v25
  %v58 = vunpack.c.l.b16 %v26
  %v59 = vunpack.c.l.b16 %v27
  %v60 = vunpack.c.l.b16 %v28
  %v61 = vunpack.c.l.b16 %v29
  %v62 = vunpack.c.l.b16 %v30
  %v63 = vunpack.c.l.b16 %v31
  %v64 = vunpack.c.l.b16 %v32
  %v65 = vunpack.c.l.b16 %v33
  %v66 = vunpack.c.l.b16 %v34
  %v67 = vpack.c.b16 %v52, %v51
  %v68 = vpack.c.b16 %v54, %v53
  %v69 = vpack.c.b16 %v56, %v55
  %v70 = vpack.c.b16 %v58, %v57
  %v71 = vpack.c.b16 %v60, %v59
  %v72 = vpack.c.b16 %v62, %v61
  %v73 = vpack.c.b16 %v64, %v63
  %v74 = vpack.c.b16 %v66, %v65
  %83 = vmatprep.subr.bf16.mxu0 0
  %84 = vmatpush1.bf16.msra.mxu0 %v67
  %85 = vmatprep.subr.bf16.mxu0 0
  %86 = vmatpush1.bf16.msra.mxu0 %v68
  %87 = vmatprep.subr.bf16.mxu0 0
  %88 = vmatpush1.bf16.msra.mxu0 %v69
  %89 = vmatprep.subr.bf16.mxu0 0
  %90 = vmatpush1.bf16.msra.mxu0 %v70
  %91 = vmatprep.subr.bf16.mxu0 0
  %92 = vmatpush1.bf16.msra.mxu0 %v71
  %93 = vmatprep.subr.bf16.mxu0 0
  %94 = vmatpush1.bf16.msra.mxu0 %v72
  %95 = vmatprep.subr.bf16.mxu0 0
  %96 = vmatpush1.bf16.msra.mxu0 %v73
  %97 = vmatprep.subr.bf16.mxu0 0
  %98 = vmatpush1.bf16.msra.mxu0 %v74
  %99 = vmatprep.subr.bf16.mxu0 0
  %100 = vmatpush1.bf16.msra.mxu0 0
  %101 = vmatprep.subr.bf16.mxu0 0
  %102 = vmatpush1.bf16.msra.mxu0 0
  %103 = vmatprep.subr.bf16.mxu0 0
  %104 = vmatpush1.bf16.msra.mxu0 0
  %105 = vmatprep.subr.bf16.mxu0 0
  %106 = vmatpush1.bf16.msra.mxu0 0
  %107 = vmatprep.subr.bf16.mxu0 0
  %108 = vmatpush1.bf16.msra.mxu0 0
  %109 = vmatprep.subr.bf16.mxu0 0
  %110 = vmatpush1.bf16.msra.mxu0 0
  %111 = vmatprep.subr.bf16.mxu0 0
  %112 = vmatpush1.bf16.msra.mxu0 0
  %113 = vmatprep.subr.bf16.mxu0 0
  %114 = vmatpush1.bf16.msra.mxu0 0
  %115 = vmatprep.mubr.bf16.mxu0 0
  %116 = vmatmul.mubr.bf16.gmra.mrb[0].mxu0 %v18
  %v117 = vpop.f32.mrb[0].mxu0
  %v118 = vadd.f32 0.0, %v117
  %v119 = vpop.f32.mrb[0].mxu0
  %v120 = vpop.f32.mrb[0].mxu0
  %v121 = vpop.f32.mrb[0].mxu0
  %122 = vdwg.mxu0
  %v123 = vld [vmem:[%s2] sm:$0x1]
  %v125 = vlaneseq
  %v126 = vshrl.u32 %v125, 7
  %v127 = vsub.s32 0, %v126
  %v128 = vrot.slane %v123, %v127
  %v130 = vmul.f32 %v118, %v128
  %v131 = vld [vmem:[%s3] sm:$0x1]
  %v133 = vlaneseq
  %v134 = vshrl.u32 %v133, 7
  %v135 = vsub.s32 0, %v134
  %v136 = vrot.slane %v131, %v135
  %v138 = vadd.f32 %v130, %v136
  %v139 = vpack.c.bf16 %v138, %v138
  %140 = vst [vmem:[%s4] sm:$0xf] %v139
  // Predicated region
  $region18: #{_lambda_.34} parent=0 // pred_check
    _
  $region19: #{_lambda_.34} parent=0 // pred_check_branch
    %142 = sbr.rel (0) target = $region21
  $region20: #{_lambda_.34} parent=0 // pred_region
    _
  $region21: #{_lambda_.34} parent=0 // pred_fallthru
    _
  // Predicated region
  $region22: #{_lambda_.34} parent=0 // pred_check
    _
  $region23: #{_lambda_.34} parent=0 // pred_check_branch
    %144 = sbr.rel (0) target = $region25
  $region24: #{_lambda_.34} parent=0 // pred_region
    _
  $region25: #{_lambda_.34} parent=0 // pred_fallthru
    _

// kernel: _lambda_.33
$region0: #{_lambda_.33}
  #allocation0 [shape = 'u32[]', space=smem, size = 0x4, offset = 0x4, fixed_abs, tag = 'smem constant byte address 0x4 - core index']
  #allocation1 [shape = 'u32[144,128]{1,0:T(1,128)}', space=vmem, size = 0x12000, scoped, tag = 'internal scratch']
  %s0 = inlined_call_operand.vmem [shape: bf16[8,1152], index: 0, kind: input, shape index: {}]
  %s1 = inlined_call_operand.vmem [shape: bf16[1152,128], index: 1, kind: input, shape index: {}]
  %s2 = inlined_call_operand.vmem [shape: f32[1,128], index: 2, kind: input, shape index: {}]
  %s3 = inlined_call_operand.vmem [shape: f32[1,128], index: 3, kind: input, shape index: {}]
  %s4 = inlined_call_operand.vmem [shape: bf16[8,128], index: 4, kind: output, shape index: {}]
  %s5 = sld [smem:[#allocation0]]
  $region26: #{_lambda_.33} parent=0
    _
  %s7 = ssub.s32 1, %s5
  %s8 = scalar_select 0, %s7, %s5
  // Predicated region
  $region2: #{_lambda_.33} parent=0 // pred_check
    _
  $region3: #{_lambda_.33} parent=0 // pred_check_branch
    %10 = sbr.rel (0) target = $region5
  $region4: #{_lambda_.33} parent=0 // pred_region
    _
  $region5: #{_lambda_.33} parent=0 // pred_fallthru
    _
  // Predicated region
  $region6: #{_lambda_.33} parent=0 // pred_check
    _
  $region7: #{_lambda_.33} parent=0 // pred_check_branch
    %12 = sbr.rel (0) target = $region9
  $region8: #{_lambda_.33} parent=0 // pred_region
    _
  $region9: #{_lambda_.33} parent=0 // pred_fallthru
    _
  // Predicated region
  $region10: #{_lambda_.33} parent=0 // pred_check
    _
  $region11: #{_lambda_.33} parent=0 // pred_check_branch
    %14 = sbr.rel (0) target = $region13
  $region12: #{_lambda_.33} parent=0 // pred_region
    _
  $region13: #{_lambda_.33} parent=0 // pred_fallthru
    _
  // Predicated region
  $region14: #{_lambda_.33} parent=0 // pred_check
    _
  $region15: #{_lambda_.33} parent=0 // pred_check_branch
    %16 = sbr.rel (0) target = $region17
  $region16: #{_lambda_.33} parent=0 // pred_region
    _
  $region17: #{_lambda_.33} parent=0 // pred_fallthru
    _
  %v18 = vld [vmem:[%s0] sm:$0xff]
  %v19 = vld [vmem:[%s0 + $0x8] sm:$0xff]
  %v20 = vld [vmem:[%s0 + $0x10] sm:$0xff]
  %v21 = vld [vmem:[%s0 + $0x18] sm:$0xff]
  %v22 = vld [vmem:[%s0 + $0x20] sm:$0xf]
  %v23 = vld [vmem:[%s1] sm:$0xf]
  %v24 = vld [vmem:[%s1 + $0x4] sm:$0xf]
  %v25 = vld [vmem:[%s1 + $0x8] sm:$0xf]
  %v26 = vld [vmem:[%s1 + $0xc] sm:$0xf]
  %v27 = vld [vmem:[%s1 + $0x10] sm:$0xf]
  %v28 = vld [vmem:[%s1 + $0x14] sm:$0xf]
  %v29 = vld [vmem:[%s1 + $0x18] sm:$0xf]
  %v30 = vld [vmem:[%s1 + $0x1c] sm:$0xf]
  %v31 = vld [vmem:[%s1 + $0x20] sm:$0xf]
  %v32 = vld [vmem:[%s1 + $0x24] sm:$0xf]
  %v33 = vld [vmem:[%s1 + $0x28] sm:$0xf]
  %v34 = vld [vmem:[%s1 + $0x2c] sm:$0xf]
  %v35 = vld [vmem:[%s1 + $0x30] sm:$0xf]
  %v36 = vld [vmem:[%s1 + $0x34] sm:$0xf]
  %v37 = vld [vmem:[%s1 + $0x38] sm:$0xf]
  %v38 = vld [vmem:[%s1 + $0x3c] sm:$0xf]
  %v39 = vld [vmem:[%s1 + $0x40] sm:$0xf]
  %v40 = vld [vmem:[%s1 + $0x44] sm:$0xf]
  %v41 = vld [vmem:[%s1 + $0x48] sm:$0xf]
  %v42 = vld [vmem:[%s1 + $0x4c] sm:$0xf]
  %v43 = vld [vmem:[%s1 + $0x50] sm:$0xf]
  %v44 = vld [vmem:[%s1 + $0x54] sm:$0xf]
  %v45 = vld [vmem:[%s1 + $0x58] sm:$0xf]
  %v46 = vld [vmem:[%s1 + $0x5c] sm:$0xf]
  %v47 = vld [vmem:[%s1 + $0x60] sm:$0xf]
  %v48 = vld [vmem:[%s1 + $0x64] sm:$0xf]
  %v49 = vld [vmem:[%s1 + $0x68] sm:$0xf]
  %v50 = vld [vmem:[%s1 + $0x6c] sm:$0xf]
  %v51 = vld [vmem:[%s1 + $0x70] sm:$0xf]
  %v52 = vld [vmem:[%s1 + $0x74] sm:$0xf]
  %v53 = vld [vmem:[%s1 + $0x78] sm:$0xf]
  %v54 = vld [vmem:[%s1 + $0x7c] sm:$0xf]
  %v55 = vld [vmem:[%s1 + $0x80] sm:$0xf]
  %v56 = vld [vmem:[%s1 + $0x84] sm:$0xf]
  %v57 = vld [vmem:[%s1 + $0x88] sm:$0xf]
  %v58 = vld [vmem:[%s1 + $0x8c] sm:$0xf]
  %v59 = vld [vmem:[%s1 + $0x90] sm:$0xf]
  %v60 = vld [vmem:[%s1 + $0x94] sm:$0xf]
  %v61 = vld [vmem:[%s1 + $0x98] sm:$0xf]
  %v62 = vld [vmem:[%s1 + $0x9c] sm:$0xf]
  %v63 = vld [vmem:[%s1 + $0xa0] sm:$0xf]
  %v64 = vld [vmem:[%s1 + $0xa4] sm:$0xf]
  %v65 = vld [vmem:[%s1 + $0xa8] sm:$0xf]
  %v66 = vld [vmem:[%s1 + $0xac] sm:$0xf]
  %v67 = vld [vmem:[%s1 + $0xb0] sm:$0xf]
  %v68 = vld [vmem:[%s1 + $0xb4] sm:$0xf]
  %v69 = vld [vmem:[%s1 + $0xb8] sm:$0xf]
  %v70 = vld [vmem:[%s1 + $0xbc] sm:$0xf]
  %v71 = vld [vmem:[%s1 + $0xc0] sm:$0xf]
  %v72 = vld [vmem:[%s1 + $0xc4] sm:$0xf]
  %v73 = vld [vmem:[%s1 + $0xc8] sm:$0xf]
  %v74 = vld [vmem:[%s1 + $0xcc] sm:$0xf]
  %v75 = vld [vmem:[%s1 + $0xd0] sm:$0xf]
  %v76 = vld [vmem:[%s1 + $0xd4] sm:$0xf]
  %v77 = vld [vmem:[%s1 + $0xd8] sm:$0xf]
  %v78 = vld [vmem:[%s1 + $0xdc] sm:$0xf]
  %v79 = vld [vmem:[%s1 + $0xe0] sm:$0xf]
  %v80 = vld [vmem:[%s1 + $0xe4] sm:$0xf]
  %v81 = vld [vmem:[%s1 + $0xe8] sm:$0xf]
  %v82 = vld [vmem:[%s1 + $0xec] sm:$0xf]
  %v83 = vld [vmem:[%s1 + $0xf0] sm:$0xf]
  %v84 = vld [vmem:[%s1 + $0xf4] sm:$0xf]
  %v85 = vld [vmem:[%s1 + $0xf8] sm:$0xf]
  %v86 = vld [vmem:[%s1 + $0xfc] sm:$0xf]
  %v87 = vld [vmem:[%s1 + $0x100] sm:$0xf]
  %v88 = vld [vmem:[%s1 + $0x104] sm:$0xf]
  %v89 = vld [vmem:[%s1 + $0x108] sm:$0xf]
  %v90 = vld [vmem:[%s1 + $0x10c] sm:$0xf]
  %v91 = vld [vmem:[%s1 + $0x110] sm:$0xf]
  %v92 = vld [vmem:[%s1 + $0x114] sm:$0xf]
  %v93 = vld [vmem:[%s1 + $0x118] sm:$0xf]
  %v94 = vld [vmem:[%s1 + $0x11c] sm:$0xf]
  %v95 = vld [vmem:[%s1 + $0x120] sm:$0xf]
  %v96 = vld [vmem:[%s1 + $0x124] sm:$0xf]
  %v97 = vld [vmem:[%s1 + $0x128] sm:$0xf]
  %v98 = vld [vmem:[%s1 + $0x12c] sm:$0xf]
  %v99 = vld [vmem:[%s1 + $0x130] sm:$0xf]
  %v100 = vld [vmem:[%s1 + $0x134] sm:$0xf]
  %v101 = vld [vmem:[%s1 + $0x138] sm:$0xf]
  %v102 = vld [vmem:[%s1 + $0x13c] sm:$0xf]
  %v103 = vld [vmem:[%s1 + $0x140] sm:$0xf]
  %v104 = vld [vmem:[%s1 + $0x144] sm:$0xf]
  %v105 = vld [vmem:[%s1 + $0x148] sm:$0xf]
  %v106 = vld [vmem:[%s1 + $0x14c] sm:$0xf]
  %v107 = vld [vmem:[%s1 + $0x150] sm:$0xf]
  %v108 = vld [vmem:[%s1 + $0x154] sm:$0xf]
  %v109 = vld [vmem:[%s1 + $0x158] sm:$0xf]
  %v110 = vld [vmem:[%s1 + $0x15c] sm:$0xf]
  %v111 = vld [vmem:[%s1 + $0x160] sm:$0xf]
  %v112 = vld [vmem:[%s1 + $0x164] sm:$0xf]
  %v113 = vld [vmem:[%s1 + $0x168] sm:$0xf]
  %v114 = vld [vmem:[%s1 + $0x16c] sm:$0xf]
  %v115 = vld [vmem:[%s1 + $0x170] sm:$0xf]
  %v116 = vld [vmem:[%s1 + $0x174] sm:$0xf]
  %v117 = vld [vmem:[%s1 + $0x178] sm:$0xf]
  %v118 = vld [vmem:[%s1 + $0x17c] sm:$0xf]
  %v119 = vld [vmem:[%s1 + $0x180] sm:$0xf]
  %v120 = vld [vmem:[%s1 + $0x184] sm:$0xf]
  %v121 = vld [vmem:[%s1 + $0x188] sm:$0xf]
  %v122 = vld [vmem:[%s1 + $0x18c] sm:$0xf]
  %v123 = vld [vmem:[%s1 + $0x190] sm:$0xf]
  %v124 = vld [vmem:[%s1 + $0x194] sm:$0xf]
  %v125 = vld [vmem:[%s1 + $0x198] sm:$0xf]
  %v126 = vld [vmem:[%s1 + $0x19c] sm:$0xf]
  %v127 = vld [vmem:[%s1 + $0x1a0] sm:$0xf]
  %v128 = vld [vmem:[%s1 + $0x1a4] sm:$0xf]
  %v129 = vld [vmem:[%s1 + $0x1a8] sm:$0xf]
  %v130 = vld [vmem:[%s1 + $0x1ac] sm:$0xf]
  %v131 = vld [vmem:[%s1 + $0x1b0] sm:$0xf]
  %v132 = vld [vmem:[%s1 + $0x1b4] sm:$0xf]
  %v133 = vld [vmem:[%s1 + $0x1b8] sm:$0xf]
  %v134 = vld [vmem:[%s1 + $0x1bc] sm:$0xf]
  %v135 = vld [vmem:[%s1 + $0x1c0] sm:$0xf]
  %v136 = vld [vmem:[%s1 + $0x1c4] sm:$0xf]
  %v137 = vld [vmem:[%s1 + $0x1c8] sm:$0xf]
  %v138 = vld [vmem:[%s1 + $0x1cc] sm:$0xf]
  %v139 = vld [vmem:[%s1 + $0x1d0] sm:$0xf]
  %v140 = vld [vmem:[%s1 + $0x1d4] sm:$0xf]
  %v141 = vld [vmem:[%s1 + $0x1d8] sm:$0xf]
  %v142 = vld [vmem:[%s1 + $0x1dc] sm:$0xf]
  %v143 = vld [vmem:[%s1 + $0x1e0] sm:$0xf]
  %v144 = vld [vmem:[%s1 + $0x1e4] sm:$0xf]
  %v145 = vld [vmem:[%s1 + $0x1e8] sm:$0xf]
  %v146 = vld [vmem:[%s1 + $0x1ec] sm:$0xf]
  %v147 = vld [vmem:[%s1 + $0x1f0] sm:$0xf]
  %v148 = vld [vmem:[%s1 + $0x1f4] sm:$0xf]
  %v149 = vld [vmem:[%s1 + $0x1f8] sm:$0xf]
  %v150 = vld [vmem:[%s1 + $0x1fc] sm:$0xf]
  %v151 = vld [vmem:[%s1 + $0x200] sm:$0xf]
  %v152 = vld [vmem:[%s1 + $0x204] sm:$0xf]
  %v153 = vld [vmem:[%s1 + $0x208] sm:$0xf]
  %v154 = vld [vmem:[%s1 + $0x20c] sm:$0xf]
  %v155 = vld [vmem:[%s1 + $0x210] sm:$0xf]
  %v156 = vld [vmem:[%s1 + $0x214] sm:$0xf]
  %v157 = vld [vmem:[%s1 + $0x218] sm:$0xf]
  %v158 = vld [vmem:[%s1 + $0x21c] sm:$0xf]
  %v159 = vld [vmem:[%s1 + $0x220] sm:$0xf]
  %v160 = vld [vmem:[%s1 + $0x224] sm:$0xf]
  %v161 = vld [vmem:[%s1 + $0x228] sm:$0xf]
  %v162 = vld [vmem:[%s1 + $0x22c] sm:$0xf]
  %v163 = vld [vmem:[%s1 + $0x230] sm:$0xf]
  %v164 = vld [vmem:[%s1 + $0x234] sm:$0xf]
  %v165 = vld [vmem:[%s1 + $0x238] sm:$0xf]
  %v166 = vld [vmem:[%s1 + $0x23c] sm:$0xf]
  %v172 = vunpack.c.l.b16 %v18
  %v173 = vunpack.c.h.b16 %v18
  %v174 = vunpack.c.l.b16 %v19
  %v175 = vunpack.c.h.b16 %v19
  %v176 = vunpack.c.l.b16 %v20
  %v177 = vunpack.c.h.b16 %v20
  %v178 = vunpack.c.l.b16 %v21
  %v179 = vunpack.c.h.b16 %v21
  %v180 = vunpack.c.l.b16 %v22
  %v181 = vpack.c.b16 %v172, %v172
  %v182 = vpack.c.b16 %v173, %v173
  %v183 = vpack.c.b16 %v174, %v174
  %v184 = vpack.c.b16 %v175, %v175
  %v185 = vpack.c.b16 %v176, %v176
  %v186 = vpack.c.b16 %v177, %v177
  %v187 = vpack.c.b16 %v178, %v178
  %v188 = vpack.c.b16 %v179, %v179
  %v189 = vpack.c.b16 %v180, %v180
  %v343 = vunpack.c.l.b16 %v23
  %v344 = vunpack.c.l.b16 %v24
  %v345 = vunpack.c.l.b16 %v25
  %v346 = vunpack.c.l.b16 %v26
  %v347 = vunpack.c.l.b16 %v27
  %v348 = vunpack.c.l.b16 %v28
  %v349 = vunpack.c.l.b16 %v29
  %v350 = vunpack.c.l.b16 %v30
  %v351 = vunpack.c.l.b16 %v31
  %v352 = vunpack.c.l.b16 %v32
  %v353 = vunpack.c.l.b16 %v33
  %v354 = vunpack.c.l.b16 %v34
  %v355 = vunpack.c.l.b16 %v35
  %v356 = vunpack.c.l.b16 %v36
  %v357 = vunpack.c.l.b16 %v37
  %v358 = vunpack.c.l.b16 %v38
  %v359 = vunpack.c.l.b16 %v39
  %v360 = vunpack.c.l.b16 %v40
  %v361 = vunpack.c.l.b16 %v41
  %v362 = vunpack.c.l.b16 %v42
  %v363 = vunpack.c.l.b16 %v43
  %v364 = vunpack.c.l.b16 %v44
  %v365 = vunpack.c.l.b16 %v45
  %v366 = vunpack.c.l.b16 %v46
  %v367 = vunpack.c.l.b16 %v47
  %v368 = vunpack.c.l.b16 %v48
  %v369 = vunpack.c.l.b16 %v49
  %v370 = vunpack.c.l.b16 %v50
  %v371 = vunpack.c.l.b16 %v51
  %v372 = vunpack.c.l.b16 %v52
  %v373 = vunpack.c.l.b16 %v53
  %v374 = vunpack.c.l.b16 %v54
  %v375 = vunpack.c.l.b16 %v55
  %v376 = vunpack.c.l.b16 %v56
  %v377 = vunpack.c.l.b16 %v57
  %v378 = vunpack.c.l.b16 %v58
  %v379 = vunpack.c.l.b16 %v59
  %v380 = vunpack.c.l.b16 %v60
  %v381 = vunpack.c.l.b16 %v61
  %v382 = vunpack.c.l.b16 %v62
  %v383 = vunpack.c.l.b16 %v63
  %v384 = vunpack.c.l.b16 %v64
  %v385 = vunpack.c.l.b16 %v65
  %v386 = vunpack.c.l.b16 %v66
  %v387 = vunpack.c.l.b16 %v67
  %v388 = vunpack.c.l.b16 %v68
  %v389 = vunpack.c.l.b16 %v69
  %v390 = vunpack.c.l.b16 %v70
  %v391 = vunpack.c.l.b16 %v71
  %v392 = vunpack.c.l.b16 %v72
  %v393 = vunpack.c.l.b16 %v73
  %v394 = vunpack.c.l.b16 %v74
  %v395 = vunpack.c.l.b16 %v75
  %v396 = vunpack.c.l.b16 %v76
  %v397 = vunpack.c.l.b16 %v77
  %v398 = vunpack.c.l.b16 %v78
  %v399 = vunpack.c.l.b16 %v79
  %v400 = vunpack.c.l.b16 %v80
  %v401 = vunpack.c.l.b16 %v81
  %v402 = vunpack.c.l.b16 %v82
  %v403 = vunpack.c.l.b16 %v83
  %v404 = vunpack.c.l.b16 %v84
  %v405 = vunpack.c.l.b16 %v85
  %v406 = vunpack.c.l.b16 %v86
  %v407 = vunpack.c.l.b16 %v87
  %v408 = vunpack.c.l.b16 %v88
  %v409 = vunpack.c.l.b16 %v89
  %v410 = vunpack.c.l.b16 %v90
  %v411 = vunpack.c.l.b16 %v91
  %v412 = vunpack.c.l.b16 %v92
  %v413 = vunpack.c.l.b16 %v93
  %v414 = vunpack.c.l.b16 %v94
  %v415 = vunpack.c.l.b16 %v95
  %v416 = vunpack.c.l.b16 %v96
  %v417 = vunpack.c.l.b16 %v97
  %v418 = vunpack.c.l.b16 %v98
  %v419 = vunpack.c.l.b16 %v99
  %v420 = vunpack.c.l.b16 %v100
  %v421 = vunpack.c.l.b16 %v101
  %v422 = vunpack.c.l.b16 %v102
  %v423 = vunpack.c.l.b16 %v103
  %v424 = vunpack.c.l.b16 %v104
  %v425 = vunpack.c.l.b16 %v105
  %v426 = vunpack.c.l.b16 %v106
  %v427 = vunpack.c.l.b16 %v107
  %v428 = vunpack.c.l.b16 %v108
  %v429 = vunpack.c.l.b16 %v109
  %v430 = vunpack.c.l.b16 %v110
  %v431 = vunpack.c.l.b16 %v111
  %v432 = vunpack.c.l.b16 %v112
  %v433 = vunpack.c.l.b16 %v113
  %v434 = vunpack.c.l.b16 %v114
  %v435 = vunpack.c.l.b16 %v115
  %v436 = vunpack.c.l.b16 %v116
  %v437 = vunpack.c.l.b16 %v117
  %v438 = vunpack.c.l.b16 %v118
  %v439 = vunpack.c.l.b16 %v119
  %v440 = vunpack.c.l.b16 %v120
  %v441 = vunpack.c.l.b16 %v121
  %v442 = vunpack.c.l.b16 %v122
  %v443 = vunpack.c.l.b16 %v123
  %v444 = vunpack.c.l.b16 %v124
  %v445 = vunpack.c.l.b16 %v125
  %v446 = vunpack.c.l.b16 %v126
  %v447 = vunpack.c.l.b16 %v127
  %v448 = vunpack.c.l.b16 %v128
  %v449 = vunpack.c.l.b16 %v129
  %v450 = vunpack.c.l.b16 %v130
  %v451 = vunpack.c.l.b16 %v131
  %v452 = vunpack.c.l.b16 %v132
  %v453 = vunpack.c.l.b16 %v133
  %v454 = vunpack.c.l.b16 %v134
  %v455 = vunpack.c.l.b16 %v135
  %v456 = vunpack.c.l.b16 %v136
  %v457 = vunpack.c.l.b16 %v137
  %v458 = vunpack.c.l.b16 %v138
  %v459 = vunpack.c.l.b16 %v139
  %v460 = vunpack.c.l.b16 %v140
  %v461 = vunpack.c.l.b16 %v141
  %v462 = vunpack.c.l.b16 %v142
  %v463 = vunpack.c.l.b16 %v143
  %v464 = vunpack.c.l.b16 %v144
  %v465 = vunpack.c.l.b16 %v145
  %v466 = vunpack.c.l.b16 %v146
  %v467 = vunpack.c.l.b16 %v147
  %v468 = vunpack.c.l.b16 %v148
  %v469 = vunpack.c.l.b16 %v149
  %v470 = vunpack.c.l.b16 %v150
  %v471 = vunpack.c.l.b16 %v151
  %v472 = vunpack.c.l.b16 %v152
  %v473 = vunpack.c.l.b16 %v153
  %v474 = vunpack.c.l.b16 %v154
  %v475 = vunpack.c.l.b16 %v155
  %v476 = vunpack.c.l.b16 %v156
  %v477 = vunpack.c.l.b16 %v157
  %v478 = vunpack.c.l.b16 %v158
  %v479 = vunpack.c.l.b16 %v159
  %v480 = vunpack.c.l.b16 %v160
  %v481 = vunpack.c.l.b16 %v161
  %v482 = vunpack.c.l.b16 %v162
  %v483 = vunpack.c.l.b16 %v163
  %v484 = vunpack.c.l.b16 %v164
  %v485 = vunpack.c.l.b16 %v165
  %v486 = vunpack.c.l.b16 %v166
  %v487 = vpack.c.b16 %v344, %v343
  %v488 = vpack.c.b16 %v346, %v345
  %v489 = vpack.c.b16 %v348, %v347
  %v490 = vpack.c.b16 %v350, %v349
  %v491 = vpack.c.b16 %v352, %v351
  %v492 = vpack.c.b16 %v354, %v353
  %v493 = vpack.c.b16 %v356, %v355
  %v494 = vpack.c.b16 %v358, %v357
  %v495 = vpack.c.b16 %v360, %v359
  %v496 = vpack.c.b16 %v362, %v361
  %v497 = vpack.c.b16 %v364, %v363
  %v498 = vpack.c.b16 %v366, %v365
  %v499 = vpack.c.b16 %v368, %v367
  %v500 = vpack.c.b16 %v370, %v369
  %v501 = vpack.c.b16 %v372, %v371
  %v502 = vpack.c.b16 %v374, %v373
  %v503 = vpack.c.b16 %v376, %v375
  %v504 = vpack.c.b16 %v378, %v377
  %v505 = vpack.c.b16 %v380, %v379
  %v506 = vpack.c.b16 %v382, %v381
  %v507 = vpack.c.b16 %v384, %v383
  %v508 = vpack.c.b16 %v386, %v385
  %v509 = vpack.c.b16 %v388, %v387
  %v510 = vpack.c.b16 %v390, %v389
  %v511 = vpack.c.b16 %v392, %v391
  %v512 = vpack.c.b16 %v394, %v393
  %v513 = vpack.c.b16 %v396, %v395
  %v514 = vpack.c.b16 %v398, %v397
  %v515 = vpack.c.b16 %v400, %v399
  %v516 = vpack.c.b16 %v402, %v401
  %v517 = vpack.c.b16 %v404, %v403
  %v518 = vpack.c.b16 %v406, %v405
  %v519 = vpack.c.b16 %v408, %v407
  %v520 = vpack.c.b16 %v410, %v409
  %v521 = vpack.c.b16 %v412, %v411
  %v522 = vpack.c.b16 %v414, %v413
  %v523 = vpack.c.b16 %v416, %v415
  %v524 = vpack.c.b16 %v418, %v417
  %v525 = vpack.c.b16 %v420, %v419
  %v526 = vpack.c.b16 %v422, %v421
  %v527 = vpack.c.b16 %v424, %v423
  %v528 = vpack.c.b16 %v426, %v425
  %v529 = vpack.c.b16 %v428, %v427
  %v530 = vpack.c.b16 %v430, %v429
  %v531 = vpack.c.b16 %v432, %v431
  %v532 = vpack.c.b16 %v434, %v433
  %v533 = vpack.c.b16 %v436, %v435
  %v534 = vpack.c.b16 %v438, %v437
  %v535 = vpack.c.b16 %v440, %v439
  %v536 = vpack.c.b16 %v442, %v441
  %v537 = vpack.c.b16 %v444, %v443
  %v538 = vpack.c.b16 %v446, %v445
  %v539 = vpack.c.b16 %v448, %v447
  %v540 = vpack.c.b16 %v450, %v449
  %v541 = vpack.c.b16 %v452, %v451
  %v542 = vpack.c.b16 %v454, %v453
  %v543 = vpack.c.b16 %v456, %v455
  %v544 = vpack.c.b16 %v458, %v457
  %v545 = vpack.c.b16 %v460, %v459
  %v546 = vpack.c.b16 %v462, %v461
  %v547 = vpack.c.b16 %v464, %v463
  %v548 = vpack.c.b16 %v466, %v465
  %v549 = vpack.c.b16 %v468, %v467
  %v550 = vpack.c.b16 %v470, %v469
  %v551 = vpack.c.b16 %v472, %v471
  %v552 = vpack.c.b16 %v474, %v473
  %v553 = vpack.c.b16 %v476, %v475
  %v554 = vpack.c.b16 %v478, %v477
  %v555 = vpack.c.b16 %v480, %v479
  %v556 = vpack.c.b16 %v482, %v481
  %v557 = vpack.c.b16 %v484, %v483
  %v558 = vpack.c.b16 %v486, %v485
  %631 = vmatprep.subr.bf16.mxu0 0
  %632 = vmatpush1.bf16.msra.mxu0 %v487
  %633 = vmatprep.subr.bf16.mxu0 0
  %634 = vmatpush1.bf16.msra.mxu0 %v488
  %635 = vmatprep.subr.bf16.mxu0 0
  %636 = vmatpush1.bf16.msra.mxu0 %v489
  %637 = vmatprep.subr.bf16.mxu0 0
  %638 = vmatpush1.bf16.msra.mxu0 %v490
  %639 = vmatprep.subr.bf16.mxu0 0
  %640 = vmatpush1.bf16.msra.mxu0 %v491
  %641 = vmatprep.subr.bf16.mxu0 0
  %642 = vmatpush1.bf16.msra.mxu0 %v492
  %643 = vmatprep.subr.bf16.mxu0 0
  %644 = vmatpush1.bf16.msra.mxu0 %v493
  %645 = vmatprep.subr.bf16.mxu0 0
  %646 = vmatpush1.bf16.msra.mxu0 %v494
  %647 = vmatprep.subr.bf16.mxu0 0
  %648 = vmatpush1.bf16.msra.mxu0 %v495
  %649 = vmatprep.subr.bf16.mxu0 0
  %650 = vmatpush1.bf16.msra.mxu0 %v496
  %651 = vmatprep.subr.bf16.mxu0 0
  %652 = vmatpush1.bf16.msra.mxu0 %v497
  %653 = vmatprep.subr.bf16.mxu0 0
  %654 = vmatpush1.bf16.msra.mxu0 %v498
  %655 = vmatprep.subr.bf16.mxu0 0
  %656 = vmatpush1.bf16.msra.mxu0 %v499
  %657 = vmatprep.subr.bf16.mxu0 0
  %658 = vmatpush1.bf16.msra.mxu0 %v500
  %659 = vmatprep.subr.bf16.mxu0 0
  %660 = vmatpush1.bf16.msra.mxu0 %v501
  %661 = vmatprep.subr.bf16.mxu0 0
  %662 = vmatpush1.bf16.msra.mxu0 %v502
  %663 = vmatprep.mubr.bf16.mxu0 %v182
  %664 = vmatmul.mubr.bf16.gmra.mrb[0].mxu0 %v181
  %v665 = vpop.f32.mrb[0].mxu0
  %v666 = vadd.f32 0.0, %v665
  %v667 = vpop.f32.mrb[0].mxu0
  %v668 = vpop.f32.mrb[0].mxu0
  %v669 = vpop.f32.mrb[0].mxu0
  %670 = vdwg.mxu0
  %671 = vmatprep.subr.bf16.mxu0 0
  %672 = vmatpush1.bf16.msra.mxu0 %v503
  %673 = vmatprep.subr.bf16.mxu0 0
  %674 = vmatpush1.bf16.msra.mxu0 %v504
  %675 = vmatprep.subr.bf16.mxu0 0
  %676 = vmatpush1.bf16.msra.mxu0 %v505
  %677 = vmatprep.subr.bf16.mxu0 0
  %678 = vmatpush1.bf16.msra.mxu0 %v506
  %679 = vmatprep.subr.bf16.mxu0 0
  %680 = vmatpush1.bf16.msra.mxu0 %v507
  %681 = vmatprep.subr.bf16.mxu0 0
  %682 = vmatpush1.bf16.msra.mxu0 %v508
  %683 = vmatprep.subr.bf16.mxu0 0
  %684 = vmatpush1.bf16.msra.mxu0 %v509
  %685 = vmatprep.subr.bf16.mxu0 0
  %686 = vmatpush1.bf16.msra.mxu0 %v510
  %687 = vmatprep.subr.bf16.mxu0 0
  %688 = vmatpush1.bf16.msra.mxu0 %v511
  %689 = vmatprep.subr.bf16.mxu0 0
  %690 = vmatpush1.bf16.msra.mxu0 %v512
  %691 = vmatprep.subr.bf16.mxu0 0
  %692 = vmatpush1.bf16.msra.mxu0 %v513
  %693 = vmatprep.subr.bf16.mxu0 0
  %694 = vmatpush1.bf16.msra.mxu0 %v514
  %695 = vmatprep.subr.bf16.mxu0 0
  %696 = vmatpush1.bf16.msra.mxu0 %v515
  %697 = vmatprep.subr.bf16.mxu0 0
  %698 = vmatpush1.bf16.msra.mxu0 %v516
  %699 = vmatprep.subr.bf16.mxu0 0
  %700 = vmatpush1.bf16.msra.mxu0 %v517
  %701 = vmatprep.subr.bf16.mxu0 0
  %702 = vmatpush1.bf16.msra.mxu0 %v518
  %703 = vmatprep.mubr.bf16.mxu0 %v184
  %704 = vmatmul.mubr.bf16.gmra.mrb[0].mxu0 %v183
  %v705 = vpop.f32.mrb[0].mxu0
  %v706 = vadd.f32 %v666, %v705
  %v707 = vpop.f32.mrb[0].mxu0
  %v708 = vpop.f32.mrb[0].mxu0
  %v709 = vpop.f32.mrb[0].mxu0
  %710 = vdwg.mxu0
  %711 = vmatprep.subr.bf16.mxu0 0
  %712 = vmatpush1.bf16.msra.mxu0 %v519
  %713 = vmatprep.subr.bf16.mxu0 0
  %714 = vmatpush1.bf16.msra.mxu0 %v520
  %715 = vmatprep.subr.bf16.mxu0 0
  %716 = vmatpush1.bf16.msra.mxu0 %v521
  %717 = vmatprep.subr.bf16.mxu0 0
  %718 = vmatpush1.bf16.msra.mxu0 %v522
  %719 = vmatprep.subr.bf16.mxu0 0
  %720 = vmatpush1.bf16.msra.mxu0 %v523
  %721 = vmatprep.subr.bf16.mxu0 0
  %722 = vmatpush1.bf16.msra.mxu0 %v524
  %723 = vmatprep.subr.bf16.mxu0 0
  %724 = vmatpush1.bf16.msra.mxu0 %v525
  %725 = vmatprep.subr.bf16.mxu0 0
  %726 = vmatpush1.bf16.msra.mxu0 %v526
  %727 = vmatprep.subr.bf16.mxu0 0
  %728 = vmatpush1.bf16.msra.mxu0 %v527
  %729 = vmatprep.subr.bf16.mxu0 0
  %730 = vmatpush1.bf16.msra.mxu0 %v528
  %731 = vmatprep.subr.bf16.mxu0 0
  %732 = vmatpush1.bf16.msra.mxu0 %v529
  %733 = vmatprep.subr.bf16.mxu0 0
  %734 = vmatpush1.bf16.msra.mxu0 %v530
  %735 = vmatprep.subr.bf16.mxu0 0
  %736 = vmatpush1.bf16.msra.mxu0 %v531
  %737 = vmatprep.subr.bf16.mxu0 0
  %738 = vmatpush1.bf16.msra.mxu0 %v532
  %739 = vmatprep.subr.bf16.mxu0 0
  %740 = vmatpush1.bf16.msra.mxu0 %v533
  %741 = vmatprep.subr.bf16.mxu0 0
  %742 = vmatpush1.bf16.msra.mxu0 %v534
  %743 = vmatprep.mubr.bf16.mxu0 %v186
  %744 = vmatmul.mubr.bf16.gmra.mrb[0].mxu0 %v185
  %v745 = vpop.f32.mrb[0].mxu0
  %v746 = vadd.f32 %v706, %v745
  %v747 = vpop.f32.mrb[0].mxu0
  %v748 = vpop.f32.mrb[0].mxu0
  %v749 = vpop.f32.mrb[0].mxu0
  %750 = vdwg.mxu0
  %751 = vmatprep.subr.bf16.mxu0 0
  %752 = vmatpush1.bf16.msra.mxu0 %v535
  %753 = vmatprep.subr.bf16.mxu0 0
  %754 = vmatpush1.bf16.msra.mxu0 %v536
  %755 = vmatprep.subr.bf16.mxu0 0
  %756 = vmatpush1.bf16.msra.mxu0 %v537
  %757 = vmatprep.subr.bf16.mxu0 0
  %758 = vmatpush1.bf16.msra.mxu0 %v538
  %759 = vmatprep.subr.bf16.mxu0 0
  %760 = vmatpush1.bf16.msra.mxu0 %v539
  %761 = vmatprep.subr.bf16.mxu0 0
  %762 = vmatpush1.bf16.msra.mxu0 %v540
  %763 = vmatprep.subr.bf16.mxu0 0
  %764 = vmatpush1.bf16.msra.mxu0 %v541
  %765 = vmatprep.subr.bf16.mxu0 0
  %766 = vmatpush1.bf16.msra.mxu0 %v542
  %767 = vmatprep.subr.bf16.mxu0 0
  %768 = vmatpush1.bf16.msra.mxu0 %v543
  %769 = vmatprep.subr.bf16.mxu0 0
  %770 = vmatpush1.bf16.msra.mxu0 %v544
  %771 = vmatprep.subr.bf16.mxu0 0
  %772 = vmatpush1.bf16.msra.mxu0 %v545
  %773 = vmatprep.subr.bf16.mxu0 0
  %774 = vmatpush1.bf16.msra.mxu0 %v546
  %775 = vmatprep.subr.bf16.mxu0 0
  %776 = vmatpush1.bf16.msra.mxu0 %v547
  %777 = vmatprep.subr.bf16.mxu0 0
  %778 = vmatpush1.bf16.msra.mxu0 %v548
  %779 = vmatprep.subr.bf16.mxu0 0
  %780 = vmatpush1.bf16.msra.mxu0 %v549
  %781 = vmatprep.subr.bf16.mxu0 0
  %782 = vmatpush1.bf16.msra.mxu0 %v550
  %783 = vmatprep.mubr.bf16.mxu0 %v188
  %784 = vmatmul.mubr.bf16.gmra.mrb[0].mxu0 %v187
  %v785 = vpop.f32.mrb[0].mxu0
  %v786 = vadd.f32 %v746, %v785
  %v787 = vpop.f32.mrb[0].mxu0
  %v788 = vpop.f32.mrb[0].mxu0
  %v789 = vpop.f32.mrb[0].mxu0
  %790 = vdwg.mxu0
  %791 = vmatprep.subr.bf16.mxu0 0
  %792 = vmatpush1.bf16.msra.mxu0 %v551
  %793 = vmatprep.subr.bf16.mxu0 0
  %794 = vmatpush1.bf16.msra.mxu0 %v552
  %795 = vmatprep.subr.bf16.mxu0 0
  %796 = vmatpush1.bf16.msra.mxu0 %v553
  %797 = vmatprep.subr.bf16.mxu0 0
  %798 = vmatpush1.bf16.msra.mxu0 %v554
  %799 = vmatprep.subr.bf16.mxu0 0
  %800 = vmatpush1.bf16.msra.mxu0 %v555
  %801 = vmatprep.subr.bf16.mxu0 0
  %802 = vmatpush1.bf16.msra.mxu0 %v556
  %803 = vmatprep.subr.bf16.mxu0 0
  %804 = vmatpush1.bf16.msra.mxu0 %v557
  %805 = vmatprep.subr.bf16.mxu0 0
  %806 = vmatpush1.bf16.msra.mxu0 %v558
  %807 = vmatprep.subr.bf16.mxu0 0
  %808 = vmatpush1.bf16.msra.mxu0 0
  %809 = vmatprep.subr.bf16.mxu0 0
  %810 = vmatpush1.bf16.msra.mxu0 0
  %811 = vmatprep.subr.bf16.mxu0 0
  %812 = vmatpush1.bf16.msra.mxu0 0
  %813 = vmatprep.subr.bf16.mxu0 0
  %814 = vmatpush1.bf16.msra.mxu0 0
  %815 = vmatprep.subr.bf16.mxu0 0
  %816 = vmatpush1.bf16.msra.mxu0 0
  %817 = vmatprep.subr.bf16.mxu0 0
  %818 = vmatpush1.bf16.msra.mxu0 0
  %819 = vmatprep.subr.bf16.mxu0 0
  %820 = vmatpush1.bf16.msra.mxu0 0
  %821 = vmatprep.subr.bf16.mxu0 0
  %822 = vmatpush1.bf16.msra.mxu0 0
  %823 = vmatprep.mubr.bf16.mxu0 0
  %824 = vmatmul.mubr.bf16.gmra.mrb[0].mxu0 %v189
  %v825 = vpop.f32.mrb[0].mxu0
  %v826 = vadd.f32 %v786, %v825
  %v827 = vpop.f32.mrb[0].mxu0
  %v828 = vpop.f32.mrb[0].mxu0
  %v829 = vpop.f32.mrb[0].mxu0
  %830 = vdwg.mxu0
  %v831 = vld [vmem:[%s2] sm:$0x1]
  %v833 = vlaneseq
  %v834 = vshrl.u32 %v833, 7
  %v835 = vsub.s32 0, %v834
  %v836 = vrot.slane %v831, %v835
  %v838 = vmul.f32 %v826, %v836
  %v839 = vld [vmem:[%s3] sm:$0x1]
  %v841 = vlaneseq
  %v842 = vshrl.u32 %v841, 7
  %v843 = vsub.s32 0, %v842
  %v844 = vrot.slane %v839, %v843
  %v846 = vadd.f32 %v838, %v844
  %v847 = vmax.f32 %v846, 0.0
  %v848 = vpack.c.bf16 %v847, %v847
  %849 = vst [vmem:[%s4] sm:$0xf] %v848
  // Predicated region
  $region18: #{_lambda_.33} parent=0 // pred_check
    _
  $region19: #{_lambda_.33} parent=0 // pred_check_branch
    %851 = sbr.rel (0) target = $region21
  $region20: #{_lambda_.33} parent=0 // pred_region
    _
  $region21: #{_lambda_.33} parent=0 // pred_fallthru
    _
  // Predicated region
  $region22: #{_lambda_.33} parent=0 // pred_check
    _
  $region23: #{_lambda_.33} parent=0 // pred_check_branch
    %853 = sbr.rel (0) target = $region25
  $region24: #{_lambda_.33} parent=0 // pred_region
    _
  $region25: #{_lambda_.33} parent=0 // pred_fallthru
    _

// kernel: _lambda_.35
$region0: #{_lambda_.35}
  #allocation0 [shape = 'u32[]', space=smem, size = 0x4, offset = 0x4, fixed_abs, tag = 'smem constant byte address 0x4 - core index']
  #allocation1 [shape = 'u32[144,128]{1,0:T(1,128)}', space=vmem, size = 0x12000, scoped, tag = 'internal scratch']
  %s0 = inlined_call_operand.vmem [shape: bf16[8,1152], index: 0, kind: input, shape index: {}]
  %s1 = inlined_call_operand.vmem [shape: bf16[1152,128], index: 1, kind: input, shape index: {}]
  %s2 = inlined_call_operand.vmem [shape: f32[1,128], index: 2, kind: input, shape index: {}]
  %s3 = inlined_call_operand.vmem [shape: f32[1,128], index: 3, kind: input, shape index: {}]
  %s4 = inlined_call_operand.vmem [shape: bf16[8,128], index: 4, kind: input, shape index: {}]
  %s5 = inlined_call_operand.vmem [shape: bf16[8,128], index: 5, kind: output, shape index: {}]
  %s6 = sld [smem:[#allocation0]]
  $region30: #{_lambda_.35} parent=0
    _
  %s8 = ssub.s32 1, %s6
  %s9 = scalar_select 0, %s8, %s6
  // Predicated region
  $region2: #{_lambda_.35} parent=0 // pred_check
    _
  $region3: #{_lambda_.35} parent=0 // pred_check_branch
    %11 = sbr.rel (0) target = $region5
  $region4: #{_lambda_.35} parent=0 // pred_region
    _
  $region5: #{_lambda_.35} parent=0 // pred_fallthru
    _
  // Predicated region
  $region6: #{_lambda_.35} parent=0 // pred_check
    _
  $region7: #{_lambda_.35} parent=0 // pred_check_branch
    %13 = sbr.rel (0) target = $region9
  $region8: #{_lambda_.35} parent=0 // pred_region
    _
  $region9: #{_lambda_.35} parent=0 // pred_fallthru
    _
  // Predicated region
  $region10: #{_lambda_.35} parent=0 // pred_check
    _
  $region11: #{_lambda_.35} parent=0 // pred_check_branch
    %15 = sbr.rel (0) target = $region13
  $region12: #{_lambda_.35} parent=0 // pred_region
    _
  $region13: #{_lambda_.35} parent=0 // pred_fallthru
    _
  // Predicated region
  $region14: #{_lambda_.35} parent=0 // pred_check
    _
  $region15: #{_lambda_.35} parent=0 // pred_check_branch
    %17 = sbr.rel (0) target = $region17
  $region16: #{_lambda_.35} parent=0 // pred_region
    _
  $region17: #{_lambda_.35} parent=0 // pred_fallthru
    _
  // Predicated region
  $region18: #{_lambda_.35} parent=0 // pred_check
    _
  $region19: #{_lambda_.35} parent=0 // pred_check_branch
    %19 = sbr.rel (0) target = $region21
  $region20: #{_lambda_.35} parent=0 // pred_region
    _
  $region21: #{_lambda_.35} parent=0 // pred_fallthru
    _
  %v21 = vld [vmem:[%s0] sm:$0xff]
  %v22 = vld [vmem:[%s0 + $0x8] sm:$0xff]
  %v23 = vld [vmem:[%s0 + $0x10] sm:$0xff]
  %v24 = vld [vmem:[%s0 + $0x18] sm:$0xff]
  %v25 = vld [vmem:[%s0 + $0x20] sm:$0xf]
  %v26 = vld [vmem:[%s1] sm:$0xf]
  %v27 = vld [vmem:[%s1 + $0x4] sm:$0xf]
  %v28 = vld [vmem:[%s1 + $0x8] sm:$0xf]
  %v29 = vld [vmem:[%s1 + $0xc] sm:$0xf]
  %v30 = vld [vmem:[%s1 + $0x10] sm:$0xf]
  %v31 = vld [vmem:[%s1 + $0x14] sm:$0xf]
  %v32 = vld [vmem:[%s1 + $0x18] sm:$0xf]
  %v33 = vld [vmem:[%s1 + $0x1c] sm:$0xf]
  %v34 = vld [vmem:[%s1 + $0x20] sm:$0xf]
  %v35 = vld [vmem:[%s1 + $0x24] sm:$0xf]
  %v36 = vld [vmem:[%s1 + $0x28] sm:$0xf]
  %v37 = vld [vmem:[%s1 + $0x2c] sm:$0xf]
  %v38 = vld [vmem:[%s1 + $0x30] sm:$0xf]
  %v39 = vld [vmem:[%s1 + $0x34] sm:$0xf]
  %v40 = vld [vmem:[%s1 + $0x38] sm:$0xf]
  %v41 = vld [vmem:[%s1 + $0x3c] sm:$0xf]
  %v42 = vld [vmem:[%s1 + $0x40] sm:$0xf]
  %v43 = vld [vmem:[%s1 + $0x44] sm:$0xf]
  %v44 = vld [vmem:[%s1 + $0x48] sm:$0xf]
  %v45 = vld [vmem:[%s1 + $0x4c] sm:$0xf]
  %v46 = vld [vmem:[%s1 + $0x50] sm:$0xf]
  %v47 = vld [vmem:[%s1 + $0x54] sm:$0xf]
  %v48 = vld [vmem:[%s1 + $0x58] sm:$0xf]
  %v49 = vld [vmem:[%s1 + $0x5c] sm:$0xf]
  %v50 = vld [vmem:[%s1 + $0x60] sm:$0xf]
  %v51 = vld [vmem:[%s1 + $0x64] sm:$0xf]
  %v52 = vld [vmem:[%s1 + $0x68] sm:$0xf]
  %v53 = vld [vmem:[%s1 + $0x6c] sm:$0xf]
  %v54 = vld [vmem:[%s1 + $0x70] sm:$0xf]
  %v55 = vld [vmem:[%s1 + $0x74] sm:$0xf]
  %v56 = vld [vmem:[%s1 + $0x78] sm:$0xf]
  %v57 = vld [vmem:[%s1 + $0x7c] sm:$0xf]
  %v58 = vld [vmem:[%s1 + $0x80] sm:$0xf]
  %v59 = vld [vmem:[%s1 + $0x84] sm:$0xf]
  %v60 = vld [vmem:[%s1 + $0x88] sm:$0xf]
  %v61 = vld [vmem:[%s1 + $0x8c] sm:$0xf]
  %v62 = vld [vmem:[%s1 + $0x90] sm:$0xf]
  %v63 = vld [vmem:[%s1 + $0x94] sm:$0xf]
  %v64 = vld [vmem:[%s1 + $0x98] sm:$0xf]
  %v65 = vld [vmem:[%s1 + $0x9c] sm:$0xf]
  %v66 = vld [vmem:[%s1 + $0xa0] sm:$0xf]
  %v67 = vld [vmem:[%s1 + $0xa4] sm:$0xf]
  %v68 = vld [vmem:[%s1 + $0xa8] sm:$0xf]
  %v69 = vld [vmem:[%s1 + $0xac] sm:$0xf]
  %v70 = vld [vmem:[%s1 + $0xb0] sm:$0xf]
  %v71 = vld [vmem:[%s1 + $0xb4] sm:$0xf]
  %v72 = vld [vmem:[%s1 + $0xb8] sm:$0xf]
  %v73 = vld [vmem:[%s1 + $0xbc] sm:$0xf]
  %v74 = vld [vmem:[%s1 + $0xc0] sm:$0xf]
  %v75 = vld [vmem:[%s1 + $0xc4] sm:$0xf]
  %v76 = vld [vmem:[%s1 + $0xc8] sm:$0xf]
  %v77 = vld [vmem:[%s1 + $0xcc] sm:$0xf]
  %v78 = vld [vmem:[%s1 + $0xd0] sm:$0xf]
  %v79 = vld [vmem:[%s1 + $0xd4] sm:$0xf]
  %v80 = vld [vmem:[%s1 + $0xd8] sm:$0xf]
  %v81 = vld [vmem:[%s1 + $0xdc] sm:$0xf]
  %v82 = vld [vmem:[%s1 + $0xe0] sm:$0xf]
  %v83 = vld [vmem:[%s1 + $0xe4] sm:$0xf]
  %v84 = vld [vmem:[%s1 + $0xe8] sm:$0xf]
  %v85 = vld [vmem:[%s1 + $0xec] sm:$0xf]
  %v86 = vld [vmem:[%s1 + $0xf0] sm:$0xf]
  %v87 = vld [vmem:[%s1 + $0xf4] sm:$0xf]
  %v88 = vld [vmem:[%s1 + $0xf8] sm:$0xf]
  %v89 = vld [vmem:[%s1 + $0xfc] sm:$0xf]
  %v90 = vld [vmem:[%s1 + $0x100] sm:$0xf]
  %v91 = vld [vmem:[%s1 + $0x104] sm:$0xf]
  %v92 = vld [vmem:[%s1 + $0x108] sm:$0xf]
  %v93 = vld [vmem:[%s1 + $0x10c] sm:$0xf]
  %v94 = vld [vmem:[%s1 + $0x110] sm:$0xf]
  %v95 = vld [vmem:[%s1 + $0x114] sm:$0xf]
  %v96 = vld [vmem:[%s1 + $0x118] sm:$0xf]
  %v97 = vld [vmem:[%s1 + $0x11c] sm:$0xf]
  %v98 = vld [vmem:[%s1 + $0x120] sm:$0xf]
  %v99 = vld [vmem:[%s1 + $0x124] sm:$0xf]
  %v100 = vld [vmem:[%s1 + $0x128] sm:$0xf]
  %v101 = vld [vmem:[%s1 + $0x12c] sm:$0xf]
  %v102 = vld [vmem:[%s1 + $0x130] sm:$0xf]
  %v103 = vld [vmem:[%s1 + $0x134] sm:$0xf]
  %v104 = vld [vmem:[%s1 + $0x138] sm:$0xf]
  %v105 = vld [vmem:[%s1 + $0x13c] sm:$0xf]
  %v106 = vld [vmem:[%s1 + $0x140] sm:$0xf]
  %v107 = vld [vmem:[%s1 + $0x144] sm:$0xf]
  %v108 = vld [vmem:[%s1 + $0x148] sm:$0xf]
  %v109 = vld [vmem:[%s1 + $0x14c] sm:$0xf]
  %v110 = vld [vmem:[%s1 + $0x150] sm:$0xf]
  %v111 = vld [vmem:[%s1 + $0x154] sm:$0xf]
  %v112 = vld [vmem:[%s1 + $0x158] sm:$0xf]
  %v113 = vld [vmem:[%s1 + $0x15c] sm:$0xf]
  %v114 = vld [vmem:[%s1 + $0x160] sm:$0xf]
  %v115 = vld [vmem:[%s1 + $0x164] sm:$0xf]
  %v116 = vld [vmem:[%s1 + $0x168] sm:$0xf]
  %v117 = vld [vmem:[%s1 + $0x16c] sm:$0xf]
  %v118 = vld [vmem:[%s1 + $0x170] sm:$0xf]
  %v119 = vld [vmem:[%s1 + $0x174] sm:$0xf]
  %v120 = vld [vmem:[%s1 + $0x178] sm:$0xf]
  %v121 = vld [vmem:[%s1 + $0x17c] sm:$0xf]
  %v122 = vld [vmem:[%s1 + $0x180] sm:$0xf]
  %v123 = vld [vmem:[%s1 + $0x184] sm:$0xf]
  %v124 = vld [vmem:[%s1 + $0x188] sm:$0xf]
  %v125 = vld [vmem:[%s1 + $0x18c] sm:$0xf]
  %v126 = vld [vmem:[%s1 + $0x190] sm:$0xf]
  %v127 = vld [vmem:[%s1 + $0x194] sm:$0xf]
  %v128 = vld [vmem:[%s1 + $0x198] sm:$0xf]
  %v129 = vld [vmem:[%s1 + $0x19c] sm:$0xf]
  %v130 = vld [vmem:[%s1 + $0x1a0] sm:$0xf]
  %v131 = vld [vmem:[%s1 + $0x1a4] sm:$0xf]
  %v132 = vld [vmem:[%s1 + $0x1a8] sm:$0xf]
  %v133 = vld [vmem:[%s1 + $0x1ac] sm:$0xf]
  %v134 = vld [vmem:[%s1 + $0x1b0] sm:$0xf]
  %v135 = vld [vmem:[%s1 + $0x1b4] sm:$0xf]
  %v136 = vld [vmem:[%s1 + $0x1b8] sm:$0xf]
  %v137 = vld [vmem:[%s1 + $0x1bc] sm:$0xf]
  %v138 = vld [vmem:[%s1 + $0x1c0] sm:$0xf]
  %v139 = vld [vmem:[%s1 + $0x1c4] sm:$0xf]
  %v140 = vld [vmem:[%s1 + $0x1c8] sm:$0xf]
  %v141 = vld [vmem:[%s1 + $0x1cc] sm:$0xf]
  %v142 = vld [vmem:[%s1 + $0x1d0] sm:$0xf]
  %v143 = vld [vmem:[%s1 + $0x1d4] sm:$0xf]
  %v144 = vld [vmem:[%s1 + $0x1d8] sm:$0xf]
  %v145 = vld [vmem:[%s1 + $0x1dc] sm:$0xf]
  %v146 = vld [vmem:[%s1 + $0x1e0] sm:$0xf]
  %v147 = vld [vmem:[%s1 + $0x1e4] sm:$0xf]
  %v148 = vld [vmem:[%s1 + $0x1e8] sm:$0xf]
  %v149 = vld [vmem:[%s1 + $0x1ec] sm:$0xf]
  %v150 = vld [vmem:[%s1 + $0x1f0] sm:$0xf]
  %v151 = vld [vmem:[%s1 + $0x1f4] sm:$0xf]
  %v152 = vld [vmem:[%s1 + $0x1f8] sm:$0xf]
  %v153 = vld [vmem:[%s1 + $0x1fc] sm:$0xf]
  %v154 = vld [vmem:[%s1 + $0x200] sm:$0xf]
  %v155 = vld [vmem:[%s1 + $0x204] sm:$0xf]
  %v156 = vld [vmem:[%s1 + $0x208] sm:$0xf]
  %v157 = vld [vmem:[%s1 + $0x20c] sm:$0xf]
  %v158 = vld [vmem:[%s1 + $0x210] sm:$0xf]
  %v159 = vld [vmem:[%s1 + $0x214] sm:$0xf]
  %v160 = vld [vmem:[%s1 + $0x218] sm:$0xf]
  %v161 = vld [vmem:[%s1 + $0x21c] sm:$0xf]
  %v162 = vld [vmem:[%s1 + $0x220] sm:$0xf]
  %v163 = vld [vmem:[%s1 + $0x224] sm:$0xf]
  %v164 = vld [vmem:[%s1 + $0x228] sm:$0xf]
  %v165 = vld [vmem:[%s1 + $0x22c] sm:$0xf]
  %v166 = vld [vmem:[%s1 + $0x230] sm:$0xf]
  %v167 = vld [vmem:[%s1 + $0x234] sm:$0xf]
  %v168 = vld [vmem:[%s1 + $0x238] sm:$0xf]
  %v169 = vld [vmem:[%s1 + $0x23c] sm:$0xf]
  %v175 = vunpack.c.l.b16 %v21
  %v176 = vunpack.c.h.b16 %v21
  %v177 = vunpack.c.l.b16 %v22
  %v178 = vunpack.c.h.b16 %v22
  %v179 = vunpack.c.l.b16 %v23
  %v180 = vunpack.c.h.b16 %v23
  %v181 = vunpack.c.l.b16 %v24
  %v182 = vunpack.c.h.b16 %v24
  %v183 = vunpack.c.l.b16 %v25
  %v184 = vpack.c.b16 %v175, %v175
  %v185 = vpack.c.b16 %v176, %v176
  %v186 = vpack.c.b16 %v177, %v177
  %v187 = vpack.c.b16 %v178, %v178
  %v188 = vpack.c.b16 %v179, %v179
  %v189 = vpack.c.b16 %v180, %v180
  %v190 = vpack.c.b16 %v181, %v181
  %v191 = vpack.c.b16 %v182, %v182
  %v192 = vpack.c.b16 %v183, %v183
  %v346 = vunpack.c.l.b16 %v26
  %v347 = vunpack.c.l.b16 %v27
  %v348 = vunpack.c.l.b16 %v28
  %v349 = vunpack.c.l.b16 %v29
  %v350 = vunpack.c.l.b16 %v30
  %v351 = vunpack.c.l.b16 %v31
  %v352 = vunpack.c.l.b16 %v32
  %v353 = vunpack.c.l.b16 %v33
  %v354 = vunpack.c.l.b16 %v34
  %v355 = vunpack.c.l.b16 %v35
  %v356 = vunpack.c.l.b16 %v36
  %v357 = vunpack.c.l.b16 %v37
  %v358 = vunpack.c.l.b16 %v38
  %v359 = vunpack.c.l.b16 %v39
  %v360 = vunpack.c.l.b16 %v40
  %v361 = vunpack.c.l.b16 %v41
  %v362 = vunpack.c.l.b16 %v42
  %v363 = vunpack.c.l.b16 %v43
  %v364 = vunpack.c.l.b16 %v44
  %v365 = vunpack.c.l.b16 %v45
  %v366 = vunpack.c.l.b16 %v46
  %v367 = vunpack.c.l.b16 %v47
  %v368 = vunpack.c.l.b16 %v48
  %v369 = vunpack.c.l.b16 %v49
  %v370 = vunpack.c.l.b16 %v50
  %v371 = vunpack.c.l.b16 %v51
  %v372 = vunpack.c.l.b16 %v52
  %v373 = vunpack.c.l.b16 %v53
  %v374 = vunpack.c.l.b16 %v54
  %v375 = vunpack.c.l.b16 %v55
  %v376 = vunpack.c.l.b16 %v56
  %v377 = vunpack.c.l.b16 %v57
  %v378 = vunpack.c.l.b16 %v58
  %v379 = vunpack.c.l.b16 %v59
  %v380 = vunpack.c.l.b16 %v60
  %v381 = vunpack.c.l.b16 %v61
  %v382 = vunpack.c.l.b16 %v62
  %v383 = vunpack.c.l.b16 %v63
  %v384 = vunpack.c.l.b16 %v64
  %v385 = vunpack.c.l.b16 %v65
  %v386 = vunpack.c.l.b16 %v66
  %v387 = vunpack.c.l.b16 %v67
  %v388 = vunpack.c.l.b16 %v68
  %v389 = vunpack.c.l.b16 %v69
  %v390 = vunpack.c.l.b16 %v70
  %v391 = vunpack.c.l.b16 %v71
  %v392 = vunpack.c.l.b16 %v72
  %v393 = vunpack.c.l.b16 %v73
  %v394 = vunpack.c.l.b16 %v74
  %v395 = vunpack.c.l.b16 %v75
  %v396 = vunpack.c.l.b16 %v76
  %v397 = vunpack.c.l.b16 %v77
  %v398 = vunpack.c.l.b16 %v78
  %v399 = vunpack.c.l.b16 %v79
  %v400 = vunpack.c.l.b16 %v80
  %v401 = vunpack.c.l.b16 %v81
  %v402 = vunpack.c.l.b16 %v82
  %v403 = vunpack.c.l.b16 %v83
  %v404 = vunpack.c.l.b16 %v84
  %v405 = vunpack.c.l.b16 %v85
  %v406 = vunpack.c.l.b16 %v86
  %v407 = vunpack.c.l.b16 %v87
  %v408 = vunpack.c.l.b16 %v88
  %v409 = vunpack.c.l.b16 %v89
  %v410 = vunpack.c.l.b16 %v90
  %v411 = vunpack.c.l.b16 %v91
  %v412 = vunpack.c.l.b16 %v92
  %v413 = vunpack.c.l.b16 %v93
  %v414 = vunpack.c.l.b16 %v94
  %v415 = vunpack.c.l.b16 %v95
  %v416 = vunpack.c.l.b16 %v96
  %v417 = vunpack.c.l.b16 %v97
  %v418 = vunpack.c.l.b16 %v98
  %v419 = vunpack.c.l.b16 %v99
  %v420 = vunpack.c.l.b16 %v100
  %v421 = vunpack.c.l.b16 %v101
  %v422 = vunpack.c.l.b16 %v102
  %v423 = vunpack.c.l.b16 %v103
  %v424 = vunpack.c.l.b16 %v104
  %v425 = vunpack.c.l.b16 %v105
  %v426 = vunpack.c.l.b16 %v106
  %v427 = vunpack.c.l.b16 %v107
  %v428 = vunpack.c.l.b16 %v108
  %v429 = vunpack.c.l.b16 %v109
  %v430 = vunpack.c.l.b16 %v110
  %v431 = vunpack.c.l.b16 %v111
  %v432 = vunpack.c.l.b16 %v112
  %v433 = vunpack.c.l.b16 %v113
  %v434 = vunpack.c.l.b16 %v114
  %v435 = vunpack.c.l.b16 %v115
  %v436 = vunpack.c.l.b16 %v116
  %v437 = vunpack.c.l.b16 %v117
  %v438 = vunpack.c.l.b16 %v118
  %v439 = vunpack.c.l.b16 %v119
  %v440 = vunpack.c.l.b16 %v120
  %v441 = vunpack.c.l.b16 %v121
  %v442 = vunpack.c.l.b16 %v122
  %v443 = vunpack.c.l.b16 %v123
  %v444 = vunpack.c.l.b16 %v124
  %v445 = vunpack.c.l.b16 %v125
  %v446 = vunpack.c.l.b16 %v126
  %v447 = vunpack.c.l.b16 %v127
  %v448 = vunpack.c.l.b16 %v128
  %v449 = vunpack.c.l.b16 %v129
  %v450 = vunpack.c.l.b16 %v130
  %v451 = vunpack.c.l.b16 %v131
  %v452 = vunpack.c.l.b16 %v132
  %v453 = vunpack.c.l.b16 %v133
  %v454 = vunpack.c.l.b16 %v134
  %v455 = vunpack.c.l.b16 %v135
  %v456 = vunpack.c.l.b16 %v136
  %v457 = vunpack.c.l.b16 %v137
  %v458 = vunpack.c.l.b16 %v138
  %v459 = vunpack.c.l.b16 %v139
  %v460 = vunpack.c.l.b16 %v140
  %v461 = vunpack.c.l.b16 %v141
  %v462 = vunpack.c.l.b16 %v142
  %v463 = vunpack.c.l.b16 %v143
  %v464 = vunpack.c.l.b16 %v144
  %v465 = vunpack.c.l.b16 %v145
  %v466 = vunpack.c.l.b16 %v146
  %v467 = vunpack.c.l.b16 %v147
  %v468 = vunpack.c.l.b16 %v148
  %v469 = vunpack.c.l.b16 %v149
  %v470 = vunpack.c.l.b16 %v150
  %v471 = vunpack.c.l.b16 %v151
  %v472 = vunpack.c.l.b16 %v152
  %v473 = vunpack.c.l.b16 %v153
  %v474 = vunpack.c.l.b16 %v154
  %v475 = vunpack.c.l.b16 %v155
  %v476 = vunpack.c.l.b16 %v156
  %v477 = vunpack.c.l.b16 %v157
  %v478 = vunpack.c.l.b16 %v158
  %v479 = vunpack.c.l.b16 %v159
  %v480 = vunpack.c.l.b16 %v160
  %v481 = vunpack.c.l.b16 %v161
  %v482 = vunpack.c.l.b16 %v162
  %v483 = vunpack.c.l.b16 %v163
  %v484 = vunpack.c.l.b16 %v164
  %v485 = vunpack.c.l.b16 %v165
  %v486 = vunpack.c.l.b16 %v166
  %v487 = vunpack.c.l.b16 %v167
  %v488 = vunpack.c.l.b16 %v168
  %v489 = vunpack.c.l.b16 %v169
  %v490 = vpack.c.b16 %v347, %v346
  %v491 = vpack.c.b16 %v349, %v348
  %v492 = vpack.c.b16 %v351, %v350
  %v493 = vpack.c.b16 %v353, %v352
  %v494 = vpack.c.b16 %v355, %v354
  %v495 = vpack.c.b16 %v357, %v356
  %v496 = vpack.c.b16 %v359, %v358
  %v497 = vpack.c.b16 %v361, %v360
  %v498 = vpack.c.b16 %v363, %v362
  %v499 = vpack.c.b16 %v365, %v364
  %v500 = vpack.c.b16 %v367, %v366
  %v501 = vpack.c.b16 %v369, %v368
  %v502 = vpack.c.b16 %v371, %v370
  %v503 = vpack.c.b16 %v373, %v372
  %v504 = vpack.c.b16 %v375, %v374
  %v505 = vpack.c.b16 %v377, %v376
  %v506 = vpack.c.b16 %v379, %v378
  %v507 = vpack.c.b16 %v381, %v380
  %v508 = vpack.c.b16 %v383, %v382
  %v509 = vpack.c.b16 %v385, %v384
  %v510 = vpack.c.b16 %v387, %v386
  %v511 = vpack.c.b16 %v389, %v388
  %v512 = vpack.c.b16 %v391, %v390
  %v513 = vpack.c.b16 %v393, %v392
  %v514 = vpack.c.b16 %v395, %v394
  %v515 = vpack.c.b16 %v397, %v396
  %v516 = vpack.c.b16 %v399, %v398
  %v517 = vpack.c.b16 %v401, %v400
  %v518 = vpack.c.b16 %v403, %v402
  %v519 = vpack.c.b16 %v405, %v404
  %v520 = vpack.c.b16 %v407, %v406
  %v521 = vpack.c.b16 %v409, %v408
  %v522 = vpack.c.b16 %v411, %v410
  %v523 = vpack.c.b16 %v413, %v412
  %v524 = vpack.c.b16 %v415, %v414
  %v525 = vpack.c.b16 %v417, %v416
  %v526 = vpack.c.b16 %v419, %v418
  %v527 = vpack.c.b16 %v421, %v420
  %v528 = vpack.c.b16 %v423, %v422
  %v529 = vpack.c.b16 %v425, %v424
  %v530 = vpack.c.b16 %v427, %v426
  %v531 = vpack.c.b16 %v429, %v428
  %v532 = vpack.c.b16 %v431, %v430
  %v533 = vpack.c.b16 %v433, %v432
  %v534 = vpack.c.b16 %v435, %v434
  %v535 = vpack.c.b16 %v437, %v436
  %v536 = vpack.c.b16 %v439, %v438
  %v537 = vpack.c.b16 %v441, %v440
  %v538 = vpack.c.b16 %v443, %v442
  %v539 = vpack.c.b16 %v445, %v444
  %v540 = vpack.c.b16 %v447, %v446
  %v541 = vpack.c.b16 %v449, %v448
  %v542 = vpack.c.b16 %v451, %v450
  %v543 = vpack.c.b16 %v453, %v452
  %v544 = vpack.c.b16 %v455, %v454
  %v545 = vpack.c.b16 %v457, %v456
  %v546 = vpack.c.b16 %v459, %v458
  %v547 = vpack.c.b16 %v461, %v460
  %v548 = vpack.c.b16 %v463, %v462
  %v549 = vpack.c.b16 %v465, %v464
  %v550 = vpack.c.b16 %v467, %v466
  %v551 = vpack.c.b16 %v469, %v468
  %v552 = vpack.c.b16 %v471, %v470
  %v553 = vpack.c.b16 %v473, %v472
  %v554 = vpack.c.b16 %v475, %v474
  %v555 = vpack.c.b16 %v477, %v476
  %v556 = vpack.c.b16 %v479, %v478
  %v557 = vpack.c.b16 %v481, %v480
  %v558 = vpack.c.b16 %v483, %v482
  %v559 = vpack.c.b16 %v485, %v484
  %v560 = vpack.c.b16 %v487, %v486
  %v561 = vpack.c.b16 %v489, %v488
  %634 = vmatprep.subr.bf16.mxu0 0
  %635 = vmatpush1.bf16.msra.mxu0 %v490
  %636 = vmatprep.subr.bf16.mxu0 0
  %637 = vmatpush1.bf16.msra.mxu0 %v491
  %638 = vmatprep.subr.bf16.mxu0 0
  %639 = vmatpush1.bf16.msra.mxu0 %v492
  %640 = vmatprep.subr.bf16.mxu0 0
  %641 = vmatpush1.bf16.msra.mxu0 %v493
  %642 = vmatprep.subr.bf16.mxu0 0
  %643 = vmatpush1.bf16.msra.mxu0 %v494
  %644 = vmatprep.subr.bf16.mxu0 0
  %645 = vmatpush1.bf16.msra.mxu0 %v495
  %646 = vmatprep.subr.bf16.mxu0 0
  %647 = vmatpush1.bf16.msra.mxu0 %v496
  %648 = vmatprep.subr.bf16.mxu0 0
  %649 = vmatpush1.bf16.msra.mxu0 %v497
  %650 = vmatprep.subr.bf16.mxu0 0
  %651 = vmatpush1.bf16.msra.mxu0 %v498
  %652 = vmatprep.subr.bf16.mxu0 0
  %653 = vmatpush1.bf16.msra.mxu0 %v499
  %654 = vmatprep.subr.bf16.mxu0 0
  %655 = vmatpush1.bf16.msra.mxu0 %v500
  %656 = vmatprep.subr.bf16.mxu0 0
  %657 = vmatpush1.bf16.msra.mxu0 %v501
  %658 = vmatprep.subr.bf16.mxu0 0
  %659 = vmatpush1.bf16.msra.mxu0 %v502
  %660 = vmatprep.subr.bf16.mxu0 0
  %661 = vmatpush1.bf16.msra.mxu0 %v503
  %662 = vmatprep.subr.bf16.mxu0 0
  %663 = vmatpush1.bf16.msra.mxu0 %v504
  %664 = vmatprep.subr.bf16.mxu0 0
  %665 = vmatpush1.bf16.msra.mxu0 %v505
  %666 = vmatprep.mubr.bf16.mxu0 %v185
  %667 = vmatmul.mubr.bf16.gmra.mrb[0].mxu0 %v184
  %v668 = vpop.f32.mrb[0].mxu0
  %v669 = vadd.f32 0.0, %v668
  %v670 = vpop.f32.mrb[0].mxu0
  %v671 = vpop.f32.mrb[0].mxu0
  %v672 = vpop.f32.mrb[0].mxu0
  %673 = vdwg.mxu0
  %674 = vmatprep.subr.bf16.mxu0 0
  %675 = vmatpush1.bf16.msra.mxu0 %v506
  %676 = vmatprep.subr.bf16.mxu0 0
  %677 = vmatpush1.bf16.msra.mxu0 %v507
  %678 = vmatprep.subr.bf16.mxu0 0
  %679 = vmatpush1.bf16.msra.mxu0 %v508
  %680 = vmatprep.subr.bf16.mxu0 0
  %681 = vmatpush1.bf16.msra.mxu0 %v509
  %682 = vmatprep.subr.bf16.mxu0 0
  %683 = vmatpush1.bf16.msra.mxu0 %v510
  %684 = vmatprep.subr.bf16.mxu0 0
  %685 = vmatpush1.bf16.msra.mxu0 %v511
  %686 = vmatprep.subr.bf16.mxu0 0
  %687 = vmatpush1.bf16.msra.mxu0 %v512
  %688 = vmatprep.subr.bf16.mxu0 0
  %689 = vmatpush1.bf16.msra.mxu0 %v513
  %690 = vmatprep.subr.bf16.mxu0 0
  %691 = vmatpush1.bf16.msra.mxu0 %v514
  %692 = vmatprep.subr.bf16.mxu0 0
  %693 = vmatpush1.bf16.msra.mxu0 %v515
  %694 = vmatprep.subr.bf16.mxu0 0
  %695 = vmatpush1.bf16.msra.mxu0 %v516
  %696 = vmatprep.subr.bf16.mxu0 0
  %697 = vmatpush1.bf16.msra.mxu0 %v517
  %698 = vmatprep.subr.bf16.mxu0 0
  %699 = vmatpush1.bf16.msra.mxu0 %v518
  %700 = vmatprep.subr.bf16.mxu0 0
  %701 = vmatpush1.bf16.msra.mxu0 %v519
  %702 = vmatprep.subr.bf16.mxu0 0
  %703 = vmatpush1.bf16.msra.mxu0 %v520
  %704 = vmatprep.subr.bf16.mxu0 0
  %705 = vmatpush1.bf16.msra.mxu0 %v521
  %706 = vmatprep.mubr.bf16.mxu0 %v187
  %707 = vmatmul.mubr.bf16.gmra.mrb[0].mxu0 %v186
  %v708 = vpop.f32.mrb[0].mxu0
  %v709 = vadd.f32 %v669, %v708
  %v710 = vpop.f32.mrb[0].mxu0
  %v711 = vpop.f32.mrb[0].mxu0
  %v712 = vpop.f32.mrb[0].mxu0
  %713 = vdwg.mxu0
  %714 = vmatprep.subr.bf16.mxu0 0
  %715 = vmatpush1.bf16.msra.mxu0 %v522
  %716 = vmatprep.subr.bf16.mxu0 0
  %717 = vmatpush1.bf16.msra.mxu0 %v523
  %718 = vmatprep.subr.bf16.mxu0 0
  %719 = vmatpush1.bf16.msra.mxu0 %v524
  %720 = vmatprep.subr.bf16.mxu0 0
  %721 = vmatpush1.bf16.msra.mxu0 %v525
  %722 = vmatprep.subr.bf16.mxu0 0
  %723 = vmatpush1.bf16.msra.mxu0 %v526
  %724 = vmatprep.subr.bf16.mxu0 0
  %725 = vmatpush1.bf16.msra.mxu0 %v527
  %726 = vmatprep.subr.bf16.mxu0 0
  %727 = vmatpush1.bf16.msra.mxu0 %v528
  %728 = vmatprep.subr.bf16.mxu0 0
  %729 = vmatpush1.bf16.msra.mxu0 %v529
  %730 = vmatprep.subr.bf16.mxu0 0
  %731 = vmatpush1.bf16.msra.mxu0 %v530
  %732 = vmatprep.subr.bf16.mxu0 0
  %733 = vmatpush1.bf16.msra.mxu0 %v531
  %734 = vmatprep.subr.bf16.mxu0 0
  %735 = vmatpush1.bf16.msra.mxu0 %v532
  %736 = vmatprep.subr.bf16.mxu0 0
  %737 = vmatpush1.bf16.msra.mxu0 %v533
  %738 = vmatprep.subr.bf16.mxu0 0
  %739 = vmatpush1.bf16.msra.mxu0 %v534
  %740 = vmatprep.subr.bf16.mxu0 0
  %741 = vmatpush1.bf16.msra.mxu0 %v535
  %742 = vmatprep.subr.bf16.mxu0 0
  %743 = vmatpush1.bf16.msra.mxu0 %v536
  %744 = vmatprep.subr.bf16.mxu0 0
  %745 = vmatpush1.bf16.msra.mxu0 %v537
  %746 = vmatprep.mubr.bf16.mxu0 %v189
  %747 = vmatmul.mubr.bf16.gmra.mrb[0].mxu0 %v188
  %v748 = vpop.f32.mrb[0].mxu0
  %v749 = vadd.f32 %v709, %v748
  %v750 = vpop.f32.mrb[0].mxu0
  %v751 = vpop.f32.mrb[0].mxu0
  %v752 = vpop.f32.mrb[0].mxu0
  %753 = vdwg.mxu0
  %754 = vmatprep.subr.bf16.mxu0 0
  %755 = vmatpush1.bf16.msra.mxu0 %v538
  %756 = vmatprep.subr.bf16.mxu0 0
  %757 = vmatpush1.bf16.msra.mxu0 %v539
  %758 = vmatprep.subr.bf16.mxu0 0
  %759 = vmatpush1.bf16.msra.mxu0 %v540
  %760 = vmatprep.subr.bf16.mxu0 0
  %761 = vmatpush1.bf16.msra.mxu0 %v541
  %762 = vmatprep.subr.bf16.mxu0 0
  %763 = vmatpush1.bf16.msra.mxu0 %v542
  %764 = vmatprep.subr.bf16.mxu0 0
  %765 = vmatpush1.bf16.msra.mxu0 %v543
  %766 = vmatprep.subr.bf16.mxu0 0
  %767 = vmatpush1.bf16.msra.mxu0 %v544
  %768 = vmatprep.subr.bf16.mxu0 0
  %769 = vmatpush1.bf16.msra.mxu0 %v545
  %770 = vmatprep.subr.bf16.mxu0 0
  %771 = vmatpush1.bf16.msra.mxu0 %v546
  %772 = vmatprep.subr.bf16.mxu0 0
  %773 = vmatpush1.bf16.msra.mxu0 %v547
  %774 = vmatprep.subr.bf16.mxu0 0
  %775 = vmatpush1.bf16.msra.mxu0 %v548
  %776 = vmatprep.subr.bf16.mxu0 0
  %777 = vmatpush1.bf16.msra.mxu0 %v549
  %778 = vmatprep.subr.bf16.mxu0 0
  %779 = vmatpush1.bf16.msra.mxu0 %v550
  %780 = vmatprep.subr.bf16.mxu0 0
  %781 = vmatpush1.bf16.msra.mxu0 %v551
  %782 = vmatprep.subr.bf16.mxu0 0
  %783 = vmatpush1.bf16.msra.mxu0 %v552
  %784 = vmatprep.subr.bf16.mxu0 0
  %785 = vmatpush1.bf16.msra.mxu0 %v553
  %786 = vmatprep.mubr.bf16.mxu0 %v191
  %787 = vmatmul.mubr.bf16.gmra.mrb[0].mxu0 %v190
  %v788 = vpop.f32.mrb[0].mxu0
  %v789 = vadd.f32 %v749, %v788
  %v790 = vpop.f32.mrb[0].mxu0
  %v791 = vpop.f32.mrb[0].mxu0
  %v792 = vpop.f32.mrb[0].mxu0
  %793 = vdwg.mxu0
  %794 = vmatprep.subr.bf16.mxu0 0
  %795 = vmatpush1.bf16.msra.mxu0 %v554
  %796 = vmatprep.subr.bf16.mxu0 0
  %797 = vmatpush1.bf16.msra.mxu0 %v555
  %798 = vmatprep.subr.bf16.mxu0 0
  %799 = vmatpush1.bf16.msra.mxu0 %v556
  %800 = vmatprep.subr.bf16.mxu0 0
  %801 = vmatpush1.bf16.msra.mxu0 %v557
  %802 = vmatprep.subr.bf16.mxu0 0
  %803 = vmatpush1.bf16.msra.mxu0 %v558
  %804 = vmatprep.subr.bf16.mxu0 0
  %805 = vmatpush1.bf16.msra.mxu0 %v559
  %806 = vmatprep.subr.bf16.mxu0 0
  %807 = vmatpush1.bf16.msra.mxu0 %v560
  %808 = vmatprep.subr.bf16.mxu0 0
  %809 = vmatpush1.bf16.msra.mxu0 %v561
  %810 = vmatprep.subr.bf16.mxu0 0
  %811 = vmatpush1.bf16.msra.mxu0 0
  %812 = vmatprep.subr.bf16.mxu0 0
  %813 = vmatpush1.bf16.msra.mxu0 0
  %814 = vmatprep.subr.bf16.mxu0 0
  %815 = vmatpush1.bf16.msra.mxu0 0
  %816 = vmatprep.subr.bf16.mxu0 0
  %817 = vmatpush1.bf16.msra.mxu0 0
  %818 = vmatprep.subr.bf16.mxu0 0
  %819 = vmatpush1.bf16.msra.mxu0 0
  %820 = vmatprep.subr.bf16.mxu0 0
  %821 = vmatpush1.bf16.msra.mxu0 0
  %822 = vmatprep.subr.bf16.mxu0 0
  %823 = vmatpush1.bf16.msra.mxu0 0
  %824 = vmatprep.subr.bf16.mxu0 0
  %825 = vmatpush1.bf16.msra.mxu0 0
  %826 = vmatprep.mubr.bf16.mxu0 0
  %827 = vmatmul.mubr.bf16.gmra.mrb[0].mxu0 %v192
  %v828 = vpop.f32.mrb[0].mxu0
  %v829 = vadd.f32 %v789, %v828
  %v830 = vpop.f32.mrb[0].mxu0
  %v831 = vpop.f32.mrb[0].mxu0
  %v832 = vpop.f32.mrb[0].mxu0
  %833 = vdwg.mxu0
  %v834 = vld [vmem:[%s2] sm:$0x1]
  %v836 = vlaneseq
  %v837 = vshrl.u32 %v836, 7
  %v838 = vsub.s32 0, %v837
  %v839 = vrot.slane %v834, %v838
  %v841 = vmul.f32 %v829, %v839
  %v842 = vld [vmem:[%s3] sm:$0x1]
  %v844 = vlaneseq
  %v845 = vshrl.u32 %v844, 7
  %v846 = vsub.s32 0, %v845
  %v847 = vrot.slane %v842, %v846
  %v849 = vadd.f32 %v841, %v847
  %v850 = vld [vmem:[%s4] sm:$0xf]
  %v851 = vunpack.c.l.bf16 %v850
  %v852 = vadd.f32 %v849, %v851
  %v853 = vmax.f32 %v852, 0.0
  %v854 = vpack.c.bf16 %v853, %v853
  %855 = vst [vmem:[%s5] sm:$0xf] %v854
  // Predicated region
  $region22: #{_lambda_.35} parent=0 // pred_check
    _
  $region23: #{_lambda_.35} parent=0 // pred_check_branch
    %857 = sbr.rel (0) target = $region25
  $region24: #{_lambda_.35} parent=0 // pred_region
    _
  $region25: #{_lambda_.35} parent=0 // pred_fallthru
    _
  // Predicated region
  $region26: #{_lambda_.35} parent=0 // pred_check
    _
  $region27: #{_lambda_.35} parent=0 // pred_check_branch
    %859 = sbr.rel (0) target = $region29
  $region28: #{_lambda_.35} parent=0 // pred_region
    _
  $region29: #{_lambda_.35} parent=0 // pred_fallthru
    _

// kernel: _lambda_.39
$region0: #{_lambda_.39}
  #allocation0 [shape = 'u32[]', space=smem, size = 0x4, offset = 0x4, fixed_abs, tag = 'smem constant byte address 0x4 - core index']
  #allocation1 [shape = 'u32[144,128]{1,0:T(1,128)}', space=vmem, size = 0x12000, scoped, tag = 'internal scratch']
  %s0 = inlined_call_operand.vmem [shape: bf16[2,128], index: 0, kind: input, shape index: {}]
  %s1 = inlined_call_operand.vmem [shape: bf16[128,128], index: 1, kind: input, shape index: {}]
  %s2 = inlined_call_operand.vmem [shape: f32[1,128], index: 2, kind: input, shape index: {}]
  %s3 = inlined_call_operand.vmem [shape: f32[1,128], index: 3, kind: input, shape index: {}]
  %s4 = inlined_call_operand.vmem [shape: bf16[2,128], index: 4, kind: output, shape index: {}]
  %s5 = sld [smem:[#allocation0]]
  $region26: #{_lambda_.39} parent=0
    _
  %s7 = ssub.s32 1, %s5
  %s8 = scalar_select 0, %s7, %s5
  // Predicated region
  $region2: #{_lambda_.39} parent=0 // pred_check
    _
  $region3: #{_lambda_.39} parent=0 // pred_check_branch
    %10 = sbr.rel (0) target = $region5
  $region4: #{_lambda_.39} parent=0 // pred_region
    _
  $region5: #{_lambda_.39} parent=0 // pred_fallthru
    _
  // Predicated region
  $region6: #{_lambda_.39} parent=0 // pred_check
    _
  $region7: #{_lambda_.39} parent=0 // pred_check_branch
    %12 = sbr.rel (0) target = $region9
  $region8: #{_lambda_.39} parent=0 // pred_region
    _
  $region9: #{_lambda_.39} parent=0 // pred_fallthru
    _
  // Predicated region
  $region10: #{_lambda_.39} parent=0 // pred_check
    _
  $region11: #{_lambda_.39} parent=0 // pred_check_branch
    %14 = sbr.rel (0) target = $region13
  $region12: #{_lambda_.39} parent=0 // pred_region
    _
  $region13: #{_lambda_.39} parent=0 // pred_fallthru
    _
  // Predicated region
  $region14: #{_lambda_.39} parent=0 // pred_check
    _
  $region15: #{_lambda_.39} parent=0 // pred_check_branch
    %16 = sbr.rel (0) target = $region17
  $region16: #{_lambda_.39} parent=0 // pred_region
    _
  $region17: #{_lambda_.39} parent=0 // pred_fallthru
    _
  %v18 = vld [vmem:[%s0] sm:$0x1]
  %v19 = vld [vmem:[%s1] sm:$0xf]
  %v20 = vld [vmem:[%s1 + $0x4] sm:$0xf]
  %v21 = vld [vmem:[%s1 + $0x8] sm:$0xf]
  %v22 = vld [vmem:[%s1 + $0xc] sm:$0xf]
  %v23 = vld [vmem:[%s1 + $0x10] sm:$0xf]
  %v24 = vld [vmem:[%s1 + $0x14] sm:$0xf]
  %v25 = vld [vmem:[%s1 + $0x18] sm:$0xf]
  %v26 = vld [vmem:[%s1 + $0x1c] sm:$0xf]
  %v27 = vld [vmem:[%s1 + $0x20] sm:$0xf]
  %v28 = vld [vmem:[%s1 + $0x24] sm:$0xf]
  %v29 = vld [vmem:[%s1 + $0x28] sm:$0xf]
  %v30 = vld [vmem:[%s1 + $0x2c] sm:$0xf]
  %v31 = vld [vmem:[%s1 + $0x30] sm:$0xf]
  %v32 = vld [vmem:[%s1 + $0x34] sm:$0xf]
  %v33 = vld [vmem:[%s1 + $0x38] sm:$0xf]
  %v34 = vld [vmem:[%s1 + $0x3c] sm:$0xf]
  %v51 = vunpack.c.l.b16 %v19
  %v52 = vunpack.c.l.b16 %v20
  %v53 = vunpack.c.l.b16 %v21
  %v54 = vunpack.c.l.b16 %v22
  %v55 = vunpack.c.l.b16 %v23
  %v56 = vunpack.c.l.b16 %v24
  %v57 = vunpack.c.l.b16 %v25
  %v58 = vunpack.c.l.b16 %v26
  %v59 = vunpack.c.l.b16 %v27
  %v60 = vunpack.c.l.b16 %v28
  %v61 = vunpack.c.l.b16 %v29
  %v62 = vunpack.c.l.b16 %v30
  %v63 = vunpack.c.l.b16 %v31
  %v64 = vunpack.c.l.b16 %v32
  %v65 = vunpack.c.l.b16 %v33
  %v66 = vunpack.c.l.b16 %v34
  %v67 = vpack.c.b16 %v52, %v51
  %v68 = vpack.c.b16 %v54, %v53
  %v69 = vpack.c.b16 %v56, %v55
  %v70 = vpack.c.b16 %v58, %v57
  %v71 = vpack.c.b16 %v60, %v59
  %v72 = vpack.c.b16 %v62, %v61
  %v73 = vpack.c.b16 %v64, %v63
  %v74 = vpack.c.b16 %v66, %v65
  %83 = vmatprep.subr.bf16.mxu0 0
  %84 = vmatpush1.bf16.msra.mxu0 %v67
  %85 = vmatprep.subr.bf16.mxu0 0
  %86 = vmatpush1.bf16.msra.mxu0 %v68
  %87 = vmatprep.subr.bf16.mxu0 0
  %88 = vmatpush1.bf16.msra.mxu0 %v69
  %89 = vmatprep.subr.bf16.mxu0 0
  %90 = vmatpush1.bf16.msra.mxu0 %v70
  %91 = vmatprep.subr.bf16.mxu0 0
  %92 = vmatpush1.bf16.msra.mxu0 %v71
  %93 = vmatprep.subr.bf16.mxu0 0
  %94 = vmatpush1.bf16.msra.mxu0 %v72
  %95 = vmatprep.subr.bf16.mxu0 0
  %96 = vmatpush1.bf16.msra.mxu0 %v73
  %97 = vmatprep.subr.bf16.mxu0 0
  %98 = vmatpush1.bf16.msra.mxu0 %v74
  %99 = vmatprep.subr.bf16.mxu0 0
  %100 = vmatpush1.bf16.msra.mxu0 0
  %101 = vmatprep.subr.bf16.mxu0 0
  %102 = vmatpush1.bf16.msra.mxu0 0
  %103 = vmatprep.subr.bf16.mxu0 0
  %104 = vmatpush1.bf16.msra.mxu0 0
  %105 = vmatprep.subr.bf16.mxu0 0
  %106 = vmatpush1.bf16.msra.mxu0 0
  %107 = vmatprep.subr.bf16.mxu0 0
  %108 = vmatpush1.bf16.msra.mxu0 0
  %109 = vmatprep.subr.bf16.mxu0 0
  %110 = vmatpush1.bf16.msra.mxu0 0
  %111 = vmatprep.subr.bf16.mxu0 0
  %112 = vmatpush1.bf16.msra.mxu0 0
  %113 = vmatprep.subr.bf16.mxu0 0
  %114 = vmatpush1.bf16.msra.mxu0 0
  %115 = vmatprep.mubr.bf16.mxu0 0
  %116 = vmatmul.mubr.bf16.gmra.mrb[0].mxu0 %v18
  %v117 = vpop.f32.mrb[0].mxu0
  %v118 = vadd.f32 0.0, %v117
  %v119 = vpop.f32.mrb[0].mxu0
  %v120 = vpop.f32.mrb[0].mxu0
  %v121 = vpop.f32.mrb[0].mxu0
  %122 = vdwg.mxu0
  %v123 = vld [vmem:[%s2] sm:$0x1]
  %v125 = vlaneseq
  %v126 = vshrl.u32 %v125, 7
  %v127 = vsub.s32 0, %v126
  %v128 = vrot.slane %v123, %v127
  %v130 = vmul.f32 %v118, %v128
  %v131 = vld [vmem:[%s3] sm:$0x1]
  %v133 = vlaneseq
  %v134 = vshrl.u32 %v133, 7
  %v135 = vsub.s32 0, %v134
  %v136 = vrot.slane %v131, %v135
  %v138 = vadd.f32 %v130, %v136
  %v139 = vpack.c.bf16 %v138, %v138
  %140 = vst [vmem:[%s4] sm:$0x1] %v139
  // Predicated region
  $region18: #{_lambda_.39} parent=0 // pred_check
    _
  $region19: #{_lambda_.39} parent=0 // pred_check_branch
    %142 = sbr.rel (0) target = $region21
  $region20: #{_lambda_.39} parent=0 // pred_region
    _
  $region21: #{_lambda_.39} parent=0 // pred_fallthru
    _
  // Predicated region
  $region22: #{_lambda_.39} parent=0 // pred_check
    _
  $region23: #{_lambda_.39} parent=0 // pred_check_branch
    %144 = sbr.rel (0) target = $region25
  $region24: #{_lambda_.39} parent=0 // pred_region
    _
  $region25: #{_lambda_.39} parent=0 // pred_fallthru
    _

// kernel: _lambda_.38
$region0: #{_lambda_.38}
  #allocation0 [shape = 'u32[]', space=smem, size = 0x4, offset = 0x4, fixed_abs, tag = 'smem constant byte address 0x4 - core index']
  #allocation1 [shape = 'u32[144,128]{1,0:T(1,128)}', space=vmem, size = 0x12000, scoped, tag = 'internal scratch']
  %s0 = inlined_call_operand.vmem [shape: bf16[2,1152], index: 0, kind: input, shape index: {}]
  %s1 = inlined_call_operand.vmem [shape: bf16[1152,128], index: 1, kind: input, shape index: {}]
  %s2 = inlined_call_operand.vmem [shape: f32[1,128], index: 2, kind: input, shape index: {}]
  %s3 = inlined_call_operand.vmem [shape: f32[1,128], index: 3, kind: input, shape index: {}]
  %s4 = inlined_call_operand.vmem [shape: bf16[2,128], index: 4, kind: output, shape index: {}]
  %s5 = sld [smem:[#allocation0]]
  $region26: #{_lambda_.38} parent=0
    _
  %s7 = ssub.s32 1, %s5
  %s8 = scalar_select 0, %s7, %s5
  // Predicated region
  $region2: #{_lambda_.38} parent=0 // pred_check
    _
  $region3: #{_lambda_.38} parent=0 // pred_check_branch
    %10 = sbr.rel (0) target = $region5
  $region4: #{_lambda_.38} parent=0 // pred_region
    _
  $region5: #{_lambda_.38} parent=0 // pred_fallthru
    _
  // Predicated region
  $region6: #{_lambda_.38} parent=0 // pred_check
    _
  $region7: #{_lambda_.38} parent=0 // pred_check_branch
    %12 = sbr.rel (0) target = $region9
  $region8: #{_lambda_.38} parent=0 // pred_region
    _
  $region9: #{_lambda_.38} parent=0 // pred_fallthru
    _
  // Predicated region
  $region10: #{_lambda_.38} parent=0 // pred_check
    _
  $region11: #{_lambda_.38} parent=0 // pred_check_branch
    %14 = sbr.rel (0) target = $region13
  $region12: #{_lambda_.38} parent=0 // pred_region
    _
  $region13: #{_lambda_.38} parent=0 // pred_fallthru
    _
  // Predicated region
  $region14: #{_lambda_.38} parent=0 // pred_check
    _
  $region15: #{_lambda_.38} parent=0 // pred_check_branch
    %16 = sbr.rel (0) target = $region17
  $region16: #{_lambda_.38} parent=0 // pred_region
    _
  $region17: #{_lambda_.38} parent=0 // pred_fallthru
    _
  %v18 = vld [vmem:[%s0] sm:$0xff]
  %v19 = vld [vmem:[%s0 + $0x8] sm:$0x1]
  %v20 = vld [vmem:[%s1] sm:$0xf]
  %v21 = vld [vmem:[%s1 + $0x4] sm:$0xf]
  %v22 = vld [vmem:[%s1 + $0x8] sm:$0xf]
  %v23 = vld [vmem:[%s1 + $0xc] sm:$0xf]
  %v24 = vld [vmem:[%s1 + $0x10] sm:$0xf]
  %v25 = vld [vmem:[%s1 + $0x14] sm:$0xf]
  %v26 = vld [vmem:[%s1 + $0x18] sm:$0xf]
  %v27 = vld [vmem:[%s1 + $0x1c] sm:$0xf]
  %v28 = vld [vmem:[%s1 + $0x20] sm:$0xf]
  %v29 = vld [vmem:[%s1 + $0x24] sm:$0xf]
  %v30 = vld [vmem:[%s1 + $0x28] sm:$0xf]
  %v31 = vld [vmem:[%s1 + $0x2c] sm:$0xf]
  %v32 = vld [vmem:[%s1 + $0x30] sm:$0xf]
  %v33 = vld [vmem:[%s1 + $0x34] sm:$0xf]
  %v34 = vld [vmem:[%s1 + $0x38] sm:$0xf]
  %v35 = vld [vmem:[%s1 + $0x3c] sm:$0xf]
  %v36 = vld [vmem:[%s1 + $0x40] sm:$0xf]
  %v37 = vld [vmem:[%s1 + $0x44] sm:$0xf]
  %v38 = vld [vmem:[%s1 + $0x48] sm:$0xf]
  %v39 = vld [vmem:[%s1 + $0x4c] sm:$0xf]
  %v40 = vld [vmem:[%s1 + $0x50] sm:$0xf]
  %v41 = vld [vmem:[%s1 + $0x54] sm:$0xf]
  %v42 = vld [vmem:[%s1 + $0x58] sm:$0xf]
  %v43 = vld [vmem:[%s1 + $0x5c] sm:$0xf]
  %v44 = vld [vmem:[%s1 + $0x60] sm:$0xf]
  %v45 = vld [vmem:[%s1 + $0x64] sm:$0xf]
  %v46 = vld [vmem:[%s1 + $0x68] sm:$0xf]
  %v47 = vld [vmem:[%s1 + $0x6c] sm:$0xf]
  %v48 = vld [vmem:[%s1 + $0x70] sm:$0xf]
  %v49 = vld [vmem:[%s1 + $0x74] sm:$0xf]
  %v50 = vld [vmem:[%s1 + $0x78] sm:$0xf]
  %v51 = vld [vmem:[%s1 + $0x7c] sm:$0xf]
  %v52 = vld [vmem:[%s1 + $0x80] sm:$0xf]
  %v53 = vld [vmem:[%s1 + $0x84] sm:$0xf]
  %v54 = vld [vmem:[%s1 + $0x88] sm:$0xf]
  %v55 = vld [vmem:[%s1 + $0x8c] sm:$0xf]
  %v56 = vld [vmem:[%s1 + $0x90] sm:$0xf]
  %v57 = vld [vmem:[%s1 + $0x94] sm:$0xf]
  %v58 = vld [vmem:[%s1 + $0x98] sm:$0xf]
  %v59 = vld [vmem:[%s1 + $0x9c] sm:$0xf]
  %v60 = vld [vmem:[%s1 + $0xa0] sm:$0xf]
  %v61 = vld [vmem:[%s1 + $0xa4] sm:$0xf]
  %v62 = vld [vmem:[%s1 + $0xa8] sm:$0xf]
  %v63 = vld [vmem:[%s1 + $0xac] sm:$0xf]
  %v64 = vld [vmem:[%s1 + $0xb0] sm:$0xf]
  %v65 = vld [vmem:[%s1 + $0xb4] sm:$0xf]
  %v66 = vld [vmem:[%s1 + $0xb8] sm:$0xf]
  %v67 = vld [vmem:[%s1 + $0xbc] sm:$0xf]
  %v68 = vld [vmem:[%s1 + $0xc0] sm:$0xf]
  %v69 = vld [vmem:[%s1 + $0xc4] sm:$0xf]
  %v70 = vld [vmem:[%s1 + $0xc8] sm:$0xf]
  %v71 = vld [vmem:[%s1 + $0xcc] sm:$0xf]
  %v72 = vld [vmem:[%s1 + $0xd0] sm:$0xf]
  %v73 = vld [vmem:[%s1 + $0xd4] sm:$0xf]
  %v74 = vld [vmem:[%s1 + $0xd8] sm:$0xf]
  %v75 = vld [vmem:[%s1 + $0xdc] sm:$0xf]
  %v76 = vld [vmem:[%s1 + $0xe0] sm:$0xf]
  %v77 = vld [vmem:[%s1 + $0xe4] sm:$0xf]
  %v78 = vld [vmem:[%s1 + $0xe8] sm:$0xf]
  %v79 = vld [vmem:[%s1 + $0xec] sm:$0xf]
  %v80 = vld [vmem:[%s1 + $0xf0] sm:$0xf]
  %v81 = vld [vmem:[%s1 + $0xf4] sm:$0xf]
  %v82 = vld [vmem:[%s1 + $0xf8] sm:$0xf]
  %v83 = vld [vmem:[%s1 + $0xfc] sm:$0xf]
  %v84 = vld [vmem:[%s1 + $0x100] sm:$0xf]
  %v85 = vld [vmem:[%s1 + $0x104] sm:$0xf]
  %v86 = vld [vmem:[%s1 + $0x108] sm:$0xf]
  %v87 = vld [vmem:[%s1 + $0x10c] sm:$0xf]
  %v88 = vld [vmem:[%s1 + $0x110] sm:$0xf]
  %v89 = vld [vmem:[%s1 + $0x114] sm:$0xf]
  %v90 = vld [vmem:[%s1 + $0x118] sm:$0xf]
  %v91 = vld [vmem:[%s1 + $0x11c] sm:$0xf]
  %v92 = vld [vmem:[%s1 + $0x120] sm:$0xf]
  %v93 = vld [vmem:[%s1 + $0x124] sm:$0xf]
  %v94 = vld [vmem:[%s1 + $0x128] sm:$0xf]
  %v95 = vld [vmem:[%s1 + $0x12c] sm:$0xf]
  %v96 = vld [vmem:[%s1 + $0x130] sm:$0xf]
  %v97 = vld [vmem:[%s1 + $0x134] sm:$0xf]
  %v98 = vld [vmem:[%s1 + $0x138] sm:$0xf]
  %v99 = vld [vmem:[%s1 + $0x13c] sm:$0xf]
  %v100 = vld [vmem:[%s1 + $0x140] sm:$0xf]
  %v101 = vld [vmem:[%s1 + $0x144] sm:$0xf]
  %v102 = vld [vmem:[%s1 + $0x148] sm:$0xf]
  %v103 = vld [vmem:[%s1 + $0x14c] sm:$0xf]
  %v104 = vld [vmem:[%s1 + $0x150] sm:$0xf]
  %v105 = vld [vmem:[%s1 + $0x154] sm:$0xf]
  %v106 = vld [vmem:[%s1 + $0x158] sm:$0xf]
  %v107 = vld [vmem:[%s1 + $0x15c] sm:$0xf]
  %v108 = vld [vmem:[%s1 + $0x160] sm:$0xf]
  %v109 = vld [vmem:[%s1 + $0x164] sm:$0xf]
  %v110 = vld [vmem:[%s1 + $0x168] sm:$0xf]
  %v111 = vld [vmem:[%s1 + $0x16c] sm:$0xf]
  %v112 = vld [vmem:[%s1 + $0x170] sm:$0xf]
  %v113 = vld [vmem:[%s1 + $0x174] sm:$0xf]
  %v114 = vld [vmem:[%s1 + $0x178] sm:$0xf]
  %v115 = vld [vmem:[%s1 + $0x17c] sm:$0xf]
  %v116 = vld [vmem:[%s1 + $0x180] sm:$0xf]
  %v117 = vld [vmem:[%s1 + $0x184] sm:$0xf]
  %v118 = vld [vmem:[%s1 + $0x188] sm:$0xf]
  %v119 = vld [vmem:[%s1 + $0x18c] sm:$0xf]
  %v120 = vld [vmem:[%s1 + $0x190] sm:$0xf]
  %v121 = vld [vmem:[%s1 + $0x194] sm:$0xf]
  %v122 = vld [vmem:[%s1 + $0x198] sm:$0xf]
  %v123 = vld [vmem:[%s1 + $0x19c] sm:$0xf]
  %v124 = vld [vmem:[%s1 + $0x1a0] sm:$0xf]
  %v125 = vld [vmem:[%s1 + $0x1a4] sm:$0xf]
  %v126 = vld [vmem:[%s1 + $0x1a8] sm:$0xf]
  %v127 = vld [vmem:[%s1 + $0x1ac] sm:$0xf]
  %v128 = vld [vmem:[%s1 + $0x1b0] sm:$0xf]
  %v129 = vld [vmem:[%s1 + $0x1b4] sm:$0xf]
  %v130 = vld [vmem:[%s1 + $0x1b8] sm:$0xf]
  %v131 = vld [vmem:[%s1 + $0x1bc] sm:$0xf]
  %v132 = vld [vmem:[%s1 + $0x1c0] sm:$0xf]
  %v133 = vld [vmem:[%s1 + $0x1c4] sm:$0xf]
  %v134 = vld [vmem:[%s1 + $0x1c8] sm:$0xf]
  %v135 = vld [vmem:[%s1 + $0x1cc] sm:$0xf]
  %v136 = vld [vmem:[%s1 + $0x1d0] sm:$0xf]
  %v137 = vld [vmem:[%s1 + $0x1d4] sm:$0xf]
  %v138 = vld [vmem:[%s1 + $0x1d8] sm:$0xf]
  %v139 = vld [vmem:[%s1 + $0x1dc] sm:$0xf]
  %v140 = vld [vmem:[%s1 + $0x1e0] sm:$0xf]
  %v141 = vld [vmem:[%s1 + $0x1e4] sm:$0xf]
  %v142 = vld [vmem:[%s1 + $0x1e8] sm:$0xf]
  %v143 = vld [vmem:[%s1 + $0x1ec] sm:$0xf]
  %v144 = vld [vmem:[%s1 + $0x1f0] sm:$0xf]
  %v145 = vld [vmem:[%s1 + $0x1f4] sm:$0xf]
  %v146 = vld [vmem:[%s1 + $0x1f8] sm:$0xf]
  %v147 = vld [vmem:[%s1 + $0x1fc] sm:$0xf]
  %v148 = vld [vmem:[%s1 + $0x200] sm:$0xf]
  %v149 = vld [vmem:[%s1 + $0x204] sm:$0xf]
  %v150 = vld [vmem:[%s1 + $0x208] sm:$0xf]
  %v151 = vld [vmem:[%s1 + $0x20c] sm:$0xf]
  %v152 = vld [vmem:[%s1 + $0x210] sm:$0xf]
  %v153 = vld [vmem:[%s1 + $0x214] sm:$0xf]
  %v154 = vld [vmem:[%s1 + $0x218] sm:$0xf]
  %v155 = vld [vmem:[%s1 + $0x21c] sm:$0xf]
  %v156 = vld [vmem:[%s1 + $0x220] sm:$0xf]
  %v157 = vld [vmem:[%s1 + $0x224] sm:$0xf]
  %v158 = vld [vmem:[%s1 + $0x228] sm:$0xf]
  %v159 = vld [vmem:[%s1 + $0x22c] sm:$0xf]
  %v160 = vld [vmem:[%s1 + $0x230] sm:$0xf]
  %v161 = vld [vmem:[%s1 + $0x234] sm:$0xf]
  %v162 = vld [vmem:[%s1 + $0x238] sm:$0xf]
  %v163 = vld [vmem:[%s1 + $0x23c] sm:$0xf]
  %v166 = vcombine.high %v18, %v18
  %v168 = vunpack.c.l.s4 1966171168
  %v169 = vunpack.c.0.s8 %v168
  %v170 = vlaneseq
  %v171 = vshrl.u32 %v170, 7
  %v172 = vsub.s32 %v169, %v171
  %v173 = vrot.slane %v18, %v172
  %v175 = vunpack.c.l.s4 1966171168
  %v176 = vunpack.c.0.s8 %v175
  %v177 = vlaneseq
  %v178 = vshrl.u32 %v177, 7
  %v179 = vsub.s32 %v176, %v178
  %v180 = vrot.slane %v166, %v179
  %v181 = vcombine.high %v173, %v173
  %v182 = vcombine.high %v180, %v180
  %v184 = vunpack.c.l.s4 1966171168
  %v185 = vunpack.c.0.s8 %v184
  %v186 = vlaneseq
  %v187 = vshrl.u32 %v186, 7
  %v188 = vsub.s32 %v185, %v187
  %v189 = vrot.slane %v173, %v188
  %v191 = vunpack.c.l.s4 1966171168
  %v192 = vunpack.c.0.s8 %v191
  %v193 = vlaneseq
  %v194 = vshrl.u32 %v193, 7
  %v195 = vsub.s32 %v192, %v194
  %v196 = vrot.slane %v180, %v195
  %v198 = vunpack.c.l.s4 1966171168
  %v199 = vunpack.c.0.s8 %v198
  %v200 = vlaneseq
  %v201 = vshrl.u32 %v200, 7
  %v202 = vsub.s32 %v199, %v201
  %v203 = vrot.slane %v181, %v202
  %v205 = vunpack.c.l.s4 1966171168
  %v206 = vunpack.c.0.s8 %v205
  %v207 = vlaneseq
  %v208 = vshrl.u32 %v207, 7
  %v209 = vsub.s32 %v206, %v208
  %v210 = vrot.slane %v182, %v209
  %v211 = vcombine.high %v189, %v189
  %v212 = vcombine.high %v196, %v196
  %v213 = vcombine.high %v203, %v203
  %v214 = vcombine.high %v210, %v210
  %v216 = vunpack.c.l.s4 1966171168
  %v217 = vunpack.c.0.s8 %v216
  %v218 = vlaneseq
  %v219 = vshrl.u32 %v218, 7
  %v220 = vsub.s32 %v217, %v219
  %v221 = vrot.slane %v19, %v220
  %v223 = vunpack.c.l.s4 1966171168
  %v224 = vunpack.c.0.s8 %v223
  %v225 = vlaneseq
  %v226 = vshrl.u32 %v225, 7
  %v227 = vsub.s32 %v224, %v226
  %v228 = vrot.slane %v221, %v227
  %v382 = vunpack.c.l.b16 %v20
  %v383 = vunpack.c.l.b16 %v21
  %v384 = vunpack.c.l.b16 %v22
  %v385 = vunpack.c.l.b16 %v23
  %v386 = vunpack.c.l.b16 %v24
  %v387 = vunpack.c.l.b16 %v25
  %v388 = vunpack.c.l.b16 %v26
  %v389 = vunpack.c.l.b16 %v27
  %v390 = vunpack.c.l.b16 %v28
  %v391 = vunpack.c.l.b16 %v29
  %v392 = vunpack.c.l.b16 %v30
  %v393 = vunpack.c.l.b16 %v31
  %v394 = vunpack.c.l.b16 %v32
  %v395 = vunpack.c.l.b16 %v33
  %v396 = vunpack.c.l.b16 %v34
  %v397 = vunpack.c.l.b16 %v35
  %v398 = vunpack.c.l.b16 %v36
  %v399 = vunpack.c.l.b16 %v37
  %v400 = vunpack.c.l.b16 %v38
  %v401 = vunpack.c.l.b16 %v39
  %v402 = vunpack.c.l.b16 %v40
  %v403 = vunpack.c.l.b16 %v41
  %v404 = vunpack.c.l.b16 %v42
  %v405 = vunpack.c.l.b16 %v43
  %v406 = vunpack.c.l.b16 %v44
  %v407 = vunpack.c.l.b16 %v45
  %v408 = vunpack.c.l.b16 %v46
  %v409 = vunpack.c.l.b16 %v47
  %v410 = vunpack.c.l.b16 %v48
  %v411 = vunpack.c.l.b16 %v49
  %v412 = vunpack.c.l.b16 %v50
  %v413 = vunpack.c.l.b16 %v51
  %v414 = vunpack.c.l.b16 %v52
  %v415 = vunpack.c.l.b16 %v53
  %v416 = vunpack.c.l.b16 %v54
  %v417 = vunpack.c.l.b16 %v55
  %v418 = vunpack.c.l.b16 %v56
  %v419 = vunpack.c.l.b16 %v57
  %v420 = vunpack.c.l.b16 %v58
  %v421 = vunpack.c.l.b16 %v59
  %v422 = vunpack.c.l.b16 %v60
  %v423 = vunpack.c.l.b16 %v61
  %v424 = vunpack.c.l.b16 %v62
  %v425 = vunpack.c.l.b16 %v63
  %v426 = vunpack.c.l.b16 %v64
  %v427 = vunpack.c.l.b16 %v65
  %v428 = vunpack.c.l.b16 %v66
  %v429 = vunpack.c.l.b16 %v67
  %v430 = vunpack.c.l.b16 %v68
  %v431 = vunpack.c.l.b16 %v69
  %v432 = vunpack.c.l.b16 %v70
  %v433 = vunpack.c.l.b16 %v71
  %v434 = vunpack.c.l.b16 %v72
  %v435 = vunpack.c.l.b16 %v73
  %v436 = vunpack.c.l.b16 %v74
  %v437 = vunpack.c.l.b16 %v75
  %v438 = vunpack.c.l.b16 %v76
  %v439 = vunpack.c.l.b16 %v77
  %v440 = vunpack.c.l.b16 %v78
  %v441 = vunpack.c.l.b16 %v79
  %v442 = vunpack.c.l.b16 %v80
  %v443 = vunpack.c.l.b16 %v81
  %v444 = vunpack.c.l.b16 %v82
  %v445 = vunpack.c.l.b16 %v83
  %v446 = vunpack.c.l.b16 %v84
  %v447 = vunpack.c.l.b16 %v85
  %v448 = vunpack.c.l.b16 %v86
  %v449 = vunpack.c.l.b16 %v87
  %v450 = vunpack.c.l.b16 %v88
  %v451 = vunpack.c.l.b16 %v89
  %v452 = vunpack.c.l.b16 %v90
  %v453 = vunpack.c.l.b16 %v91
  %v454 = vunpack.c.l.b16 %v92
  %v455 = vunpack.c.l.b16 %v93
  %v456 = vunpack.c.l.b16 %v94
  %v457 = vunpack.c.l.b16 %v95
  %v458 = vunpack.c.l.b16 %v96
  %v459 = vunpack.c.l.b16 %v97
  %v460 = vunpack.c.l.b16 %v98
  %v461 = vunpack.c.l.b16 %v99
  %v462 = vunpack.c.l.b16 %v100
  %v463 = vunpack.c.l.b16 %v101
  %v464 = vunpack.c.l.b16 %v102
  %v465 = vunpack.c.l.b16 %v103
  %v466 = vunpack.c.l.b16 %v104
  %v467 = vunpack.c.l.b16 %v105
  %v468 = vunpack.c.l.b16 %v106
  %v469 = vunpack.c.l.b16 %v107
  %v470 = vunpack.c.l.b16 %v108
  %v471 = vunpack.c.l.b16 %v109
  %v472 = vunpack.c.l.b16 %v110
  %v473 = vunpack.c.l.b16 %v111
  %v474 = vunpack.c.l.b16 %v112
  %v475 = vunpack.c.l.b16 %v113
  %v476 = vunpack.c.l.b16 %v114
  %v477 = vunpack.c.l.b16 %v115
  %v478 = vunpack.c.l.b16 %v116
  %v479 = vunpack.c.l.b16 %v117
  %v480 = vunpack.c.l.b16 %v118
  %v481 = vunpack.c.l.b16 %v119
  %v482 = vunpack.c.l.b16 %v120
  %v483 = vunpack.c.l.b16 %v121
  %v484 = vunpack.c.l.b16 %v122
  %v485 = vunpack.c.l.b16 %v123
  %v486 = vunpack.c.l.b16 %v124
  %v487 = vunpack.c.l.b16 %v125
  %v488 = vunpack.c.l.b16 %v126
  %v489 = vunpack.c.l.b16 %v127
  %v490 = vunpack.c.l.b16 %v128
  %v491 = vunpack.c.l.b16 %v129
  %v492 = vunpack.c.l.b16 %v130
  %v493 = vunpack.c.l.b16 %v131
  %v494 = vunpack.c.l.b16 %v132
  %v495 = vunpack.c.l.b16 %v133
  %v496 = vunpack.c.l.b16 %v134
  %v497 = vunpack.c.l.b16 %v135
  %v498 = vunpack.c.l.b16 %v136
  %v499 = vunpack.c.l.b16 %v137
  %v500 = vunpack.c.l.b16 %v138
  %v501 = vunpack.c.l.b16 %v139
  %v502 = vunpack.c.l.b16 %v140
  %v503 = vunpack.c.l.b16 %v141
  %v504 = vunpack.c.l.b16 %v142
  %v505 = vunpack.c.l.b16 %v143
  %v506 = vunpack.c.l.b16 %v144
  %v507 = vunpack.c.l.b16 %v145
  %v508 = vunpack.c.l.b16 %v146
  %v509 = vunpack.c.l.b16 %v147
  %v510 = vunpack.c.l.b16 %v148
  %v511 = vunpack.c.l.b16 %v149
  %v512 = vunpack.c.l.b16 %v150
  %v513 = vunpack.c.l.b16 %v151
  %v514 = vunpack.c.l.b16 %v152
  %v515 = vunpack.c.l.b16 %v153
  %v516 = vunpack.c.l.b16 %v154
  %v517 = vunpack.c.l.b16 %v155
  %v518 = vunpack.c.l.b16 %v156
  %v519 = vunpack.c.l.b16 %v157
  %v520 = vunpack.c.l.b16 %v158
  %v521 = vunpack.c.l.b16 %v159
  %v522 = vunpack.c.l.b16 %v160
  %v523 = vunpack.c.l.b16 %v161
  %v524 = vunpack.c.l.b16 %v162
  %v525 = vunpack.c.l.b16 %v163
  %v526 = vpack.c.b16 %v383, %v382
  %v527 = vpack.c.b16 %v385, %v384
  %v528 = vpack.c.b16 %v387, %v386
  %v529 = vpack.c.b16 %v389, %v388
  %v530 = vpack.c.b16 %v391, %v390
  %v531 = vpack.c.b16 %v393, %v392
  %v532 = vpack.c.b16 %v395, %v394
  %v533 = vpack.c.b16 %v397, %v396
  %v534 = vpack.c.b16 %v399, %v398
  %v535 = vpack.c.b16 %v401, %v400
  %v536 = vpack.c.b16 %v403, %v402
  %v537 = vpack.c.b16 %v405, %v404
  %v538 = vpack.c.b16 %v407, %v406
  %v539 = vpack.c.b16 %v409, %v408
  %v540 = vpack.c.b16 %v411, %v410
  %v541 = vpack.c.b16 %v413, %v412
  %v542 = vpack.c.b16 %v415, %v414
  %v543 = vpack.c.b16 %v417, %v416
  %v544 = vpack.c.b16 %v419, %v418
  %v545 = vpack.c.b16 %v421, %v420
  %v546 = vpack.c.b16 %v423, %v422
  %v547 = vpack.c.b16 %v425, %v424
  %v548 = vpack.c.b16 %v427, %v426
  %v549 = vpack.c.b16 %v429, %v428
  %v550 = vpack.c.b16 %v431, %v430
  %v551 = vpack.c.b16 %v433, %v432
  %v552 = vpack.c.b16 %v435, %v434
  %v553 = vpack.c.b16 %v437, %v436
  %v554 = vpack.c.b16 %v439, %v438
  %v555 = vpack.c.b16 %v441, %v440
  %v556 = vpack.c.b16 %v443, %v442
  %v557 = vpack.c.b16 %v445, %v444
  %v558 = vpack.c.b16 %v447, %v446
  %v559 = vpack.c.b16 %v449, %v448
  %v560 = vpack.c.b16 %v451, %v450
  %v561 = vpack.c.b16 %v453, %v452
  %v562 = vpack.c.b16 %v455, %v454
  %v563 = vpack.c.b16 %v457, %v456
  %v564 = vpack.c.b16 %v459, %v458
  %v565 = vpack.c.b16 %v461, %v460
  %v566 = vpack.c.b16 %v463, %v462
  %v567 = vpack.c.b16 %v465, %v464
  %v568 = vpack.c.b16 %v467, %v466
  %v569 = vpack.c.b16 %v469, %v468
  %v570 = vpack.c.b16 %v471, %v470
  %v571 = vpack.c.b16 %v473, %v472
  %v572 = vpack.c.b16 %v475, %v474
  %v573 = vpack.c.b16 %v477, %v476
  %v574 = vpack.c.b16 %v479, %v478
  %v575 = vpack.c.b16 %v481, %v480
  %v576 = vpack.c.b16 %v483, %v482
  %v577 = vpack.c.b16 %v485, %v484
  %v578 = vpack.c.b16 %v487, %v486
  %v579 = vpack.c.b16 %v489, %v488
  %v580 = vpack.c.b16 %v491, %v490
  %v581 = vpack.c.b16 %v493, %v492
  %v582 = vpack.c.b16 %v495, %v494
  %v583 = vpack.c.b16 %v497, %v496
  %v584 = vpack.c.b16 %v499, %v498
  %v585 = vpack.c.b16 %v501, %v500
  %v586 = vpack.c.b16 %v503, %v502
  %v587 = vpack.c.b16 %v505, %v504
  %v588 = vpack.c.b16 %v507, %v506
  %v589 = vpack.c.b16 %v509, %v508
  %v590 = vpack.c.b16 %v511, %v510
  %v591 = vpack.c.b16 %v513, %v512
  %v592 = vpack.c.b16 %v515, %v514
  %v593 = vpack.c.b16 %v517, %v516
  %v594 = vpack.c.b16 %v519, %v518
  %v595 = vpack.c.b16 %v521, %v520
  %v596 = vpack.c.b16 %v523, %v522
  %v597 = vpack.c.b16 %v525, %v524
  %670 = vmatprep.subr.bf16.mxu0 0
  %671 = vmatpush1.bf16.msra.mxu0 %v526
  %672 = vmatprep.subr.bf16.mxu0 0
  %673 = vmatpush1.bf16.msra.mxu0 %v527
  %674 = vmatprep.subr.bf16.mxu0 0
  %675 = vmatpush1.bf16.msra.mxu0 %v528
  %676 = vmatprep.subr.bf16.mxu0 0
  %677 = vmatpush1.bf16.msra.mxu0 %v529
  %678 = vmatprep.subr.bf16.mxu0 0
  %679 = vmatpush1.bf16.msra.mxu0 %v530
  %680 = vmatprep.subr.bf16.mxu0 0
  %681 = vmatpush1.bf16.msra.mxu0 %v531
  %682 = vmatprep.subr.bf16.mxu0 0
  %683 = vmatpush1.bf16.msra.mxu0 %v532
  %684 = vmatprep.subr.bf16.mxu0 0
  %685 = vmatpush1.bf16.msra.mxu0 %v533
  %686 = vmatprep.subr.bf16.mxu0 0
  %687 = vmatpush1.bf16.msra.mxu0 %v534
  %688 = vmatprep.subr.bf16.mxu0 0
  %689 = vmatpush1.bf16.msra.mxu0 %v535
  %690 = vmatprep.subr.bf16.mxu0 0
  %691 = vmatpush1.bf16.msra.mxu0 %v536
  %692 = vmatprep.subr.bf16.mxu0 0
  %693 = vmatpush1.bf16.msra.mxu0 %v537
  %694 = vmatprep.subr.bf16.mxu0 0
  %695 = vmatpush1.bf16.msra.mxu0 %v538
  %696 = vmatprep.subr.bf16.mxu0 0
  %697 = vmatpush1.bf16.msra.mxu0 %v539
  %698 = vmatprep.subr.bf16.mxu0 0
  %699 = vmatpush1.bf16.msra.mxu0 %v540
  %700 = vmatprep.subr.bf16.mxu0 0
  %701 = vmatpush1.bf16.msra.mxu0 %v541
  %702 = vmatprep.mubr.bf16.mxu0 %v203
  %703 = vmatmul.mubr.bf16.gmra.mrb[0].mxu0 %v189
  %v704 = vpop.f32.mrb[0].mxu0
  %v705 = vadd.f32 0.0, %v704
  %v706 = vpop.f32.mrb[0].mxu0
  %v707 = vpop.f32.mrb[0].mxu0
  %v708 = vpop.f32.mrb[0].mxu0
  %709 = vdwg.mxu0
  %710 = vmatprep.subr.bf16.mxu0 0
  %711 = vmatpush1.bf16.msra.mxu0 %v542
  %712 = vmatprep.subr.bf16.mxu0 0
  %713 = vmatpush1.bf16.msra.mxu0 %v543
  %714 = vmatprep.subr.bf16.mxu0 0
  %715 = vmatpush1.bf16.msra.mxu0 %v544
  %716 = vmatprep.subr.bf16.mxu0 0
  %717 = vmatpush1.bf16.msra.mxu0 %v545
  %718 = vmatprep.subr.bf16.mxu0 0
  %719 = vmatpush1.bf16.msra.mxu0 %v546
  %720 = vmatprep.subr.bf16.mxu0 0
  %721 = vmatpush1.bf16.msra.mxu0 %v547
  %722 = vmatprep.subr.bf16.mxu0 0
  %723 = vmatpush1.bf16.msra.mxu0 %v548
  %724 = vmatprep.subr.bf16.mxu0 0
  %725 = vmatpush1.bf16.msra.mxu0 %v549
  %726 = vmatprep.subr.bf16.mxu0 0
  %727 = vmatpush1.bf16.msra.mxu0 %v550
  %728 = vmatprep.subr.bf16.mxu0 0
  %729 = vmatpush1.bf16.msra.mxu0 %v551
  %730 = vmatprep.subr.bf16.mxu0 0
  %731 = vmatpush1.bf16.msra.mxu0 %v552
  %732 = vmatprep.subr.bf16.mxu0 0
  %733 = vmatpush1.bf16.msra.mxu0 %v553
  %734 = vmatprep.subr.bf16.mxu0 0
  %735 = vmatpush1.bf16.msra.mxu0 %v554
  %736 = vmatprep.subr.bf16.mxu0 0
  %737 = vmatpush1.bf16.msra.mxu0 %v555
  %738 = vmatprep.subr.bf16.mxu0 0
  %739 = vmatpush1.bf16.msra.mxu0 %v556
  %740 = vmatprep.subr.bf16.mxu0 0
  %741 = vmatpush1.bf16.msra.mxu0 %v557
  %742 = vmatprep.mubr.bf16.mxu0 %v213
  %743 = vmatmul.mubr.bf16.gmra.mrb[0].mxu0 %v211
  %v744 = vpop.f32.mrb[0].mxu0
  %v745 = vadd.f32 %v705, %v744
  %v746 = vpop.f32.mrb[0].mxu0
  %v747 = vpop.f32.mrb[0].mxu0
  %v748 = vpop.f32.mrb[0].mxu0
  %749 = vdwg.mxu0
  %750 = vmatprep.subr.bf16.mxu0 0
  %751 = vmatpush1.bf16.msra.mxu0 %v558
  %752 = vmatprep.subr.bf16.mxu0 0
  %753 = vmatpush1.bf16.msra.mxu0 %v559
  %754 = vmatprep.subr.bf16.mxu0 0
  %755 = vmatpush1.bf16.msra.mxu0 %v560
  %756 = vmatprep.subr.bf16.mxu0 0
  %757 = vmatpush1.bf16.msra.mxu0 %v561
  %758 = vmatprep.subr.bf16.mxu0 0
  %759 = vmatpush1.bf16.msra.mxu0 %v562
  %760 = vmatprep.subr.bf16.mxu0 0
  %761 = vmatpush1.bf16.msra.mxu0 %v563
  %762 = vmatprep.subr.bf16.mxu0 0
  %763 = vmatpush1.bf16.msra.mxu0 %v564
  %764 = vmatprep.subr.bf16.mxu0 0
  %765 = vmatpush1.bf16.msra.mxu0 %v565
  %766 = vmatprep.subr.bf16.mxu0 0
  %767 = vmatpush1.bf16.msra.mxu0 %v566
  %768 = vmatprep.subr.bf16.mxu0 0
  %769 = vmatpush1.bf16.msra.mxu0 %v567
  %770 = vmatprep.subr.bf16.mxu0 0
  %771 = vmatpush1.bf16.msra.mxu0 %v568
  %772 = vmatprep.subr.bf16.mxu0 0
  %773 = vmatpush1.bf16.msra.mxu0 %v569
  %774 = vmatprep.subr.bf16.mxu0 0
  %775 = vmatpush1.bf16.msra.mxu0 %v570
  %776 = vmatprep.subr.bf16.mxu0 0
  %777 = vmatpush1.bf16.msra.mxu0 %v571
  %778 = vmatprep.subr.bf16.mxu0 0
  %779 = vmatpush1.bf16.msra.mxu0 %v572
  %780 = vmatprep.subr.bf16.mxu0 0
  %781 = vmatpush1.bf16.msra.mxu0 %v573
  %782 = vmatprep.mubr.bf16.mxu0 %v210
  %783 = vmatmul.mubr.bf16.gmra.mrb[0].mxu0 %v196
  %v784 = vpop.f32.mrb[0].mxu0
  %v785 = vadd.f32 %v745, %v784
  %v786 = vpop.f32.mrb[0].mxu0
  %v787 = vpop.f32.mrb[0].mxu0
  %v788 = vpop.f32.mrb[0].mxu0
  %789 = vdwg.mxu0
  %790 = vmatprep.subr.bf16.mxu0 0
  %791 = vmatpush1.bf16.msra.mxu0 %v574
  %792 = vmatprep.subr.bf16.mxu0 0
  %793 = vmatpush1.bf16.msra.mxu0 %v575
  %794 = vmatprep.subr.bf16.mxu0 0
  %795 = vmatpush1.bf16.msra.mxu0 %v576
  %796 = vmatprep.subr.bf16.mxu0 0
  %797 = vmatpush1.bf16.msra.mxu0 %v577
  %798 = vmatprep.subr.bf16.mxu0 0
  %799 = vmatpush1.bf16.msra.mxu0 %v578
  %800 = vmatprep.subr.bf16.mxu0 0
  %801 = vmatpush1.bf16.msra.mxu0 %v579
  %802 = vmatprep.subr.bf16.mxu0 0
  %803 = vmatpush1.bf16.msra.mxu0 %v580
  %804 = vmatprep.subr.bf16.mxu0 0
  %805 = vmatpush1.bf16.msra.mxu0 %v581
  %806 = vmatprep.subr.bf16.mxu0 0
  %807 = vmatpush1.bf16.msra.mxu0 %v582
  %808 = vmatprep.subr.bf16.mxu0 0
  %809 = vmatpush1.bf16.msra.mxu0 %v583
  %810 = vmatprep.subr.bf16.mxu0 0
  %811 = vmatpush1.bf16.msra.mxu0 %v584
  %812 = vmatprep.subr.bf16.mxu0 0
  %813 = vmatpush1.bf16.msra.mxu0 %v585
  %814 = vmatprep.subr.bf16.mxu0 0
  %815 = vmatpush1.bf16.msra.mxu0 %v586
  %816 = vmatprep.subr.bf16.mxu0 0
  %817 = vmatpush1.bf16.msra.mxu0 %v587
  %818 = vmatprep.subr.bf16.mxu0 0
  %819 = vmatpush1.bf16.msra.mxu0 %v588
  %820 = vmatprep.subr.bf16.mxu0 0
  %821 = vmatpush1.bf16.msra.mxu0 %v589
  %822 = vmatprep.mubr.bf16.mxu0 %v214
  %823 = vmatmul.mubr.bf16.gmra.mrb[0].mxu0 %v212
  %v824 = vpop.f32.mrb[0].mxu0
  %v825 = vadd.f32 %v785, %v824
  %v826 = vpop.f32.mrb[0].mxu0
  %v827 = vpop.f32.mrb[0].mxu0
  %v828 = vpop.f32.mrb[0].mxu0
  %829 = vdwg.mxu0
  %830 = vmatprep.subr.bf16.mxu0 0
  %831 = vmatpush1.bf16.msra.mxu0 %v590
  %832 = vmatprep.subr.bf16.mxu0 0
  %833 = vmatpush1.bf16.msra.mxu0 %v591
  %834 = vmatprep.subr.bf16.mxu0 0
  %835 = vmatpush1.bf16.msra.mxu0 %v592
  %836 = vmatprep.subr.bf16.mxu0 0
  %837 = vmatpush1.bf16.msra.mxu0 %v593
  %838 = vmatprep.subr.bf16.mxu0 0
  %839 = vmatpush1.bf16.msra.mxu0 %v594
  %840 = vmatprep.subr.bf16.mxu0 0
  %841 = vmatpush1.bf16.msra.mxu0 %v595
  %842 = vmatprep.subr.bf16.mxu0 0
  %843 = vmatpush1.bf16.msra.mxu0 %v596
  %844 = vmatprep.subr.bf16.mxu0 0
  %845 = vmatpush1.bf16.msra.mxu0 %v597
  %846 = vmatprep.subr.bf16.mxu0 0
  %847 = vmatpush1.bf16.msra.mxu0 0
  %848 = vmatprep.subr.bf16.mxu0 0
  %849 = vmatpush1.bf16.msra.mxu0 0
  %850 = vmatprep.subr.bf16.mxu0 0
  %851 = vmatpush1.bf16.msra.mxu0 0
  %852 = vmatprep.subr.bf16.mxu0 0
  %853 = vmatpush1.bf16.msra.mxu0 0
  %854 = vmatprep.subr.bf16.mxu0 0
  %855 = vmatpush1.bf16.msra.mxu0 0
  %856 = vmatprep.subr.bf16.mxu0 0
  %857 = vmatpush1.bf16.msra.mxu0 0
  %858 = vmatprep.subr.bf16.mxu0 0
  %859 = vmatpush1.bf16.msra.mxu0 0
  %860 = vmatprep.subr.bf16.mxu0 0
  %861 = vmatpush1.bf16.msra.mxu0 0
  %862 = vmatprep.mubr.bf16.mxu0 0
  %863 = vmatmul.mubr.bf16.gmra.mrb[0].mxu0 %v228
  %v864 = vpop.f32.mrb[0].mxu0
  %v865 = vadd.f32 %v825, %v864
  %v866 = vpop.f32.mrb[0].mxu0
  %v867 = vpop.f32.mrb[0].mxu0
  %v868 = vpop.f32.mrb[0].mxu0
  %869 = vdwg.mxu0
  %v870 = vld [vmem:[%s2] sm:$0x1]
  %v872 = vlaneseq
  %v873 = vshrl.u32 %v872, 7
  %v874 = vsub.s32 0, %v873
  %v875 = vrot.slane %v870, %v874
  %v877 = vmul.f32 %v865, %v875
  %v878 = vld [vmem:[%s3] sm:$0x1]
  %v880 = vlaneseq
  %v881 = vshrl.u32 %v880, 7
  %v882 = vsub.s32 0, %v881
  %v883 = vrot.slane %v878, %v882
  %v885 = vadd.f32 %v877, %v883
  %v886 = vmax.f32 %v885, 0.0
  %v887 = vpack.c.bf16 %v886, %v886
  %888 = vst [vmem:[%s4] sm:$0x1] %v887
  // Predicated region
  $region18: #{_lambda_.38} parent=0 // pred_check
    _
  $region19: #{_lambda_.38} parent=0 // pred_check_branch
    %890 = sbr.rel (0) target = $region21
  $region20: #{_lambda_.38} parent=0 // pred_region
    _
  $region21: #{_lambda_.38} parent=0 // pred_fallthru
    _
  // Predicated region
  $region22: #{_lambda_.38} parent=0 // pred_check
    _
  $region23: #{_lambda_.38} parent=0 // pred_check_branch
    %892 = sbr.rel (0) target = $region25
  $region24: #{_lambda_.38} parent=0 // pred_region
    _
  $region25: #{_lambda_.38} parent=0 // pred_fallthru
    _

// kernel: _lambda_.40
$region0: #{_lambda_.40}
  #allocation0 [shape = 'u32[]', space=smem, size = 0x4, offset = 0x4, fixed_abs, tag = 'smem constant byte address 0x4 - core index']
  #allocation1 [shape = 'u32[144,128]{1,0:T(1,128)}', space=vmem, size = 0x12000, scoped, tag = 'internal scratch']
  %s0 = inlined_call_operand.vmem [shape: bf16[2,1152], index: 0, kind: input, shape index: {}]
  %s1 = inlined_call_operand.vmem [shape: bf16[1152,128], index: 1, kind: input, shape index: {}]
  %s2 = inlined_call_operand.vmem [shape: f32[1,128], index: 2, kind: input, shape index: {}]
  %s3 = inlined_call_operand.vmem [shape: f32[1,128], index: 3, kind: input, shape index: {}]
  %s4 = inlined_call_operand.vmem [shape: bf16[2,128], index: 4, kind: input, shape index: {}]
  %s5 = inlined_call_operand.vmem [shape: bf16[2,128], index: 5, kind: output, shape index: {}]
  %s6 = sld [smem:[#allocation0]]
  $region30: #{_lambda_.40} parent=0
    _
  %s8 = ssub.s32 1, %s6
  %s9 = scalar_select 0, %s8, %s6
  // Predicated region
  $region2: #{_lambda_.40} parent=0 // pred_check
    _
  $region3: #{_lambda_.40} parent=0 // pred_check_branch
    %11 = sbr.rel (0) target = $region5
  $region4: #{_lambda_.40} parent=0 // pred_region
    _
  $region5: #{_lambda_.40} parent=0 // pred_fallthru
    _
  // Predicated region
  $region6: #{_lambda_.40} parent=0 // pred_check
    _
  $region7: #{_lambda_.40} parent=0 // pred_check_branch
    %13 = sbr.rel (0) target = $region9
  $region8: #{_lambda_.40} parent=0 // pred_region
    _
  $region9: #{_lambda_.40} parent=0 // pred_fallthru
    _
  // Predicated region
  $region10: #{_lambda_.40} parent=0 // pred_check
    _
  $region11: #{_lambda_.40} parent=0 // pred_check_branch
    %15 = sbr.rel (0) target = $region13
  $region12: #{_lambda_.40} parent=0 // pred_region
    _
  $region13: #{_lambda_.40} parent=0 // pred_fallthru
    _
  // Predicated region
  $region14: #{_lambda_.40} parent=0 // pred_check
    _
  $region15: #{_lambda_.40} parent=0 // pred_check_branch
    %17 = sbr.rel (0) target = $region17
  $region16: #{_lambda_.40} parent=0 // pred_region
    _
  $region17: #{_lambda_.40} parent=0 // pred_fallthru
    _
  // Predicated region
  $region18: #{_lambda_.40} parent=0 // pred_check
    _
  $region19: #{_lambda_.40} parent=0 // pred_check_branch
    %19 = sbr.rel (0) target = $region21
  $region20: #{_lambda_.40} parent=0 // pred_region
    _
  $region21: #{_lambda_.40} parent=0 // pred_fallthru
    _
  %v21 = vld [vmem:[%s0] sm:$0xff]
  %v22 = vld [vmem:[%s0 + $0x8] sm:$0x1]
  %v23 = vld [vmem:[%s1] sm:$0xf]
  %v24 = vld [vmem:[%s1 + $0x4] sm:$0xf]
  %v25 = vld [vmem:[%s1 + $0x8] sm:$0xf]
  %v26 = vld [vmem:[%s1 + $0xc] sm:$0xf]
  %v27 = vld [vmem:[%s1 + $0x10] sm:$0xf]
  %v28 = vld [vmem:[%s1 + $0x14] sm:$0xf]
  %v29 = vld [vmem:[%s1 + $0x18] sm:$0xf]
  %v30 = vld [vmem:[%s1 + $0x1c] sm:$0xf]
  %v31 = vld [vmem:[%s1 + $0x20] sm:$0xf]
  %v32 = vld [vmem:[%s1 + $0x24] sm:$0xf]
  %v33 = vld [vmem:[%s1 + $0x28] sm:$0xf]
  %v34 = vld [vmem:[%s1 + $0x2c] sm:$0xf]
  %v35 = vld [vmem:[%s1 + $0x30] sm:$0xf]
  %v36 = vld [vmem:[%s1 + $0x34] sm:$0xf]
  %v37 = vld [vmem:[%s1 + $0x38] sm:$0xf]
  %v38 = vld [vmem:[%s1 + $0x3c] sm:$0xf]
  %v39 = vld [vmem:[%s1 + $0x40] sm:$0xf]
  %v40 = vld [vmem:[%s1 + $0x44] sm:$0xf]
  %v41 = vld [vmem:[%s1 + $0x48] sm:$0xf]
  %v42 = vld [vmem:[%s1 + $0x4c] sm:$0xf]
  %v43 = vld [vmem:[%s1 + $0x50] sm:$0xf]
  %v44 = vld [vmem:[%s1 + $0x54] sm:$0xf]
  %v45 = vld [vmem:[%s1 + $0x58] sm:$0xf]
  %v46 = vld [vmem:[%s1 + $0x5c] sm:$0xf]
  %v47 = vld [vmem:[%s1 + $0x60] sm:$0xf]
  %v48 = vld [vmem:[%s1 + $0x64] sm:$0xf]
  %v49 = vld [vmem:[%s1 + $0x68] sm:$0xf]
  %v50 = vld [vmem:[%s1 + $0x6c] sm:$0xf]
  %v51 = vld [vmem:[%s1 + $0x70] sm:$0xf]
  %v52 = vld [vmem:[%s1 + $0x74] sm:$0xf]
  %v53 = vld [vmem:[%s1 + $0x78] sm:$0xf]
  %v54 = vld [vmem:[%s1 + $0x7c] sm:$0xf]
  %v55 = vld [vmem:[%s1 + $0x80] sm:$0xf]
  %v56 = vld [vmem:[%s1 + $0x84] sm:$0xf]
  %v57 = vld [vmem:[%s1 + $0x88] sm:$0xf]
  %v58 = vld [vmem:[%s1 + $0x8c] sm:$0xf]
  %v59 = vld [vmem:[%s1 + $0x90] sm:$0xf]
  %v60 = vld [vmem:[%s1 + $0x94] sm:$0xf]
  %v61 = vld [vmem:[%s1 + $0x98] sm:$0xf]
  %v62 = vld [vmem:[%s1 + $0x9c] sm:$0xf]
  %v63 = vld [vmem:[%s1 + $0xa0] sm:$0xf]
  %v64 = vld [vmem:[%s1 + $0xa4] sm:$0xf]
  %v65 = vld [vmem:[%s1 + $0xa8] sm:$0xf]
  %v66 = vld [vmem:[%s1 + $0xac] sm:$0xf]
  %v67 = vld [vmem:[%s1 + $0xb0] sm:$0xf]
  %v68 = vld [vmem:[%s1 + $0xb4] sm:$0xf]
  %v69 = vld [vmem:[%s1 + $0xb8] sm:$0xf]
  %v70 = vld [vmem:[%s1 + $0xbc] sm:$0xf]
  %v71 = vld [vmem:[%s1 + $0xc0] sm:$0xf]
  %v72 = vld [vmem:[%s1 + $0xc4] sm:$0xf]
  %v73 = vld [vmem:[%s1 + $0xc8] sm:$0xf]
  %v74 = vld [vmem:[%s1 + $0xcc] sm:$0xf]
  %v75 = vld [vmem:[%s1 + $0xd0] sm:$0xf]
  %v76 = vld [vmem:[%s1 + $0xd4] sm:$0xf]
  %v77 = vld [vmem:[%s1 + $0xd8] sm:$0xf]
  %v78 = vld [vmem:[%s1 + $0xdc] sm:$0xf]
  %v79 = vld [vmem:[%s1 + $0xe0] sm:$0xf]
  %v80 = vld [vmem:[%s1 + $0xe4] sm:$0xf]
  %v81 = vld [vmem:[%s1 + $0xe8] sm:$0xf]
  %v82 = vld [vmem:[%s1 + $0xec] sm:$0xf]
  %v83 = vld [vmem:[%s1 + $0xf0] sm:$0xf]
  %v84 = vld [vmem:[%s1 + $0xf4] sm:$0xf]
  %v85 = vld [vmem:[%s1 + $0xf8] sm:$0xf]
  %v86 = vld [vmem:[%s1 + $0xfc] sm:$0xf]
  %v87 = vld [vmem:[%s1 + $0x100] sm:$0xf]
  %v88 = vld [vmem:[%s1 + $0x104] sm:$0xf]
  %v89 = vld [vmem:[%s1 + $0x108] sm:$0xf]
  %v90 = vld [vmem:[%s1 + $0x10c] sm:$0xf]
  %v91 = vld [vmem:[%s1 + $0x110] sm:$0xf]
  %v92 = vld [vmem:[%s1 + $0x114] sm:$0xf]
  %v93 = vld [vmem:[%s1 + $0x118] sm:$0xf]
  %v94 = vld [vmem:[%s1 + $0x11c] sm:$0xf]
  %v95 = vld [vmem:[%s1 + $0x120] sm:$0xf]
  %v96 = vld [vmem:[%s1 + $0x124] sm:$0xf]
  %v97 = vld [vmem:[%s1 + $0x128] sm:$0xf]
  %v98 = vld [vmem:[%s1 + $0x12c] sm:$0xf]
  %v99 = vld [vmem:[%s1 + $0x130] sm:$0xf]
  %v100 = vld [vmem:[%s1 + $0x134] sm:$0xf]
  %v101 = vld [vmem:[%s1 + $0x138] sm:$0xf]
  %v102 = vld [vmem:[%s1 + $0x13c] sm:$0xf]
  %v103 = vld [vmem:[%s1 + $0x140] sm:$0xf]
  %v104 = vld [vmem:[%s1 + $0x144] sm:$0xf]
  %v105 = vld [vmem:[%s1 + $0x148] sm:$0xf]
  %v106 = vld [vmem:[%s1 + $0x14c] sm:$0xf]
  %v107 = vld [vmem:[%s1 + $0x150] sm:$0xf]
  %v108 = vld [vmem:[%s1 + $0x154] sm:$0xf]
  %v109 = vld [vmem:[%s1 + $0x158] sm:$0xf]
  %v110 = vld [vmem:[%s1 + $0x15c] sm:$0xf]
  %v111 = vld [vmem:[%s1 + $0x160] sm:$0xf]
  %v112 = vld [vmem:[%s1 + $0x164] sm:$0xf]
  %v113 = vld [vmem:[%s1 + $0x168] sm:$0xf]
  %v114 = vld [vmem:[%s1 + $0x16c] sm:$0xf]
  %v115 = vld [vmem:[%s1 + $0x170] sm:$0xf]
  %v116 = vld [vmem:[%s1 + $0x174] sm:$0xf]
  %v117 = vld [vmem:[%s1 + $0x178] sm:$0xf]
  %v118 = vld [vmem:[%s1 + $0x17c] sm:$0xf]
  %v119 = vld [vmem:[%s1 + $0x180] sm:$0xf]
  %v120 = vld [vmem:[%s1 + $0x184] sm:$0xf]
  %v121 = vld [vmem:[%s1 + $0x188] sm:$0xf]
  %v122 = vld [vmem:[%s1 + $0x18c] sm:$0xf]
  %v123 = vld [vmem:[%s1 + $0x190] sm:$0xf]
  %v124 = vld [vmem:[%s1 + $0x194] sm:$0xf]
  %v125 = vld [vmem:[%s1 + $0x198] sm:$0xf]
  %v126 = vld [vmem:[%s1 + $0x19c] sm:$0xf]
  %v127 = vld [vmem:[%s1 + $0x1a0] sm:$0xf]
  %v128 = vld [vmem:[%s1 + $0x1a4] sm:$0xf]
  %v129 = vld [vmem:[%s1 + $0x1a8] sm:$0xf]
  %v130 = vld [vmem:[%s1 + $0x1ac] sm:$0xf]
  %v131 = vld [vmem:[%s1 + $0x1b0] sm:$0xf]
  %v132 = vld [vmem:[%s1 + $0x1b4] sm:$0xf]
  %v133 = vld [vmem:[%s1 + $0x1b8] sm:$0xf]
  %v134 = vld [vmem:[%s1 + $0x1bc] sm:$0xf]
  %v135 = vld [vmem:[%s1 + $0x1c0] sm:$0xf]
  %v136 = vld [vmem:[%s1 + $0x1c4] sm:$0xf]
  %v137 = vld [vmem:[%s1 + $0x1c8] sm:$0xf]
  %v138 = vld [vmem:[%s1 + $0x1cc] sm:$0xf]
  %v139 = vld [vmem:[%s1 + $0x1d0] sm:$0xf]
  %v140 = vld [vmem:[%s1 + $0x1d4] sm:$0xf]
  %v141 = vld [vmem:[%s1 + $0x1d8] sm:$0xf]
  %v142 = vld [vmem:[%s1 + $0x1dc] sm:$0xf]
  %v143 = vld [vmem:[%s1 + $0x1e0] sm:$0xf]
  %v144 = vld [vmem:[%s1 + $0x1e4] sm:$0xf]
  %v145 = vld [vmem:[%s1 + $0x1e8] sm:$0xf]
  %v146 = vld [vmem:[%s1 + $0x1ec] sm:$0xf]
  %v147 = vld [vmem:[%s1 + $0x1f0] sm:$0xf]
  %v148 = vld [vmem:[%s1 + $0x1f4] sm:$0xf]
  %v149 = vld [vmem:[%s1 + $0x1f8] sm:$0xf]
  %v150 = vld [vmem:[%s1 + $0x1fc] sm:$0xf]
  %v151 = vld [vmem:[%s1 + $0x200] sm:$0xf]
  %v152 = vld [vmem:[%s1 + $0x204] sm:$0xf]
  %v153 = vld [vmem:[%s1 + $0x208] sm:$0xf]
  %v154 = vld [vmem:[%s1 + $0x20c] sm:$0xf]
  %v155 = vld [vmem:[%s1 + $0x210] sm:$0xf]
  %v156 = vld [vmem:[%s1 + $0x214] sm:$0xf]
  %v157 = vld [vmem:[%s1 + $0x218] sm:$0xf]
  %v158 = vld [vmem:[%s1 + $0x21c] sm:$0xf]
  %v159 = vld [vmem:[%s1 + $0x220] sm:$0xf]
  %v160 = vld [vmem:[%s1 + $0x224] sm:$0xf]
  %v161 = vld [vmem:[%s1 + $0x228] sm:$0xf]
  %v162 = vld [vmem:[%s1 + $0x22c] sm:$0xf]
  %v163 = vld [vmem:[%s1 + $0x230] sm:$0xf]
  %v164 = vld [vmem:[%s1 + $0x234] sm:$0xf]
  %v165 = vld [vmem:[%s1 + $0x238] sm:$0xf]
  %v166 = vld [vmem:[%s1 + $0x23c] sm:$0xf]
  %v169 = vcombine.high %v21, %v21
  %v171 = vunpack.c.l.s4 1966171168
  %v172 = vunpack.c.0.s8 %v171
  %v173 = vlaneseq
  %v174 = vshrl.u32 %v173, 7
  %v175 = vsub.s32 %v172, %v174
  %v176 = vrot.slane %v21, %v175
  %v178 = vunpack.c.l.s4 1966171168
  %v179 = vunpack.c.0.s8 %v178
  %v180 = vlaneseq
  %v181 = vshrl.u32 %v180, 7
  %v182 = vsub.s32 %v179, %v181
  %v183 = vrot.slane %v169, %v182
  %v184 = vcombine.high %v176, %v176
  %v185 = vcombine.high %v183, %v183
  %v187 = vunpack.c.l.s4 1966171168
  %v188 = vunpack.c.0.s8 %v187
  %v189 = vlaneseq
  %v190 = vshrl.u32 %v189, 7
  %v191 = vsub.s32 %v188, %v190
  %v192 = vrot.slane %v176, %v191
  %v194 = vunpack.c.l.s4 1966171168
  %v195 = vunpack.c.0.s8 %v194
  %v196 = vlaneseq
  %v197 = vshrl.u32 %v196, 7
  %v198 = vsub.s32 %v195, %v197
  %v199 = vrot.slane %v183, %v198
  %v201 = vunpack.c.l.s4 1966171168
  %v202 = vunpack.c.0.s8 %v201
  %v203 = vlaneseq
  %v204 = vshrl.u32 %v203, 7
  %v205 = vsub.s32 %v202, %v204
  %v206 = vrot.slane %v184, %v205
  %v208 = vunpack.c.l.s4 1966171168
  %v209 = vunpack.c.0.s8 %v208
  %v210 = vlaneseq
  %v211 = vshrl.u32 %v210, 7
  %v212 = vsub.s32 %v209, %v211
  %v213 = vrot.slane %v185, %v212
  %v214 = vcombine.high %v192, %v192
  %v215 = vcombine.high %v199, %v199
  %v216 = vcombine.high %v206, %v206
  %v217 = vcombine.high %v213, %v213
  %v219 = vunpack.c.l.s4 1966171168
  %v220 = vunpack.c.0.s8 %v219
  %v221 = vlaneseq
  %v222 = vshrl.u32 %v221, 7
  %v223 = vsub.s32 %v220, %v222
  %v224 = vrot.slane %v22, %v223
  %v226 = vunpack.c.l.s4 1966171168
  %v227 = vunpack.c.0.s8 %v226
  %v228 = vlaneseq
  %v229 = vshrl.u32 %v228, 7
  %v230 = vsub.s32 %v227, %v229
  %v231 = vrot.slane %v224, %v230
  %v385 = vunpack.c.l.b16 %v23
  %v386 = vunpack.c.l.b16 %v24
  %v387 = vunpack.c.l.b16 %v25
  %v388 = vunpack.c.l.b16 %v26
  %v389 = vunpack.c.l.b16 %v27
  %v390 = vunpack.c.l.b16 %v28
  %v391 = vunpack.c.l.b16 %v29
  %v392 = vunpack.c.l.b16 %v30
  %v393 = vunpack.c.l.b16 %v31
  %v394 = vunpack.c.l.b16 %v32
  %v395 = vunpack.c.l.b16 %v33
  %v396 = vunpack.c.l.b16 %v34
  %v397 = vunpack.c.l.b16 %v35
  %v398 = vunpack.c.l.b16 %v36
  %v399 = vunpack.c.l.b16 %v37
  %v400 = vunpack.c.l.b16 %v38
  %v401 = vunpack.c.l.b16 %v39
  %v402 = vunpack.c.l.b16 %v40
  %v403 = vunpack.c.l.b16 %v41
  %v404 = vunpack.c.l.b16 %v42
  %v405 = vunpack.c.l.b16 %v43
  %v406 = vunpack.c.l.b16 %v44
  %v407 = vunpack.c.l.b16 %v45
  %v408 = vunpack.c.l.b16 %v46
  %v409 = vunpack.c.l.b16 %v47
  %v410 = vunpack.c.l.b16 %v48
  %v411 = vunpack.c.l.b16 %v49
  %v412 = vunpack.c.l.b16 %v50
  %v413 = vunpack.c.l.b16 %v51
  %v414 = vunpack.c.l.b16 %v52
  %v415 = vunpack.c.l.b16 %v53
  %v416 = vunpack.c.l.b16 %v54
  %v417 = vunpack.c.l.b16 %v55
  %v418 = vunpack.c.l.b16 %v56
  %v419 = vunpack.c.l.b16 %v57
  %v420 = vunpack.c.l.b16 %v58
  %v421 = vunpack.c.l.b16 %v59
  %v422 = vunpack.c.l.b16 %v60
  %v423 = vunpack.c.l.b16 %v61
  %v424 = vunpack.c.l.b16 %v62
  %v425 = vunpack.c.l.b16 %v63
  %v426 = vunpack.c.l.b16 %v64
  %v427 = vunpack.c.l.b16 %v65
  %v428 = vunpack.c.l.b16 %v66
  %v429 = vunpack.c.l.b16 %v67
  %v430 = vunpack.c.l.b16 %v68
  %v431 = vunpack.c.l.b16 %v69
  %v432 = vunpack.c.l.b16 %v70
  %v433 = vunpack.c.l.b16 %v71
  %v434 = vunpack.c.l.b16 %v72
  %v435 = vunpack.c.l.b16 %v73
  %v436 = vunpack.c.l.b16 %v74
  %v437 = vunpack.c.l.b16 %v75
  %v438 = vunpack.c.l.b16 %v76
  %v439 = vunpack.c.l.b16 %v77
  %v440 = vunpack.c.l.b16 %v78
  %v441 = vunpack.c.l.b16 %v79
  %v442 = vunpack.c.l.b16 %v80
  %v443 = vunpack.c.l.b16 %v81
  %v444 = vunpack.c.l.b16 %v82
  %v445 = vunpack.c.l.b16 %v83
  %v446 = vunpack.c.l.b16 %v84
  %v447 = vunpack.c.l.b16 %v85
  %v448 = vunpack.c.l.b16 %v86
  %v449 = vunpack.c.l.b16 %v87
  %v450 = vunpack.c.l.b16 %v88
  %v451 = vunpack.c.l.b16 %v89
  %v452 = vunpack.c.l.b16 %v90
  %v453 = vunpack.c.l.b16 %v91
  %v454 = vunpack.c.l.b16 %v92
  %v455 = vunpack.c.l.b16 %v93
  %v456 = vunpack.c.l.b16 %v94
  %v457 = vunpack.c.l.b16 %v95
  %v458 = vunpack.c.l.b16 %v96
  %v459 = vunpack.c.l.b16 %v97
  %v460 = vunpack.c.l.b16 %v98
  %v461 = vunpack.c.l.b16 %v99
  %v462 = vunpack.c.l.b16 %v100
  %v463 = vunpack.c.l.b16 %v101
  %v464 = vunpack.c.l.b16 %v102
  %v465 = vunpack.c.l.b16 %v103
  %v466 = vunpack.c.l.b16 %v104
  %v467 = vunpack.c.l.b16 %v105
  %v468 = vunpack.c.l.b16 %v106
  %v469 = vunpack.c.l.b16 %v107
  %v470 = vunpack.c.l.b16 %v108
  %v471 = vunpack.c.l.b16 %v109
  %v472 = vunpack.c.l.b16 %v110
  %v473 = vunpack.c.l.b16 %v111
  %v474 = vunpack.c.l.b16 %v112
  %v475 = vunpack.c.l.b16 %v113
  %v476 = vunpack.c.l.b16 %v114
  %v477 = vunpack.c.l.b16 %v115
  %v478 = vunpack.c.l.b16 %v116
  %v479 = vunpack.c.l.b16 %v117
  %v480 = vunpack.c.l.b16 %v118
  %v481 = vunpack.c.l.b16 %v119
  %v482 = vunpack.c.l.b16 %v120
  %v483 = vunpack.c.l.b16 %v121
  %v484 = vunpack.c.l.b16 %v122
  %v485 = vunpack.c.l.b16 %v123
  %v486 = vunpack.c.l.b16 %v124
  %v487 = vunpack.c.l.b16 %v125
  %v488 = vunpack.c.l.b16 %v126
  %v489 = vunpack.c.l.b16 %v127
  %v490 = vunpack.c.l.b16 %v128
  %v491 = vunpack.c.l.b16 %v129
  %v492 = vunpack.c.l.b16 %v130
  %v493 = vunpack.c.l.b16 %v131
  %v494 = vunpack.c.l.b16 %v132
  %v495 = vunpack.c.l.b16 %v133
  %v496 = vunpack.c.l.b16 %v134
  %v497 = vunpack.c.l.b16 %v135
  %v498 = vunpack.c.l.b16 %v136
  %v499 = vunpack.c.l.b16 %v137
  %v500 = vunpack.c.l.b16 %v138
  %v501 = vunpack.c.l.b16 %v139
  %v502 = vunpack.c.l.b16 %v140
  %v503 = vunpack.c.l.b16 %v141
  %v504 = vunpack.c.l.b16 %v142
  %v505 = vunpack.c.l.b16 %v143
  %v506 = vunpack.c.l.b16 %v144
  %v507 = vunpack.c.l.b16 %v145
  %v508 = vunpack.c.l.b16 %v146
  %v509 = vunpack.c.l.b16 %v147
  %v510 = vunpack.c.l.b16 %v148
  %v511 = vunpack.c.l.b16 %v149
  %v512 = vunpack.c.l.b16 %v150
  %v513 = vunpack.c.l.b16 %v151
  %v514 = vunpack.c.l.b16 %v152
  %v515 = vunpack.c.l.b16 %v153
  %v516 = vunpack.c.l.b16 %v154
  %v517 = vunpack.c.l.b16 %v155
  %v518 = vunpack.c.l.b16 %v156
  %v519 = vunpack.c.l.b16 %v157
  %v520 = vunpack.c.l.b16 %v158
  %v521 = vunpack.c.l.b16 %v159
  %v522 = vunpack.c.l.b16 %v160
  %v523 = vunpack.c.l.b16 %v161
  %v524 = vunpack.c.l.b16 %v162
  %v525 = vunpack.c.l.b16 %v163
  %v526 = vunpack.c.l.b16 %v164
  %v527 = vunpack.c.l.b16 %v165
  %v528 = vunpack.c.l.b16 %v166
  %v529 = vpack.c.b16 %v386, %v385
  %v530 = vpack.c.b16 %v388, %v387
  %v531 = vpack.c.b16 %v390, %v389
  %v532 = vpack.c.b16 %v392, %v391
  %v533 = vpack.c.b16 %v394, %v393
  %v534 = vpack.c.b16 %v396, %v395
  %v535 = vpack.c.b16 %v398, %v397
  %v536 = vpack.c.b16 %v400, %v399
  %v537 = vpack.c.b16 %v402, %v401
  %v538 = vpack.c.b16 %v404, %v403
  %v539 = vpack.c.b16 %v406, %v405
  %v540 = vpack.c.b16 %v408, %v407
  %v541 = vpack.c.b16 %v410, %v409
  %v542 = vpack.c.b16 %v412, %v411
  %v543 = vpack.c.b16 %v414, %v413
  %v544 = vpack.c.b16 %v416, %v415
  %v545 = vpack.c.b16 %v418, %v417
  %v546 = vpack.c.b16 %v420, %v419
  %v547 = vpack.c.b16 %v422, %v421
  %v548 = vpack.c.b16 %v424, %v423
  %v549 = vpack.c.b16 %v426, %v425
  %v550 = vpack.c.b16 %v428, %v427
  %v551 = vpack.c.b16 %v430, %v429
  %v552 = vpack.c.b16 %v432, %v431
  %v553 = vpack.c.b16 %v434, %v433
  %v554 = vpack.c.b16 %v436, %v435
  %v555 = vpack.c.b16 %v438, %v437
  %v556 = vpack.c.b16 %v440, %v439
  %v557 = vpack.c.b16 %v442, %v441
  %v558 = vpack.c.b16 %v444, %v443
  %v559 = vpack.c.b16 %v446, %v445
  %v560 = vpack.c.b16 %v448, %v447
  %v561 = vpack.c.b16 %v450, %v449
  %v562 = vpack.c.b16 %v452, %v451
  %v563 = vpack.c.b16 %v454, %v453
  %v564 = vpack.c.b16 %v456, %v455
  %v565 = vpack.c.b16 %v458, %v457
  %v566 = vpack.c.b16 %v460, %v459
  %v567 = vpack.c.b16 %v462, %v461
  %v568 = vpack.c.b16 %v464, %v463
  %v569 = vpack.c.b16 %v466, %v465
  %v570 = vpack.c.b16 %v468, %v467
  %v571 = vpack.c.b16 %v470, %v469
  %v572 = vpack.c.b16 %v472, %v471
  %v573 = vpack.c.b16 %v474, %v473
  %v574 = vpack.c.b16 %v476, %v475
  %v575 = vpack.c.b16 %v478, %v477
  %v576 = vpack.c.b16 %v480, %v479
  %v577 = vpack.c.b16 %v482, %v481
  %v578 = vpack.c.b16 %v484, %v483
  %v579 = vpack.c.b16 %v486, %v485
  %v580 = vpack.c.b16 %v488, %v487
  %v581 = vpack.c.b16 %v490, %v489
  %v582 = vpack.c.b16 %v492, %v491
  %v583 = vpack.c.b16 %v494, %v493
  %v584 = vpack.c.b16 %v496, %v495
  %v585 = vpack.c.b16 %v498, %v497
  %v586 = vpack.c.b16 %v500, %v499
  %v587 = vpack.c.b16 %v502, %v501
  %v588 = vpack.c.b16 %v504, %v503
  %v589 = vpack.c.b16 %v506, %v505
  %v590 = vpack.c.b16 %v508, %v507
  %v591 = vpack.c.b16 %v510, %v509
  %v592 = vpack.c.b16 %v512, %v511
  %v593 = vpack.c.b16 %v514, %v513
  %v594 = vpack.c.b16 %v516, %v515
  %v595 = vpack.c.b16 %v518, %v517
  %v596 = vpack.c.b16 %v520, %v519
  %v597 = vpack.c.b16 %v522, %v521
  %v598 = vpack.c.b16 %v524, %v523
  %v599 = vpack.c.b16 %v526, %v525
  %v600 = vpack.c.b16 %v528, %v527
  %673 = vmatprep.subr.bf16.mxu0 0
  %674 = vmatpush1.bf16.msra.mxu0 %v529
  %675 = vmatprep.subr.bf16.mxu0 0
  %676 = vmatpush1.bf16.msra.mxu0 %v530
  %677 = vmatprep.subr.bf16.mxu0 0
  %678 = vmatpush1.bf16.msra.mxu0 %v531
  %679 = vmatprep.subr.bf16.mxu0 0
  %680 = vmatpush1.bf16.msra.mxu0 %v532
  %681 = vmatprep.subr.bf16.mxu0 0
  %682 = vmatpush1.bf16.msra.mxu0 %v533
  %683 = vmatprep.subr.bf16.mxu0 0
  %684 = vmatpush1.bf16.msra.mxu0 %v534
  %685 = vmatprep.subr.bf16.mxu0 0
  %686 = vmatpush1.bf16.msra.mxu0 %v535
  %687 = vmatprep.subr.bf16.mxu0 0
  %688 = vmatpush1.bf16.msra.mxu0 %v536
  %689 = vmatprep.subr.bf16.mxu0 0
  %690 = vmatpush1.bf16.msra.mxu0 %v537
  %691 = vmatprep.subr.bf16.mxu0 0
  %692 = vmatpush1.bf16.msra.mxu0 %v538
  %693 = vmatprep.subr.bf16.mxu0 0
  %694 = vmatpush1.bf16.msra.mxu0 %v539
  %695 = vmatprep.subr.bf16.mxu0 0
  %696 = vmatpush1.bf16.msra.mxu0 %v540
  %697 = vmatprep.subr.bf16.mxu0 0
  %698 = vmatpush1.bf16.msra.mxu0 %v541
  %699 = vmatprep.subr.bf16.mxu0 0
  %700 = vmatpush1.bf16.msra.mxu0 %v542
  %701 = vmatprep.subr.bf16.mxu0 0
  %702 = vmatpush1.bf16.msra.mxu0 %v543
  %703 = vmatprep.subr.bf16.mxu0 0
  %704 = vmatpush1.bf16.msra.mxu0 %v544
  %705 = vmatprep.mubr.bf16.mxu0 %v206
  %706 = vmatmul.mubr.bf16.gmra.mrb[0].mxu0 %v192
  %v707 = vpop.f32.mrb[0].mxu0
  %v708 = vadd.f32 0.0, %v707
  %v709 = vpop.f32.mrb[0].mxu0
  %v710 = vpop.f32.mrb[0].mxu0
  %v711 = vpop.f32.mrb[0].mxu0
  %712 = vdwg.mxu0
  %713 = vmatprep.subr.bf16.mxu0 0
  %714 = vmatpush1.bf16.msra.mxu0 %v545
  %715 = vmatprep.subr.bf16.mxu0 0
  %716 = vmatpush1.bf16.msra.mxu0 %v546
  %717 = vmatprep.subr.bf16.mxu0 0
  %718 = vmatpush1.bf16.msra.mxu0 %v547
  %719 = vmatprep.subr.bf16.mxu0 0
  %720 = vmatpush1.bf16.msra.mxu0 %v548
  %721 = vmatprep.subr.bf16.mxu0 0
  %722 = vmatpush1.bf16.msra.mxu0 %v549
  %723 = vmatprep.subr.bf16.mxu0 0
  %724 = vmatpush1.bf16.msra.mxu0 %v550
  %725 = vmatprep.subr.bf16.mxu0 0
  %726 = vmatpush1.bf16.msra.mxu0 %v551
  %727 = vmatprep.subr.bf16.mxu0 0
  %728 = vmatpush1.bf16.msra.mxu0 %v552
  %729 = vmatprep.subr.bf16.mxu0 0
  %730 = vmatpush1.bf16.msra.mxu0 %v553
  %731 = vmatprep.subr.bf16.mxu0 0
  %732 = vmatpush1.bf16.msra.mxu0 %v554
  %733 = vmatprep.subr.bf16.mxu0 0
  %734 = vmatpush1.bf16.msra.mxu0 %v555
  %735 = vmatprep.subr.bf16.mxu0 0
  %736 = vmatpush1.bf16.msra.mxu0 %v556
  %737 = vmatprep.subr.bf16.mxu0 0
  %738 = vmatpush1.bf16.msra.mxu0 %v557
  %739 = vmatprep.subr.bf16.mxu0 0
  %740 = vmatpush1.bf16.msra.mxu0 %v558
  %741 = vmatprep.subr.bf16.mxu0 0
  %742 = vmatpush1.bf16.msra.mxu0 %v559
  %743 = vmatprep.subr.bf16.mxu0 0
  %744 = vmatpush1.bf16.msra.mxu0 %v560
  %745 = vmatprep.mubr.bf16.mxu0 %v216
  %746 = vmatmul.mubr.bf16.gmra.mrb[0].mxu0 %v214
  %v747 = vpop.f32.mrb[0].mxu0
  %v748 = vadd.f32 %v708, %v747
  %v749 = vpop.f32.mrb[0].mxu0
  %v750 = vpop.f32.mrb[0].mxu0
  %v751 = vpop.f32.mrb[0].mxu0
  %752 = vdwg.mxu0
  %753 = vmatprep.subr.bf16.mxu0 0
  %754 = vmatpush1.bf16.msra.mxu0 %v561
  %755 = vmatprep.subr.bf16.mxu0 0
  %756 = vmatpush1.bf16.msra.mxu0 %v562
  %757 = vmatprep.subr.bf16.mxu0 0
  %758 = vmatpush1.bf16.msra.mxu0 %v563
  %759 = vmatprep.subr.bf16.mxu0 0
  %760 = vmatpush1.bf16.msra.mxu0 %v564
  %761 = vmatprep.subr.bf16.mxu0 0
  %762 = vmatpush1.bf16.msra.mxu0 %v565
  %763 = vmatprep.subr.bf16.mxu0 0
  %764 = vmatpush1.bf16.msra.mxu0 %v566
  %765 = vmatprep.subr.bf16.mxu0 0
  %766 = vmatpush1.bf16.msra.mxu0 %v567
  %767 = vmatprep.subr.bf16.mxu0 0
  %768 = vmatpush1.bf16.msra.mxu0 %v568
  %769 = vmatprep.subr.bf16.mxu0 0
  %770 = vmatpush1.bf16.msra.mxu0 %v569
  %771 = vmatprep.subr.bf16.mxu0 0
  %772 = vmatpush1.bf16.msra.mxu0 %v570
  %773 = vmatprep.subr.bf16.mxu0 0
  %774 = vmatpush1.bf16.msra.mxu0 %v571
  %775 = vmatprep.subr.bf16.mxu0 0
  %776 = vmatpush1.bf16.msra.mxu0 %v572
  %777 = vmatprep.subr.bf16.mxu0 0
  %778 = vmatpush1.bf16.msra.mxu0 %v573
  %779 = vmatprep.subr.bf16.mxu0 0
  %780 = vmatpush1.bf16.msra.mxu0 %v574
  %781 = vmatprep.subr.bf16.mxu0 0
  %782 = vmatpush1.bf16.msra.mxu0 %v575
  %783 = vmatprep.subr.bf16.mxu0 0
  %784 = vmatpush1.bf16.msra.mxu0 %v576
  %785 = vmatprep.mubr.bf16.mxu0 %v213
  %786 = vmatmul.mubr.bf16.gmra.mrb[0].mxu0 %v199
  %v787 = vpop.f32.mrb[0].mxu0
  %v788 = vadd.f32 %v748, %v787
  %v789 = vpop.f32.mrb[0].mxu0
  %v790 = vpop.f32.mrb[0].mxu0
  %v791 = vpop.f32.mrb[0].mxu0
  %792 = vdwg.mxu0
  %793 = vmatprep.subr.bf16.mxu0 0
  %794 = vmatpush1.bf16.msra.mxu0 %v577
  %795 = vmatprep.subr.bf16.mxu0 0
  %796 = vmatpush1.bf16.msra.mxu0 %v578
  %797 = vmatprep.subr.bf16.mxu0 0
  %798 = vmatpush1.bf16.msra.mxu0 %v579
  %799 = vmatprep.subr.bf16.mxu0 0
  %800 = vmatpush1.bf16.msra.mxu0 %v580
  %801 = vmatprep.subr.bf16.mxu0 0
  %802 = vmatpush1.bf16.msra.mxu0 %v581
  %803 = vmatprep.subr.bf16.mxu0 0
  %804 = vmatpush1.bf16.msra.mxu0 %v582
  %805 = vmatprep.subr.bf16.mxu0 0
  %806 = vmatpush1.bf16.msra.mxu0 %v583
  %807 = vmatprep.subr.bf16.mxu0 0
  %808 = vmatpush1.bf16.msra.mxu0 %v584
  %809 = vmatprep.subr.bf16.mxu0 0
  %810 = vmatpush1.bf16.msra.mxu0 %v585
  %811 = vmatprep.subr.bf16.mxu0 0
  %812 = vmatpush1.bf16.msra.mxu0 %v586
  %813 = vmatprep.subr.bf16.mxu0 0
  %814 = vmatpush1.bf16.msra.mxu0 %v587
  %815 = vmatprep.subr.bf16.mxu0 0
  %816 = vmatpush1.bf16.msra.mxu0 %v588
  %817 = vmatprep.subr.bf16.mxu0 0
  %818 = vmatpush1.bf16.msra.mxu0 %v589
  %819 = vmatprep.subr.bf16.mxu0 0
  %820 = vmatpush1.bf16.msra.mxu0 %v590
  %821 = vmatprep.subr.bf16.mxu0 0
  %822 = vmatpush1.bf16.msra.mxu0 %v591
  %823 = vmatprep.subr.bf16.mxu0 0
  %824 = vmatpush1.bf16.msra.mxu0 %v592
  %825 = vmatprep.mubr.bf16.mxu0 %v217
  %826 = vmatmul.mubr.bf16.gmra.mrb[0].mxu0 %v215
  %v827 = vpop.f32.mrb[0].mxu0
  %v828 = vadd.f32 %v788, %v827
  %v829 = vpop.f32.mrb[0].mxu0
  %v830 = vpop.f32.mrb[0].mxu0
  %v831 = vpop.f32.mrb[0].mxu0
  %832 = vdwg.mxu0
  %833 = vmatprep.subr.bf16.mxu0 0
  %834 = vmatpush1.bf16.msra.mxu0 %v593
  %835 = vmatprep.subr.bf16.mxu0 0
  %836 = vmatpush1.bf16.msra.mxu0 %v594
  %837 = vmatprep.subr.bf16.mxu0 0
  %838 = vmatpush1.bf16.msra.mxu0 %v595
  %839 = vmatprep.subr.bf16.mxu0 0
  %840 = vmatpush1.bf16.msra.mxu0 %v596
  %841 = vmatprep.subr.bf16.mxu0 0
  %842 = vmatpush1.bf16.msra.mxu0 %v597
  %843 = vmatprep.subr.bf16.mxu0 0
  %844 = vmatpush1.bf16.msra.mxu0 %v598
  %845 = vmatprep.subr.bf16.mxu0 0
  %846 = vmatpush1.bf16.msra.mxu0 %v599
  %847 = vmatprep.subr.bf16.mxu0 0
  %848 = vmatpush1.bf16.msra.mxu0 %v600
  %849 = vmatprep.subr.bf16.mxu0 0
  %850 = vmatpush1.bf16.msra.mxu0 0
  %851 = vmatprep.subr.bf16.mxu0 0
  %852 = vmatpush1.bf16.msra.mxu0 0
  %853 = vmatprep.subr.bf16.mxu0 0
  %854 = vmatpush1.bf16.msra.mxu0 0
  %855 = vmatprep.subr.bf16.mxu0 0
  %856 = vmatpush1.bf16.msra.mxu0 0
  %857 = vmatprep.subr.bf16.mxu0 0
  %858 = vmatpush1.bf16.msra.mxu0 0
  %859 = vmatprep.subr.bf16.mxu0 0
  %860 = vmatpush1.bf16.msra.mxu0 0
  %861 = vmatprep.subr.bf16.mxu0 0
  %862 = vmatpush1.bf16.msra.mxu0 0
  %863 = vmatprep.subr.bf16.mxu0 0
  %864 = vmatpush1.bf16.msra.mxu0 0
  %865 = vmatprep.mubr.bf16.mxu0 0
  %866 = vmatmul.mubr.bf16.gmra.mrb[0].mxu0 %v231
  %v867 = vpop.f32.mrb[0].mxu0
  %v868 = vadd.f32 %v828, %v867
  %v869 = vpop.f32.mrb[0].mxu0
  %v870 = vpop.f32.mrb[0].mxu0
  %v871 = vpop.f32.mrb[0].mxu0
  %872 = vdwg.mxu0
  %v873 = vld [vmem:[%s2] sm:$0x1]
  %v875 = vlaneseq
  %v876 = vshrl.u32 %v875, 7
  %v877 = vsub.s32 0, %v876
  %v878 = vrot.slane %v873, %v877
  %v880 = vmul.f32 %v868, %v878
  %v881 = vld [vmem:[%s3] sm:$0x1]
  %v883 = vlaneseq
  %v884 = vshrl.u32 %v883, 7
  %v885 = vsub.s32 0, %v884
  %v886 = vrot.slane %v881, %v885
  %v888 = vadd.f32 %v880, %v886
  %v889 = vld [vmem:[%s4] sm:$0x1]
  %v890 = vunpack.c.l.bf16 %v889
  %v891 = vadd.f32 %v888, %v890
  %v892 = vmax.f32 %v891, 0.0
  %v893 = vpack.c.bf16 %v892, %v892
  %894 = vst [vmem:[%s5] sm:$0x1] %v893
  // Predicated region
  $region22: #{_lambda_.40} parent=0 // pred_check
    _
  $region23: #{_lambda_.40} parent=0 // pred_check_branch
    %896 = sbr.rel (0) target = $region25
  $region24: #{_lambda_.40} parent=0 // pred_region
    _
  $region25: #{_lambda_.40} parent=0 // pred_fallthru
    _
  // Predicated region
  $region26: #{_lambda_.40} parent=0 // pred_check
    _
  $region27: #{_lambda_.40} parent=0 // pred_check_branch
    %898 = sbr.rel (0) target = $region29
  $region28: #{_lambda_.40} parent=0 // pred_region
    _
  $region29: #{_lambda_.40} parent=0 // pred_fallthru
    _

// kernel: _lambda_.43
$region0: #{_lambda_.43}
  #allocation0 [shape = 'u32[]', space=smem, size = 0x4, offset = 0x4, fixed_abs, tag = 'smem constant byte address 0x4 - core index']
  #allocation1 [shape = 'u32[144,128]{1,0:T(1,128)}', space=vmem, size = 0x12000, scoped, tag = 'internal scratch']
  %s0 = inlined_call_operand.vmem [shape: bf16[2,128], index: 0, kind: input, shape index: {}]
  %s1 = inlined_call_operand.vmem [shape: f32[128,128], index: 1, kind: input, shape index: {}]
  %s2 = inlined_call_operand.hbm [shape: f32[2,128], index: 2, kind: output, shape index: {}]
  %s3 = sld [smem:[#allocation0]]
  $region18: #{_lambda_.43} parent=0
    _
  %s5 = ssub.s32 1, %s3
  %s6 = scalar_select 0, %s5, %s3
  $region1: #{_lambda_.43} parent=0
    #allocation2 [shape = 'u8[1024]{0}', space=vmem, size = 0x400, scoped, tag = 'output window, operand 0, single buffered']
    #allocation3 [shape = 's32[1]{0}', space=sflag, size = 0x4, scoped, tag = 'scoped memory for _lambda_.43']
    %7 = vsyncpa [#allocation3], 0
    // Predicated region
    $region2: #{_lambda_.43} parent=1 // pred_check
      _
    $region3: #{_lambda_.43} parent=1 // pred_check_branch
      %9 = sbr.rel (0) target = $region5
    $region4: #{_lambda_.43} parent=1 // pred_region
      _
    $region5: #{_lambda_.43} parent=1 // pred_fallthru
      _
    // Predicated region
    $region6: #{_lambda_.43} parent=1 // pred_check
      _
    $region7: #{_lambda_.43} parent=1 // pred_check_branch
      %11 = sbr.rel (0) target = $region9
    $region8: #{_lambda_.43} parent=1 // pred_region
      _
    $region9: #{_lambda_.43} parent=1 // pred_fallthru
      _
    %v12 = vld [vmem:[%s0] sm:$0x1]
    %v13 = vunpack.c.l.bf16 %v12
    %v14 = vld [vmem:[%s1] sm:$0xff]
    %v15 = vld [vmem:[%s1 + $0x8] sm:$0xff]
    %v16 = vld [vmem:[%s1 + $0x10] sm:$0xff]
    %v17 = vld [vmem:[%s1 + $0x18] sm:$0xff]
    %v18 = vld [vmem:[%s1 + $0x20] sm:$0xff]
    %v19 = vld [vmem:[%s1 + $0x28] sm:$0xff]
    %v20 = vld [vmem:[%s1 + $0x30] sm:$0xff]
    %v21 = vld [vmem:[%s1 + $0x38] sm:$0xff]
    %v22 = vld [vmem:[%s1 + $0x40] sm:$0xff]
    %v23 = vld [vmem:[%s1 + $0x48] sm:$0xff]
    %v24 = vld [vmem:[%s1 + $0x50] sm:$0xff]
    %v25 = vld [vmem:[%s1 + $0x58] sm:$0xff]
    %v26 = vld [vmem:[%s1 + $0x60] sm:$0xff]
    %v27 = vld [vmem:[%s1 + $0x68] sm:$0xff]
    %v28 = vld [vmem:[%s1 + $0x70] sm:$0xff]
    %v29 = vld [vmem:[%s1 + $0x78] sm:$0xff]
    %30 = vmatprep.subr.mxu0 0.0
    %31 = vmatpush1.msra.mxu0 %v14
    %32 = vmatprep.subr.mxu0 0.0
    %33 = vmatpush1.msra.mxu0 %v15
    %34 = vmatprep.subr.mxu0 0.0
    %35 = vmatpush1.msra.mxu0 %v16
    %36 = vmatprep.subr.mxu0 0.0
    %37 = vmatpush1.msra.mxu0 %v17
    %38 = vmatprep.subr.mxu0 0.0
    %39 = vmatpush1.msra.mxu0 %v18
    %40 = vmatprep.subr.mxu0 0.0
    %41 = vmatpush1.msra.mxu0 %v19
    %42 = vmatprep.subr.mxu0 0.0
    %43 = vmatpush1.msra.mxu0 %v20
    %44 = vmatprep.subr.mxu0 0.0
    %45 = vmatpush1.msra.mxu0 %v21
    %46 = vmatprep.subr.mxu0 0.0
    %47 = vmatpush1.msra.mxu0 %v22
    %48 = vmatprep.subr.mxu0 0.0
    %49 = vmatpush1.msra.mxu0 %v23
    %50 = vmatprep.subr.mxu0 0.0
    %51 = vmatpush1.msra.mxu0 %v24
    %52 = vmatprep.subr.mxu0 0.0
    %53 = vmatpush1.msra.mxu0 %v25
    %54 = vmatprep.subr.mxu0 0.0
    %55 = vmatpush1.msra.mxu0 %v26
    %56 = vmatprep.subr.mxu0 0.0
    %57 = vmatpush1.msra.mxu0 %v27
    %58 = vmatprep.subr.mxu0 0.0
    %59 = vmatpush1.msra.mxu0 %v28
    %60 = vmatprep.subr.mxu0 0.0
    %61 = vmatpush1.msra.mxu0 %v29
    %62 = vmatprep.subr.mxu0 0.0
    %63 = vmatpush1.msra.mxu0 0.0
    %64 = vmatprep.subr.mxu0 0.0
    %65 = vmatpush1.msra.mxu0 0.0
    %66 = vmatprep.subr.mxu0 0.0
    %67 = vmatpush1.msra.mxu0 0.0
    %68 = vmatprep.subr.mxu0 0.0
    %69 = vmatpush1.msra.mxu0 0.0
    %70 = vmatprep.subr.mxu0 0.0
    %71 = vmatpush1.msra.mxu0 0.0
    %72 = vmatprep.subr.mxu0 0.0
    %73 = vmatpush1.msra.mxu0 0.0
    %74 = vmatprep.subr.mxu0 0.0
    %75 = vmatpush1.msra.mxu0 0.0
    %76 = vmatprep.subr.mxu0 0.0
    %77 = vmatpush1.msra.mxu0 0.0
    %78 = vmatprep.subr.mxu0 0.0
    %79 = vmatpush1.msra.mxu0 0.0
    %80 = vmatprep.subr.mxu0 0.0
    %81 = vmatpush1.msra.mxu0 0.0
    %82 = vmatprep.subr.mxu0 0.0
    %83 = vmatpush1.msra.mxu0 0.0
    %84 = vmatprep.subr.mxu0 0.0
    %85 = vmatpush1.msra.mxu0 0.0
    %86 = vmatprep.subr.mxu0 0.0
    %87 = vmatpush1.msra.mxu0 0.0
    %88 = vmatprep.subr.mxu0 0.0
    %89 = vmatpush1.msra.mxu0 0.0
    %90 = vmatprep.subr.mxu0 0.0
    %91 = vmatpush1.msra.mxu0 0.0
    %92 = vmatprep.subr.mxu0 0.0
    %93 = vmatpush1.msra.mxu0 0.0
    %94 = vmatprep.mubr.f32.mxu0 0.0
    %95 = vmatmul.mubr.f32.gmra.mrb[0].mxu0 %v13
    %v96 = vpop.f32.mrb[0].mxu0
    %v97 = vadd.f32 0.0, %v96
    %v98 = vpop.f32.mrb[0].mxu0
    %99 = vdwg.mxu0
    %100 = vst [vmem:[#allocation2] sm:$0x3] %v97
    // Predicated region
    $region10: #{_lambda_.43} parent=1 // pred_check
      _
    $region11: #{_lambda_.43} parent=1 // pred_check_branch
      %102 = sbr.rel (0) target = $region13
    $region12: #{_lambda_.43} parent=1 // pred_region
      %s104 = ssub.s32 32, 32
      %105 = vsyncadd [#allocation3], %s104
      %s107 = sshll.u32 [#allocation2], 4
      %s108 = int_to_ptr.vmem [resolvable:$true] %s107
      %110 = dma.vmem_to_hbm [thread:$0]  %s108, 32, %s2, [#allocation3]
    $region13: #{_lambda_.43} parent=1 // pred_fallthru
      _
    // Predicated region
    $region14: #{_lambda_.43} parent=1 // pred_check
      _
    $region15: #{_lambda_.43} parent=1 // pred_check_branch
      %112 = sbr.rel (0) target = $region17
    $region16: #{_lambda_.43} parent=1 // pred_region
      %113 = dma.done [#allocation3], 32
    $region17: #{_lambda_.43} parent=1 // pred_fallthru
      _
    %114 = vsyncpa [#allocation3], 1

</llo_original>
